<compile_context>
chip_gen: v7x
topology: tpu7x:2x2x1
jax: 0.10.0
libtpu: 0.0.40
codegen_flags: <defaults>
</compile_context>

<pallas_src>
import jax
import jax.numpy as jnp
from jax import lax
from jax.experimental import pallas as pl
from jax.experimental.pallas import tpu as pltpu

EPS = 1e-5          # PyTorch BatchNorm2d default eps
NEG_SLOPE = 0.2     # LeakyReLU(0.2)

# Static layer geometry implied by the module (input patches are 33x33):
#   conv(1->4,k4,s2,p1): 33x33 -> 16x16   conv(4->4,k4,s2,p1): 16x16 -> 8x8
#   conv(4->4,k4,s2,p1):  8x8  ->  4x4    conv(4->1,k4,s1,p0):  4x4  -> 1x1
_P1_PAD = 1152      # layer-1 contraction dim 33*33=1089, zero-padded to a 128 multiple


def _vmem_spec():
    return pl.BlockSpec(memory_space=pltpu.MemorySpace.VMEM)


def _smem_spec():
    return pl.BlockSpec(memory_space=pltpu.MemorySpace.SMEM)


# ---------------------------------------------------------------------------
# Fused Pallas kernel: whole Discr forward in one launch
# ---------------------------------------------------------------------------
def _discr_fused_kernel(x_ref, a1_ref, a2_ref, a3_ref, a4_ref, gamma_ref, beta_ref,
                        o_ref, act1_ref, act2_ref, act3_ref):
    """Fused Discr forward.

    x_ref   : [1152, N] bf16  zero-padded input; column n = flattened 33x33 patch n
    a1..a4  : dense conv matrices (bf16): [1024,1152], [256,1024], [64,256], [8,64]
              (a4 is the real [1,64] row zero-padded to 8 rows)
    gamma_ref, beta_ref : [3, 4] f32 in SMEM (per-layer, per-channel BN affine)
    o_ref   : [1, N] f32 sigmoid output
    actK_ref: bf16 VMEM scratch for post-BN/LeakyReLU activations, layout [C*H*W, N]
    """

    def conv(a_ref, act_ref):
        # bf16 x bf16 MXU matmul, f32 accumulation.
        return jnp.dot(a_ref[...], act_ref[...], preferred_element_type=jnp.float32)

    def bn_lrelu_store(y, layer, num_ch, p, out_scr):
        # y: [num_ch * p, N] f32 raw conv output. Training-mode BatchNorm2d:
        # per-channel mean / biased variance over (N, H, W) == over the [p, N]
        # row block (full lane + sublane reduction), then affine + LeakyReLU.
        for c in range(num_ch):
            blk = y[c * p:(c + 1) * p, :]
            mean = jnp.mean(blk)
            var = jnp.mean(jnp.square(blk - mean))            # biased variance
            scale = gamma_ref[layer, c] * lax.rsqrt(var + EPS)
            shift = beta_ref[layer, c] - mean * scale
            yn = blk * scale + shift
            out_scr[c * p:(c + 1) * p, :] = jnp.where(
                yn > 0, yn, NEG_SLOPE * yn).astype(out_scr.dtype)

    bn_lrelu_store(conv(a1_ref, x_ref), 0, 4, 256, act1_ref)    # [4*16*16, N]
    bn_lrelu_store(conv(a2_ref, act1_ref), 1, 4, 64, act2_ref)  # [4*8*8,  N]
    bn_lrelu_store(conv(a3_ref, act2_ref), 2, 4, 16, act3_ref)  # [4*4*4,  N]
    y4 = conv(a4_ref, act3_ref)                                 # [8, N]; only row 0 is real
    o_ref[...] = jax.nn.sigmoid(y4[0:1, :])                     # [1, N]


# ---------------------------------------------------------------------------
# Weight preprocessing: lower a Conv2d to a dense matrix on flattened layouts
# ---------------------------------------------------------------------------
def _conv_to_matrix(w, h_in, w_in, stride, pad):
    """Conv2d weight [C_out, C_in, KH, KW] -> A [C_out*Ho*Wo, C_in*H_in*W_in] such
    that, for activations stored as [C*H*W, N], the (cross-correlation) conv with
    zero padding is exactly A @ act."""
    c_out, c_in, kh, kw = w.shape
    h_out = (h_in + 2 * pad - kh) // stride + 1
    w_out = (w_in + 2 * pad - kw) // stride + 1
    p_in, p_out = h_in * w_in, h_out * w_out

    ih = jnp.arange(h_out)[:, None] * stride - pad + jnp.arange(kh)[None, :]   # [Ho, KH]
    iw = jnp.arange(w_out)[:, None] * stride - pad + jnp.arange(kw)[None, :]   # [Wo, KW]
    vh = (ih >= 0) & (ih < h_in)
    vw = (iw >= 0) & (iw < w_in)
    ih = jnp.clip(ih, 0, h_in - 1)
    iw = jnp.clip(iw, 0, w_in - 1)

    shape6 = (c_out, h_out, w_out, c_in, kh, kw)
    rows = (jnp.arange(c_out).reshape(c_out, 1, 1, 1, 1, 1) * p_out
            + jnp.arange(h_out).reshape(1, h_out, 1, 1, 1, 1) * w_out
            + jnp.arange(w_out).reshape(1, 1, w_out, 1, 1, 1))
    cols = (jnp.arange(c_in).reshape(1, 1, 1, c_in, 1, 1) * p_in
            + ih.reshape(1, h_out, 1, 1, kh, 1) * w_in
            + iw.reshape(1, 1, w_out, 1, 1, kw))
    vals = (w[:, None, None, :, :, :]
            * (vh.reshape(1, h_out, 1, 1, kh, 1)
               & vw.reshape(1, 1, w_out, 1, 1, kw)).astype(w.dtype))
    a = jnp.zeros((c_out * p_out, c_in * p_in), w.dtype)
    return a.at[jnp.broadcast_to(rows, shape6).reshape(-1),
                jnp.broadcast_to(cols, shape6).reshape(-1)].add(vals.reshape(-1))


# ---------------------------------------------------------------------------
# Discr.forward
# ---------------------------------------------------------------------------
@jax.jit
def discr_forward(x, params):
    """x: [1089, N] (same layout as the torch input). Returns [N, 1] sigmoid scores."""
    w1, w2, w3, w4, gamma, beta = params
    n = x.shape[1]

    # Weight preprocessing (pure XLA, tiny): conv -> dense matmul matrices, bf16.
    a1 = _conv_to_matrix(w1, 33, 33, 2, 1)                        # [1024, 1089]
    a2 = _conv_to_matrix(w2, 16, 16, 2, 1).astype(jnp.bfloat16)   # [256, 1024]
    a3 = _conv_to_matrix(w3, 8, 8, 2, 1).astype(jnp.bfloat16)     # [64, 256]
    a4 = _conv_to_matrix(w4, 4, 4, 1, 0)                          # [1, 64]
    # Pad layer-1 contraction dim 1089 -> 1152 (multiple of 128) with zeros (no effect
    # on the dot product), and pad a4 to 8 output rows (only row 0 is used).
    a1 = jnp.pad(a1, ((0, 0), (0, _P1_PAD - a1.shape[1]))).astype(jnp.bfloat16)
    a4 = jnp.pad(a4, ((0, 7), (0, 0))).astype(jnp.bfloat16)       # [8, 64]
    # torch: transpose(0,1) -> reshape(-1,33,33) -> unsqueeze(1). In the kernel layout
    # (flattened 33x33 patch on sublanes, batch on lanes) the raw [1089, N] input is
    # already correct -- only zero-pad the sublane axis.
    x_p = jnp.pad(x, ((0, _P1_PAD - x.shape[0]), (0, 0))).astype(jnp.bfloat16)

    out = pl.pallas_call(
        _discr_fused_kernel,
        out_shape=jax.ShapeDtypeStruct((1, n), jnp.float32),
        in_specs=[_vmem_spec(),                       # x
                  _vmem_spec(), _vmem_spec(),         # a1, a2
                  _vmem_spec(), _vmem_spec(),         # a3, a4
                  _smem_spec(), _smem_spec()],        # gamma, beta (scalar tables)
        out_specs=_vmem_spec(),
        scratch_shapes=[
            pltpu.VMEM((1024, n), jnp.bfloat16),      # layer-1 activations [4*16*16, N]
            pltpu.VMEM((256, n), jnp.bfloat16),       # layer-2 activations [4*8*8,  N]
            pltpu.VMEM((64, n), jnp.bfloat16),        # layer-3 activations [4*4*4,  N]
        ],
        compiler_params=pltpu.CompilerParams(vmem_limit_bytes=48 * 1024 * 1024),
    )(x_p, a1, a2, a3, a4, gamma, beta)

    return out.reshape(n, 1)                          # [1, N] -> [N, 1] (pure reshape)


# ---------------------------------------------------------------------------
# Parameters (bias-free convs; BatchNorm default init gamma=1, beta=0)
# ---------------------------------------------------------------------------
def init_params(key):
    ks = jax.random.split(key, 4)
    w1 = 0.02 * jax.random.normal(ks[0], (4, 1, 4, 4), jnp.float32)  # Conv2d(1, 4, 4, 2, 1)
    w2 = 0.02 * jax.random.normal(ks[1], (4, 4, 4, 4), jnp.float32)  # Conv2d(4, 4, 4, 2, 1)
    w3 = 0.02 * jax.random.normal(ks[2], (4, 4, 4, 4), jnp.float32)  # Conv2d(4, 4, 4, 2, 1)
    w4 = 0.02 * jax.random.normal(ks[3], (1, 4, 4, 4), jnp.float32)  # Conv2d(4, 1, 4, 1, 0)
    gamma = jnp.ones((3, 4), jnp.float32)
    beta = jnp.zeros((3, 4), jnp.float32)
    return (w1, w2, w3, w4, gamma, beta)


# ---------------------------------------------------------------------------
# Plain-XLA reference (for an in-script numerical sanity check)
# ---------------------------------------------------------------------------
@jax.jit
def _reference_forward(x, params):
    w1, w2, w3, w4, gamma, beta = params
    n = x.shape[1]
    y = jnp.transpose(x, (1, 0)).reshape(n, 1, 33, 33)

    def block(y, w, g, b, stride, pad):
        y = lax.conv_general_dilated(y, w, (stride, stride), ((pad, pad), (pad, pad)),
                                     dimension_numbers=("NCHW", "OIHW", "NCHW"),
                                     precision=lax.Precision.HIGHEST)
        m = jnp.mean(y, axis=(0, 2, 3), keepdims=True)
        v = jnp.mean(jnp.square(y - m), axis=(0, 2, 3), keepdims=True)
        y = (y - m) * lax.rsqrt(v + EPS) * g.reshape(1, -1, 1, 1) + b.reshape(1, -1, 1, 1)
        return jnp.where(y > 0, y, NEG_SLOPE * y)

    y = block(y, w1, gamma[0], beta[0], 2, 1)
    y = block(y, w2, gamma[1], beta[1], 2, 1)
    y = block(y, w3, gamma[2], beta[2], 2, 1)
    y = lax.conv_general_dilated(y, w4, (1, 1), ((0, 0), (0, 0)),
                                 dimension_numbers=("NCHW", "OIHW", "NCHW"),
                                 precision=lax.Precision.HIGHEST)
    return jax.nn.sigmoid(y).reshape(n, 1)


if __name__ == "__main__":
    key = jax.random.PRNGKey(0)
    kx, kp = jax.random.split(key)
    n = 128   # batch; a multiple of 128 keeps every vreg lane live (any N still works)
    x = jax.random.normal(kx, (33 * 33, n), jnp.float32)   # torch input layout [1089, N]
    params = init_params(kp)

    out = discr_forward(x, params)
    jax.block_until_ready(out)

    assert out.shape == (n, 1)
    assert bool(jnp.all(jnp.isfinite(out)))
    assert bool(jnp.all((out >= 0.0) & (out <= 1.0)))       # sigmoid range

    # Numerical sanity check vs. plain XLA (tolerance covers the bf16 matmul operands).
    ref = _reference_forward(x, params)
    max_err = float(jnp.max(jnp.abs(out - ref)))
    assert max_err < 3e-2, f"max |pallas - reference| = {max_err}"

    print("KERNEL_OK")
</pallas_src>

<mosaic_0001>
module attributes {stable_mosaic.version = 11 : i64} {
  func.func private @main(%arg0: i32) attributes {dimension_semantics = [#tpu.dimension_semantics<core_parallel>], iteration_bounds = array<i64: 2>, tpu.core_type = #tpu.core_type<sc_scalar_subcore>, window_params = []} {
    return
  }
}

module attributes {stable_mosaic.version = 11 : i64} {
  func.func private @main(%arg0: i32) attributes {dimension_semantics = [#tpu.dimension_semantics<core_parallel>], iteration_bounds = array<i64: 2>, tpu.core_type = #tpu.core_type<sc_scalar_subcore>, window_params = []} {
    return
  }
}

module attributes {stable_mosaic.version = 11 : i64} {
  func.func @_discr_fused_kernel(%arg0: memref<1152x128xbf16, #tpu.memory_space<vmem>>, %arg1: memref<1024x1152xbf16, #tpu.memory_space<vmem>>, %arg2: memref<256x1024xbf16, #tpu.memory_space<vmem>>, %arg3: memref<64x256xbf16, #tpu.memory_space<vmem>>, %arg4: memref<8x64xbf16, #tpu.memory_space<vmem>>, %arg5: memref<3x4xf32, #tpu.memory_space<smem>>, %arg6: memref<3x4xf32, #tpu.memory_space<smem>>, %arg7: memref<1x128xf32, #tpu.memory_space<vmem>>, %arg8: memref<1024x128xbf16, #tpu.memory_space<vmem>>, %arg9: memref<256x128xbf16, #tpu.memory_space<vmem>>, %arg10: memref<64x128xbf16, #tpu.memory_space<vmem>>) attributes {dimension_semantics = [], scalar_prefetch = 0 : i64, scratch_operands = 3 : i64, tpu.core_type = #tpu.core_type<tc>} {
    %c0 = arith.constant 0 : index
    %c0_0 = arith.constant 0 : index
    %0 = vector.load %arg1[%c0, %c0_0] : memref<1024x1152xbf16, #tpu.memory_space<vmem>>, vector<1024x1152xbf16>
    %c0_1 = arith.constant 0 : index
    %c0_2 = arith.constant 0 : index
    %1 = vector.load %arg0[%c0_1, %c0_2] : memref<1152x128xbf16, #tpu.memory_space<vmem>>, vector<1152x128xbf16>
    %cst = arith.constant dense<0.000000e+00> : vector<1024x128xf32>
    %2 = tpu.matmul %0, %1, %cst {dimension_numbers = #tpu.dot_dimension_numbers<[1], [0], [0], [1], [0, 0, 1, 1], [], []>} : vector<1024x1152xbf16>, vector<1152x128xbf16>, vector<1024x128xf32> -> vector<1024x128xf32>
    %3 = vector.extract_strided_slice %2 {offsets = [0, 0], sizes = [256, 128], strides = [1, 1]} : vector<1024x128xf32> to vector<256x128xf32>
    %4 = vector.shape_cast %3 : vector<256x128xf32> to vector<1x256x128xf32>
    %cst_3 = arith.constant dense<0.000000e+00> : vector<1xf32>
    %5 = vector.multi_reduction <add>, %4, %cst_3 [1, 2] : vector<1x256x128xf32> to vector<1xf32>
    %6 = vector.shape_cast %5 : vector<1xf32> to vector<1x1x1xf32>
    %7 = vector.extract %6[0, 0, 0] : f32 from vector<1x1x1xf32>
    %cst_4 = arith.constant 3.276800e+04 : f32
    %8 = arith.divf %7, %cst_4 : f32
    %9 = vector.broadcast %8 : f32 to vector<256x128xf32>
    %10 = arith.subf %3, %9 : vector<256x128xf32>
    %11 = arith.mulf %10, %10 : vector<256x128xf32>
    %12 = vector.shape_cast %11 : vector<256x128xf32> to vector<1x256x128xf32>
    %cst_5 = arith.constant dense<0.000000e+00> : vector<1xf32>
    %13 = vector.multi_reduction <add>, %12, %cst_5 [1, 2] : vector<1x256x128xf32> to vector<1xf32>
    %14 = vector.shape_cast %13 : vector<1xf32> to vector<1x1x1xf32>
    %15 = vector.extract %14[0, 0, 0] : f32 from vector<1x1x1xf32>
    %cst_6 = arith.constant 3.276800e+04 : f32
    %16 = arith.divf %15, %cst_6 : f32
    %c0_7 = arith.constant 0 : index
    %c0_8 = arith.constant 0 : index
    %17 = memref.load %arg5[%c0_7, %c0_8] : memref<3x4xf32, #tpu.memory_space<smem>>
    %cst_9 = arith.constant 9.99999974E-6 : f32
    %18 = arith.addf %16, %cst_9 : f32
    %19 = math.rsqrt %18 : f32
    %20 = arith.mulf %17, %19 : f32
    %c0_10 = arith.constant 0 : index
    %c0_11 = arith.constant 0 : index
    %21 = memref.load %arg6[%c0_10, %c0_11] : memref<3x4xf32, #tpu.memory_space<smem>>
    %22 = arith.mulf %8, %20 : f32
    %23 = arith.subf %21, %22 : f32
    %24 = vector.broadcast %20 : f32 to vector<256x128xf32>
    %25 = arith.mulf %3, %24 : vector<256x128xf32>
    %26 = vector.broadcast %23 : f32 to vector<256x128xf32>
    %27 = arith.addf %25, %26 : vector<256x128xf32>
    %cst_12 = arith.constant 0.000000e+00 : f32
    %28 = vector.broadcast %cst_12 : f32 to vector<256x128xf32>
    %29 = arith.cmpf ogt, %27, %28 : vector<256x128xf32>
    %cst_13 = arith.constant 2.000000e-01 : f32
    %30 = vector.broadcast %cst_13 : f32 to vector<256x128xf32>
    %31 = arith.mulf %30, %27 : vector<256x128xf32>
    %32 = arith.select %29, %27, %31 : vector<256x128xi1>, vector<256x128xf32>
    %33 = arith.truncf %32 : vector<256x128xf32> to vector<256x128xbf16>
    %c0_14 = arith.constant 0 : index
    %c0_15 = arith.constant 0 : index
    %34 = vector.load %arg8[%c0_14, %c0_15] : memref<1024x128xbf16, #tpu.memory_space<vmem>>, vector<256x128xbf16>
    tpu.vector_store %arg8[%c0_14, %c0_15], %33 {strides = array<i32>} : memref<1024x128xbf16, #tpu.memory_space<vmem>>, vector<256x128xbf16>,
    %35 = vector.extract_strided_slice %2 {offsets = [256, 0], sizes = [256, 128], strides = [1, 1]} : vector<1024x128xf32> to vector<256x128xf32>
    %36 = vector.shape_cast %35 : vector<256x128xf32> to vector<1x256x128xf32>
    %cst_16 = arith.constant dense<0.000000e+00> : vector<1xf32>
    %37 = vector.multi_reduction <add>, %36, %cst_16 [1, 2] : vector<1x256x128xf32> to vector<1xf32>
    %38 = vector.shape_cast %37 : vector<1xf32> to vector<1x1x1xf32>
    %39 = vector.extract %38[0, 0, 0] : f32 from vector<1x1x1xf32>
    %cst_17 = arith.constant 3.276800e+04 : f32
    %40 = arith.divf %39, %cst_17 : f32
    %41 = vector.broadcast %40 : f32 to vector<256x128xf32>
    %42 = arith.subf %35, %41 : vector<256x128xf32>
    %43 = arith.mulf %42, %42 : vector<256x128xf32>
    %44 = vector.shape_cast %43 : vector<256x128xf32> to vector<1x256x128xf32>
    %cst_18 = arith.constant dense<0.000000e+00> : vector<1xf32>
    %45 = vector.multi_reduction <add>, %44, %cst_18 [1, 2] : vector<1x256x128xf32> to vector<1xf32>
    %46 = vector.shape_cast %45 : vector<1xf32> to vector<1x1x1xf32>
    %47 = vector.extract %46[0, 0, 0] : f32 from vector<1x1x1xf32>
    %cst_19 = arith.constant 3.276800e+04 : f32
    %48 = arith.divf %47, %cst_19 : f32
    %c0_20 = arith.constant 0 : index
    %c1 = arith.constant 1 : index
    %49 = memref.load %arg5[%c0_20, %c1] : memref<3x4xf32, #tpu.memory_space<smem>>
    %cst_21 = arith.constant 9.99999974E-6 : f32
    %50 = arith.addf %48, %cst_21 : f32
    %51 = math.rsqrt %50 : f32
    %52 = arith.mulf %49, %51 : f32
    %c0_22 = arith.constant 0 : index
    %c1_23 = arith.constant 1 : index
    %53 = memref.load %arg6[%c0_22, %c1_23] : memref<3x4xf32, #tpu.memory_space<smem>>
    %54 = arith.mulf %40, %52 : f32
    %55 = arith.subf %53, %54 : f32
    %56 = vector.broadcast %52 : f32 to vector<256x128xf32>
    %57 = arith.mulf %35, %56 : vector<256x128xf32>
    %58 = vector.broadcast %55 : f32 to vector<256x128xf32>
    %59 = arith.addf %57, %58 : vector<256x128xf32>
    %cst_24 = arith.constant 0.000000e+00 : f32
    %60 = vector.broadcast %cst_24 : f32 to vector<256x128xf32>
    %61 = arith.cmpf ogt, %59, %60 : vector<256x128xf32>
    %cst_25 = arith.constant 2.000000e-01 : f32
    %62 = vector.broadcast %cst_25 : f32 to vector<256x128xf32>
    %63 = arith.mulf %62, %59 : vector<256x128xf32>
    %64 = arith.select %61, %59, %63 : vector<256x128xi1>, vector<256x128xf32>
    %65 = arith.truncf %64 : vector<256x128xf32> to vector<256x128xbf16>
    %c256 = arith.constant 256 : index
    %c0_26 = arith.constant 0 : index
    %66 = vector.load %arg8[%c256, %c0_26] : memref<1024x128xbf16, #tpu.memory_space<vmem>>, vector<256x128xbf16>
    tpu.vector_store %arg8[%c256, %c0_26], %65 {strides = array<i32>} : memref<1024x128xbf16, #tpu.memory_space<vmem>>, vector<256x128xbf16>,
    %67 = vector.extract_strided_slice %2 {offsets = [512, 0], sizes = [256, 128], strides = [1, 1]} : vector<1024x128xf32> to vector<256x128xf32>
    %68 = vector.shape_cast %67 : vector<256x128xf32> to vector<1x256x128xf32>
    %cst_27 = arith.constant dense<0.000000e+00> : vector<1xf32>
    %69 = vector.multi_reduction <add>, %68, %cst_27 [1, 2] : vector<1x256x128xf32> to vector<1xf32>
    %70 = vector.shape_cast %69 : vector<1xf32> to vector<1x1x1xf32>
    %71 = vector.extract %70[0, 0, 0] : f32 from vector<1x1x1xf32>
    %cst_28 = arith.constant 3.276800e+04 : f32
    %72 = arith.divf %71, %cst_28 : f32
    %73 = vector.broadcast %72 : f32 to vector<256x128xf32>
    %74 = arith.subf %67, %73 : vector<256x128xf32>
    %75 = arith.mulf %74, %74 : vector<256x128xf32>
    %76 = vector.shape_cast %75 : vector<256x128xf32> to vector<1x256x128xf32>
    %cst_29 = arith.constant dense<0.000000e+00> : vector<1xf32>
    %77 = vector.multi_reduction <add>, %76, %cst_29 [1, 2] : vector<1x256x128xf32> to vector<1xf32>
    %78 = vector.shape_cast %77 : vector<1xf32> to vector<1x1x1xf32>
    %79 = vector.extract %78[0, 0, 0] : f32 from vector<1x1x1xf32>
    %cst_30 = arith.constant 3.276800e+04 : f32
    %80 = arith.divf %79, %cst_30 : f32
    %c0_31 = arith.constant 0 : index
    %c2 = arith.constant 2 : index
    %81 = memref.load %arg5[%c0_31, %c2] : memref<3x4xf32, #tpu.memory_space<smem>>
    %cst_32 = arith.constant 9.99999974E-6 : f32
    %82 = arith.addf %80, %cst_32 : f32
    %83 = math.rsqrt %82 : f32
    %84 = arith.mulf %81, %83 : f32
    %c0_33 = arith.constant 0 : index
    %c2_34 = arith.constant 2 : index
    %85 = memref.load %arg6[%c0_33, %c2_34] : memref<3x4xf32, #tpu.memory_space<smem>>
    %86 = arith.mulf %72, %84 : f32
    %87 = arith.subf %85, %86 : f32
    %88 = vector.broadcast %84 : f32 to vector<256x128xf32>
    %89 = arith.mulf %67, %88 : vector<256x128xf32>
    %90 = vector.broadcast %87 : f32 to vector<256x128xf32>
    %91 = arith.addf %89, %90 : vector<256x128xf32>
    %cst_35 = arith.constant 0.000000e+00 : f32
    %92 = vector.broadcast %cst_35 : f32 to vector<256x128xf32>
    %93 = arith.cmpf ogt, %91, %92 : vector<256x128xf32>
    %cst_36 = arith.constant 2.000000e-01 : f32
    %94 = vector.broadcast %cst_36 : f32 to vector<256x128xf32>
    %95 = arith.mulf %94, %91 : vector<256x128xf32>
    %96 = arith.select %93, %91, %95 : vector<256x128xi1>, vector<256x128xf32>
    %97 = arith.truncf %96 : vector<256x128xf32> to vector<256x128xbf16>
    %c512 = arith.constant 512 : index
    %c0_37 = arith.constant 0 : index
    %98 = vector.load %arg8[%c512, %c0_37] : memref<1024x128xbf16, #tpu.memory_space<vmem>>, vector<256x128xbf16>
    tpu.vector_store %arg8[%c512, %c0_37], %97 {strides = array<i32>} : memref<1024x128xbf16, #tpu.memory_space<vmem>>, vector<256x128xbf16>,
    %99 = vector.extract_strided_slice %2 {offsets = [768, 0], sizes = [256, 128], strides = [1, 1]} : vector<1024x128xf32> to vector<256x128xf32>
    %100 = vector.shape_cast %99 : vector<256x128xf32> to vector<1x256x128xf32>
    %cst_38 = arith.constant dense<0.000000e+00> : vector<1xf32>
    %101 = vector.multi_reduction <add>, %100, %cst_38 [1, 2] : vector<1x256x128xf32> to vector<1xf32>
    %102 = vector.shape_cast %101 : vector<1xf32> to vector<1x1x1xf32>
    %103 = vector.extract %102[0, 0, 0] : f32 from vector<1x1x1xf32>
    %cst_39 = arith.constant 3.276800e+04 : f32
    %104 = arith.divf %103, %cst_39 : f32
    %105 = vector.broadcast %104 : f32 to vector<256x128xf32>
    %106 = arith.subf %99, %105 : vector<256x128xf32>
    %107 = arith.mulf %106, %106 : vector<256x128xf32>
    %108 = vector.shape_cast %107 : vector<256x128xf32> to vector<1x256x128xf32>
    %cst_40 = arith.constant dense<0.000000e+00> : vector<1xf32>
    %109 = vector.multi_reduction <add>, %108, %cst_40 [1, 2] : vector<1x256x128xf32> to vector<1xf32>
    %110 = vector.shape_cast %109 : vector<1xf32> to vector<1x1x1xf32>
    %111 = vector.extract %110[0, 0, 0] : f32 from vector<1x1x1xf32>
    %cst_41 = arith.constant 3.276800e+04 : f32
    %112 = arith.divf %111, %cst_41 : f32
    %c0_42 = arith.constant 0 : index
    %c3 = arith.constant 3 : index
    %113 = memref.load %arg5[%c0_42, %c3] : memref<3x4xf32, #tpu.memory_space<smem>>
    %cst_43 = arith.constant 9.99999974E-6 : f32
    %114 = arith.addf %112, %cst_43 : f32
    %115 = math.rsqrt %114 : f32
    %116 = arith.mulf %113, %115 : f32
    %c0_44 = arith.constant 0 : index
    %c3_45 = arith.constant 3 : index
    %117 = memref.load %arg6[%c0_44, %c3_45] : memref<3x4xf32, #tpu.memory_space<smem>>
    %118 = arith.mulf %104, %116 : f32
    %119 = arith.subf %117, %118 : f32
    %120 = vector.broadcast %116 : f32 to vector<256x128xf32>
    %121 = arith.mulf %99, %120 : vector<256x128xf32>
    %122 = vector.broadcast %119 : f32 to vector<256x128xf32>
    %123 = arith.addf %121, %122 : vector<256x128xf32>
    %cst_46 = arith.constant 0.000000e+00 : f32
    %124 = vector.broadcast %cst_46 : f32 to vector<256x128xf32>
    %125 = arith.cmpf ogt, %123, %124 : vector<256x128xf32>
    %cst_47 = arith.constant 2.000000e-01 : f32
    %126 = vector.broadcast %cst_47 : f32 to vector<256x128xf32>
    %127 = arith.mulf %126, %123 : vector<256x128xf32>
    %128 = arith.select %125, %123, %127 : vector<256x128xi1>, vector<256x128xf32>
    %129 = arith.truncf %128 : vector<256x128xf32> to vector<256x128xbf16>
    %c768 = arith.constant 768 : index
    %c0_48 = arith.constant 0 : index
    %130 = vector.load %arg8[%c768, %c0_48] : memref<1024x128xbf16, #tpu.memory_space<vmem>>, vector<256x128xbf16>
    tpu.vector_store %arg8[%c768, %c0_48], %129 {strides = array<i32>} : memref<1024x128xbf16, #tpu.memory_space<vmem>>, vector<256x128xbf16>,
    %c0_49 = arith.constant 0 : index
    %c0_50 = arith.constant 0 : index
    %131 = vector.load %arg2[%c0_49, %c0_50] : memref<256x1024xbf16, #tpu.memory_space<vmem>>, vector<256x1024xbf16>
    %c0_51 = arith.constant 0 : index
    %c0_52 = arith.constant 0 : index
    %132 = vector.load %arg8[%c0_51, %c0_52] : memref<1024x128xbf16, #tpu.memory_space<vmem>>, vector<1024x128xbf16>
    %cst_53 = arith.constant dense<0.000000e+00> : vector<256x128xf32>
    %133 = tpu.matmul %131, %132, %cst_53 {dimension_numbers = #tpu.dot_dimension_numbers<[1], [0], [0], [1], [0, 0, 1, 1], [], []>} : vector<256x1024xbf16>, vector<1024x128xbf16>, vector<256x128xf32> -> vector<256x128xf32>
    %134 = vector.extract_strided_slice %133 {offsets = [0, 0], sizes = [64, 128], strides = [1, 1]} : vector<256x128xf32> to vector<64x128xf32>
    %135 = vector.shape_cast %134 : vector<64x128xf32> to vector<1x64x128xf32>
    %cst_54 = arith.constant dense<0.000000e+00> : vector<1xf32>
    %136 = vector.multi_reduction <add>, %135, %cst_54 [1, 2] : vector<1x64x128xf32> to vector<1xf32>
    %137 = vector.shape_cast %136 : vector<1xf32> to vector<1x1x1xf32>
    %138 = vector.extract %137[0, 0, 0] : f32 from vector<1x1x1xf32>
    %cst_55 = arith.constant 8.192000e+03 : f32
    %139 = arith.divf %138, %cst_55 : f32
    %140 = vector.broadcast %139 : f32 to vector<64x128xf32>
    %141 = arith.subf %134, %140 : vector<64x128xf32>
    %142 = arith.mulf %141, %141 : vector<64x128xf32>
    %143 = vector.shape_cast %142 : vector<64x128xf32> to vector<1x64x128xf32>
    %cst_56 = arith.constant dense<0.000000e+00> : vector<1xf32>
    %144 = vector.multi_reduction <add>, %143, %cst_56 [1, 2] : vector<1x64x128xf32> to vector<1xf32>
    %145 = vector.shape_cast %144 : vector<1xf32> to vector<1x1x1xf32>
    %146 = vector.extract %145[0, 0, 0] : f32 from vector<1x1x1xf32>
    %cst_57 = arith.constant 8.192000e+03 : f32
    %147 = arith.divf %146, %cst_57 : f32
    %c1_58 = arith.constant 1 : index
    %c0_59 = arith.constant 0 : index
    %148 = memref.load %arg5[%c1_58, %c0_59] : memref<3x4xf32, #tpu.memory_space<smem>>
    %cst_60 = arith.constant 9.99999974E-6 : f32
    %149 = arith.addf %147, %cst_60 : f32
    %150 = math.rsqrt %149 : f32
    %151 = arith.mulf %148, %150 : f32
    %c1_61 = arith.constant 1 : index
    %c0_62 = arith.constant 0 : index
    %152 = memref.load %arg6[%c1_61, %c0_62] : memref<3x4xf32, #tpu.memory_space<smem>>
    %153 = arith.mulf %139, %151 : f32
    %154 = arith.subf %152, %153 : f32
    %155 = vector.broadcast %151 : f32 to vector<64x128xf32>
    %156 = arith.mulf %134, %155 : vector<64x128xf32>
    %157 = vector.broadcast %154 : f32 to vector<64x128xf32>
    %158 = arith.addf %156, %157 : vector<64x128xf32>
    %cst_63 = arith.constant 0.000000e+00 : f32
    %159 = vector.broadcast %cst_63 : f32 to vector<64x128xf32>
    %160 = arith.cmpf ogt, %158, %159 : vector<64x128xf32>
    %cst_64 = arith.constant 2.000000e-01 : f32
    %161 = vector.broadcast %cst_64 : f32 to vector<64x128xf32>
    %162 = arith.mulf %161, %158 : vector<64x128xf32>
    %163 = arith.select %160, %158, %162 : vector<64x128xi1>, vector<64x128xf32>
    %164 = arith.truncf %163 : vector<64x128xf32> to vector<64x128xbf16>
    %c0_65 = arith.constant 0 : index
    %c0_66 = arith.constant 0 : index
    %165 = vector.load %arg9[%c0_65, %c0_66] : memref<256x128xbf16, #tpu.memory_space<vmem>>, vector<64x128xbf16>
    tpu.vector_store %arg9[%c0_65, %c0_66], %164 {strides = array<i32>} : memref<256x128xbf16, #tpu.memory_space<vmem>>, vector<64x128xbf16>,
    %166 = vector.extract_strided_slice %133 {offsets = [64, 0], sizes = [64, 128], strides = [1, 1]} : vector<256x128xf32> to vector<64x128xf32>
    %167 = vector.shape_cast %166 : vector<64x128xf32> to vector<1x64x128xf32>
    %cst_67 = arith.constant dense<0.000000e+00> : vector<1xf32>
    %168 = vector.multi_reduction <add>, %167, %cst_67 [1, 2] : vector<1x64x128xf32> to vector<1xf32>
    %169 = vector.shape_cast %168 : vector<1xf32> to vector<1x1x1xf32>
    %170 = vector.extract %169[0, 0, 0] : f32 from vector<1x1x1xf32>
    %cst_68 = arith.constant 8.192000e+03 : f32
    %171 = arith.divf %170, %cst_68 : f32
    %172 = vector.broadcast %171 : f32 to vector<64x128xf32>
    %173 = arith.subf %166, %172 : vector<64x128xf32>
    %174 = arith.mulf %173, %173 : vector<64x128xf32>
    %175 = vector.shape_cast %174 : vector<64x128xf32> to vector<1x64x128xf32>
    %cst_69 = arith.constant dense<0.000000e+00> : vector<1xf32>
    %176 = vector.multi_reduction <add>, %175, %cst_69 [1, 2] : vector<1x64x128xf32> to vector<1xf32>
    %177 = vector.shape_cast %176 : vector<1xf32> to vector<1x1x1xf32>
    %178 = vector.extract %177[0, 0, 0] : f32 from vector<1x1x1xf32>
    %cst_70 = arith.constant 8.192000e+03 : f32
    %179 = arith.divf %178, %cst_70 : f32
    %c1_71 = arith.constant 1 : index
    %c1_72 = arith.constant 1 : index
    %180 = memref.load %arg5[%c1_71, %c1_72] : memref<3x4xf32, #tpu.memory_space<smem>>
    %cst_73 = arith.constant 9.99999974E-6 : f32
    %181 = arith.addf %179, %cst_73 : f32
    %182 = math.rsqrt %181 : f32
    %183 = arith.mulf %180, %182 : f32
    %c1_74 = arith.constant 1 : index
    %c1_75 = arith.constant 1 : index
    %184 = memref.load %arg6[%c1_74, %c1_75] : memref<3x4xf32, #tpu.memory_space<smem>>
    %185 = arith.mulf %171, %183 : f32
    %186 = arith.subf %184, %185 : f32
    %187 = vector.broadcast %183 : f32 to vector<64x128xf32>
    %188 = arith.mulf %166, %187 : vector<64x128xf32>
    %189 = vector.broadcast %186 : f32 to vector<64x128xf32>
    %190 = arith.addf %188, %189 : vector<64x128xf32>
    %cst_76 = arith.constant 0.000000e+00 : f32
    %191 = vector.broadcast %cst_76 : f32 to vector<64x128xf32>
    %192 = arith.cmpf ogt, %190, %191 : vector<64x128xf32>
    %cst_77 = arith.constant 2.000000e-01 : f32
    %193 = vector.broadcast %cst_77 : f32 to vector<64x128xf32>
    %194 = arith.mulf %193, %190 : vector<64x128xf32>
    %195 = arith.select %192, %190, %194 : vector<64x128xi1>, vector<64x128xf32>
    %196 = arith.truncf %195 : vector<64x128xf32> to vector<64x128xbf16>
    %c64 = arith.constant 64 : index
    %c0_78 = arith.constant 0 : index
    %197 = vector.load %arg9[%c64, %c0_78] : memref<256x128xbf16, #tpu.memory_space<vmem>>, vector<64x128xbf16>
    tpu.vector_store %arg9[%c64, %c0_78], %196 {strides = array<i32>} : memref<256x128xbf16, #tpu.memory_space<vmem>>, vector<64x128xbf16>,
    %198 = vector.extract_strided_slice %133 {offsets = [128, 0], sizes = [64, 128], strides = [1, 1]} : vector<256x128xf32> to vector<64x128xf32>
    %199 = vector.shape_cast %198 : vector<64x128xf32> to vector<1x64x128xf32>
    %cst_79 = arith.constant dense<0.000000e+00> : vector<1xf32>
    %200 = vector.multi_reduction <add>, %199, %cst_79 [1, 2] : vector<1x64x128xf32> to vector<1xf32>
    %201 = vector.shape_cast %200 : vector<1xf32> to vector<1x1x1xf32>
    %202 = vector.extract %201[0, 0, 0] : f32 from vector<1x1x1xf32>
    %cst_80 = arith.constant 8.192000e+03 : f32
    %203 = arith.divf %202, %cst_80 : f32
    %204 = vector.broadcast %203 : f32 to vector<64x128xf32>
    %205 = arith.subf %198, %204 : vector<64x128xf32>
    %206 = arith.mulf %205, %205 : vector<64x128xf32>
    %207 = vector.shape_cast %206 : vector<64x128xf32> to vector<1x64x128xf32>
    %cst_81 = arith.constant dense<0.000000e+00> : vector<1xf32>
    %208 = vector.multi_reduction <add>, %207, %cst_81 [1, 2] : vector<1x64x128xf32> to vector<1xf32>
    %209 = vector.shape_cast %208 : vector<1xf32> to vector<1x1x1xf32>
    %210 = vector.extract %209[0, 0, 0] : f32 from vector<1x1x1xf32>
    %cst_82 = arith.constant 8.192000e+03 : f32
    %211 = arith.divf %210, %cst_82 : f32
    %c1_83 = arith.constant 1 : index
    %c2_84 = arith.constant 2 : index
    %212 = memref.load %arg5[%c1_83, %c2_84] : memref<3x4xf32, #tpu.memory_space<smem>>
    %cst_85 = arith.constant 9.99999974E-6 : f32
    %213 = arith.addf %211, %cst_85 : f32
    %214 = math.rsqrt %213 : f32
    %215 = arith.mulf %212, %214 : f32
    %c1_86 = arith.constant 1 : index
    %c2_87 = arith.constant 2 : index
    %216 = memref.load %arg6[%c1_86, %c2_87] : memref<3x4xf32, #tpu.memory_space<smem>>
    %217 = arith.mulf %203, %215 : f32
    %218 = arith.subf %216, %217 : f32
    %219 = vector.broadcast %215 : f32 to vector<64x128xf32>
    %220 = arith.mulf %198, %219 : vector<64x128xf32>
    %221 = vector.broadcast %218 : f32 to vector<64x128xf32>
    %222 = arith.addf %220, %221 : vector<64x128xf32>
    %cst_88 = arith.constant 0.000000e+00 : f32
    %223 = vector.broadcast %cst_88 : f32 to vector<64x128xf32>
    %224 = arith.cmpf ogt, %222, %223 : vector<64x128xf32>
    %cst_89 = arith.constant 2.000000e-01 : f32
    %225 = vector.broadcast %cst_89 : f32 to vector<64x128xf32>
    %226 = arith.mulf %225, %222 : vector<64x128xf32>
    %227 = arith.select %224, %222, %226 : vector<64x128xi1>, vector<64x128xf32>
    %228 = arith.truncf %227 : vector<64x128xf32> to vector<64x128xbf16>
    %c128 = arith.constant 128 : index
    %c0_90 = arith.constant 0 : index
    %229 = vector.load %arg9[%c128, %c0_90] : memref<256x128xbf16, #tpu.memory_space<vmem>>, vector<64x128xbf16>
    tpu.vector_store %arg9[%c128, %c0_90], %228 {strides = array<i32>} : memref<256x128xbf16, #tpu.memory_space<vmem>>, vector<64x128xbf16>,
    %230 = vector.extract_strided_slice %133 {offsets = [192, 0], sizes = [64, 128], strides = [1, 1]} : vector<256x128xf32> to vector<64x128xf32>
    %231 = vector.shape_cast %230 : vector<64x128xf32> to vector<1x64x128xf32>
    %cst_91 = arith.constant dense<0.000000e+00> : vector<1xf32>
    %232 = vector.multi_reduction <add>, %231, %cst_91 [1, 2] : vector<1x64x128xf32> to vector<1xf32>
    %233 = vector.shape_cast %232 : vector<1xf32> to vector<1x1x1xf32>
    %234 = vector.extract %233[0, 0, 0] : f32 from vector<1x1x1xf32>
    %cst_92 = arith.constant 8.192000e+03 : f32
    %235 = arith.divf %234, %cst_92 : f32
    %236 = vector.broadcast %235 : f32 to vector<64x128xf32>
    %237 = arith.subf %230, %236 : vector<64x128xf32>
    %238 = arith.mulf %237, %237 : vector<64x128xf32>
    %239 = vector.shape_cast %238 : vector<64x128xf32> to vector<1x64x128xf32>
    %cst_93 = arith.constant dense<0.000000e+00> : vector<1xf32>
    %240 = vector.multi_reduction <add>, %239, %cst_93 [1, 2] : vector<1x64x128xf32> to vector<1xf32>
    %241 = vector.shape_cast %240 : vector<1xf32> to vector<1x1x1xf32>
    %242 = vector.extract %241[0, 0, 0] : f32 from vector<1x1x1xf32>
    %cst_94 = arith.constant 8.192000e+03 : f32
    %243 = arith.divf %242, %cst_94 : f32
    %c1_95 = arith.constant 1 : index
    %c3_96 = arith.constant 3 : index
    %244 = memref.load %arg5[%c1_95, %c3_96] : memref<3x4xf32, #tpu.memory_space<smem>>
    %cst_97 = arith.constant 9.99999974E-6 : f32
    %245 = arith.addf %243, %cst_97 : f32
    %246 = math.rsqrt %245 : f32
    %247 = arith.mulf %244, %246 : f32
    %c1_98 = arith.constant 1 : index
    %c3_99 = arith.constant 3 : index
    %248 = memref.load %arg6[%c1_98, %c3_99] : memref<3x4xf32, #tpu.memory_space<smem>>
    %249 = arith.mulf %235, %247 : f32
    %250 = arith.subf %248, %249 : f32
    %251 = vector.broadcast %247 : f32 to vector<64x128xf32>
    %252 = arith.mulf %230, %251 : vector<64x128xf32>
    %253 = vector.broadcast %250 : f32 to vector<64x128xf32>
    %254 = arith.addf %252, %253 : vector<64x128xf32>
    %cst_100 = arith.constant 0.000000e+00 : f32
    %255 = vector.broadcast %cst_100 : f32 to vector<64x128xf32>
    %256 = arith.cmpf ogt, %254, %255 : vector<64x128xf32>
    %cst_101 = arith.constant 2.000000e-01 : f32
    %257 = vector.broadcast %cst_101 : f32 to vector<64x128xf32>
    %258 = arith.mulf %257, %254 : vector<64x128xf32>
    %259 = arith.select %256, %254, %258 : vector<64x128xi1>, vector<64x128xf32>
    %260 = arith.truncf %259 : vector<64x128xf32> to vector<64x128xbf16>
    %c192 = arith.constant 192 : index
    %c0_102 = arith.constant 0 : index
    %261 = vector.load %arg9[%c192, %c0_102] : memref<256x128xbf16, #tpu.memory_space<vmem>>, vector<64x128xbf16>
    tpu.vector_store %arg9[%c192, %c0_102], %260 {strides = array<i32>} : memref<256x128xbf16, #tpu.memory_space<vmem>>, vector<64x128xbf16>,
    %c0_103 = arith.constant 0 : index
    %c0_104 = arith.constant 0 : index
    %262 = vector.load %arg3[%c0_103, %c0_104] : memref<64x256xbf16, #tpu.memory_space<vmem>>, vector<64x256xbf16>
    %c0_105 = arith.constant 0 : index
    %c0_106 = arith.constant 0 : index
    %263 = vector.load %arg9[%c0_105, %c0_106] : memref<256x128xbf16, #tpu.memory_space<vmem>>, vector<256x128xbf16>
    %cst_107 = arith.constant dense<0.000000e+00> : vector<64x128xf32>
    %264 = tpu.matmul %262, %263, %cst_107 {dimension_numbers = #tpu.dot_dimension_numbers<[1], [0], [0], [1], [0, 0, 1, 1], [], []>} : vector<64x256xbf16>, vector<256x128xbf16>, vector<64x128xf32> -> vector<64x128xf32>
    %265 = vector.extract_strided_slice %264 {offsets = [0, 0], sizes = [16, 128], strides = [1, 1]} : vector<64x128xf32> to vector<16x128xf32>
    %266 = vector.shape_cast %265 : vector<16x128xf32> to vector<1x16x128xf32>
    %cst_108 = arith.constant dense<0.000000e+00> : vector<1xf32>
    %267 = vector.multi_reduction <add>, %266, %cst_108 [1, 2] : vector<1x16x128xf32> to vector<1xf32>
    %268 = vector.shape_cast %267 : vector<1xf32> to vector<1x1x1xf32>
    %269 = vector.extract %268[0, 0, 0] : f32 from vector<1x1x1xf32>
    %cst_109 = arith.constant 2.048000e+03 : f32
    %270 = arith.divf %269, %cst_109 : f32
    %271 = vector.broadcast %270 : f32 to vector<16x128xf32>
    %272 = arith.subf %265, %271 : vector<16x128xf32>
    %273 = arith.mulf %272, %272 : vector<16x128xf32>
    %274 = vector.shape_cast %273 : vector<16x128xf32> to vector<1x16x128xf32>
    %cst_110 = arith.constant dense<0.000000e+00> : vector<1xf32>
    %275 = vector.multi_reduction <add>, %274, %cst_110 [1, 2] : vector<1x16x128xf32> to vector<1xf32>
    %276 = vector.shape_cast %275 : vector<1xf32> to vector<1x1x1xf32>
    %277 = vector.extract %276[0, 0, 0] : f32 from vector<1x1x1xf32>
    %cst_111 = arith.constant 2.048000e+03 : f32
    %278 = arith.divf %277, %cst_111 : f32
    %c2_112 = arith.constant 2 : index
    %c0_113 = arith.constant 0 : index
    %279 = memref.load %arg5[%c2_112, %c0_113] : memref<3x4xf32, #tpu.memory_space<smem>>
    %cst_114 = arith.constant 9.99999974E-6 : f32
    %280 = arith.addf %278, %cst_114 : f32
    %281 = math.rsqrt %280 : f32
    %282 = arith.mulf %279, %281 : f32
    %c2_115 = arith.constant 2 : index
    %c0_116 = arith.constant 0 : index
    %283 = memref.load %arg6[%c2_115, %c0_116] : memref<3x4xf32, #tpu.memory_space<smem>>
    %284 = arith.mulf %270, %282 : f32
    %285 = arith.subf %283, %284 : f32
    %286 = vector.broadcast %282 : f32 to vector<16x128xf32>
    %287 = arith.mulf %265, %286 : vector<16x128xf32>
    %288 = vector.broadcast %285 : f32 to vector<16x128xf32>
    %289 = arith.addf %287, %288 : vector<16x128xf32>
    %cst_117 = arith.constant 0.000000e+00 : f32
    %290 = vector.broadcast %cst_117 : f32 to vector<16x128xf32>
    %291 = arith.cmpf ogt, %289, %290 : vector<16x128xf32>
    %cst_118 = arith.constant 2.000000e-01 : f32
    %292 = vector.broadcast %cst_118 : f32 to vector<16x128xf32>
    %293 = arith.mulf %292, %289 : vector<16x128xf32>
    %294 = arith.select %291, %289, %293 : vector<16x128xi1>, vector<16x128xf32>
    %295 = arith.truncf %294 : vector<16x128xf32> to vector<16x128xbf16>
    %c0_119 = arith.constant 0 : index
    %c0_120 = arith.constant 0 : index
    %296 = vector.load %arg10[%c0_119, %c0_120] : memref<64x128xbf16, #tpu.memory_space<vmem>>, vector<16x128xbf16>
    tpu.vector_store %arg10[%c0_119, %c0_120], %295 {strides = array<i32>} : memref<64x128xbf16, #tpu.memory_space<vmem>>, vector<16x128xbf16>,
    %297 = vector.extract_strided_slice %264 {offsets = [16, 0], sizes = [16, 128], strides = [1, 1]} : vector<64x128xf32> to vector<16x128xf32>
    %298 = vector.shape_cast %297 : vector<16x128xf32> to vector<1x16x128xf32>
    %cst_121 = arith.constant dense<0.000000e+00> : vector<1xf32>
    %299 = vector.multi_reduction <add>, %298, %cst_121 [1, 2] : vector<1x16x128xf32> to vector<1xf32>
    %300 = vector.shape_cast %299 : vector<1xf32> to vector<1x1x1xf32>
    %301 = vector.extract %300[0, 0, 0] : f32 from vector<1x1x1xf32>
    %cst_122 = arith.constant 2.048000e+03 : f32
    %302 = arith.divf %301, %cst_122 : f32
    %303 = vector.broadcast %302 : f32 to vector<16x128xf32>
    %304 = arith.subf %297, %303 : vector<16x128xf32>
    %305 = arith.mulf %304, %304 : vector<16x128xf32>
    %306 = vector.shape_cast %305 : vector<16x128xf32> to vector<1x16x128xf32>
    %cst_123 = arith.constant dense<0.000000e+00> : vector<1xf32>
    %307 = vector.multi_reduction <add>, %306, %cst_123 [1, 2] : vector<1x16x128xf32> to vector<1xf32>
    %308 = vector.shape_cast %307 : vector<1xf32> to vector<1x1x1xf32>
    %309 = vector.extract %308[0, 0, 0] : f32 from vector<1x1x1xf32>
    %cst_124 = arith.constant 2.048000e+03 : f32
    %310 = arith.divf %309, %cst_124 : f32
    %c2_125 = arith.constant 2 : index
    %c1_126 = arith.constant 1 : index
    %311 = memref.load %arg5[%c2_125, %c1_126] : memref<3x4xf32, #tpu.memory_space<smem>>
    %cst_127 = arith.constant 9.99999974E-6 : f32
    %312 = arith.addf %310, %cst_127 : f32
    %313 = math.rsqrt %312 : f32
    %314 = arith.mulf %311, %313 : f32
    %c2_128 = arith.constant 2 : index
    %c1_129 = arith.constant 1 : index
    %315 = memref.load %arg6[%c2_128, %c1_129] : memref<3x4xf32, #tpu.memory_space<smem>>
    %316 = arith.mulf %302, %314 : f32
    %317 = arith.subf %315, %316 : f32
    %318 = vector.broadcast %314 : f32 to vector<16x128xf32>
    %319 = arith.mulf %297, %318 : vector<16x128xf32>
    %320 = vector.broadcast %317 : f32 to vector<16x128xf32>
    %321 = arith.addf %319, %320 : vector<16x128xf32>
    %cst_130 = arith.constant 0.000000e+00 : f32
    %322 = vector.broadcast %cst_130 : f32 to vector<16x128xf32>
    %323 = arith.cmpf ogt, %321, %322 : vector<16x128xf32>
    %cst_131 = arith.constant 2.000000e-01 : f32
    %324 = vector.broadcast %cst_131 : f32 to vector<16x128xf32>
    %325 = arith.mulf %324, %321 : vector<16x128xf32>
    %326 = arith.select %323, %321, %325 : vector<16x128xi1>, vector<16x128xf32>
    %327 = arith.truncf %326 : vector<16x128xf32> to vector<16x128xbf16>
    %c16 = arith.constant 16 : index
    %c0_132 = arith.constant 0 : index
    %328 = vector.load %arg10[%c16, %c0_132] : memref<64x128xbf16, #tpu.memory_space<vmem>>, vector<16x128xbf16>
    tpu.vector_store %arg10[%c16, %c0_132], %327 {strides = array<i32>} : memref<64x128xbf16, #tpu.memory_space<vmem>>, vector<16x128xbf16>,
    %329 = vector.extract_strided_slice %264 {offsets = [32, 0], sizes = [16, 128], strides = [1, 1]} : vector<64x128xf32> to vector<16x128xf32>
    %330 = vector.shape_cast %329 : vector<16x128xf32> to vector<1x16x128xf32>
    %cst_133 = arith.constant dense<0.000000e+00> : vector<1xf32>
    %331 = vector.multi_reduction <add>, %330, %cst_133 [1, 2] : vector<1x16x128xf32> to vector<1xf32>
    %332 = vector.shape_cast %331 : vector<1xf32> to vector<1x1x1xf32>
    %333 = vector.extract %332[0, 0, 0] : f32 from vector<1x1x1xf32>
    %cst_134 = arith.constant 2.048000e+03 : f32
    %334 = arith.divf %333, %cst_134 : f32
    %335 = vector.broadcast %334 : f32 to vector<16x128xf32>
    %336 = arith.subf %329, %335 : vector<16x128xf32>
    %337 = arith.mulf %336, %336 : vector<16x128xf32>
    %338 = vector.shape_cast %337 : vector<16x128xf32> to vector<1x16x128xf32>
    %cst_135 = arith.constant dense<0.000000e+00> : vector<1xf32>
    %339 = vector.multi_reduction <add>, %338, %cst_135 [1, 2] : vector<1x16x128xf32> to vector<1xf32>
    %340 = vector.shape_cast %339 : vector<1xf32> to vector<1x1x1xf32>
    %341 = vector.extract %340[0, 0, 0] : f32 from vector<1x1x1xf32>
    %cst_136 = arith.constant 2.048000e+03 : f32
    %342 = arith.divf %341, %cst_136 : f32
    %c2_137 = arith.constant 2 : index
    %c2_138 = arith.constant 2 : index
    %343 = memref.load %arg5[%c2_137, %c2_138] : memref<3x4xf32, #tpu.memory_space<smem>>
    %cst_139 = arith.constant 9.99999974E-6 : f32
    %344 = arith.addf %342, %cst_139 : f32
    %345 = math.rsqrt %344 : f32
    %346 = arith.mulf %343, %345 : f32
    %c2_140 = arith.constant 2 : index
    %c2_141 = arith.constant 2 : index
    %347 = memref.load %arg6[%c2_140, %c2_141] : memref<3x4xf32, #tpu.memory_space<smem>>
    %348 = arith.mulf %334, %346 : f32
    %349 = arith.subf %347, %348 : f32
    %350 = vector.broadcast %346 : f32 to vector<16x128xf32>
    %351 = arith.mulf %329, %350 : vector<16x128xf32>
    %352 = vector.broadcast %349 : f32 to vector<16x128xf32>
    %353 = arith.addf %351, %352 : vector<16x128xf32>
    %cst_142 = arith.constant 0.000000e+00 : f32
    %354 = vector.broadcast %cst_142 : f32 to vector<16x128xf32>
    %355 = arith.cmpf ogt, %353, %354 : vector<16x128xf32>
    %cst_143 = arith.constant 2.000000e-01 : f32
    %356 = vector.broadcast %cst_143 : f32 to vector<16x128xf32>
    %357 = arith.mulf %356, %353 : vector<16x128xf32>
    %358 = arith.select %355, %353, %357 : vector<16x128xi1>, vector<16x128xf32>
    %359 = arith.truncf %358 : vector<16x128xf32> to vector<16x128xbf16>
    %c32 = arith.constant 32 : index
    %c0_144 = arith.constant 0 : index
    %360 = vector.load %arg10[%c32, %c0_144] : memref<64x128xbf16, #tpu.memory_space<vmem>>, vector<16x128xbf16>
    tpu.vector_store %arg10[%c32, %c0_144], %359 {strides = array<i32>} : memref<64x128xbf16, #tpu.memory_space<vmem>>, vector<16x128xbf16>,
    %361 = vector.extract_strided_slice %264 {offsets = [48, 0], sizes = [16, 128], strides = [1, 1]} : vector<64x128xf32> to vector<16x128xf32>
    %362 = vector.shape_cast %361 : vector<16x128xf32> to vector<1x16x128xf32>
    %cst_145 = arith.constant dense<0.000000e+00> : vector<1xf32>
    %363 = vector.multi_reduction <add>, %362, %cst_145 [1, 2] : vector<1x16x128xf32> to vector<1xf32>
    %364 = vector.shape_cast %363 : vector<1xf32> to vector<1x1x1xf32>
    %365 = vector.extract %364[0, 0, 0] : f32 from vector<1x1x1xf32>
    %cst_146 = arith.constant 2.048000e+03 : f32
    %366 = arith.divf %365, %cst_146 : f32
    %367 = vector.broadcast %366 : f32 to vector<16x128xf32>
    %368 = arith.subf %361, %367 : vector<16x128xf32>
    %369 = arith.mulf %368, %368 : vector<16x128xf32>
    %370 = vector.shape_cast %369 : vector<16x128xf32> to vector<1x16x128xf32>
    %cst_147 = arith.constant dense<0.000000e+00> : vector<1xf32>
    %371 = vector.multi_reduction <add>, %370, %cst_147 [1, 2] : vector<1x16x128xf32> to vector<1xf32>
    %372 = vector.shape_cast %371 : vector<1xf32> to vector<1x1x1xf32>
    %373 = vector.extract %372[0, 0, 0] : f32 from vector<1x1x1xf32>
    %cst_148 = arith.constant 2.048000e+03 : f32
    %374 = arith.divf %373, %cst_148 : f32
    %c2_149 = arith.constant 2 : index
    %c3_150 = arith.constant 3 : index
    %375 = memref.load %arg5[%c2_149, %c3_150] : memref<3x4xf32, #tpu.memory_space<smem>>
    %cst_151 = arith.constant 9.99999974E-6 : f32
    %376 = arith.addf %374, %cst_151 : f32
    %377 = math.rsqrt %376 : f32
    %378 = arith.mulf %375, %377 : f32
    %c2_152 = arith.constant 2 : index
    %c3_153 = arith.constant 3 : index
    %379 = memref.load %arg6[%c2_152, %c3_153] : memref<3x4xf32, #tpu.memory_space<smem>>
    %380 = arith.mulf %366, %378 : f32
    %381 = arith.subf %379, %380 : f32
    %382 = vector.broadcast %378 : f32 to vector<16x128xf32>
    %383 = arith.mulf %361, %382 : vector<16x128xf32>
    %384 = vector.broadcast %381 : f32 to vector<16x128xf32>
    %385 = arith.addf %383, %384 : vector<16x128xf32>
    %cst_154 = arith.constant 0.000000e+00 : f32
    %386 = vector.broadcast %cst_154 : f32 to vector<16x128xf32>
    %387 = arith.cmpf ogt, %385, %386 : vector<16x128xf32>
    %cst_155 = arith.constant 2.000000e-01 : f32
    %388 = vector.broadcast %cst_155 : f32 to vector<16x128xf32>
    %389 = arith.mulf %388, %385 : vector<16x128xf32>
    %390 = arith.select %387, %385, %389 : vector<16x128xi1>, vector<16x128xf32>
    %391 = arith.truncf %390 : vector<16x128xf32> to vector<16x128xbf16>
    %c48 = arith.constant 48 : index
    %c0_156 = arith.constant 0 : index
    %392 = vector.load %arg10[%c48, %c0_156] : memref<64x128xbf16, #tpu.memory_space<vmem>>, vector<16x128xbf16>
    tpu.vector_store %arg10[%c48, %c0_156], %391 {strides = array<i32>} : memref<64x128xbf16, #tpu.memory_space<vmem>>, vector<16x128xbf16>,
    %c0_157 = arith.constant 0 : index
    %c0_158 = arith.constant 0 : index
    %393 = vector.load %arg4[%c0_157, %c0_158] : memref<8x64xbf16, #tpu.memory_space<vmem>>, vector<8x64xbf16>
    %c0_159 = arith.constant 0 : index
    %c0_160 = arith.constant 0 : index
    %394 = vector.load %arg10[%c0_159, %c0_160] : memref<64x128xbf16, #tpu.memory_space<vmem>>, vector<64x128xbf16>
    %cst_161 = arith.constant dense<0.000000e+00> : vector<8x128xf32>
    %395 = tpu.matmul %393, %394, %cst_161 {dimension_numbers = #tpu.dot_dimension_numbers<[1], [0], [0], [1], [0, 0, 1, 1], [], []>} : vector<8x64xbf16>, vector<64x128xbf16>, vector<8x128xf32> -> vector<8x128xf32>
    %396 = vector.extract_strided_slice %395 {offsets = [0, 0], sizes = [1, 128], strides = [1, 1]} : vector<8x128xf32> to vector<1x128xf32>
    %397 = arith.negf %396 : vector<1x128xf32>
    %398 = math.exp %397 : vector<1x128xf32>
    %cst_162 = arith.constant 1.000000e+00 : f32
    %399 = vector.broadcast %cst_162 : f32 to vector<1x128xf32>
    %400 = arith.addf %399, %398 : vector<1x128xf32>
    %401 = arith.divf %399, %400 : vector<1x128xf32>
    %c0_163 = arith.constant 0 : index
    %c0_164 = arith.constant 0 : index
    %402 = vector.load %arg7[%c0_163, %c0_164] : memref<1x128xf32, #tpu.memory_space<vmem>>, vector<1x128xf32>
    tpu.vector_store %arg7[%c0_163, %c0_164], %401 {strides = array<i32>} : memref<1x128xf32, #tpu.memory_space<vmem>>, vector<1x128xf32>,
    return
  }
}

</mosaic_0001>

<llo_original>
// kernel: mul.39
$region0: #{mul.39}
  #allocation0 [shape = 's32[1]{0}', space=sflag, size = 0x4, scoped, tag = 'scoped memory for mul.39']
  %s0 = inlined_call_operand.vmem [shape: f32[64], index: 0, kind: input, shape index: {}]
  %s1 = inlined_call_operand.vmem [shape: f32[64], index: 1, kind: input, shape index: {}]
  %s2 = inlined_call_operand.vmem [shape: f32[64], index: 2, kind: output, shape index: {}]
  %v3 = vld [vmem:[%s0] sm:$0x1]
  %v4 = vld [vmem:[%s1] sm:$0x1]
  %5 = xla_tuple %v3, %v4
  %6 = xla_tuple %5
  %v7 = vmul.f32 %v3, %v4
  %8 = xla_tuple %v7
  %9 = vst [vmem:[%s2] sm:$0x1] %v7

// kernel: discr_forward.1
$region0: #{discr_forward.1}
  #allocation0 [shape = 'u32[]', space=smem, size = 0x4, offset = 0x4, fixed_abs, tag = 'smem constant byte address 0x4 - core index']
  #allocation1 [shape = 'u32[144,128]{1,0:T(1,128)}', space=vmem, size = 0x12000, scoped, tag = 'internal scratch']
  #allocation2 [shape = 'bf16[1024,128]{1,0:T(16,128)(2,1)}', space=vmem, size = 0x40000, scoped, tag = 'scratch operand']
  #allocation3 [shape = 'bf16[256,128]{1,0:T(16,128)(2,1)}', space=vmem, size = 0x10000, scoped, tag = 'scratch operand']
  #allocation4 [shape = 'bf16[64,128]{1,0:T(16,128)(2,1)}', space=vmem, size = 0x4000, scoped, tag = 'scratch operand']
  %s0 = inlined_call_operand.vmem [shape: bf16[1152,128], index: 0, kind: input, shape index: {}]
  %s1 = inlined_call_operand.vmem [shape: bf16[1024,1152], index: 1, kind: input, shape index: {}]
  %s2 = inlined_call_operand.vmem [shape: bf16[256,1024], index: 2, kind: input, shape index: {}]
  %s3 = inlined_call_operand.vmem [shape: bf16[64,256], index: 3, kind: input, shape index: {}]
  %s4 = inlined_call_operand.vmem [shape: bf16[8,64], index: 4, kind: input, shape index: {}]
  %s5 = inlined_call_operand.vmem [shape: f32[3,4], index: 5, kind: input, shape index: {}]
  %s6 = inlined_call_operand.vmem [shape: f32[3,4], index: 6, kind: input, shape index: {}]
  %s7 = inlined_call_operand.hbm [shape: f32[1,128], index: 7, kind: output, shape index: {}]
  %s8 = sld [smem:[#allocation0]]
  $region46: #{discr_forward.1} parent=0
    _
  %s10 = ssub.s32 1, %s8
  %s11 = scalar_select 0, %s10, %s8
  $region1: #{discr_forward.1} parent=0
    #allocation5 [shape = 'u8[2048]{0}', space=smem, size = 0x800, scoped, tag = 'input window, operand 5, single buffered']
    #allocation6 [shape = 's32[1]{0}', space=sflag, size = 0x4, scoped, tag = 'scoped memory for discr_forward.1']
    #allocation7 [shape = 's32[1]{0}', space=sflag, size = 0x4, scoped, tag = 'scoped memory for discr_forward.1']
    #allocation8 [shape = 'u8[2048]{0}', space=smem, size = 0x800, scoped, tag = 'input window, operand 6, single buffered']
    #allocation9 [shape = 's32[1]{0}', space=sflag, size = 0x4, scoped, tag = 'scoped memory for discr_forward.1']
    #allocation10 [shape = 'u8[512]{0}', space=vmem, size = 0x400, scoped, tag = 'output window, operand 0, single buffered']
    %12 = vsyncpa [#allocation7], 0
    %13 = vsyncpa [#allocation9], 0
    %14 = vsyncpa [#allocation6], 0
    // Predicated region
    $region2: #{discr_forward.1} parent=1 // pred_check
      _
    $region3: #{discr_forward.1} parent=1 // pred_check_branch
      %16 = sbr.rel (0) target = $region5
    $region4: #{discr_forward.1} parent=1 // pred_region
      _
    $region5: #{discr_forward.1} parent=1 // pred_fallthru
      _
    // Predicated region
    $region6: #{discr_forward.1} parent=1 // pred_check
      _
    $region7: #{discr_forward.1} parent=1 // pred_check_branch
      %18 = sbr.rel (0) target = $region9
    $region8: #{discr_forward.1} parent=1 // pred_region
      _
    $region9: #{discr_forward.1} parent=1 // pred_fallthru
      _
    // Predicated region
    $region10: #{discr_forward.1} parent=1 // pred_check
      _
    $region11: #{discr_forward.1} parent=1 // pred_check_branch
      %20 = sbr.rel (0) target = $region13
    $region12: #{discr_forward.1} parent=1 // pred_region
      _
    $region13: #{discr_forward.1} parent=1 // pred_fallthru
      _
    // Predicated region
    $region14: #{discr_forward.1} parent=1 // pred_check
      _
    $region15: #{discr_forward.1} parent=1 // pred_check_branch
      %22 = sbr.rel (0) target = $region17
    $region16: #{discr_forward.1} parent=1 // pred_region
      _
    $region17: #{discr_forward.1} parent=1 // pred_fallthru
      _
    // Predicated region
    $region18: #{discr_forward.1} parent=1 // pred_check
      _
    $region19: #{discr_forward.1} parent=1 // pred_check_branch
      %24 = sbr.rel (0) target = $region21
    $region20: #{discr_forward.1} parent=1 // pred_region
      _
    $region21: #{discr_forward.1} parent=1 // pred_fallthru
      _
    // Predicated region
    $region22: #{discr_forward.1} parent=1 // pred_check
      _
    $region23: #{discr_forward.1} parent=1 // pred_check_branch
      %26 = sbr.rel (0) target = $region25
    $region24: #{discr_forward.1} parent=1 // pred_region
      %s28 = ssub.s32 64, 64
      %29 = vsyncadd [#allocation7], %s28
      %s31 = sshll.u32 %s5, 4
      %s32 = int_to_ptr.vmem [resolvable:$true] %s31
      %34 = dma.vmem_to_smem %s32, 64, [#allocation5], [#allocation7]
    $region25: #{discr_forward.1} parent=1 // pred_fallthru
      _
    // Predicated region
    $region26: #{discr_forward.1} parent=1 // pred_check
      _
    $region27: #{discr_forward.1} parent=1 // pred_check_branch
      %36 = sbr.rel (0) target = $region29
    $region28: #{discr_forward.1} parent=1 // pred_region
      %s38 = ssub.s32 64, 64
      %39 = vsyncadd [#allocation9], %s38
      %s41 = sshll.u32 %s6, 4
      %s42 = int_to_ptr.vmem [resolvable:$true] %s41
      %44 = dma.vmem_to_smem %s42, 64, [#allocation8], [#allocation9]
    $region29: #{discr_forward.1} parent=1 // pred_fallthru
      _
    // Predicated region
    $region30: #{discr_forward.1} parent=1 // pred_check
      _
    $region31: #{discr_forward.1} parent=1 // pred_check_branch
      %46 = sbr.rel (0) target = $region33
    $region32: #{discr_forward.1} parent=1 // pred_region
      %47 = dma.done [#allocation7], 64
    $region33: #{discr_forward.1} parent=1 // pred_fallthru
      _
    // Predicated region
    $region34: #{discr_forward.1} parent=1 // pred_check
      _
    $region35: #{discr_forward.1} parent=1 // pred_check_branch
      %49 = sbr.rel (0) target = $region37
    $region36: #{discr_forward.1} parent=1 // pred_region
      %50 = dma.done [#allocation9], 64
    $region37: #{discr_forward.1} parent=1 // pred_fallthru
      _
    %51 = sfence
    %v53 = vld [vmem:[%s1] sm:$0xff]
    %v54 = vld [vmem:[%s1 + $0x8] sm:$0xff]
    %v55 = vld [vmem:[%s1 + $0x10] sm:$0xff]
    %v56 = vld [vmem:[%s1 + $0x18] sm:$0xff]
    %v57 = vld [vmem:[%s1 + $0x20] sm:$0xf]
    %v58 = vld [vmem:[%s1 + $0x24] sm:$0xff]
    %v59 = vld [vmem:[%s1 + $0x2c] sm:$0xff]
    %v60 = vld [vmem:[%s1 + $0x34] sm:$0xff]
    %v61 = vld [vmem:[%s1 + $0x3c] sm:$0xff]
    %v62 = vld [vmem:[%s1 + $0x44] sm:$0xf]
    %v63 = vld [vmem:[%s1 + $0x48] sm:$0xff]
    %v64 = vld [vmem:[%s1 + $0x50] sm:$0xff]
    %v65 = vld [vmem:[%s1 + $0x58] sm:$0xff]
    %v66 = vld [vmem:[%s1 + $0x60] sm:$0xff]
    %v67 = vld [vmem:[%s1 + $0x68] sm:$0xf]
    %v68 = vld [vmem:[%s1 + $0x6c] sm:$0xff]
    %v69 = vld [vmem:[%s1 + $0x74] sm:$0xff]
    %v70 = vld [vmem:[%s1 + $0x7c] sm:$0xff]
    %v71 = vld [vmem:[%s1 + $0x84] sm:$0xff]
    %v72 = vld [vmem:[%s1 + $0x8c] sm:$0xf]
    %v73 = vld [vmem:[%s1 + $0x90] sm:$0xff]
    %v74 = vld [vmem:[%s1 + $0x98] sm:$0xff]
    %v75 = vld [vmem:[%s1 + $0xa0] sm:$0xff]
    %v76 = vld [vmem:[%s1 + $0xa8] sm:$0xff]
    %v77 = vld [vmem:[%s1 + $0xb0] sm:$0xf]
    %v78 = vld [vmem:[%s1 + $0xb4] sm:$0xff]
    %v79 = vld [vmem:[%s1 + $0xbc] sm:$0xff]
    %v80 = vld [vmem:[%s1 + $0xc4] sm:$0xff]
    %v81 = vld [vmem:[%s1 + $0xcc] sm:$0xff]
    %v82 = vld [vmem:[%s1 + $0xd4] sm:$0xf]
    %v83 = vld [vmem:[%s1 + $0xd8] sm:$0xff]
    %v84 = vld [vmem:[%s1 + $0xe0] sm:$0xff]
    %v85 = vld [vmem:[%s1 + $0xe8] sm:$0xff]
    %v86 = vld [vmem:[%s1 + $0xf0] sm:$0xff]
    %v87 = vld [vmem:[%s1 + $0xf8] sm:$0xf]
    %v88 = vld [vmem:[%s1 + $0xfc] sm:$0xff]
    %v89 = vld [vmem:[%s1 + $0x104] sm:$0xff]
    %v90 = vld [vmem:[%s1 + $0x10c] sm:$0xff]
    %v91 = vld [vmem:[%s1 + $0x114] sm:$0xff]
    %v92 = vld [vmem:[%s1 + $0x11c] sm:$0xf]
    %v93 = vld [vmem:[%s1 + $0x120] sm:$0xff]
    %v94 = vld [vmem:[%s1 + $0x128] sm:$0xff]
    %v95 = vld [vmem:[%s1 + $0x130] sm:$0xff]
    %v96 = vld [vmem:[%s1 + $0x138] sm:$0xff]
    %v97 = vld [vmem:[%s1 + $0x140] sm:$0xf]
    %v98 = vld [vmem:[%s1 + $0x144] sm:$0xff]
    %v99 = vld [vmem:[%s1 + $0x14c] sm:$0xff]
    %v100 = vld [vmem:[%s1 + $0x154] sm:$0xff]
    %v101 = vld [vmem:[%s1 + $0x15c] sm:$0xff]
    %v102 = vld [vmem:[%s1 + $0x164] sm:$0xf]
    %v103 = vld [vmem:[%s1 + $0x168] sm:$0xff]
    %v104 = vld [vmem:[%s1 + $0x170] sm:$0xff]
    %v105 = vld [vmem:[%s1 + $0x178] sm:$0xff]
    %v106 = vld [vmem:[%s1 + $0x180] sm:$0xff]
    %v107 = vld [vmem:[%s1 + $0x188] sm:$0xf]
    %v108 = vld [vmem:[%s1 + $0x18c] sm:$0xff]
    %v109 = vld [vmem:[%s1 + $0x194] sm:$0xff]
    %v110 = vld [vmem:[%s1 + $0x19c] sm:$0xff]
    %v111 = vld [vmem:[%s1 + $0x1a4] sm:$0xff]
    %v112 = vld [vmem:[%s1 + $0x1ac] sm:$0xf]
    %v113 = vld [vmem:[%s1 + $0x1b0] sm:$0xff]
    %v114 = vld [vmem:[%s1 + $0x1b8] sm:$0xff]
    %v115 = vld [vmem:[%s1 + $0x1c0] sm:$0xff]
    %v116 = vld [vmem:[%s1 + $0x1c8] sm:$0xff]
    %v117 = vld [vmem:[%s1 + $0x1d0] sm:$0xf]
    %v118 = vld [vmem:[%s1 + $0x1d4] sm:$0xff]
    %v119 = vld [vmem:[%s1 + $0x1dc] sm:$0xff]
    %v120 = vld [vmem:[%s1 + $0x1e4] sm:$0xff]
    %v121 = vld [vmem:[%s1 + $0x1ec] sm:$0xff]
    %v122 = vld [vmem:[%s1 + $0x1f4] sm:$0xf]
    %v123 = vld [vmem:[%s1 + $0x1f8] sm:$0xff]
    %v124 = vld [vmem:[%s1 + $0x200] sm:$0xff]
    %v125 = vld [vmem:[%s1 + $0x208] sm:$0xff]
    %v126 = vld [vmem:[%s1 + $0x210] sm:$0xff]
    %v127 = vld [vmem:[%s1 + $0x218] sm:$0xf]
    %v128 = vld [vmem:[%s1 + $0x21c] sm:$0xff]
    %v129 = vld [vmem:[%s1 + $0x224] sm:$0xff]
    %v130 = vld [vmem:[%s1 + $0x22c] sm:$0xff]
    %v131 = vld [vmem:[%s1 + $0x234] sm:$0xff]
    %v132 = vld [vmem:[%s1 + $0x23c] sm:$0xf]
    %v133 = vld [vmem:[%s1 + $0x240] sm:$0xff]
    %v134 = vld [vmem:[%s1 + $0x248] sm:$0xff]
    %v135 = vld [vmem:[%s1 + $0x250] sm:$0xff]
    %v136 = vld [vmem:[%s1 + $0x258] sm:$0xff]
    %v137 = vld [vmem:[%s1 + $0x260] sm:$0xf]
    %v138 = vld [vmem:[%s1 + $0x264] sm:$0xff]
    %v139 = vld [vmem:[%s1 + $0x26c] sm:$0xff]
    %v140 = vld [vmem:[%s1 + $0x274] sm:$0xff]
    %v141 = vld [vmem:[%s1 + $0x27c] sm:$0xff]
    %v142 = vld [vmem:[%s1 + $0x284] sm:$0xf]
    %v143 = vld [vmem:[%s1 + $0x288] sm:$0xff]
    %v144 = vld [vmem:[%s1 + $0x290] sm:$0xff]
    %v145 = vld [vmem:[%s1 + $0x298] sm:$0xff]
    %v146 = vld [vmem:[%s1 + $0x2a0] sm:$0xff]
    %v147 = vld [vmem:[%s1 + $0x2a8] sm:$0xf]
    %v148 = vld [vmem:[%s1 + $0x2ac] sm:$0xff]
    %v149 = vld [vmem:[%s1 + $0x2b4] sm:$0xff]
    %v150 = vld [vmem:[%s1 + $0x2bc] sm:$0xff]
    %v151 = vld [vmem:[%s1 + $0x2c4] sm:$0xff]
    %v152 = vld [vmem:[%s1 + $0x2cc] sm:$0xf]
    %v153 = vld [vmem:[%s1 + $0x2d0] sm:$0xff]
    %v154 = vld [vmem:[%s1 + $0x2d8] sm:$0xff]
    %v155 = vld [vmem:[%s1 + $0x2e0] sm:$0xff]
    %v156 = vld [vmem:[%s1 + $0x2e8] sm:$0xff]
    %v157 = vld [vmem:[%s1 + $0x2f0] sm:$0xf]
    %v158 = vld [vmem:[%s1 + $0x2f4] sm:$0xff]
    %v159 = vld [vmem:[%s1 + $0x2fc] sm:$0xff]
    %v160 = vld [vmem:[%s1 + $0x304] sm:$0xff]
    %v161 = vld [vmem:[%s1 + $0x30c] sm:$0xff]
    %v162 = vld [vmem:[%s1 + $0x314] sm:$0xf]
    %v163 = vld [vmem:[%s1 + $0x318] sm:$0xff]
    %v164 = vld [vmem:[%s1 + $0x320] sm:$0xff]
    %v165 = vld [vmem:[%s1 + $0x328] sm:$0xff]
    %v166 = vld [vmem:[%s1 + $0x330] sm:$0xff]
    %v167 = vld [vmem:[%s1 + $0x338] sm:$0xf]
    %v168 = vld [vmem:[%s1 + $0x33c] sm:$0xff]
    %v169 = vld [vmem:[%s1 + $0x344] sm:$0xff]
    %v170 = vld [vmem:[%s1 + $0x34c] sm:$0xff]
    %v171 = vld [vmem:[%s1 + $0x354] sm:$0xff]
    %v172 = vld [vmem:[%s1 + $0x35c] sm:$0xf]
    %v173 = vld [vmem:[%s1 + $0x360] sm:$0xff]
    %v174 = vld [vmem:[%s1 + $0x368] sm:$0xff]
    %v175 = vld [vmem:[%s1 + $0x370] sm:$0xff]
    %v176 = vld [vmem:[%s1 + $0x378] sm:$0xff]
    %v177 = vld [vmem:[%s1 + $0x380] sm:$0xf]
    %v178 = vld [vmem:[%s1 + $0x384] sm:$0xff]
    %v179 = vld [vmem:[%s1 + $0x38c] sm:$0xff]
    %v180 = vld [vmem:[%s1 + $0x394] sm:$0xff]
    %v181 = vld [vmem:[%s1 + $0x39c] sm:$0xff]
    %v182 = vld [vmem:[%s1 + $0x3a4] sm:$0xf]
    %v183 = vld [vmem:[%s1 + $0x3a8] sm:$0xff]
    %v184 = vld [vmem:[%s1 + $0x3b0] sm:$0xff]
    %v185 = vld [vmem:[%s1 + $0x3b8] sm:$0xff]
    %v186 = vld [vmem:[%s1 + $0x3c0] sm:$0xff]
    %v187 = vld [vmem:[%s1 + $0x3c8] sm:$0xf]
    %v188 = vld [vmem:[%s1 + $0x3cc] sm:$0xff]
    %v189 = vld [vmem:[%s1 + $0x3d4] sm:$0xff]
    %v190 = vld [vmem:[%s1 + $0x3dc] sm:$0xff]
    %v191 = vld [vmem:[%s1 + $0x3e4] sm:$0xff]
    %v192 = vld [vmem:[%s1 + $0x3ec] sm:$0xf]
    %v193 = vld [vmem:[%s1 + $0x3f0] sm:$0xff]
    %v194 = vld [vmem:[%s1 + $0x3f8] sm:$0xff]
    %v195 = vld [vmem:[%s1 + $0x400] sm:$0xff]
    %v196 = vld [vmem:[%s1 + $0x408] sm:$0xff]
    %v197 = vld [vmem:[%s1 + $0x410] sm:$0xf]
    %v198 = vld [vmem:[%s1 + $0x414] sm:$0xff]
    %v199 = vld [vmem:[%s1 + $0x41c] sm:$0xff]
    %v200 = vld [vmem:[%s1 + $0x424] sm:$0xff]
    %v201 = vld [vmem:[%s1 + $0x42c] sm:$0xff]
    %v202 = vld [vmem:[%s1 + $0x434] sm:$0xf]
    %v203 = vld [vmem:[%s1 + $0x438] sm:$0xff]
    %v204 = vld [vmem:[%s1 + $0x440] sm:$0xff]
    %v205 = vld [vmem:[%s1 + $0x448] sm:$0xff]
    %v206 = vld [vmem:[%s1 + $0x450] sm:$0xff]
    %v207 = vld [vmem:[%s1 + $0x458] sm:$0xf]
    %v208 = vld [vmem:[%s1 + $0x45c] sm:$0xff]
    %v209 = vld [vmem:[%s1 + $0x464] sm:$0xff]
    %v210 = vld [vmem:[%s1 + $0x46c] sm:$0xff]
    %v211 = vld [vmem:[%s1 + $0x474] sm:$0xff]
    %v212 = vld [vmem:[%s1 + $0x47c] sm:$0xf]
    %v213 = vld [vmem:[%s1 + $0x480] sm:$0xff]
    %v214 = vld [vmem:[%s1 + $0x488] sm:$0xff]
    %v215 = vld [vmem:[%s1 + $0x490] sm:$0xff]
    %v216 = vld [vmem:[%s1 + $0x498] sm:$0xff]
    %v217 = vld [vmem:[%s1 + $0x4a0] sm:$0xf]
    %v218 = vld [vmem:[%s1 + $0x4a4] sm:$0xff]
    %v219 = vld [vmem:[%s1 + $0x4ac] sm:$0xff]
    %v220 = vld [vmem:[%s1 + $0x4b4] sm:$0xff]
    %v221 = vld [vmem:[%s1 + $0x4bc] sm:$0xff]
    %v222 = vld [vmem:[%s1 + $0x4c4] sm:$0xf]
    %v223 = vld [vmem:[%s1 + $0x4c8] sm:$0xff]
    %v224 = vld [vmem:[%s1 + $0x4d0] sm:$0xff]
    %v225 = vld [vmem:[%s1 + $0x4d8] sm:$0xff]
    %v226 = vld [vmem:[%s1 + $0x4e0] sm:$0xff]
    %v227 = vld [vmem:[%s1 + $0x4e8] sm:$0xf]
    %v228 = vld [vmem:[%s1 + $0x4ec] sm:$0xff]
    %v229 = vld [vmem:[%s1 + $0x4f4] sm:$0xff]
    %v230 = vld [vmem:[%s1 + $0x4fc] sm:$0xff]
    %v231 = vld [vmem:[%s1 + $0x504] sm:$0xff]
    %v232 = vld [vmem:[%s1 + $0x50c] sm:$0xf]
    %v233 = vld [vmem:[%s1 + $0x510] sm:$0xff]
    %v234 = vld [vmem:[%s1 + $0x518] sm:$0xff]
    %v235 = vld [vmem:[%s1 + $0x520] sm:$0xff]
    %v236 = vld [vmem:[%s1 + $0x528] sm:$0xff]
    %v237 = vld [vmem:[%s1 + $0x530] sm:$0xf]
    %v238 = vld [vmem:[%s1 + $0x534] sm:$0xff]
    %v239 = vld [vmem:[%s1 + $0x53c] sm:$0xff]
    %v240 = vld [vmem:[%s1 + $0x544] sm:$0xff]
    %v241 = vld [vmem:[%s1 + $0x54c] sm:$0xff]
    %v242 = vld [vmem:[%s1 + $0x554] sm:$0xf]
    %v243 = vld [vmem:[%s1 + $0x558] sm:$0xff]
    %v244 = vld [vmem:[%s1 + $0x560] sm:$0xff]
    %v245 = vld [vmem:[%s1 + $0x568] sm:$0xff]
    %v246 = vld [vmem:[%s1 + $0x570] sm:$0xff]
    %v247 = vld [vmem:[%s1 + $0x578] sm:$0xf]
    %v248 = vld [vmem:[%s1 + $0x57c] sm:$0xff]
    %v249 = vld [vmem:[%s1 + $0x584] sm:$0xff]
    %v250 = vld [vmem:[%s1 + $0x58c] sm:$0xff]
    %v251 = vld [vmem:[%s1 + $0x594] sm:$0xff]
    %v252 = vld [vmem:[%s1 + $0x59c] sm:$0xf]
    %v253 = vld [vmem:[%s1 + $0x5a0] sm:$0xff]
    %v254 = vld [vmem:[%s1 + $0x5a8] sm:$0xff]
    %v255 = vld [vmem:[%s1 + $0x5b0] sm:$0xff]
    %v256 = vld [vmem:[%s1 + $0x5b8] sm:$0xff]
    %v257 = vld [vmem:[%s1 + $0x5c0] sm:$0xf]
    %v258 = vld [vmem:[%s1 + $0x5c4] sm:$0xff]
    %v259 = vld [vmem:[%s1 + $0x5cc] sm:$0xff]
    %v260 = vld [vmem:[%s1 + $0x5d4] sm:$0xff]
    %v261 = vld [vmem:[%s1 + $0x5dc] sm:$0xff]
    %v262 = vld [vmem:[%s1 + $0x5e4] sm:$0xf]
    %v263 = vld [vmem:[%s1 + $0x5e8] sm:$0xff]
    %v264 = vld [vmem:[%s1 + $0x5f0] sm:$0xff]
    %v265 = vld [vmem:[%s1 + $0x5f8] sm:$0xff]
    %v266 = vld [vmem:[%s1 + $0x600] sm:$0xff]
    %v267 = vld [vmem:[%s1 + $0x608] sm:$0xf]
    %v268 = vld [vmem:[%s1 + $0x60c] sm:$0xff]
    %v269 = vld [vmem:[%s1 + $0x614] sm:$0xff]
    %v270 = vld [vmem:[%s1 + $0x61c] sm:$0xff]
    %v271 = vld [vmem:[%s1 + $0x624] sm:$0xff]
    %v272 = vld [vmem:[%s1 + $0x62c] sm:$0xf]
    %v273 = vld [vmem:[%s1 + $0x630] sm:$0xff]
    %v274 = vld [vmem:[%s1 + $0x638] sm:$0xff]
    %v275 = vld [vmem:[%s1 + $0x640] sm:$0xff]
    %v276 = vld [vmem:[%s1 + $0x648] sm:$0xff]
    %v277 = vld [vmem:[%s1 + $0x650] sm:$0xf]
    %v278 = vld [vmem:[%s1 + $0x654] sm:$0xff]
    %v279 = vld [vmem:[%s1 + $0x65c] sm:$0xff]
    %v280 = vld [vmem:[%s1 + $0x664] sm:$0xff]
    %v281 = vld [vmem:[%s1 + $0x66c] sm:$0xff]
    %v282 = vld [vmem:[%s1 + $0x674] sm:$0xf]
    %v283 = vld [vmem:[%s1 + $0x678] sm:$0xff]
    %v284 = vld [vmem:[%s1 + $0x680] sm:$0xff]
    %v285 = vld [vmem:[%s1 + $0x688] sm:$0xff]
    %v286 = vld [vmem:[%s1 + $0x690] sm:$0xff]
    %v287 = vld [vmem:[%s1 + $0x698] sm:$0xf]
    %v288 = vld [vmem:[%s1 + $0x69c] sm:$0xff]
    %v289 = vld [vmem:[%s1 + $0x6a4] sm:$0xff]
    %v290 = vld [vmem:[%s1 + $0x6ac] sm:$0xff]
    %v291 = vld [vmem:[%s1 + $0x6b4] sm:$0xff]
    %v292 = vld [vmem:[%s1 + $0x6bc] sm:$0xf]
    %v293 = vld [vmem:[%s1 + $0x6c0] sm:$0xff]
    %v294 = vld [vmem:[%s1 + $0x6c8] sm:$0xff]
    %v295 = vld [vmem:[%s1 + $0x6d0] sm:$0xff]
    %v296 = vld [vmem:[%s1 + $0x6d8] sm:$0xff]
    %v297 = vld [vmem:[%s1 + $0x6e0] sm:$0xf]
    %v298 = vld [vmem:[%s1 + $0x6e4] sm:$0xff]
    %v299 = vld [vmem:[%s1 + $0x6ec] sm:$0xff]
    %v300 = vld [vmem:[%s1 + $0x6f4] sm:$0xff]
    %v301 = vld [vmem:[%s1 + $0x6fc] sm:$0xff]
    %v302 = vld [vmem:[%s1 + $0x704] sm:$0xf]
    %v303 = vld [vmem:[%s1 + $0x708] sm:$0xff]
    %v304 = vld [vmem:[%s1 + $0x710] sm:$0xff]
    %v305 = vld [vmem:[%s1 + $0x718] sm:$0xff]
    %v306 = vld [vmem:[%s1 + $0x720] sm:$0xff]
    %v307 = vld [vmem:[%s1 + $0x728] sm:$0xf]
    %v308 = vld [vmem:[%s1 + $0x72c] sm:$0xff]
    %v309 = vld [vmem:[%s1 + $0x734] sm:$0xff]
    %v310 = vld [vmem:[%s1 + $0x73c] sm:$0xff]
    %v311 = vld [vmem:[%s1 + $0x744] sm:$0xff]
    %v312 = vld [vmem:[%s1 + $0x74c] sm:$0xf]
    %v313 = vld [vmem:[%s1 + $0x750] sm:$0xff]
    %v314 = vld [vmem:[%s1 + $0x758] sm:$0xff]
    %v315 = vld [vmem:[%s1 + $0x760] sm:$0xff]
    %v316 = vld [vmem:[%s1 + $0x768] sm:$0xff]
    %v317 = vld [vmem:[%s1 + $0x770] sm:$0xf]
    %v318 = vld [vmem:[%s1 + $0x774] sm:$0xff]
    %v319 = vld [vmem:[%s1 + $0x77c] sm:$0xff]
    %v320 = vld [vmem:[%s1 + $0x784] sm:$0xff]
    %v321 = vld [vmem:[%s1 + $0x78c] sm:$0xff]
    %v322 = vld [vmem:[%s1 + $0x794] sm:$0xf]
    %v323 = vld [vmem:[%s1 + $0x798] sm:$0xff]
    %v324 = vld [vmem:[%s1 + $0x7a0] sm:$0xff]
    %v325 = vld [vmem:[%s1 + $0x7a8] sm:$0xff]
    %v326 = vld [vmem:[%s1 + $0x7b0] sm:$0xff]
    %v327 = vld [vmem:[%s1 + $0x7b8] sm:$0xf]
    %v328 = vld [vmem:[%s1 + $0x7bc] sm:$0xff]
    %v329 = vld [vmem:[%s1 + $0x7c4] sm:$0xff]
    %v330 = vld [vmem:[%s1 + $0x7cc] sm:$0xff]
    %v331 = vld [vmem:[%s1 + $0x7d4] sm:$0xff]
    %v332 = vld [vmem:[%s1 + $0x7dc] sm:$0xf]
    %v333 = vld [vmem:[%s1 + $0x7e0] sm:$0xff]
    %v334 = vld [vmem:[%s1 + $0x7e8] sm:$0xff]
    %v335 = vld [vmem:[%s1 + $0x7f0] sm:$0xff]
    %v336 = vld [vmem:[%s1 + $0x7f8] sm:$0xff]
    %v337 = vld [vmem:[%s1 + $0x800] sm:$0xf]
    %v338 = vld [vmem:[%s1 + $0x804] sm:$0xff]
    %v339 = vld [vmem:[%s1 + $0x80c] sm:$0xff]
    %v340 = vld [vmem:[%s1 + $0x814] sm:$0xff]
    %v341 = vld [vmem:[%s1 + $0x81c] sm:$0xff]
    %v342 = vld [vmem:[%s1 + $0x824] sm:$0xf]
    %v343 = vld [vmem:[%s1 + $0x828] sm:$0xff]
    %v344 = vld [vmem:[%s1 + $0x830] sm:$0xff]
    %v345 = vld [vmem:[%s1 + $0x838] sm:$0xff]
    %v346 = vld [vmem:[%s1 + $0x840] sm:$0xff]
    %v347 = vld [vmem:[%s1 + $0x848] sm:$0xf]
    %v348 = vld [vmem:[%s1 + $0x84c] sm:$0xff]
    %v349 = vld [vmem:[%s1 + $0x854] sm:$0xff]
    %v350 = vld [vmem:[%s1 + $0x85c] sm:$0xff]
    %v351 = vld [vmem:[%s1 + $0x864] sm:$0xff]
    %v352 = vld [vmem:[%s1 + $0x86c] sm:$0xf]
    %v353 = vld [vmem:[%s1 + $0x870] sm:$0xff]
    %v354 = vld [vmem:[%s1 + $0x878] sm:$0xff]
    %v355 = vld [vmem:[%s1 + $0x880] sm:$0xff]
    %v356 = vld [vmem:[%s1 + $0x888] sm:$0xff]
    %v357 = vld [vmem:[%s1 + $0x890] sm:$0xf]
    %v358 = vld [vmem:[%s1 + $0x894] sm:$0xff]
    %v359 = vld [vmem:[%s1 + $0x89c] sm:$0xff]
    %v360 = vld [vmem:[%s1 + $0x8a4] sm:$0xff]
    %v361 = vld [vmem:[%s1 + $0x8ac] sm:$0xff]
    %v362 = vld [vmem:[%s1 + $0x8b4] sm:$0xf]
    %v363 = vld [vmem:[%s1 + $0x8b8] sm:$0xff]
    %v364 = vld [vmem:[%s1 + $0x8c0] sm:$0xff]
    %v365 = vld [vmem:[%s1 + $0x8c8] sm:$0xff]
    %v366 = vld [vmem:[%s1 + $0x8d0] sm:$0xff]
    %v367 = vld [vmem:[%s1 + $0x8d8] sm:$0xf]
    %v368 = vld [vmem:[%s1 + $0x8dc] sm:$0xff]
    %v369 = vld [vmem:[%s1 + $0x8e4] sm:$0xff]
    %v370 = vld [vmem:[%s1 + $0x8ec] sm:$0xff]
    %v371 = vld [vmem:[%s1 + $0x8f4] sm:$0xff]
    %v372 = vld [vmem:[%s1 + $0x8fc] sm:$0xf]
    %v373 = vld [vmem:[%s1 + $0x900] sm:$0xff]
    %v374 = vld [vmem:[%s1 + $0x908] sm:$0xff]
    %v375 = vld [vmem:[%s1 + $0x910] sm:$0xff]
    %v376 = vld [vmem:[%s1 + $0x918] sm:$0xff]
    %v377 = vld [vmem:[%s1 + $0x920] sm:$0xf]
    %v378 = vld [vmem:[%s1 + $0x924] sm:$0xff]
    %v379 = vld [vmem:[%s1 + $0x92c] sm:$0xff]
    %v380 = vld [vmem:[%s1 + $0x934] sm:$0xff]
    %v381 = vld [vmem:[%s1 + $0x93c] sm:$0xff]
    %v382 = vld [vmem:[%s1 + $0x944] sm:$0xf]
    %v383 = vld [vmem:[%s1 + $0x948] sm:$0xff]
    %v384 = vld [vmem:[%s1 + $0x950] sm:$0xff]
    %v385 = vld [vmem:[%s1 + $0x958] sm:$0xff]
    %v386 = vld [vmem:[%s1 + $0x960] sm:$0xff]
    %v387 = vld [vmem:[%s1 + $0x968] sm:$0xf]
    %v388 = vld [vmem:[%s1 + $0x96c] sm:$0xff]
    %v389 = vld [vmem:[%s1 + $0x974] sm:$0xff]
    %v390 = vld [vmem:[%s1 + $0x97c] sm:$0xff]
    %v391 = vld [vmem:[%s1 + $0x984] sm:$0xff]
    %v392 = vld [vmem:[%s1 + $0x98c] sm:$0xf]
    %v393 = vld [vmem:[%s1 + $0x990] sm:$0xff]
    %v394 = vld [vmem:[%s1 + $0x998] sm:$0xff]
    %v395 = vld [vmem:[%s1 + $0x9a0] sm:$0xff]
    %v396 = vld [vmem:[%s1 + $0x9a8] sm:$0xff]
    %v397 = vld [vmem:[%s1 + $0x9b0] sm:$0xf]
    %v398 = vld [vmem:[%s1 + $0x9b4] sm:$0xff]
    %v399 = vld [vmem:[%s1 + $0x9bc] sm:$0xff]
    %v400 = vld [vmem:[%s1 + $0x9c4] sm:$0xff]
    %v401 = vld [vmem:[%s1 + $0x9cc] sm:$0xff]
    %v402 = vld [vmem:[%s1 + $0x9d4] sm:$0xf]
    %v403 = vld [vmem:[%s1 + $0x9d8] sm:$0xff]
    %v404 = vld [vmem:[%s1 + $0x9e0] sm:$0xff]
    %v405 = vld [vmem:[%s1 + $0x9e8] sm:$0xff]
    %v406 = vld [vmem:[%s1 + $0x9f0] sm:$0xff]
    %v407 = vld [vmem:[%s1 + $0x9f8] sm:$0xf]
    %v408 = vld [vmem:[%s1 + $0x9fc] sm:$0xff]
    %v409 = vld [vmem:[%s1 + $0xa04] sm:$0xff]
    %v410 = vld [vmem:[%s1 + $0xa0c] sm:$0xff]
    %v411 = vld [vmem:[%s1 + $0xa14] sm:$0xff]
    %v412 = vld [vmem:[%s1 + $0xa1c] sm:$0xf]
    %v413 = vld [vmem:[%s1 + $0xa20] sm:$0xff]
    %v414 = vld [vmem:[%s1 + $0xa28] sm:$0xff]
    %v415 = vld [vmem:[%s1 + $0xa30] sm:$0xff]
    %v416 = vld [vmem:[%s1 + $0xa38] sm:$0xff]
    %v417 = vld [vmem:[%s1 + $0xa40] sm:$0xf]
    %v418 = vld [vmem:[%s1 + $0xa44] sm:$0xff]
    %v419 = vld [vmem:[%s1 + $0xa4c] sm:$0xff]
    %v420 = vld [vmem:[%s1 + $0xa54] sm:$0xff]
    %v421 = vld [vmem:[%s1 + $0xa5c] sm:$0xff]
    %v422 = vld [vmem:[%s1 + $0xa64] sm:$0xf]
    %v423 = vld [vmem:[%s1 + $0xa68] sm:$0xff]
    %v424 = vld [vmem:[%s1 + $0xa70] sm:$0xff]
    %v425 = vld [vmem:[%s1 + $0xa78] sm:$0xff]
    %v426 = vld [vmem:[%s1 + $0xa80] sm:$0xff]
    %v427 = vld [vmem:[%s1 + $0xa88] sm:$0xf]
    %v428 = vld [vmem:[%s1 + $0xa8c] sm:$0xff]
    %v429 = vld [vmem:[%s1 + $0xa94] sm:$0xff]
    %v430 = vld [vmem:[%s1 + $0xa9c] sm:$0xff]
    %v431 = vld [vmem:[%s1 + $0xaa4] sm:$0xff]
    %v432 = vld [vmem:[%s1 + $0xaac] sm:$0xf]
    %v433 = vld [vmem:[%s1 + $0xab0] sm:$0xff]
    %v434 = vld [vmem:[%s1 + $0xab8] sm:$0xff]
    %v435 = vld [vmem:[%s1 + $0xac0] sm:$0xff]
    %v436 = vld [vmem:[%s1 + $0xac8] sm:$0xff]
    %v437 = vld [vmem:[%s1 + $0xad0] sm:$0xf]
    %v438 = vld [vmem:[%s1 + $0xad4] sm:$0xff]
    %v439 = vld [vmem:[%s1 + $0xadc] sm:$0xff]
    %v440 = vld [vmem:[%s1 + $0xae4] sm:$0xff]
    %v441 = vld [vmem:[%s1 + $0xaec] sm:$0xff]
    %v442 = vld [vmem:[%s1 + $0xaf4] sm:$0xf]
    %v443 = vld [vmem:[%s1 + $0xaf8] sm:$0xff]
    %v444 = vld [vmem:[%s1 + $0xb00] sm:$0xff]
    %v445 = vld [vmem:[%s1 + $0xb08] sm:$0xff]
    %v446 = vld [vmem:[%s1 + $0xb10] sm:$0xff]
    %v447 = vld [vmem:[%s1 + $0xb18] sm:$0xf]
    %v448 = vld [vmem:[%s1 + $0xb1c] sm:$0xff]
    %v449 = vld [vmem:[%s1 + $0xb24] sm:$0xff]
    %v450 = vld [vmem:[%s1 + $0xb2c] sm:$0xff]
    %v451 = vld [vmem:[%s1 + $0xb34] sm:$0xff]
    %v452 = vld [vmem:[%s1 + $0xb3c] sm:$0xf]
    %v453 = vld [vmem:[%s1 + $0xb40] sm:$0xff]
    %v454 = vld [vmem:[%s1 + $0xb48] sm:$0xff]
    %v455 = vld [vmem:[%s1 + $0xb50] sm:$0xff]
    %v456 = vld [vmem:[%s1 + $0xb58] sm:$0xff]
    %v457 = vld [vmem:[%s1 + $0xb60] sm:$0xf]
    %v458 = vld [vmem:[%s1 + $0xb64] sm:$0xff]
    %v459 = vld [vmem:[%s1 + $0xb6c] sm:$0xff]
    %v460 = vld [vmem:[%s1 + $0xb74] sm:$0xff]
    %v461 = vld [vmem:[%s1 + $0xb7c] sm:$0xff]
    %v462 = vld [vmem:[%s1 + $0xb84] sm:$0xf]
    %v463 = vld [vmem:[%s1 + $0xb88] sm:$0xff]
    %v464 = vld [vmem:[%s1 + $0xb90] sm:$0xff]
    %v465 = vld [vmem:[%s1 + $0xb98] sm:$0xff]
    %v466 = vld [vmem:[%s1 + $0xba0] sm:$0xff]
    %v467 = vld [vmem:[%s1 + $0xba8] sm:$0xf]
    %v468 = vld [vmem:[%s1 + $0xbac] sm:$0xff]
    %v469 = vld [vmem:[%s1 + $0xbb4] sm:$0xff]
    %v470 = vld [vmem:[%s1 + $0xbbc] sm:$0xff]
    %v471 = vld [vmem:[%s1 + $0xbc4] sm:$0xff]
    %v472 = vld [vmem:[%s1 + $0xbcc] sm:$0xf]
    %v473 = vld [vmem:[%s1 + $0xbd0] sm:$0xff]
    %v474 = vld [vmem:[%s1 + $0xbd8] sm:$0xff]
    %v475 = vld [vmem:[%s1 + $0xbe0] sm:$0xff]
    %v476 = vld [vmem:[%s1 + $0xbe8] sm:$0xff]
    %v477 = vld [vmem:[%s1 + $0xbf0] sm:$0xf]
    %v478 = vld [vmem:[%s1 + $0xbf4] sm:$0xff]
    %v479 = vld [vmem:[%s1 + $0xbfc] sm:$0xff]
    %v480 = vld [vmem:[%s1 + $0xc04] sm:$0xff]
    %v481 = vld [vmem:[%s1 + $0xc0c] sm:$0xff]
    %v482 = vld [vmem:[%s1 + $0xc14] sm:$0xf]
    %v483 = vld [vmem:[%s1 + $0xc18] sm:$0xff]
    %v484 = vld [vmem:[%s1 + $0xc20] sm:$0xff]
    %v485 = vld [vmem:[%s1 + $0xc28] sm:$0xff]
    %v486 = vld [vmem:[%s1 + $0xc30] sm:$0xff]
    %v487 = vld [vmem:[%s1 + $0xc38] sm:$0xf]
    %v488 = vld [vmem:[%s1 + $0xc3c] sm:$0xff]
    %v489 = vld [vmem:[%s1 + $0xc44] sm:$0xff]
    %v490 = vld [vmem:[%s1 + $0xc4c] sm:$0xff]
    %v491 = vld [vmem:[%s1 + $0xc54] sm:$0xff]
    %v492 = vld [vmem:[%s1 + $0xc5c] sm:$0xf]
    %v493 = vld [vmem:[%s1 + $0xc60] sm:$0xff]
    %v494 = vld [vmem:[%s1 + $0xc68] sm:$0xff]
    %v495 = vld [vmem:[%s1 + $0xc70] sm:$0xff]
    %v496 = vld [vmem:[%s1 + $0xc78] sm:$0xff]
    %v497 = vld [vmem:[%s1 + $0xc80] sm:$0xf]
    %v498 = vld [vmem:[%s1 + $0xc84] sm:$0xff]
    %v499 = vld [vmem:[%s1 + $0xc8c] sm:$0xff]
    %v500 = vld [vmem:[%s1 + $0xc94] sm:$0xff]
    %v501 = vld [vmem:[%s1 + $0xc9c] sm:$0xff]
    %v502 = vld [vmem:[%s1 + $0xca4] sm:$0xf]
    %v503 = vld [vmem:[%s1 + $0xca8] sm:$0xff]
    %v504 = vld [vmem:[%s1 + $0xcb0] sm:$0xff]
    %v505 = vld [vmem:[%s1 + $0xcb8] sm:$0xff]
    %v506 = vld [vmem:[%s1 + $0xcc0] sm:$0xff]
    %v507 = vld [vmem:[%s1 + $0xcc8] sm:$0xf]
    %v508 = vld [vmem:[%s1 + $0xccc] sm:$0xff]
    %v509 = vld [vmem:[%s1 + $0xcd4] sm:$0xff]
    %v510 = vld [vmem:[%s1 + $0xcdc] sm:$0xff]
    %v511 = vld [vmem:[%s1 + $0xce4] sm:$0xff]
    %v512 = vld [vmem:[%s1 + $0xcec] sm:$0xf]
    %v513 = vld [vmem:[%s1 + $0xcf0] sm:$0xff]
    %v514 = vld [vmem:[%s1 + $0xcf8] sm:$0xff]
    %v515 = vld [vmem:[%s1 + $0xd00] sm:$0xff]
    %v516 = vld [vmem:[%s1 + $0xd08] sm:$0xff]
    %v517 = vld [vmem:[%s1 + $0xd10] sm:$0xf]
    %v518 = vld [vmem:[%s1 + $0xd14] sm:$0xff]
    %v519 = vld [vmem:[%s1 + $0xd1c] sm:$0xff]
    %v520 = vld [vmem:[%s1 + $0xd24] sm:$0xff]
    %v521 = vld [vmem:[%s1 + $0xd2c] sm:$0xff]
    %v522 = vld [vmem:[%s1 + $0xd34] sm:$0xf]
    %v523 = vld [vmem:[%s1 + $0xd38] sm:$0xff]
    %v524 = vld [vmem:[%s1 + $0xd40] sm:$0xff]
    %v525 = vld [vmem:[%s1 + $0xd48] sm:$0xff]
    %v526 = vld [vmem:[%s1 + $0xd50] sm:$0xff]
    %v527 = vld [vmem:[%s1 + $0xd58] sm:$0xf]
    %v528 = vld [vmem:[%s1 + $0xd5c] sm:$0xff]
    %v529 = vld [vmem:[%s1 + $0xd64] sm:$0xff]
    %v530 = vld [vmem:[%s1 + $0xd6c] sm:$0xff]
    %v531 = vld [vmem:[%s1 + $0xd74] sm:$0xff]
    %v532 = vld [vmem:[%s1 + $0xd7c] sm:$0xf]
    %v533 = vld [vmem:[%s1 + $0xd80] sm:$0xff]
    %v534 = vld [vmem:[%s1 + $0xd88] sm:$0xff]
    %v535 = vld [vmem:[%s1 + $0xd90] sm:$0xff]
    %v536 = vld [vmem:[%s1 + $0xd98] sm:$0xff]
    %v537 = vld [vmem:[%s1 + $0xda0] sm:$0xf]
    %v538 = vld [vmem:[%s1 + $0xda4] sm:$0xff]
    %v539 = vld [vmem:[%s1 + $0xdac] sm:$0xff]
    %v540 = vld [vmem:[%s1 + $0xdb4] sm:$0xff]
    %v541 = vld [vmem:[%s1 + $0xdbc] sm:$0xff]
    %v542 = vld [vmem:[%s1 + $0xdc4] sm:$0xf]
    %v543 = vld [vmem:[%s1 + $0xdc8] sm:$0xff]
    %v544 = vld [vmem:[%s1 + $0xdd0] sm:$0xff]
    %v545 = vld [vmem:[%s1 + $0xdd8] sm:$0xff]
    %v546 = vld [vmem:[%s1 + $0xde0] sm:$0xff]
    %v547 = vld [vmem:[%s1 + $0xde8] sm:$0xf]
    %v548 = vld [vmem:[%s1 + $0xdec] sm:$0xff]
    %v549 = vld [vmem:[%s1 + $0xdf4] sm:$0xff]
    %v550 = vld [vmem:[%s1 + $0xdfc] sm:$0xff]
    %v551 = vld [vmem:[%s1 + $0xe04] sm:$0xff]
    %v552 = vld [vmem:[%s1 + $0xe0c] sm:$0xf]
    %v553 = vld [vmem:[%s1 + $0xe10] sm:$0xff]
    %v554 = vld [vmem:[%s1 + $0xe18] sm:$0xff]
    %v555 = vld [vmem:[%s1 + $0xe20] sm:$0xff]
    %v556 = vld [vmem:[%s1 + $0xe28] sm:$0xff]
    %v557 = vld [vmem:[%s1 + $0xe30] sm:$0xf]
    %v558 = vld [vmem:[%s1 + $0xe34] sm:$0xff]
    %v559 = vld [vmem:[%s1 + $0xe3c] sm:$0xff]
    %v560 = vld [vmem:[%s1 + $0xe44] sm:$0xff]
    %v561 = vld [vmem:[%s1 + $0xe4c] sm:$0xff]
    %v562 = vld [vmem:[%s1 + $0xe54] sm:$0xf]
    %v563 = vld [vmem:[%s1 + $0xe58] sm:$0xff]
    %v564 = vld [vmem:[%s1 + $0xe60] sm:$0xff]
    %v565 = vld [vmem:[%s1 + $0xe68] sm:$0xff]
    %v566 = vld [vmem:[%s1 + $0xe70] sm:$0xff]
    %v567 = vld [vmem:[%s1 + $0xe78] sm:$0xf]
    %v568 = vld [vmem:[%s1 + $0xe7c] sm:$0xff]
    %v569 = vld [vmem:[%s1 + $0xe84] sm:$0xff]
    %v570 = vld [vmem:[%s1 + $0xe8c] sm:$0xff]
    %v571 = vld [vmem:[%s1 + $0xe94] sm:$0xff]
    %v572 = vld [vmem:[%s1 + $0xe9c] sm:$0xf]
    %v573 = vld [vmem:[%s1 + $0xea0] sm:$0xff]
    %v574 = vld [vmem:[%s1 + $0xea8] sm:$0xff]
    %v575 = vld [vmem:[%s1 + $0xeb0] sm:$0xff]
    %v576 = vld [vmem:[%s1 + $0xeb8] sm:$0xff]
    %v577 = vld [vmem:[%s1 + $0xec0] sm:$0xf]
    %v578 = vld [vmem:[%s1 + $0xec4] sm:$0xff]
    %v579 = vld [vmem:[%s1 + $0xecc] sm:$0xff]
    %v580 = vld [vmem:[%s1 + $0xed4] sm:$0xff]
    %v581 = vld [vmem:[%s1 + $0xedc] sm:$0xff]
    %v582 = vld [vmem:[%s1 + $0xee4] sm:$0xf]
    %v583 = vld [vmem:[%s1 + $0xee8] sm:$0xff]
    %v584 = vld [vmem:[%s1 + $0xef0] sm:$0xff]
    %v585 = vld [vmem:[%s1 + $0xef8] sm:$0xff]
    %v586 = vld [vmem:[%s1 + $0xf00] sm:$0xff]
    %v587 = vld [vmem:[%s1 + $0xf08] sm:$0xf]
    %v588 = vld [vmem:[%s1 + $0xf0c] sm:$0xff]
    %v589 = vld [vmem:[%s1 + $0xf14] sm:$0xff]
    %v590 = vld [vmem:[%s1 + $0xf1c] sm:$0xff]
    %v591 = vld [vmem:[%s1 + $0xf24] sm:$0xff]
    %v592 = vld [vmem:[%s1 + $0xf2c] sm:$0xf]
    %v593 = vld [vmem:[%s1 + $0xf30] sm:$0xff]
    %v594 = vld [vmem:[%s1 + $0xf38] sm:$0xff]
    %v595 = vld [vmem:[%s1 + $0xf40] sm:$0xff]
    %v596 = vld [vmem:[%s1 + $0xf48] sm:$0xff]
    %v597 = vld [vmem:[%s1 + $0xf50] sm:$0xf]
    %v598 = vld [vmem:[%s1 + $0xf54] sm:$0xff]
    %v599 = vld [vmem:[%s1 + $0xf5c] sm:$0xff]
    %v600 = vld [vmem:[%s1 + $0xf64] sm:$0xff]
    %v601 = vld [vmem:[%s1 + $0xf6c] sm:$0xff]
    %v602 = vld [vmem:[%s1 + $0xf74] sm:$0xf]
    %v603 = vld [vmem:[%s1 + $0xf78] sm:$0xff]
    %v604 = vld [vmem:[%s1 + $0xf80] sm:$0xff]
    %v605 = vld [vmem:[%s1 + $0xf88] sm:$0xff]
    %v606 = vld [vmem:[%s1 + $0xf90] sm:$0xff]
    %v607 = vld [vmem:[%s1 + $0xf98] sm:$0xf]
    %v608 = vld [vmem:[%s1 + $0xf9c] sm:$0xff]
    %v609 = vld [vmem:[%s1 + $0xfa4] sm:$0xff]
    %v610 = vld [vmem:[%s1 + $0xfac] sm:$0xff]
    %v611 = vld [vmem:[%s1 + $0xfb4] sm:$0xff]
    %v612 = vld [vmem:[%s1 + $0xfbc] sm:$0xf]
    %v613 = vld [vmem:[%s1 + $0xfc0] sm:$0xff]
    %v614 = vld [vmem:[%s1 + $0xfc8] sm:$0xff]
    %v615 = vld [vmem:[%s1 + $0xfd0] sm:$0xff]
    %v616 = vld [vmem:[%s1 + $0xfd8] sm:$0xff]
    %v617 = vld [vmem:[%s1 + $0xfe0] sm:$0xf]
    %v618 = vld [vmem:[%s1 + $0xfe4] sm:$0xff]
    %v619 = vld [vmem:[%s1 + $0xfec] sm:$0xff]
    %v620 = vld [vmem:[%s1 + $0xff4] sm:$0xff]
    %v621 = vld [vmem:[%s1 + $0xffc] sm:$0xff]
    %v622 = vld [vmem:[%s1 + $0x1004] sm:$0xf]
    %v623 = vld [vmem:[%s1 + $0x1008] sm:$0xff]
    %v624 = vld [vmem:[%s1 + $0x1010] sm:$0xff]
    %v625 = vld [vmem:[%s1 + $0x1018] sm:$0xff]
    %v626 = vld [vmem:[%s1 + $0x1020] sm:$0xff]
    %v627 = vld [vmem:[%s1 + $0x1028] sm:$0xf]
    %v628 = vld [vmem:[%s1 + $0x102c] sm:$0xff]
    %v629 = vld [vmem:[%s1 + $0x1034] sm:$0xff]
    %v630 = vld [vmem:[%s1 + $0x103c] sm:$0xff]
    %v631 = vld [vmem:[%s1 + $0x1044] sm:$0xff]
    %v632 = vld [vmem:[%s1 + $0x104c] sm:$0xf]
    %v633 = vld [vmem:[%s1 + $0x1050] sm:$0xff]
    %v634 = vld [vmem:[%s1 + $0x1058] sm:$0xff]
    %v635 = vld [vmem:[%s1 + $0x1060] sm:$0xff]
    %v636 = vld [vmem:[%s1 + $0x1068] sm:$0xff]
    %v637 = vld [vmem:[%s1 + $0x1070] sm:$0xf]
    %v638 = vld [vmem:[%s1 + $0x1074] sm:$0xff]
    %v639 = vld [vmem:[%s1 + $0x107c] sm:$0xff]
    %v640 = vld [vmem:[%s1 + $0x1084] sm:$0xff]
    %v641 = vld [vmem:[%s1 + $0x108c] sm:$0xff]
    %v642 = vld [vmem:[%s1 + $0x1094] sm:$0xf]
    %v643 = vld [vmem:[%s1 + $0x1098] sm:$0xff]
    %v644 = vld [vmem:[%s1 + $0x10a0] sm:$0xff]
    %v645 = vld [vmem:[%s1 + $0x10a8] sm:$0xff]
    %v646 = vld [vmem:[%s1 + $0x10b0] sm:$0xff]
    %v647 = vld [vmem:[%s1 + $0x10b8] sm:$0xf]
    %v648 = vld [vmem:[%s1 + $0x10bc] sm:$0xff]
    %v649 = vld [vmem:[%s1 + $0x10c4] sm:$0xff]
    %v650 = vld [vmem:[%s1 + $0x10cc] sm:$0xff]
    %v651 = vld [vmem:[%s1 + $0x10d4] sm:$0xff]
    %v652 = vld [vmem:[%s1 + $0x10dc] sm:$0xf]
    %v653 = vld [vmem:[%s1 + $0x10e0] sm:$0xff]
    %v654 = vld [vmem:[%s1 + $0x10e8] sm:$0xff]
    %v655 = vld [vmem:[%s1 + $0x10f0] sm:$0xff]
    %v656 = vld [vmem:[%s1 + $0x10f8] sm:$0xff]
    %v657 = vld [vmem:[%s1 + $0x1100] sm:$0xf]
    %v658 = vld [vmem:[%s1 + $0x1104] sm:$0xff]
    %v659 = vld [vmem:[%s1 + $0x110c] sm:$0xff]
    %v660 = vld [vmem:[%s1 + $0x1114] sm:$0xff]
    %v661 = vld [vmem:[%s1 + $0x111c] sm:$0xff]
    %v662 = vld [vmem:[%s1 + $0x1124] sm:$0xf]
    %v663 = vld [vmem:[%s1 + $0x1128] sm:$0xff]
    %v664 = vld [vmem:[%s1 + $0x1130] sm:$0xff]
    %v665 = vld [vmem:[%s1 + $0x1138] sm:$0xff]
    %v666 = vld [vmem:[%s1 + $0x1140] sm:$0xff]
    %v667 = vld [vmem:[%s1 + $0x1148] sm:$0xf]
    %v668 = vld [vmem:[%s1 + $0x114c] sm:$0xff]
    %v669 = vld [vmem:[%s1 + $0x1154] sm:$0xff]
    %v670 = vld [vmem:[%s1 + $0x115c] sm:$0xff]
    %v671 = vld [vmem:[%s1 + $0x1164] sm:$0xff]
    %v672 = vld [vmem:[%s1 + $0x116c] sm:$0xf]
    %v673 = vld [vmem:[%s1 + $0x1170] sm:$0xff]
    %v674 = vld [vmem:[%s1 + $0x1178] sm:$0xff]
    %v675 = vld [vmem:[%s1 + $0x1180] sm:$0xff]
    %v676 = vld [vmem:[%s1 + $0x1188] sm:$0xff]
    %v677 = vld [vmem:[%s1 + $0x1190] sm:$0xf]
    %v678 = vld [vmem:[%s1 + $0x1194] sm:$0xff]
    %v679 = vld [vmem:[%s1 + $0x119c] sm:$0xff]
    %v680 = vld [vmem:[%s1 + $0x11a4] sm:$0xff]
    %v681 = vld [vmem:[%s1 + $0x11ac] sm:$0xff]
    %v682 = vld [vmem:[%s1 + $0x11b4] sm:$0xf]
    %v683 = vld [vmem:[%s1 + $0x11b8] sm:$0xff]
    %v684 = vld [vmem:[%s1 + $0x11c0] sm:$0xff]
    %v685 = vld [vmem:[%s1 + $0x11c8] sm:$0xff]
    %v686 = vld [vmem:[%s1 + $0x11d0] sm:$0xff]
    %v687 = vld [vmem:[%s1 + $0x11d8] sm:$0xf]
    %v688 = vld [vmem:[%s1 + $0x11dc] sm:$0xff]
    %v689 = vld [vmem:[%s1 + $0x11e4] sm:$0xff]
    %v690 = vld [vmem:[%s1 + $0x11ec] sm:$0xff]
    %v691 = vld [vmem:[%s1 + $0x11f4] sm:$0xff]
    %v692 = vld [vmem:[%s1 + $0x11fc] sm:$0xf]
    %v693 = vld [vmem:[%s0] sm:$0xf]
    %v694 = vld [vmem:[%s0 + $0x4] sm:$0xf]
    %v695 = vld [vmem:[%s0 + $0x8] sm:$0xf]
    %v696 = vld [vmem:[%s0 + $0xc] sm:$0xf]
    %v697 = vld [vmem:[%s0 + $0x10] sm:$0xf]
    %v698 = vld [vmem:[%s0 + $0x14] sm:$0xf]
    %v699 = vld [vmem:[%s0 + $0x18] sm:$0xf]
    %v700 = vld [vmem:[%s0 + $0x1c] sm:$0xf]
    %v701 = vld [vmem:[%s0 + $0x20] sm:$0xf]
    %v702 = vld [vmem:[%s0 + $0x24] sm:$0xf]
    %v703 = vld [vmem:[%s0 + $0x28] sm:$0xf]
    %v704 = vld [vmem:[%s0 + $0x2c] sm:$0xf]
    %v705 = vld [vmem:[%s0 + $0x30] sm:$0xf]
    %v706 = vld [vmem:[%s0 + $0x34] sm:$0xf]
    %v707 = vld [vmem:[%s0 + $0x38] sm:$0xf]
    %v708 = vld [vmem:[%s0 + $0x3c] sm:$0xf]
    %v709 = vld [vmem:[%s0 + $0x40] sm:$0xf]
    %v710 = vld [vmem:[%s0 + $0x44] sm:$0xf]
    %v711 = vld [vmem:[%s0 + $0x48] sm:$0xf]
    %v712 = vld [vmem:[%s0 + $0x4c] sm:$0xf]
    %v713 = vld [vmem:[%s0 + $0x50] sm:$0xf]
    %v714 = vld [vmem:[%s0 + $0x54] sm:$0xf]
    %v715 = vld [vmem:[%s0 + $0x58] sm:$0xf]
    %v716 = vld [vmem:[%s0 + $0x5c] sm:$0xf]
    %v717 = vld [vmem:[%s0 + $0x60] sm:$0xf]
    %v718 = vld [vmem:[%s0 + $0x64] sm:$0xf]
    %v719 = vld [vmem:[%s0 + $0x68] sm:$0xf]
    %v720 = vld [vmem:[%s0 + $0x6c] sm:$0xf]
    %v721 = vld [vmem:[%s0 + $0x70] sm:$0xf]
    %v722 = vld [vmem:[%s0 + $0x74] sm:$0xf]
    %v723 = vld [vmem:[%s0 + $0x78] sm:$0xf]
    %v724 = vld [vmem:[%s0 + $0x7c] sm:$0xf]
    %v725 = vld [vmem:[%s0 + $0x80] sm:$0xf]
    %v726 = vld [vmem:[%s0 + $0x84] sm:$0xf]
    %v727 = vld [vmem:[%s0 + $0x88] sm:$0xf]
    %v728 = vld [vmem:[%s0 + $0x8c] sm:$0xf]
    %v729 = vld [vmem:[%s0 + $0x90] sm:$0xf]
    %v730 = vld [vmem:[%s0 + $0x94] sm:$0xf]
    %v731 = vld [vmem:[%s0 + $0x98] sm:$0xf]
    %v732 = vld [vmem:[%s0 + $0x9c] sm:$0xf]
    %v733 = vld [vmem:[%s0 + $0xa0] sm:$0xf]
    %v734 = vld [vmem:[%s0 + $0xa4] sm:$0xf]
    %v735 = vld [vmem:[%s0 + $0xa8] sm:$0xf]
    %v736 = vld [vmem:[%s0 + $0xac] sm:$0xf]
    %v737 = vld [vmem:[%s0 + $0xb0] sm:$0xf]
    %v738 = vld [vmem:[%s0 + $0xb4] sm:$0xf]
    %v739 = vld [vmem:[%s0 + $0xb8] sm:$0xf]
    %v740 = vld [vmem:[%s0 + $0xbc] sm:$0xf]
    %v741 = vld [vmem:[%s0 + $0xc0] sm:$0xf]
    %v742 = vld [vmem:[%s0 + $0xc4] sm:$0xf]
    %v743 = vld [vmem:[%s0 + $0xc8] sm:$0xf]
    %v744 = vld [vmem:[%s0 + $0xcc] sm:$0xf]
    %v745 = vld [vmem:[%s0 + $0xd0] sm:$0xf]
    %v746 = vld [vmem:[%s0 + $0xd4] sm:$0xf]
    %v747 = vld [vmem:[%s0 + $0xd8] sm:$0xf]
    %v748 = vld [vmem:[%s0 + $0xdc] sm:$0xf]
    %v749 = vld [vmem:[%s0 + $0xe0] sm:$0xf]
    %v750 = vld [vmem:[%s0 + $0xe4] sm:$0xf]
    %v751 = vld [vmem:[%s0 + $0xe8] sm:$0xf]
    %v752 = vld [vmem:[%s0 + $0xec] sm:$0xf]
    %v753 = vld [vmem:[%s0 + $0xf0] sm:$0xf]
    %v754 = vld [vmem:[%s0 + $0xf4] sm:$0xf]
    %v755 = vld [vmem:[%s0 + $0xf8] sm:$0xf]
    %v756 = vld [vmem:[%s0 + $0xfc] sm:$0xf]
    %v757 = vld [vmem:[%s0 + $0x100] sm:$0xf]
    %v758 = vld [vmem:[%s0 + $0x104] sm:$0xf]
    %v759 = vld [vmem:[%s0 + $0x108] sm:$0xf]
    %v760 = vld [vmem:[%s0 + $0x10c] sm:$0xf]
    %v761 = vld [vmem:[%s0 + $0x110] sm:$0xf]
    %v762 = vld [vmem:[%s0 + $0x114] sm:$0xf]
    %v763 = vld [vmem:[%s0 + $0x118] sm:$0xf]
    %v764 = vld [vmem:[%s0 + $0x11c] sm:$0xf]
    %v765 = vld [vmem:[%s0 + $0x120] sm:$0xf]
    %v766 = vld [vmem:[%s0 + $0x124] sm:$0xf]
    %v767 = vld [vmem:[%s0 + $0x128] sm:$0xf]
    %v768 = vld [vmem:[%s0 + $0x12c] sm:$0xf]
    %v769 = vld [vmem:[%s0 + $0x130] sm:$0xf]
    %v770 = vld [vmem:[%s0 + $0x134] sm:$0xf]
    %v771 = vld [vmem:[%s0 + $0x138] sm:$0xf]
    %v772 = vld [vmem:[%s0 + $0x13c] sm:$0xf]
    %v773 = vld [vmem:[%s0 + $0x140] sm:$0xf]
    %v774 = vld [vmem:[%s0 + $0x144] sm:$0xf]
    %v775 = vld [vmem:[%s0 + $0x148] sm:$0xf]
    %v776 = vld [vmem:[%s0 + $0x14c] sm:$0xf]
    %v777 = vld [vmem:[%s0 + $0x150] sm:$0xf]
    %v778 = vld [vmem:[%s0 + $0x154] sm:$0xf]
    %v779 = vld [vmem:[%s0 + $0x158] sm:$0xf]
    %v780 = vld [vmem:[%s0 + $0x15c] sm:$0xf]
    %v781 = vld [vmem:[%s0 + $0x160] sm:$0xf]
    %v782 = vld [vmem:[%s0 + $0x164] sm:$0xf]
    %v783 = vld [vmem:[%s0 + $0x168] sm:$0xf]
    %v784 = vld [vmem:[%s0 + $0x16c] sm:$0xf]
    %v785 = vld [vmem:[%s0 + $0x170] sm:$0xf]
    %v786 = vld [vmem:[%s0 + $0x174] sm:$0xf]
    %v787 = vld [vmem:[%s0 + $0x178] sm:$0xf]
    %v788 = vld [vmem:[%s0 + $0x17c] sm:$0xf]
    %v789 = vld [vmem:[%s0 + $0x180] sm:$0xf]
    %v790 = vld [vmem:[%s0 + $0x184] sm:$0xf]
    %v791 = vld [vmem:[%s0 + $0x188] sm:$0xf]
    %v792 = vld [vmem:[%s0 + $0x18c] sm:$0xf]
    %v793 = vld [vmem:[%s0 + $0x190] sm:$0xf]
    %v794 = vld [vmem:[%s0 + $0x194] sm:$0xf]
    %v795 = vld [vmem:[%s0 + $0x198] sm:$0xf]
    %v796 = vld [vmem:[%s0 + $0x19c] sm:$0xf]
    %v797 = vld [vmem:[%s0 + $0x1a0] sm:$0xf]
    %v798 = vld [vmem:[%s0 + $0x1a4] sm:$0xf]
    %v799 = vld [vmem:[%s0 + $0x1a8] sm:$0xf]
    %v800 = vld [vmem:[%s0 + $0x1ac] sm:$0xf]
    %v801 = vld [vmem:[%s0 + $0x1b0] sm:$0xf]
    %v802 = vld [vmem:[%s0 + $0x1b4] sm:$0xf]
    %v803 = vld [vmem:[%s0 + $0x1b8] sm:$0xf]
    %v804 = vld [vmem:[%s0 + $0x1bc] sm:$0xf]
    %v805 = vld [vmem:[%s0 + $0x1c0] sm:$0xf]
    %v806 = vld [vmem:[%s0 + $0x1c4] sm:$0xf]
    %v807 = vld [vmem:[%s0 + $0x1c8] sm:$0xf]
    %v808 = vld [vmem:[%s0 + $0x1cc] sm:$0xf]
    %v809 = vld [vmem:[%s0 + $0x1d0] sm:$0xf]
    %v810 = vld [vmem:[%s0 + $0x1d4] sm:$0xf]
    %v811 = vld [vmem:[%s0 + $0x1d8] sm:$0xf]
    %v812 = vld [vmem:[%s0 + $0x1dc] sm:$0xf]
    %v813 = vld [vmem:[%s0 + $0x1e0] sm:$0xf]
    %v814 = vld [vmem:[%s0 + $0x1e4] sm:$0xf]
    %v815 = vld [vmem:[%s0 + $0x1e8] sm:$0xf]
    %v816 = vld [vmem:[%s0 + $0x1ec] sm:$0xf]
    %v817 = vld [vmem:[%s0 + $0x1f0] sm:$0xf]
    %v818 = vld [vmem:[%s0 + $0x1f4] sm:$0xf]
    %v819 = vld [vmem:[%s0 + $0x1f8] sm:$0xf]
    %v820 = vld [vmem:[%s0 + $0x1fc] sm:$0xf]
    %v821 = vld [vmem:[%s0 + $0x200] sm:$0xf]
    %v822 = vld [vmem:[%s0 + $0x204] sm:$0xf]
    %v823 = vld [vmem:[%s0 + $0x208] sm:$0xf]
    %v824 = vld [vmem:[%s0 + $0x20c] sm:$0xf]
    %v825 = vld [vmem:[%s0 + $0x210] sm:$0xf]
    %v826 = vld [vmem:[%s0 + $0x214] sm:$0xf]
    %v827 = vld [vmem:[%s0 + $0x218] sm:$0xf]
    %v828 = vld [vmem:[%s0 + $0x21c] sm:$0xf]
    %v829 = vld [vmem:[%s0 + $0x220] sm:$0xf]
    %v830 = vld [vmem:[%s0 + $0x224] sm:$0xf]
    %v831 = vld [vmem:[%s0 + $0x228] sm:$0xf]
    %v832 = vld [vmem:[%s0 + $0x22c] sm:$0xf]
    %v833 = vld [vmem:[%s0 + $0x230] sm:$0xf]
    %v834 = vld [vmem:[%s0 + $0x234] sm:$0xf]
    %v835 = vld [vmem:[%s0 + $0x238] sm:$0xf]
    %v836 = vld [vmem:[%s0 + $0x23c] sm:$0xf]
    %v1477 = vunpack.c.l.b16 %v53
    %v1478 = vunpack.c.h.b16 %v53
    %v1479 = vunpack.c.l.b16 %v54
    %v1480 = vunpack.c.h.b16 %v54
    %v1481 = vunpack.c.l.b16 %v55
    %v1482 = vunpack.c.h.b16 %v55
    %v1483 = vunpack.c.l.b16 %v56
    %v1484 = vunpack.c.h.b16 %v56
    %v1485 = vunpack.c.l.b16 %v57
    %v1486 = vunpack.c.l.b16 %v58
    %v1487 = vunpack.c.h.b16 %v58
    %v1488 = vunpack.c.l.b16 %v59
    %v1489 = vunpack.c.h.b16 %v59
    %v1490 = vunpack.c.l.b16 %v60
    %v1491 = vunpack.c.h.b16 %v60
    %v1492 = vunpack.c.l.b16 %v61
    %v1493 = vunpack.c.h.b16 %v61
    %v1494 = vunpack.c.l.b16 %v62
    %v1495 = vunpack.c.l.b16 %v63
    %v1496 = vunpack.c.h.b16 %v63
    %v1497 = vunpack.c.l.b16 %v64
    %v1498 = vunpack.c.h.b16 %v64
    %v1499 = vunpack.c.l.b16 %v65
    %v1500 = vunpack.c.h.b16 %v65
    %v1501 = vunpack.c.l.b16 %v66
    %v1502 = vunpack.c.h.b16 %v66
    %v1503 = vunpack.c.l.b16 %v67
    %v1504 = vunpack.c.l.b16 %v68
    %v1505 = vunpack.c.h.b16 %v68
    %v1506 = vunpack.c.l.b16 %v69
    %v1507 = vunpack.c.h.b16 %v69
    %v1508 = vunpack.c.l.b16 %v70
    %v1509 = vunpack.c.h.b16 %v70
    %v1510 = vunpack.c.l.b16 %v71
    %v1511 = vunpack.c.h.b16 %v71
    %v1512 = vunpack.c.l.b16 %v72
    %v1513 = vunpack.c.l.b16 %v73
    %v1514 = vunpack.c.h.b16 %v73
    %v1515 = vunpack.c.l.b16 %v74
    %v1516 = vunpack.c.h.b16 %v74
    %v1517 = vunpack.c.l.b16 %v75
    %v1518 = vunpack.c.h.b16 %v75
    %v1519 = vunpack.c.l.b16 %v76
    %v1520 = vunpack.c.h.b16 %v76
    %v1521 = vunpack.c.l.b16 %v77
    %v1522 = vunpack.c.l.b16 %v78
    %v1523 = vunpack.c.h.b16 %v78
    %v1524 = vunpack.c.l.b16 %v79
    %v1525 = vunpack.c.h.b16 %v79
    %v1526 = vunpack.c.l.b16 %v80
    %v1527 = vunpack.c.h.b16 %v80
    %v1528 = vunpack.c.l.b16 %v81
    %v1529 = vunpack.c.h.b16 %v81
    %v1530 = vunpack.c.l.b16 %v82
    %v1531 = vunpack.c.l.b16 %v83
    %v1532 = vunpack.c.h.b16 %v83
    %v1533 = vunpack.c.l.b16 %v84
    %v1534 = vunpack.c.h.b16 %v84
    %v1535 = vunpack.c.l.b16 %v85
    %v1536 = vunpack.c.h.b16 %v85
    %v1537 = vunpack.c.l.b16 %v86
    %v1538 = vunpack.c.h.b16 %v86
    %v1539 = vunpack.c.l.b16 %v87
    %v1540 = vunpack.c.l.b16 %v88
    %v1541 = vunpack.c.h.b16 %v88
    %v1542 = vunpack.c.l.b16 %v89
    %v1543 = vunpack.c.h.b16 %v89
    %v1544 = vunpack.c.l.b16 %v90
    %v1545 = vunpack.c.h.b16 %v90
    %v1546 = vunpack.c.l.b16 %v91
    %v1547 = vunpack.c.h.b16 %v91
    %v1548 = vunpack.c.l.b16 %v92
    %v1549 = vunpack.c.l.b16 %v93
    %v1550 = vunpack.c.h.b16 %v93
    %v1551 = vunpack.c.l.b16 %v94
    %v1552 = vunpack.c.h.b16 %v94
    %v1553 = vunpack.c.l.b16 %v95
    %v1554 = vunpack.c.h.b16 %v95
    %v1555 = vunpack.c.l.b16 %v96
    %v1556 = vunpack.c.h.b16 %v96
    %v1557 = vunpack.c.l.b16 %v97
    %v1558 = vunpack.c.l.b16 %v98
    %v1559 = vunpack.c.h.b16 %v98
    %v1560 = vunpack.c.l.b16 %v99
    %v1561 = vunpack.c.h.b16 %v99
    %v1562 = vunpack.c.l.b16 %v100
    %v1563 = vunpack.c.h.b16 %v100
    %v1564 = vunpack.c.l.b16 %v101
    %v1565 = vunpack.c.h.b16 %v101
    %v1566 = vunpack.c.l.b16 %v102
    %v1567 = vunpack.c.l.b16 %v103
    %v1568 = vunpack.c.h.b16 %v103
    %v1569 = vunpack.c.l.b16 %v104
    %v1570 = vunpack.c.h.b16 %v104
    %v1571 = vunpack.c.l.b16 %v105
    %v1572 = vunpack.c.h.b16 %v105
    %v1573 = vunpack.c.l.b16 %v106
    %v1574 = vunpack.c.h.b16 %v106
    %v1575 = vunpack.c.l.b16 %v107
    %v1576 = vunpack.c.l.b16 %v108
    %v1577 = vunpack.c.h.b16 %v108
    %v1578 = vunpack.c.l.b16 %v109
    %v1579 = vunpack.c.h.b16 %v109
    %v1580 = vunpack.c.l.b16 %v110
    %v1581 = vunpack.c.h.b16 %v110
    %v1582 = vunpack.c.l.b16 %v111
    %v1583 = vunpack.c.h.b16 %v111
    %v1584 = vunpack.c.l.b16 %v112
    %v1585 = vunpack.c.l.b16 %v113
    %v1586 = vunpack.c.h.b16 %v113
    %v1587 = vunpack.c.l.b16 %v114
    %v1588 = vunpack.c.h.b16 %v114
    %v1589 = vunpack.c.l.b16 %v115
    %v1590 = vunpack.c.h.b16 %v115
    %v1591 = vunpack.c.l.b16 %v116
    %v1592 = vunpack.c.h.b16 %v116
    %v1593 = vunpack.c.l.b16 %v117
    %v1594 = vunpack.c.l.b16 %v118
    %v1595 = vunpack.c.h.b16 %v118
    %v1596 = vunpack.c.l.b16 %v119
    %v1597 = vunpack.c.h.b16 %v119
    %v1598 = vunpack.c.l.b16 %v120
    %v1599 = vunpack.c.h.b16 %v120
    %v1600 = vunpack.c.l.b16 %v121
    %v1601 = vunpack.c.h.b16 %v121
    %v1602 = vunpack.c.l.b16 %v122
    %v1603 = vunpack.c.l.b16 %v123
    %v1604 = vunpack.c.h.b16 %v123
    %v1605 = vunpack.c.l.b16 %v124
    %v1606 = vunpack.c.h.b16 %v124
    %v1607 = vunpack.c.l.b16 %v125
    %v1608 = vunpack.c.h.b16 %v125
    %v1609 = vunpack.c.l.b16 %v126
    %v1610 = vunpack.c.h.b16 %v126
    %v1611 = vunpack.c.l.b16 %v127
    %v1612 = vunpack.c.l.b16 %v128
    %v1613 = vunpack.c.h.b16 %v128
    %v1614 = vunpack.c.l.b16 %v129
    %v1615 = vunpack.c.h.b16 %v129
    %v1616 = vunpack.c.l.b16 %v130
    %v1617 = vunpack.c.h.b16 %v130
    %v1618 = vunpack.c.l.b16 %v131
    %v1619 = vunpack.c.h.b16 %v131
    %v1620 = vunpack.c.l.b16 %v132
    %v1621 = vunpack.c.l.b16 %v133
    %v1622 = vunpack.c.h.b16 %v133
    %v1623 = vunpack.c.l.b16 %v134
    %v1624 = vunpack.c.h.b16 %v134
    %v1625 = vunpack.c.l.b16 %v135
    %v1626 = vunpack.c.h.b16 %v135
    %v1627 = vunpack.c.l.b16 %v136
    %v1628 = vunpack.c.h.b16 %v136
    %v1629 = vunpack.c.l.b16 %v137
    %v1630 = vunpack.c.l.b16 %v138
    %v1631 = vunpack.c.h.b16 %v138
    %v1632 = vunpack.c.l.b16 %v139
    %v1633 = vunpack.c.h.b16 %v139
    %v1634 = vunpack.c.l.b16 %v140
    %v1635 = vunpack.c.h.b16 %v140
    %v1636 = vunpack.c.l.b16 %v141
    %v1637 = vunpack.c.h.b16 %v141
    %v1638 = vunpack.c.l.b16 %v142
    %v1639 = vunpack.c.l.b16 %v143
    %v1640 = vunpack.c.h.b16 %v143
    %v1641 = vunpack.c.l.b16 %v144
    %v1642 = vunpack.c.h.b16 %v144
    %v1643 = vunpack.c.l.b16 %v145
    %v1644 = vunpack.c.h.b16 %v145
    %v1645 = vunpack.c.l.b16 %v146
    %v1646 = vunpack.c.h.b16 %v146
    %v1647 = vunpack.c.l.b16 %v147
    %v1648 = vunpack.c.l.b16 %v148
    %v1649 = vunpack.c.h.b16 %v148
    %v1650 = vunpack.c.l.b16 %v149
    %v1651 = vunpack.c.h.b16 %v149
    %v1652 = vunpack.c.l.b16 %v150
    %v1653 = vunpack.c.h.b16 %v150
    %v1654 = vunpack.c.l.b16 %v151
    %v1655 = vunpack.c.h.b16 %v151
    %v1656 = vunpack.c.l.b16 %v152
    %v1657 = vunpack.c.l.b16 %v153
    %v1658 = vunpack.c.h.b16 %v153
    %v1659 = vunpack.c.l.b16 %v154
    %v1660 = vunpack.c.h.b16 %v154
    %v1661 = vunpack.c.l.b16 %v155
    %v1662 = vunpack.c.h.b16 %v155
    %v1663 = vunpack.c.l.b16 %v156
    %v1664 = vunpack.c.h.b16 %v156
    %v1665 = vunpack.c.l.b16 %v157
    %v1666 = vunpack.c.l.b16 %v158
    %v1667 = vunpack.c.h.b16 %v158
    %v1668 = vunpack.c.l.b16 %v159
    %v1669 = vunpack.c.h.b16 %v159
    %v1670 = vunpack.c.l.b16 %v160
    %v1671 = vunpack.c.h.b16 %v160
    %v1672 = vunpack.c.l.b16 %v161
    %v1673 = vunpack.c.h.b16 %v161
    %v1674 = vunpack.c.l.b16 %v162
    %v1675 = vunpack.c.l.b16 %v163
    %v1676 = vunpack.c.h.b16 %v163
    %v1677 = vunpack.c.l.b16 %v164
    %v1678 = vunpack.c.h.b16 %v164
    %v1679 = vunpack.c.l.b16 %v165
    %v1680 = vunpack.c.h.b16 %v165
    %v1681 = vunpack.c.l.b16 %v166
    %v1682 = vunpack.c.h.b16 %v166
    %v1683 = vunpack.c.l.b16 %v167
    %v1684 = vunpack.c.l.b16 %v168
    %v1685 = vunpack.c.h.b16 %v168
    %v1686 = vunpack.c.l.b16 %v169
    %v1687 = vunpack.c.h.b16 %v169
    %v1688 = vunpack.c.l.b16 %v170
    %v1689 = vunpack.c.h.b16 %v170
    %v1690 = vunpack.c.l.b16 %v171
    %v1691 = vunpack.c.h.b16 %v171
    %v1692 = vunpack.c.l.b16 %v172
    %v1693 = vunpack.c.l.b16 %v173
    %v1694 = vunpack.c.h.b16 %v173
    %v1695 = vunpack.c.l.b16 %v174
    %v1696 = vunpack.c.h.b16 %v174
    %v1697 = vunpack.c.l.b16 %v175
    %v1698 = vunpack.c.h.b16 %v175
    %v1699 = vunpack.c.l.b16 %v176
    %v1700 = vunpack.c.h.b16 %v176
    %v1701 = vunpack.c.l.b16 %v177
    %v1702 = vunpack.c.l.b16 %v178
    %v1703 = vunpack.c.h.b16 %v178
    %v1704 = vunpack.c.l.b16 %v179
    %v1705 = vunpack.c.h.b16 %v179
    %v1706 = vunpack.c.l.b16 %v180
    %v1707 = vunpack.c.h.b16 %v180
    %v1708 = vunpack.c.l.b16 %v181
    %v1709 = vunpack.c.h.b16 %v181
    %v1710 = vunpack.c.l.b16 %v182
    %v1711 = vunpack.c.l.b16 %v183
    %v1712 = vunpack.c.h.b16 %v183
    %v1713 = vunpack.c.l.b16 %v184
    %v1714 = vunpack.c.h.b16 %v184
    %v1715 = vunpack.c.l.b16 %v185
    %v1716 = vunpack.c.h.b16 %v185
    %v1717 = vunpack.c.l.b16 %v186
    %v1718 = vunpack.c.h.b16 %v186
    %v1719 = vunpack.c.l.b16 %v187
    %v1720 = vunpack.c.l.b16 %v188
    %v1721 = vunpack.c.h.b16 %v188
    %v1722 = vunpack.c.l.b16 %v189
    %v1723 = vunpack.c.h.b16 %v189
    %v1724 = vunpack.c.l.b16 %v190
    %v1725 = vunpack.c.h.b16 %v190
    %v1726 = vunpack.c.l.b16 %v191
    %v1727 = vunpack.c.h.b16 %v191
    %v1728 = vunpack.c.l.b16 %v192
    %v1729 = vunpack.c.l.b16 %v193
    %v1730 = vunpack.c.h.b16 %v193
    %v1731 = vunpack.c.l.b16 %v194
    %v1732 = vunpack.c.h.b16 %v194
    %v1733 = vunpack.c.l.b16 %v195
    %v1734 = vunpack.c.h.b16 %v195
    %v1735 = vunpack.c.l.b16 %v196
    %v1736 = vunpack.c.h.b16 %v196
    %v1737 = vunpack.c.l.b16 %v197
    %v1738 = vunpack.c.l.b16 %v198
    %v1739 = vunpack.c.h.b16 %v198
    %v1740 = vunpack.c.l.b16 %v199
    %v1741 = vunpack.c.h.b16 %v199
    %v1742 = vunpack.c.l.b16 %v200
    %v1743 = vunpack.c.h.b16 %v200
    %v1744 = vunpack.c.l.b16 %v201
    %v1745 = vunpack.c.h.b16 %v201
    %v1746 = vunpack.c.l.b16 %v202
    %v1747 = vunpack.c.l.b16 %v203
    %v1748 = vunpack.c.h.b16 %v203
    %v1749 = vunpack.c.l.b16 %v204
    %v1750 = vunpack.c.h.b16 %v204
    %v1751 = vunpack.c.l.b16 %v205
    %v1752 = vunpack.c.h.b16 %v205
    %v1753 = vunpack.c.l.b16 %v206
    %v1754 = vunpack.c.h.b16 %v206
    %v1755 = vunpack.c.l.b16 %v207
    %v1756 = vunpack.c.l.b16 %v208
    %v1757 = vunpack.c.h.b16 %v208
    %v1758 = vunpack.c.l.b16 %v209
    %v1759 = vunpack.c.h.b16 %v209
    %v1760 = vunpack.c.l.b16 %v210
    %v1761 = vunpack.c.h.b16 %v210
    %v1762 = vunpack.c.l.b16 %v211
    %v1763 = vunpack.c.h.b16 %v211
    %v1764 = vunpack.c.l.b16 %v212
    %v1765 = vunpack.c.l.b16 %v213
    %v1766 = vunpack.c.h.b16 %v213
    %v1767 = vunpack.c.l.b16 %v214
    %v1768 = vunpack.c.h.b16 %v214
    %v1769 = vunpack.c.l.b16 %v215
    %v1770 = vunpack.c.h.b16 %v215
    %v1771 = vunpack.c.l.b16 %v216
    %v1772 = vunpack.c.h.b16 %v216
    %v1773 = vunpack.c.l.b16 %v217
    %v1774 = vunpack.c.l.b16 %v218
    %v1775 = vunpack.c.h.b16 %v218
    %v1776 = vunpack.c.l.b16 %v219
    %v1777 = vunpack.c.h.b16 %v219
    %v1778 = vunpack.c.l.b16 %v220
    %v1779 = vunpack.c.h.b16 %v220
    %v1780 = vunpack.c.l.b16 %v221
    %v1781 = vunpack.c.h.b16 %v221
    %v1782 = vunpack.c.l.b16 %v222
    %v1783 = vunpack.c.l.b16 %v223
    %v1784 = vunpack.c.h.b16 %v223
    %v1785 = vunpack.c.l.b16 %v224
    %v1786 = vunpack.c.h.b16 %v224
    %v1787 = vunpack.c.l.b16 %v225
    %v1788 = vunpack.c.h.b16 %v225
    %v1789 = vunpack.c.l.b16 %v226
    %v1790 = vunpack.c.h.b16 %v226
    %v1791 = vunpack.c.l.b16 %v227
    %v1792 = vunpack.c.l.b16 %v228
    %v1793 = vunpack.c.h.b16 %v228
    %v1794 = vunpack.c.l.b16 %v229
    %v1795 = vunpack.c.h.b16 %v229
    %v1796 = vunpack.c.l.b16 %v230
    %v1797 = vunpack.c.h.b16 %v230
    %v1798 = vunpack.c.l.b16 %v231
    %v1799 = vunpack.c.h.b16 %v231
    %v1800 = vunpack.c.l.b16 %v232
    %v1801 = vunpack.c.l.b16 %v233
    %v1802 = vunpack.c.h.b16 %v233
    %v1803 = vunpack.c.l.b16 %v234
    %v1804 = vunpack.c.h.b16 %v234
    %v1805 = vunpack.c.l.b16 %v235
    %v1806 = vunpack.c.h.b16 %v235
    %v1807 = vunpack.c.l.b16 %v236
    %v1808 = vunpack.c.h.b16 %v236
    %v1809 = vunpack.c.l.b16 %v237
    %v1810 = vunpack.c.l.b16 %v238
    %v1811 = vunpack.c.h.b16 %v238
    %v1812 = vunpack.c.l.b16 %v239
    %v1813 = vunpack.c.h.b16 %v239
    %v1814 = vunpack.c.l.b16 %v240
    %v1815 = vunpack.c.h.b16 %v240
    %v1816 = vunpack.c.l.b16 %v241
    %v1817 = vunpack.c.h.b16 %v241
    %v1818 = vunpack.c.l.b16 %v242
    %v1819 = vunpack.c.l.b16 %v243
    %v1820 = vunpack.c.h.b16 %v243
    %v1821 = vunpack.c.l.b16 %v244
    %v1822 = vunpack.c.h.b16 %v244
    %v1823 = vunpack.c.l.b16 %v245
    %v1824 = vunpack.c.h.b16 %v245
    %v1825 = vunpack.c.l.b16 %v246
    %v1826 = vunpack.c.h.b16 %v246
    %v1827 = vunpack.c.l.b16 %v247
    %v1828 = vunpack.c.l.b16 %v248
    %v1829 = vunpack.c.h.b16 %v248
    %v1830 = vunpack.c.l.b16 %v249
    %v1831 = vunpack.c.h.b16 %v249
    %v1832 = vunpack.c.l.b16 %v250
    %v1833 = vunpack.c.h.b16 %v250
    %v1834 = vunpack.c.l.b16 %v251
    %v1835 = vunpack.c.h.b16 %v251
    %v1836 = vunpack.c.l.b16 %v252
    %v1837 = vunpack.c.l.b16 %v253
    %v1838 = vunpack.c.h.b16 %v253
    %v1839 = vunpack.c.l.b16 %v254
    %v1840 = vunpack.c.h.b16 %v254
    %v1841 = vunpack.c.l.b16 %v255
    %v1842 = vunpack.c.h.b16 %v255
    %v1843 = vunpack.c.l.b16 %v256
    %v1844 = vunpack.c.h.b16 %v256
    %v1845 = vunpack.c.l.b16 %v257
    %v1846 = vunpack.c.l.b16 %v258
    %v1847 = vunpack.c.h.b16 %v258
    %v1848 = vunpack.c.l.b16 %v259
    %v1849 = vunpack.c.h.b16 %v259
    %v1850 = vunpack.c.l.b16 %v260
    %v1851 = vunpack.c.h.b16 %v260
    %v1852 = vunpack.c.l.b16 %v261
    %v1853 = vunpack.c.h.b16 %v261
    %v1854 = vunpack.c.l.b16 %v262
    %v1855 = vunpack.c.l.b16 %v263
    %v1856 = vunpack.c.h.b16 %v263
    %v1857 = vunpack.c.l.b16 %v264
    %v1858 = vunpack.c.h.b16 %v264
    %v1859 = vunpack.c.l.b16 %v265
    %v1860 = vunpack.c.h.b16 %v265
    %v1861 = vunpack.c.l.b16 %v266
    %v1862 = vunpack.c.h.b16 %v266
    %v1863 = vunpack.c.l.b16 %v267
    %v1864 = vunpack.c.l.b16 %v268
    %v1865 = vunpack.c.h.b16 %v268
    %v1866 = vunpack.c.l.b16 %v269
    %v1867 = vunpack.c.h.b16 %v269
    %v1868 = vunpack.c.l.b16 %v270
    %v1869 = vunpack.c.h.b16 %v270
    %v1870 = vunpack.c.l.b16 %v271
    %v1871 = vunpack.c.h.b16 %v271
    %v1872 = vunpack.c.l.b16 %v272
    %v1873 = vunpack.c.l.b16 %v273
    %v1874 = vunpack.c.h.b16 %v273
    %v1875 = vunpack.c.l.b16 %v274
    %v1876 = vunpack.c.h.b16 %v274
    %v1877 = vunpack.c.l.b16 %v275
    %v1878 = vunpack.c.h.b16 %v275
    %v1879 = vunpack.c.l.b16 %v276
    %v1880 = vunpack.c.h.b16 %v276
    %v1881 = vunpack.c.l.b16 %v277
    %v1882 = vunpack.c.l.b16 %v278
    %v1883 = vunpack.c.h.b16 %v278
    %v1884 = vunpack.c.l.b16 %v279
    %v1885 = vunpack.c.h.b16 %v279
    %v1886 = vunpack.c.l.b16 %v280
    %v1887 = vunpack.c.h.b16 %v280
    %v1888 = vunpack.c.l.b16 %v281
    %v1889 = vunpack.c.h.b16 %v281
    %v1890 = vunpack.c.l.b16 %v282
    %v1891 = vunpack.c.l.b16 %v283
    %v1892 = vunpack.c.h.b16 %v283
    %v1893 = vunpack.c.l.b16 %v284
    %v1894 = vunpack.c.h.b16 %v284
    %v1895 = vunpack.c.l.b16 %v285
    %v1896 = vunpack.c.h.b16 %v285
    %v1897 = vunpack.c.l.b16 %v286
    %v1898 = vunpack.c.h.b16 %v286
    %v1899 = vunpack.c.l.b16 %v287
    %v1900 = vunpack.c.l.b16 %v288
    %v1901 = vunpack.c.h.b16 %v288
    %v1902 = vunpack.c.l.b16 %v289
    %v1903 = vunpack.c.h.b16 %v289
    %v1904 = vunpack.c.l.b16 %v290
    %v1905 = vunpack.c.h.b16 %v290
    %v1906 = vunpack.c.l.b16 %v291
    %v1907 = vunpack.c.h.b16 %v291
    %v1908 = vunpack.c.l.b16 %v292
    %v1909 = vunpack.c.l.b16 %v293
    %v1910 = vunpack.c.h.b16 %v293
    %v1911 = vunpack.c.l.b16 %v294
    %v1912 = vunpack.c.h.b16 %v294
    %v1913 = vunpack.c.l.b16 %v295
    %v1914 = vunpack.c.h.b16 %v295
    %v1915 = vunpack.c.l.b16 %v296
    %v1916 = vunpack.c.h.b16 %v296
    %v1917 = vunpack.c.l.b16 %v297
    %v1918 = vunpack.c.l.b16 %v298
    %v1919 = vunpack.c.h.b16 %v298
    %v1920 = vunpack.c.l.b16 %v299
    %v1921 = vunpack.c.h.b16 %v299
    %v1922 = vunpack.c.l.b16 %v300
    %v1923 = vunpack.c.h.b16 %v300
    %v1924 = vunpack.c.l.b16 %v301
    %v1925 = vunpack.c.h.b16 %v301
    %v1926 = vunpack.c.l.b16 %v302
    %v1927 = vunpack.c.l.b16 %v303
    %v1928 = vunpack.c.h.b16 %v303
    %v1929 = vunpack.c.l.b16 %v304
    %v1930 = vunpack.c.h.b16 %v304
    %v1931 = vunpack.c.l.b16 %v305
    %v1932 = vunpack.c.h.b16 %v305
    %v1933 = vunpack.c.l.b16 %v306
    %v1934 = vunpack.c.h.b16 %v306
    %v1935 = vunpack.c.l.b16 %v307
    %v1936 = vunpack.c.l.b16 %v308
    %v1937 = vunpack.c.h.b16 %v308
    %v1938 = vunpack.c.l.b16 %v309
    %v1939 = vunpack.c.h.b16 %v309
    %v1940 = vunpack.c.l.b16 %v310
    %v1941 = vunpack.c.h.b16 %v310
    %v1942 = vunpack.c.l.b16 %v311
    %v1943 = vunpack.c.h.b16 %v311
    %v1944 = vunpack.c.l.b16 %v312
    %v1945 = vunpack.c.l.b16 %v313
    %v1946 = vunpack.c.h.b16 %v313
    %v1947 = vunpack.c.l.b16 %v314
    %v1948 = vunpack.c.h.b16 %v314
    %v1949 = vunpack.c.l.b16 %v315
    %v1950 = vunpack.c.h.b16 %v315
    %v1951 = vunpack.c.l.b16 %v316
    %v1952 = vunpack.c.h.b16 %v316
    %v1953 = vunpack.c.l.b16 %v317
    %v1954 = vunpack.c.l.b16 %v318
    %v1955 = vunpack.c.h.b16 %v318
    %v1956 = vunpack.c.l.b16 %v319
    %v1957 = vunpack.c.h.b16 %v319
    %v1958 = vunpack.c.l.b16 %v320
    %v1959 = vunpack.c.h.b16 %v320
    %v1960 = vunpack.c.l.b16 %v321
    %v1961 = vunpack.c.h.b16 %v321
    %v1962 = vunpack.c.l.b16 %v322
    %v1963 = vunpack.c.l.b16 %v323
    %v1964 = vunpack.c.h.b16 %v323
    %v1965 = vunpack.c.l.b16 %v324
    %v1966 = vunpack.c.h.b16 %v324
    %v1967 = vunpack.c.l.b16 %v325
    %v1968 = vunpack.c.h.b16 %v325
    %v1969 = vunpack.c.l.b16 %v326
    %v1970 = vunpack.c.h.b16 %v326
    %v1971 = vunpack.c.l.b16 %v327
    %v1972 = vunpack.c.l.b16 %v328
    %v1973 = vunpack.c.h.b16 %v328
    %v1974 = vunpack.c.l.b16 %v329
    %v1975 = vunpack.c.h.b16 %v329
    %v1976 = vunpack.c.l.b16 %v330
    %v1977 = vunpack.c.h.b16 %v330
    %v1978 = vunpack.c.l.b16 %v331
    %v1979 = vunpack.c.h.b16 %v331
    %v1980 = vunpack.c.l.b16 %v332
    %v1981 = vunpack.c.l.b16 %v333
    %v1982 = vunpack.c.h.b16 %v333
    %v1983 = vunpack.c.l.b16 %v334
    %v1984 = vunpack.c.h.b16 %v334
    %v1985 = vunpack.c.l.b16 %v335
    %v1986 = vunpack.c.h.b16 %v335
    %v1987 = vunpack.c.l.b16 %v336
    %v1988 = vunpack.c.h.b16 %v336
    %v1989 = vunpack.c.l.b16 %v337
    %v1990 = vunpack.c.l.b16 %v338
    %v1991 = vunpack.c.h.b16 %v338
    %v1992 = vunpack.c.l.b16 %v339
    %v1993 = vunpack.c.h.b16 %v339
    %v1994 = vunpack.c.l.b16 %v340
    %v1995 = vunpack.c.h.b16 %v340
    %v1996 = vunpack.c.l.b16 %v341
    %v1997 = vunpack.c.h.b16 %v341
    %v1998 = vunpack.c.l.b16 %v342
    %v1999 = vunpack.c.l.b16 %v343
    %v2000 = vunpack.c.h.b16 %v343
    %v2001 = vunpack.c.l.b16 %v344
    %v2002 = vunpack.c.h.b16 %v344
    %v2003 = vunpack.c.l.b16 %v345
    %v2004 = vunpack.c.h.b16 %v345
    %v2005 = vunpack.c.l.b16 %v346
    %v2006 = vunpack.c.h.b16 %v346
    %v2007 = vunpack.c.l.b16 %v347
    %v2008 = vunpack.c.l.b16 %v348
    %v2009 = vunpack.c.h.b16 %v348
    %v2010 = vunpack.c.l.b16 %v349
    %v2011 = vunpack.c.h.b16 %v349
    %v2012 = vunpack.c.l.b16 %v350
    %v2013 = vunpack.c.h.b16 %v350
    %v2014 = vunpack.c.l.b16 %v351
    %v2015 = vunpack.c.h.b16 %v351
    %v2016 = vunpack.c.l.b16 %v352
    %v2017 = vunpack.c.l.b16 %v353
    %v2018 = vunpack.c.h.b16 %v353
    %v2019 = vunpack.c.l.b16 %v354
    %v2020 = vunpack.c.h.b16 %v354
    %v2021 = vunpack.c.l.b16 %v355
    %v2022 = vunpack.c.h.b16 %v355
    %v2023 = vunpack.c.l.b16 %v356
    %v2024 = vunpack.c.h.b16 %v356
    %v2025 = vunpack.c.l.b16 %v357
    %v2026 = vunpack.c.l.b16 %v358
    %v2027 = vunpack.c.h.b16 %v358
    %v2028 = vunpack.c.l.b16 %v359
    %v2029 = vunpack.c.h.b16 %v359
    %v2030 = vunpack.c.l.b16 %v360
    %v2031 = vunpack.c.h.b16 %v360
    %v2032 = vunpack.c.l.b16 %v361
    %v2033 = vunpack.c.h.b16 %v361
    %v2034 = vunpack.c.l.b16 %v362
    %v2035 = vunpack.c.l.b16 %v363
    %v2036 = vunpack.c.h.b16 %v363
    %v2037 = vunpack.c.l.b16 %v364
    %v2038 = vunpack.c.h.b16 %v364
    %v2039 = vunpack.c.l.b16 %v365
    %v2040 = vunpack.c.h.b16 %v365
    %v2041 = vunpack.c.l.b16 %v366
    %v2042 = vunpack.c.h.b16 %v366
    %v2043 = vunpack.c.l.b16 %v367
    %v2044 = vunpack.c.l.b16 %v368
    %v2045 = vunpack.c.h.b16 %v368
    %v2046 = vunpack.c.l.b16 %v369
    %v2047 = vunpack.c.h.b16 %v369
    %v2048 = vunpack.c.l.b16 %v370
    %v2049 = vunpack.c.h.b16 %v370
    %v2050 = vunpack.c.l.b16 %v371
    %v2051 = vunpack.c.h.b16 %v371
    %v2052 = vunpack.c.l.b16 %v372
    %v2053 = vunpack.c.l.b16 %v373
    %v2054 = vunpack.c.h.b16 %v373
    %v2055 = vunpack.c.l.b16 %v374
    %v2056 = vunpack.c.h.b16 %v374
    %v2057 = vunpack.c.l.b16 %v375
    %v2058 = vunpack.c.h.b16 %v375
    %v2059 = vunpack.c.l.b16 %v376
    %v2060 = vunpack.c.h.b16 %v376
    %v2061 = vunpack.c.l.b16 %v377
    %v2062 = vunpack.c.l.b16 %v378
    %v2063 = vunpack.c.h.b16 %v378
    %v2064 = vunpack.c.l.b16 %v379
    %v2065 = vunpack.c.h.b16 %v379
    %v2066 = vunpack.c.l.b16 %v380
    %v2067 = vunpack.c.h.b16 %v380
    %v2068 = vunpack.c.l.b16 %v381
    %v2069 = vunpack.c.h.b16 %v381
    %v2070 = vunpack.c.l.b16 %v382
    %v2071 = vunpack.c.l.b16 %v383
    %v2072 = vunpack.c.h.b16 %v383
    %v2073 = vunpack.c.l.b16 %v384
    %v2074 = vunpack.c.h.b16 %v384
    %v2075 = vunpack.c.l.b16 %v385
    %v2076 = vunpack.c.h.b16 %v385
    %v2077 = vunpack.c.l.b16 %v386
    %v2078 = vunpack.c.h.b16 %v386
    %v2079 = vunpack.c.l.b16 %v387
    %v2080 = vunpack.c.l.b16 %v388
    %v2081 = vunpack.c.h.b16 %v388
    %v2082 = vunpack.c.l.b16 %v389
    %v2083 = vunpack.c.h.b16 %v389
    %v2084 = vunpack.c.l.b16 %v390
    %v2085 = vunpack.c.h.b16 %v390
    %v2086 = vunpack.c.l.b16 %v391
    %v2087 = vunpack.c.h.b16 %v391
    %v2088 = vunpack.c.l.b16 %v392
    %v2089 = vunpack.c.l.b16 %v393
    %v2090 = vunpack.c.h.b16 %v393
    %v2091 = vunpack.c.l.b16 %v394
    %v2092 = vunpack.c.h.b16 %v394
    %v2093 = vunpack.c.l.b16 %v395
    %v2094 = vunpack.c.h.b16 %v395
    %v2095 = vunpack.c.l.b16 %v396
    %v2096 = vunpack.c.h.b16 %v396
    %v2097 = vunpack.c.l.b16 %v397
    %v2098 = vunpack.c.l.b16 %v398
    %v2099 = vunpack.c.h.b16 %v398
    %v2100 = vunpack.c.l.b16 %v399
    %v2101 = vunpack.c.h.b16 %v399
    %v2102 = vunpack.c.l.b16 %v400
    %v2103 = vunpack.c.h.b16 %v400
    %v2104 = vunpack.c.l.b16 %v401
    %v2105 = vunpack.c.h.b16 %v401
    %v2106 = vunpack.c.l.b16 %v402
    %v2107 = vunpack.c.l.b16 %v403
    %v2108 = vunpack.c.h.b16 %v403
    %v2109 = vunpack.c.l.b16 %v404
    %v2110 = vunpack.c.h.b16 %v404
    %v2111 = vunpack.c.l.b16 %v405
    %v2112 = vunpack.c.h.b16 %v405
    %v2113 = vunpack.c.l.b16 %v406
    %v2114 = vunpack.c.h.b16 %v406
    %v2115 = vunpack.c.l.b16 %v407
    %v2116 = vunpack.c.l.b16 %v408
    %v2117 = vunpack.c.h.b16 %v408
    %v2118 = vunpack.c.l.b16 %v409
    %v2119 = vunpack.c.h.b16 %v409
    %v2120 = vunpack.c.l.b16 %v410
    %v2121 = vunpack.c.h.b16 %v410
    %v2122 = vunpack.c.l.b16 %v411
    %v2123 = vunpack.c.h.b16 %v411
    %v2124 = vunpack.c.l.b16 %v412
    %v2125 = vunpack.c.l.b16 %v413
    %v2126 = vunpack.c.h.b16 %v413
    %v2127 = vunpack.c.l.b16 %v414
    %v2128 = vunpack.c.h.b16 %v414
    %v2129 = vunpack.c.l.b16 %v415
    %v2130 = vunpack.c.h.b16 %v415
    %v2131 = vunpack.c.l.b16 %v416
    %v2132 = vunpack.c.h.b16 %v416
    %v2133 = vunpack.c.l.b16 %v417
    %v2134 = vunpack.c.l.b16 %v418
    %v2135 = vunpack.c.h.b16 %v418
    %v2136 = vunpack.c.l.b16 %v419
    %v2137 = vunpack.c.h.b16 %v419
    %v2138 = vunpack.c.l.b16 %v420
    %v2139 = vunpack.c.h.b16 %v420
    %v2140 = vunpack.c.l.b16 %v421
    %v2141 = vunpack.c.h.b16 %v421
    %v2142 = vunpack.c.l.b16 %v422
    %v2143 = vunpack.c.l.b16 %v423
    %v2144 = vunpack.c.h.b16 %v423
    %v2145 = vunpack.c.l.b16 %v424
    %v2146 = vunpack.c.h.b16 %v424
    %v2147 = vunpack.c.l.b16 %v425
    %v2148 = vunpack.c.h.b16 %v425
    %v2149 = vunpack.c.l.b16 %v426
    %v2150 = vunpack.c.h.b16 %v426
    %v2151 = vunpack.c.l.b16 %v427
    %v2152 = vunpack.c.l.b16 %v428
    %v2153 = vunpack.c.h.b16 %v428
    %v2154 = vunpack.c.l.b16 %v429
    %v2155 = vunpack.c.h.b16 %v429
    %v2156 = vunpack.c.l.b16 %v430
    %v2157 = vunpack.c.h.b16 %v430
    %v2158 = vunpack.c.l.b16 %v431
    %v2159 = vunpack.c.h.b16 %v431
    %v2160 = vunpack.c.l.b16 %v432
    %v2161 = vunpack.c.l.b16 %v433
    %v2162 = vunpack.c.h.b16 %v433
    %v2163 = vunpack.c.l.b16 %v434
    %v2164 = vunpack.c.h.b16 %v434
    %v2165 = vunpack.c.l.b16 %v435
    %v2166 = vunpack.c.h.b16 %v435
    %v2167 = vunpack.c.l.b16 %v436
    %v2168 = vunpack.c.h.b16 %v436
    %v2169 = vunpack.c.l.b16 %v437
    %v2170 = vunpack.c.l.b16 %v438
    %v2171 = vunpack.c.h.b16 %v438
    %v2172 = vunpack.c.l.b16 %v439
    %v2173 = vunpack.c.h.b16 %v439
    %v2174 = vunpack.c.l.b16 %v440
    %v2175 = vunpack.c.h.b16 %v440
    %v2176 = vunpack.c.l.b16 %v441
    %v2177 = vunpack.c.h.b16 %v441
    %v2178 = vunpack.c.l.b16 %v442
    %v2179 = vunpack.c.l.b16 %v443
    %v2180 = vunpack.c.h.b16 %v443
    %v2181 = vunpack.c.l.b16 %v444
    %v2182 = vunpack.c.h.b16 %v444
    %v2183 = vunpack.c.l.b16 %v445
    %v2184 = vunpack.c.h.b16 %v445
    %v2185 = vunpack.c.l.b16 %v446
    %v2186 = vunpack.c.h.b16 %v446
    %v2187 = vunpack.c.l.b16 %v447
    %v2188 = vunpack.c.l.b16 %v448
    %v2189 = vunpack.c.h.b16 %v448
    %v2190 = vunpack.c.l.b16 %v449
    %v2191 = vunpack.c.h.b16 %v449
    %v2192 = vunpack.c.l.b16 %v450
    %v2193 = vunpack.c.h.b16 %v450
    %v2194 = vunpack.c.l.b16 %v451
    %v2195 = vunpack.c.h.b16 %v451
    %v2196 = vunpack.c.l.b16 %v452
    %v2197 = vunpack.c.l.b16 %v453
    %v2198 = vunpack.c.h.b16 %v453
    %v2199 = vunpack.c.l.b16 %v454
    %v2200 = vunpack.c.h.b16 %v454
    %v2201 = vunpack.c.l.b16 %v455
    %v2202 = vunpack.c.h.b16 %v455
    %v2203 = vunpack.c.l.b16 %v456
    %v2204 = vunpack.c.h.b16 %v456
    %v2205 = vunpack.c.l.b16 %v457
    %v2206 = vunpack.c.l.b16 %v458
    %v2207 = vunpack.c.h.b16 %v458
    %v2208 = vunpack.c.l.b16 %v459
    %v2209 = vunpack.c.h.b16 %v459
    %v2210 = vunpack.c.l.b16 %v460
    %v2211 = vunpack.c.h.b16 %v460
    %v2212 = vunpack.c.l.b16 %v461
    %v2213 = vunpack.c.h.b16 %v461
    %v2214 = vunpack.c.l.b16 %v462
    %v2215 = vunpack.c.l.b16 %v463
    %v2216 = vunpack.c.h.b16 %v463
    %v2217 = vunpack.c.l.b16 %v464
    %v2218 = vunpack.c.h.b16 %v464
    %v2219 = vunpack.c.l.b16 %v465
    %v2220 = vunpack.c.h.b16 %v465
    %v2221 = vunpack.c.l.b16 %v466
    %v2222 = vunpack.c.h.b16 %v466
    %v2223 = vunpack.c.l.b16 %v467
    %v2224 = vunpack.c.l.b16 %v468
    %v2225 = vunpack.c.h.b16 %v468
    %v2226 = vunpack.c.l.b16 %v469
    %v2227 = vunpack.c.h.b16 %v469
    %v2228 = vunpack.c.l.b16 %v470
    %v2229 = vunpack.c.h.b16 %v470
    %v2230 = vunpack.c.l.b16 %v471
    %v2231 = vunpack.c.h.b16 %v471
    %v2232 = vunpack.c.l.b16 %v472
    %v2233 = vunpack.c.l.b16 %v473
    %v2234 = vunpack.c.h.b16 %v473
    %v2235 = vunpack.c.l.b16 %v474
    %v2236 = vunpack.c.h.b16 %v474
    %v2237 = vunpack.c.l.b16 %v475
    %v2238 = vunpack.c.h.b16 %v475
    %v2239 = vunpack.c.l.b16 %v476
    %v2240 = vunpack.c.h.b16 %v476
    %v2241 = vunpack.c.l.b16 %v477
    %v2242 = vunpack.c.l.b16 %v478
    %v2243 = vunpack.c.h.b16 %v478
    %v2244 = vunpack.c.l.b16 %v479
    %v2245 = vunpack.c.h.b16 %v479
    %v2246 = vunpack.c.l.b16 %v480
    %v2247 = vunpack.c.h.b16 %v480
    %v2248 = vunpack.c.l.b16 %v481
    %v2249 = vunpack.c.h.b16 %v481
    %v2250 = vunpack.c.l.b16 %v482
    %v2251 = vunpack.c.l.b16 %v483
    %v2252 = vunpack.c.h.b16 %v483
    %v2253 = vunpack.c.l.b16 %v484
    %v2254 = vunpack.c.h.b16 %v484
    %v2255 = vunpack.c.l.b16 %v485
    %v2256 = vunpack.c.h.b16 %v485
    %v2257 = vunpack.c.l.b16 %v486
    %v2258 = vunpack.c.h.b16 %v486
    %v2259 = vunpack.c.l.b16 %v487
    %v2260 = vunpack.c.l.b16 %v488
    %v2261 = vunpack.c.h.b16 %v488
    %v2262 = vunpack.c.l.b16 %v489
    %v2263 = vunpack.c.h.b16 %v489
    %v2264 = vunpack.c.l.b16 %v490
    %v2265 = vunpack.c.h.b16 %v490
    %v2266 = vunpack.c.l.b16 %v491
    %v2267 = vunpack.c.h.b16 %v491
    %v2268 = vunpack.c.l.b16 %v492
    %v2269 = vunpack.c.l.b16 %v493
    %v2270 = vunpack.c.h.b16 %v493
    %v2271 = vunpack.c.l.b16 %v494
    %v2272 = vunpack.c.h.b16 %v494
    %v2273 = vunpack.c.l.b16 %v495
    %v2274 = vunpack.c.h.b16 %v495
    %v2275 = vunpack.c.l.b16 %v496
    %v2276 = vunpack.c.h.b16 %v496
    %v2277 = vunpack.c.l.b16 %v497
    %v2278 = vunpack.c.l.b16 %v498
    %v2279 = vunpack.c.h.b16 %v498
    %v2280 = vunpack.c.l.b16 %v499
    %v2281 = vunpack.c.h.b16 %v499
    %v2282 = vunpack.c.l.b16 %v500
    %v2283 = vunpack.c.h.b16 %v500
    %v2284 = vunpack.c.l.b16 %v501
    %v2285 = vunpack.c.h.b16 %v501
    %v2286 = vunpack.c.l.b16 %v502
    %v2287 = vunpack.c.l.b16 %v503
    %v2288 = vunpack.c.h.b16 %v503
    %v2289 = vunpack.c.l.b16 %v504
    %v2290 = vunpack.c.h.b16 %v504
    %v2291 = vunpack.c.l.b16 %v505
    %v2292 = vunpack.c.h.b16 %v505
    %v2293 = vunpack.c.l.b16 %v506
    %v2294 = vunpack.c.h.b16 %v506
    %v2295 = vunpack.c.l.b16 %v507
    %v2296 = vunpack.c.l.b16 %v508
    %v2297 = vunpack.c.h.b16 %v508
    %v2298 = vunpack.c.l.b16 %v509
    %v2299 = vunpack.c.h.b16 %v509
    %v2300 = vunpack.c.l.b16 %v510
    %v2301 = vunpack.c.h.b16 %v510
    %v2302 = vunpack.c.l.b16 %v511
    %v2303 = vunpack.c.h.b16 %v511
    %v2304 = vunpack.c.l.b16 %v512
    %v2305 = vunpack.c.l.b16 %v513
    %v2306 = vunpack.c.h.b16 %v513
    %v2307 = vunpack.c.l.b16 %v514
    %v2308 = vunpack.c.h.b16 %v514
    %v2309 = vunpack.c.l.b16 %v515
    %v2310 = vunpack.c.h.b16 %v515
    %v2311 = vunpack.c.l.b16 %v516
    %v2312 = vunpack.c.h.b16 %v516
    %v2313 = vunpack.c.l.b16 %v517
    %v2314 = vunpack.c.l.b16 %v518
    %v2315 = vunpack.c.h.b16 %v518
    %v2316 = vunpack.c.l.b16 %v519
    %v2317 = vunpack.c.h.b16 %v519
    %v2318 = vunpack.c.l.b16 %v520
    %v2319 = vunpack.c.h.b16 %v520
    %v2320 = vunpack.c.l.b16 %v521
    %v2321 = vunpack.c.h.b16 %v521
    %v2322 = vunpack.c.l.b16 %v522
    %v2323 = vunpack.c.l.b16 %v523
    %v2324 = vunpack.c.h.b16 %v523
    %v2325 = vunpack.c.l.b16 %v524
    %v2326 = vunpack.c.h.b16 %v524
    %v2327 = vunpack.c.l.b16 %v525
    %v2328 = vunpack.c.h.b16 %v525
    %v2329 = vunpack.c.l.b16 %v526
    %v2330 = vunpack.c.h.b16 %v526
    %v2331 = vunpack.c.l.b16 %v527
    %v2332 = vunpack.c.l.b16 %v528
    %v2333 = vunpack.c.h.b16 %v528
    %v2334 = vunpack.c.l.b16 %v529
    %v2335 = vunpack.c.h.b16 %v529
    %v2336 = vunpack.c.l.b16 %v530
    %v2337 = vunpack.c.h.b16 %v530
    %v2338 = vunpack.c.l.b16 %v531
    %v2339 = vunpack.c.h.b16 %v531
    %v2340 = vunpack.c.l.b16 %v532
    %v2341 = vunpack.c.l.b16 %v533
    %v2342 = vunpack.c.h.b16 %v533
    %v2343 = vunpack.c.l.b16 %v534
    %v2344 = vunpack.c.h.b16 %v534
    %v2345 = vunpack.c.l.b16 %v535
    %v2346 = vunpack.c.h.b16 %v535
    %v2347 = vunpack.c.l.b16 %v536
    %v2348 = vunpack.c.h.b16 %v536
    %v2349 = vunpack.c.l.b16 %v537
    %v2350 = vunpack.c.l.b16 %v538
    %v2351 = vunpack.c.h.b16 %v538
    %v2352 = vunpack.c.l.b16 %v539
    %v2353 = vunpack.c.h.b16 %v539
    %v2354 = vunpack.c.l.b16 %v540
    %v2355 = vunpack.c.h.b16 %v540
    %v2356 = vunpack.c.l.b16 %v541
    %v2357 = vunpack.c.h.b16 %v541
    %v2358 = vunpack.c.l.b16 %v542
    %v2359 = vunpack.c.l.b16 %v543
    %v2360 = vunpack.c.h.b16 %v543
    %v2361 = vunpack.c.l.b16 %v544
    %v2362 = vunpack.c.h.b16 %v544
    %v2363 = vunpack.c.l.b16 %v545
    %v2364 = vunpack.c.h.b16 %v545
    %v2365 = vunpack.c.l.b16 %v546
    %v2366 = vunpack.c.h.b16 %v546
    %v2367 = vunpack.c.l.b16 %v547
    %v2368 = vunpack.c.l.b16 %v548
    %v2369 = vunpack.c.h.b16 %v548
    %v2370 = vunpack.c.l.b16 %v549
    %v2371 = vunpack.c.h.b16 %v549
    %v2372 = vunpack.c.l.b16 %v550
    %v2373 = vunpack.c.h.b16 %v550
    %v2374 = vunpack.c.l.b16 %v551
    %v2375 = vunpack.c.h.b16 %v551
    %v2376 = vunpack.c.l.b16 %v552
    %v2377 = vunpack.c.l.b16 %v553
    %v2378 = vunpack.c.h.b16 %v553
    %v2379 = vunpack.c.l.b16 %v554
    %v2380 = vunpack.c.h.b16 %v554
    %v2381 = vunpack.c.l.b16 %v555
    %v2382 = vunpack.c.h.b16 %v555
    %v2383 = vunpack.c.l.b16 %v556
    %v2384 = vunpack.c.h.b16 %v556
    %v2385 = vunpack.c.l.b16 %v557
    %v2386 = vunpack.c.l.b16 %v558
    %v2387 = vunpack.c.h.b16 %v558
    %v2388 = vunpack.c.l.b16 %v559
    %v2389 = vunpack.c.h.b16 %v559
    %v2390 = vunpack.c.l.b16 %v560
    %v2391 = vunpack.c.h.b16 %v560
    %v2392 = vunpack.c.l.b16 %v561
    %v2393 = vunpack.c.h.b16 %v561
    %v2394 = vunpack.c.l.b16 %v562
    %v2395 = vunpack.c.l.b16 %v563
    %v2396 = vunpack.c.h.b16 %v563
    %v2397 = vunpack.c.l.b16 %v564
    %v2398 = vunpack.c.h.b16 %v564
    %v2399 = vunpack.c.l.b16 %v565
    %v2400 = vunpack.c.h.b16 %v565
    %v2401 = vunpack.c.l.b16 %v566
    %v2402 = vunpack.c.h.b16 %v566
    %v2403 = vunpack.c.l.b16 %v567
    %v2404 = vunpack.c.l.b16 %v568
    %v2405 = vunpack.c.h.b16 %v568
    %v2406 = vunpack.c.l.b16 %v569
    %v2407 = vunpack.c.h.b16 %v569
    %v2408 = vunpack.c.l.b16 %v570
    %v2409 = vunpack.c.h.b16 %v570
    %v2410 = vunpack.c.l.b16 %v571
    %v2411 = vunpack.c.h.b16 %v571
    %v2412 = vunpack.c.l.b16 %v572
    %v2413 = vunpack.c.l.b16 %v573
    %v2414 = vunpack.c.h.b16 %v573
    %v2415 = vunpack.c.l.b16 %v574
    %v2416 = vunpack.c.h.b16 %v574
    %v2417 = vunpack.c.l.b16 %v575
    %v2418 = vunpack.c.h.b16 %v575
    %v2419 = vunpack.c.l.b16 %v576
    %v2420 = vunpack.c.h.b16 %v576
    %v2421 = vunpack.c.l.b16 %v577
    %v2422 = vunpack.c.l.b16 %v578
    %v2423 = vunpack.c.h.b16 %v578
    %v2424 = vunpack.c.l.b16 %v579
    %v2425 = vunpack.c.h.b16 %v579
    %v2426 = vunpack.c.l.b16 %v580
    %v2427 = vunpack.c.h.b16 %v580
    %v2428 = vunpack.c.l.b16 %v581
    %v2429 = vunpack.c.h.b16 %v581
    %v2430 = vunpack.c.l.b16 %v582
    %v2431 = vunpack.c.l.b16 %v583
    %v2432 = vunpack.c.h.b16 %v583
    %v2433 = vunpack.c.l.b16 %v584
    %v2434 = vunpack.c.h.b16 %v584
    %v2435 = vunpack.c.l.b16 %v585
    %v2436 = vunpack.c.h.b16 %v585
    %v2437 = vunpack.c.l.b16 %v586
    %v2438 = vunpack.c.h.b16 %v586
    %v2439 = vunpack.c.l.b16 %v587
    %v2440 = vunpack.c.l.b16 %v588
    %v2441 = vunpack.c.h.b16 %v588
    %v2442 = vunpack.c.l.b16 %v589
    %v2443 = vunpack.c.h.b16 %v589
    %v2444 = vunpack.c.l.b16 %v590
    %v2445 = vunpack.c.h.b16 %v590
    %v2446 = vunpack.c.l.b16 %v591
    %v2447 = vunpack.c.h.b16 %v591
    %v2448 = vunpack.c.l.b16 %v592
    %v2449 = vunpack.c.l.b16 %v593
    %v2450 = vunpack.c.h.b16 %v593
    %v2451 = vunpack.c.l.b16 %v594
    %v2452 = vunpack.c.h.b16 %v594
    %v2453 = vunpack.c.l.b16 %v595
    %v2454 = vunpack.c.h.b16 %v595
    %v2455 = vunpack.c.l.b16 %v596
    %v2456 = vunpack.c.h.b16 %v596
    %v2457 = vunpack.c.l.b16 %v597
    %v2458 = vunpack.c.l.b16 %v598
    %v2459 = vunpack.c.h.b16 %v598
    %v2460 = vunpack.c.l.b16 %v599
    %v2461 = vunpack.c.h.b16 %v599
    %v2462 = vunpack.c.l.b16 %v600
    %v2463 = vunpack.c.h.b16 %v600
    %v2464 = vunpack.c.l.b16 %v601
    %v2465 = vunpack.c.h.b16 %v601
    %v2466 = vunpack.c.l.b16 %v602
    %v2467 = vunpack.c.l.b16 %v603
    %v2468 = vunpack.c.h.b16 %v603
    %v2469 = vunpack.c.l.b16 %v604
    %v2470 = vunpack.c.h.b16 %v604
    %v2471 = vunpack.c.l.b16 %v605
    %v2472 = vunpack.c.h.b16 %v605
    %v2473 = vunpack.c.l.b16 %v606
    %v2474 = vunpack.c.h.b16 %v606
    %v2475 = vunpack.c.l.b16 %v607
    %v2476 = vunpack.c.l.b16 %v608
    %v2477 = vunpack.c.h.b16 %v608
    %v2478 = vunpack.c.l.b16 %v609
    %v2479 = vunpack.c.h.b16 %v609
    %v2480 = vunpack.c.l.b16 %v610
    %v2481 = vunpack.c.h.b16 %v610
    %v2482 = vunpack.c.l.b16 %v611
    %v2483 = vunpack.c.h.b16 %v611
    %v2484 = vunpack.c.l.b16 %v612
    %v2485 = vunpack.c.l.b16 %v613
    %v2486 = vunpack.c.h.b16 %v613
    %v2487 = vunpack.c.l.b16 %v614
    %v2488 = vunpack.c.h.b16 %v614
    %v2489 = vunpack.c.l.b16 %v615
    %v2490 = vunpack.c.h.b16 %v615
    %v2491 = vunpack.c.l.b16 %v616
    %v2492 = vunpack.c.h.b16 %v616
    %v2493 = vunpack.c.l.b16 %v617
    %v2494 = vunpack.c.l.b16 %v618
    %v2495 = vunpack.c.h.b16 %v618
    %v2496 = vunpack.c.l.b16 %v619
    %v2497 = vunpack.c.h.b16 %v619
    %v2498 = vunpack.c.l.b16 %v620
    %v2499 = vunpack.c.h.b16 %v620
    %v2500 = vunpack.c.l.b16 %v621
    %v2501 = vunpack.c.h.b16 %v621
    %v2502 = vunpack.c.l.b16 %v622
    %v2503 = vunpack.c.l.b16 %v623
    %v2504 = vunpack.c.h.b16 %v623
    %v2505 = vunpack.c.l.b16 %v624
    %v2506 = vunpack.c.h.b16 %v624
    %v2507 = vunpack.c.l.b16 %v625
    %v2508 = vunpack.c.h.b16 %v625
    %v2509 = vunpack.c.l.b16 %v626
    %v2510 = vunpack.c.h.b16 %v626
    %v2511 = vunpack.c.l.b16 %v627
    %v2512 = vunpack.c.l.b16 %v628
    %v2513 = vunpack.c.h.b16 %v628
    %v2514 = vunpack.c.l.b16 %v629
    %v2515 = vunpack.c.h.b16 %v629
    %v2516 = vunpack.c.l.b16 %v630
    %v2517 = vunpack.c.h.b16 %v630
    %v2518 = vunpack.c.l.b16 %v631
    %v2519 = vunpack.c.h.b16 %v631
    %v2520 = vunpack.c.l.b16 %v632
    %v2521 = vunpack.c.l.b16 %v633
    %v2522 = vunpack.c.h.b16 %v633
    %v2523 = vunpack.c.l.b16 %v634
    %v2524 = vunpack.c.h.b16 %v634
    %v2525 = vunpack.c.l.b16 %v635
    %v2526 = vunpack.c.h.b16 %v635
    %v2527 = vunpack.c.l.b16 %v636
    %v2528 = vunpack.c.h.b16 %v636
    %v2529 = vunpack.c.l.b16 %v637
    %v2530 = vunpack.c.l.b16 %v638
    %v2531 = vunpack.c.h.b16 %v638
    %v2532 = vunpack.c.l.b16 %v639
    %v2533 = vunpack.c.h.b16 %v639
    %v2534 = vunpack.c.l.b16 %v640
    %v2535 = vunpack.c.h.b16 %v640
    %v2536 = vunpack.c.l.b16 %v641
    %v2537 = vunpack.c.h.b16 %v641
    %v2538 = vunpack.c.l.b16 %v642
    %v2539 = vunpack.c.l.b16 %v643
    %v2540 = vunpack.c.h.b16 %v643
    %v2541 = vunpack.c.l.b16 %v644
    %v2542 = vunpack.c.h.b16 %v644
    %v2543 = vunpack.c.l.b16 %v645
    %v2544 = vunpack.c.h.b16 %v645
    %v2545 = vunpack.c.l.b16 %v646
    %v2546 = vunpack.c.h.b16 %v646
    %v2547 = vunpack.c.l.b16 %v647
    %v2548 = vunpack.c.l.b16 %v648
    %v2549 = vunpack.c.h.b16 %v648
    %v2550 = vunpack.c.l.b16 %v649
    %v2551 = vunpack.c.h.b16 %v649
    %v2552 = vunpack.c.l.b16 %v650
    %v2553 = vunpack.c.h.b16 %v650
    %v2554 = vunpack.c.l.b16 %v651
    %v2555 = vunpack.c.h.b16 %v651
    %v2556 = vunpack.c.l.b16 %v652
    %v2557 = vunpack.c.l.b16 %v653
    %v2558 = vunpack.c.h.b16 %v653
    %v2559 = vunpack.c.l.b16 %v654
    %v2560 = vunpack.c.h.b16 %v654
    %v2561 = vunpack.c.l.b16 %v655
    %v2562 = vunpack.c.h.b16 %v655
    %v2563 = vunpack.c.l.b16 %v656
    %v2564 = vunpack.c.h.b16 %v656
    %v2565 = vunpack.c.l.b16 %v657
    %v2566 = vunpack.c.l.b16 %v658
    %v2567 = vunpack.c.h.b16 %v658
    %v2568 = vunpack.c.l.b16 %v659
    %v2569 = vunpack.c.h.b16 %v659
    %v2570 = vunpack.c.l.b16 %v660
    %v2571 = vunpack.c.h.b16 %v660
    %v2572 = vunpack.c.l.b16 %v661
    %v2573 = vunpack.c.h.b16 %v661
    %v2574 = vunpack.c.l.b16 %v662
    %v2575 = vunpack.c.l.b16 %v663
    %v2576 = vunpack.c.h.b16 %v663
    %v2577 = vunpack.c.l.b16 %v664
    %v2578 = vunpack.c.h.b16 %v664
    %v2579 = vunpack.c.l.b16 %v665
    %v2580 = vunpack.c.h.b16 %v665
    %v2581 = vunpack.c.l.b16 %v666
    %v2582 = vunpack.c.h.b16 %v666
    %v2583 = vunpack.c.l.b16 %v667
    %v2584 = vunpack.c.l.b16 %v668
    %v2585 = vunpack.c.h.b16 %v668
    %v2586 = vunpack.c.l.b16 %v669
    %v2587 = vunpack.c.h.b16 %v669
    %v2588 = vunpack.c.l.b16 %v670
    %v2589 = vunpack.c.h.b16 %v670
    %v2590 = vunpack.c.l.b16 %v671
    %v2591 = vunpack.c.h.b16 %v671
    %v2592 = vunpack.c.l.b16 %v672
    %v2593 = vunpack.c.l.b16 %v673
    %v2594 = vunpack.c.h.b16 %v673
    %v2595 = vunpack.c.l.b16 %v674
    %v2596 = vunpack.c.h.b16 %v674
    %v2597 = vunpack.c.l.b16 %v675
    %v2598 = vunpack.c.h.b16 %v675
    %v2599 = vunpack.c.l.b16 %v676
    %v2600 = vunpack.c.h.b16 %v676
    %v2601 = vunpack.c.l.b16 %v677
    %v2602 = vunpack.c.l.b16 %v678
    %v2603 = vunpack.c.h.b16 %v678
    %v2604 = vunpack.c.l.b16 %v679
    %v2605 = vunpack.c.h.b16 %v679
    %v2606 = vunpack.c.l.b16 %v680
    %v2607 = vunpack.c.h.b16 %v680
    %v2608 = vunpack.c.l.b16 %v681
    %v2609 = vunpack.c.h.b16 %v681
    %v2610 = vunpack.c.l.b16 %v682
    %v2611 = vunpack.c.l.b16 %v683
    %v2612 = vunpack.c.h.b16 %v683
    %v2613 = vunpack.c.l.b16 %v684
    %v2614 = vunpack.c.h.b16 %v684
    %v2615 = vunpack.c.l.b16 %v685
    %v2616 = vunpack.c.h.b16 %v685
    %v2617 = vunpack.c.l.b16 %v686
    %v2618 = vunpack.c.h.b16 %v686
    %v2619 = vunpack.c.l.b16 %v687
    %v2620 = vunpack.c.l.b16 %v688
    %v2621 = vunpack.c.h.b16 %v688
    %v2622 = vunpack.c.l.b16 %v689
    %v2623 = vunpack.c.h.b16 %v689
    %v2624 = vunpack.c.l.b16 %v690
    %v2625 = vunpack.c.h.b16 %v690
    %v2626 = vunpack.c.l.b16 %v691
    %v2627 = vunpack.c.h.b16 %v691
    %v2628 = vunpack.c.l.b16 %v692
    %v2629 = vpack.c.b16 %v1486, %v1477
    %v2630 = vpack.c.b16 %v1487, %v1478
    %v2631 = vpack.c.b16 %v1488, %v1479
    %v2632 = vpack.c.b16 %v1489, %v1480
    %v2633 = vpack.c.b16 %v1490, %v1481
    %v2634 = vpack.c.b16 %v1491, %v1482
    %v2635 = vpack.c.b16 %v1492, %v1483
    %v2636 = vpack.c.b16 %v1493, %v1484
    %v2637 = vpack.c.b16 %v1494, %v1485
    %v2638 = vpack.c.b16 %v1504, %v1495
    %v2639 = vpack.c.b16 %v1505, %v1496
    %v2640 = vpack.c.b16 %v1506, %v1497
    %v2641 = vpack.c.b16 %v1507, %v1498
    %v2642 = vpack.c.b16 %v1508, %v1499
    %v2643 = vpack.c.b16 %v1509, %v1500
    %v2644 = vpack.c.b16 %v1510, %v1501
    %v2645 = vpack.c.b16 %v1511, %v1502
    %v2646 = vpack.c.b16 %v1512, %v1503
    %v2647 = vpack.c.b16 %v1522, %v1513
    %v2648 = vpack.c.b16 %v1523, %v1514
    %v2649 = vpack.c.b16 %v1524, %v1515
    %v2650 = vpack.c.b16 %v1525, %v1516
    %v2651 = vpack.c.b16 %v1526, %v1517
    %v2652 = vpack.c.b16 %v1527, %v1518
    %v2653 = vpack.c.b16 %v1528, %v1519
    %v2654 = vpack.c.b16 %v1529, %v1520
    %v2655 = vpack.c.b16 %v1530, %v1521
    %v2656 = vpack.c.b16 %v1540, %v1531
    %v2657 = vpack.c.b16 %v1541, %v1532
    %v2658 = vpack.c.b16 %v1542, %v1533
    %v2659 = vpack.c.b16 %v1543, %v1534
    %v2660 = vpack.c.b16 %v1544, %v1535
    %v2661 = vpack.c.b16 %v1545, %v1536
    %v2662 = vpack.c.b16 %v1546, %v1537
    %v2663 = vpack.c.b16 %v1547, %v1538
    %v2664 = vpack.c.b16 %v1548, %v1539
    %v2665 = vpack.c.b16 %v1558, %v1549
    %v2666 = vpack.c.b16 %v1559, %v1550
    %v2667 = vpack.c.b16 %v1560, %v1551
    %v2668 = vpack.c.b16 %v1561, %v1552
    %v2669 = vpack.c.b16 %v1562, %v1553
    %v2670 = vpack.c.b16 %v1563, %v1554
    %v2671 = vpack.c.b16 %v1564, %v1555
    %v2672 = vpack.c.b16 %v1565, %v1556
    %v2673 = vpack.c.b16 %v1566, %v1557
    %v2674 = vpack.c.b16 %v1576, %v1567
    %v2675 = vpack.c.b16 %v1577, %v1568
    %v2676 = vpack.c.b16 %v1578, %v1569
    %v2677 = vpack.c.b16 %v1579, %v1570
    %v2678 = vpack.c.b16 %v1580, %v1571
    %v2679 = vpack.c.b16 %v1581, %v1572
    %v2680 = vpack.c.b16 %v1582, %v1573
    %v2681 = vpack.c.b16 %v1583, %v1574
    %v2682 = vpack.c.b16 %v1584, %v1575
    %v2683 = vpack.c.b16 %v1594, %v1585
    %v2684 = vpack.c.b16 %v1595, %v1586
    %v2685 = vpack.c.b16 %v1596, %v1587
    %v2686 = vpack.c.b16 %v1597, %v1588
    %v2687 = vpack.c.b16 %v1598, %v1589
    %v2688 = vpack.c.b16 %v1599, %v1590
    %v2689 = vpack.c.b16 %v1600, %v1591
    %v2690 = vpack.c.b16 %v1601, %v1592
    %v2691 = vpack.c.b16 %v1602, %v1593
    %v2692 = vpack.c.b16 %v1612, %v1603
    %v2693 = vpack.c.b16 %v1613, %v1604
    %v2694 = vpack.c.b16 %v1614, %v1605
    %v2695 = vpack.c.b16 %v1615, %v1606
    %v2696 = vpack.c.b16 %v1616, %v1607
    %v2697 = vpack.c.b16 %v1617, %v1608
    %v2698 = vpack.c.b16 %v1618, %v1609
    %v2699 = vpack.c.b16 %v1619, %v1610
    %v2700 = vpack.c.b16 %v1620, %v1611
    %v2701 = vpack.c.b16 %v1630, %v1621
    %v2702 = vpack.c.b16 %v1631, %v1622
    %v2703 = vpack.c.b16 %v1632, %v1623
    %v2704 = vpack.c.b16 %v1633, %v1624
    %v2705 = vpack.c.b16 %v1634, %v1625
    %v2706 = vpack.c.b16 %v1635, %v1626
    %v2707 = vpack.c.b16 %v1636, %v1627
    %v2708 = vpack.c.b16 %v1637, %v1628
    %v2709 = vpack.c.b16 %v1638, %v1629
    %v2710 = vpack.c.b16 %v1648, %v1639
    %v2711 = vpack.c.b16 %v1649, %v1640
    %v2712 = vpack.c.b16 %v1650, %v1641
    %v2713 = vpack.c.b16 %v1651, %v1642
    %v2714 = vpack.c.b16 %v1652, %v1643
    %v2715 = vpack.c.b16 %v1653, %v1644
    %v2716 = vpack.c.b16 %v1654, %v1645
    %v2717 = vpack.c.b16 %v1655, %v1646
    %v2718 = vpack.c.b16 %v1656, %v1647
    %v2719 = vpack.c.b16 %v1666, %v1657
    %v2720 = vpack.c.b16 %v1667, %v1658
    %v2721 = vpack.c.b16 %v1668, %v1659
    %v2722 = vpack.c.b16 %v1669, %v1660
    %v2723 = vpack.c.b16 %v1670, %v1661
    %v2724 = vpack.c.b16 %v1671, %v1662
    %v2725 = vpack.c.b16 %v1672, %v1663
    %v2726 = vpack.c.b16 %v1673, %v1664
    %v2727 = vpack.c.b16 %v1674, %v1665
    %v2728 = vpack.c.b16 %v1684, %v1675
    %v2729 = vpack.c.b16 %v1685, %v1676
    %v2730 = vpack.c.b16 %v1686, %v1677
    %v2731 = vpack.c.b16 %v1687, %v1678
    %v2732 = vpack.c.b16 %v1688, %v1679
    %v2733 = vpack.c.b16 %v1689, %v1680
    %v2734 = vpack.c.b16 %v1690, %v1681
    %v2735 = vpack.c.b16 %v1691, %v1682
    %v2736 = vpack.c.b16 %v1692, %v1683
    %v2737 = vpack.c.b16 %v1702, %v1693
    %v2738 = vpack.c.b16 %v1703, %v1694
    %v2739 = vpack.c.b16 %v1704, %v1695
    %v2740 = vpack.c.b16 %v1705, %v1696
    %v2741 = vpack.c.b16 %v1706, %v1697
    %v2742 = vpack.c.b16 %v1707, %v1698
    %v2743 = vpack.c.b16 %v1708, %v1699
    %v2744 = vpack.c.b16 %v1709, %v1700
    %v2745 = vpack.c.b16 %v1710, %v1701
    %v2746 = vpack.c.b16 %v1720, %v1711
    %v2747 = vpack.c.b16 %v1721, %v1712
    %v2748 = vpack.c.b16 %v1722, %v1713
    %v2749 = vpack.c.b16 %v1723, %v1714
    %v2750 = vpack.c.b16 %v1724, %v1715
    %v2751 = vpack.c.b16 %v1725, %v1716
    %v2752 = vpack.c.b16 %v1726, %v1717
    %v2753 = vpack.c.b16 %v1727, %v1718
    %v2754 = vpack.c.b16 %v1728, %v1719
    %v2755 = vpack.c.b16 %v1738, %v1729
    %v2756 = vpack.c.b16 %v1739, %v1730
    %v2757 = vpack.c.b16 %v1740, %v1731
    %v2758 = vpack.c.b16 %v1741, %v1732
    %v2759 = vpack.c.b16 %v1742, %v1733
    %v2760 = vpack.c.b16 %v1743, %v1734
    %v2761 = vpack.c.b16 %v1744, %v1735
    %v2762 = vpack.c.b16 %v1745, %v1736
    %v2763 = vpack.c.b16 %v1746, %v1737
    %v2764 = vpack.c.b16 %v1756, %v1747
    %v2765 = vpack.c.b16 %v1757, %v1748
    %v2766 = vpack.c.b16 %v1758, %v1749
    %v2767 = vpack.c.b16 %v1759, %v1750
    %v2768 = vpack.c.b16 %v1760, %v1751
    %v2769 = vpack.c.b16 %v1761, %v1752
    %v2770 = vpack.c.b16 %v1762, %v1753
    %v2771 = vpack.c.b16 %v1763, %v1754
    %v2772 = vpack.c.b16 %v1764, %v1755
    %v2773 = vpack.c.b16 %v1774, %v1765
    %v2774 = vpack.c.b16 %v1775, %v1766
    %v2775 = vpack.c.b16 %v1776, %v1767
    %v2776 = vpack.c.b16 %v1777, %v1768
    %v2777 = vpack.c.b16 %v1778, %v1769
    %v2778 = vpack.c.b16 %v1779, %v1770
    %v2779 = vpack.c.b16 %v1780, %v1771
    %v2780 = vpack.c.b16 %v1781, %v1772
    %v2781 = vpack.c.b16 %v1782, %v1773
    %v2782 = vpack.c.b16 %v1792, %v1783
    %v2783 = vpack.c.b16 %v1793, %v1784
    %v2784 = vpack.c.b16 %v1794, %v1785
    %v2785 = vpack.c.b16 %v1795, %v1786
    %v2786 = vpack.c.b16 %v1796, %v1787
    %v2787 = vpack.c.b16 %v1797, %v1788
    %v2788 = vpack.c.b16 %v1798, %v1789
    %v2789 = vpack.c.b16 %v1799, %v1790
    %v2790 = vpack.c.b16 %v1800, %v1791
    %v2791 = vpack.c.b16 %v1810, %v1801
    %v2792 = vpack.c.b16 %v1811, %v1802
    %v2793 = vpack.c.b16 %v1812, %v1803
    %v2794 = vpack.c.b16 %v1813, %v1804
    %v2795 = vpack.c.b16 %v1814, %v1805
    %v2796 = vpack.c.b16 %v1815, %v1806
    %v2797 = vpack.c.b16 %v1816, %v1807
    %v2798 = vpack.c.b16 %v1817, %v1808
    %v2799 = vpack.c.b16 %v1818, %v1809
    %v2800 = vpack.c.b16 %v1828, %v1819
    %v2801 = vpack.c.b16 %v1829, %v1820
    %v2802 = vpack.c.b16 %v1830, %v1821
    %v2803 = vpack.c.b16 %v1831, %v1822
    %v2804 = vpack.c.b16 %v1832, %v1823
    %v2805 = vpack.c.b16 %v1833, %v1824
    %v2806 = vpack.c.b16 %v1834, %v1825
    %v2807 = vpack.c.b16 %v1835, %v1826
    %v2808 = vpack.c.b16 %v1836, %v1827
    %v2809 = vpack.c.b16 %v1846, %v1837
    %v2810 = vpack.c.b16 %v1847, %v1838
    %v2811 = vpack.c.b16 %v1848, %v1839
    %v2812 = vpack.c.b16 %v1849, %v1840
    %v2813 = vpack.c.b16 %v1850, %v1841
    %v2814 = vpack.c.b16 %v1851, %v1842
    %v2815 = vpack.c.b16 %v1852, %v1843
    %v2816 = vpack.c.b16 %v1853, %v1844
    %v2817 = vpack.c.b16 %v1854, %v1845
    %v2818 = vpack.c.b16 %v1864, %v1855
    %v2819 = vpack.c.b16 %v1865, %v1856
    %v2820 = vpack.c.b16 %v1866, %v1857
    %v2821 = vpack.c.b16 %v1867, %v1858
    %v2822 = vpack.c.b16 %v1868, %v1859
    %v2823 = vpack.c.b16 %v1869, %v1860
    %v2824 = vpack.c.b16 %v1870, %v1861
    %v2825 = vpack.c.b16 %v1871, %v1862
    %v2826 = vpack.c.b16 %v1872, %v1863
    %v2827 = vpack.c.b16 %v1882, %v1873
    %v2828 = vpack.c.b16 %v1883, %v1874
    %v2829 = vpack.c.b16 %v1884, %v1875
    %v2830 = vpack.c.b16 %v1885, %v1876
    %v2831 = vpack.c.b16 %v1886, %v1877
    %v2832 = vpack.c.b16 %v1887, %v1878
    %v2833 = vpack.c.b16 %v1888, %v1879
    %v2834 = vpack.c.b16 %v1889, %v1880
    %v2835 = vpack.c.b16 %v1890, %v1881
    %v2836 = vpack.c.b16 %v1900, %v1891
    %v2837 = vpack.c.b16 %v1901, %v1892
    %v2838 = vpack.c.b16 %v1902, %v1893
    %v2839 = vpack.c.b16 %v1903, %v1894
    %v2840 = vpack.c.b16 %v1904, %v1895
    %v2841 = vpack.c.b16 %v1905, %v1896
    %v2842 = vpack.c.b16 %v1906, %v1897
    %v2843 = vpack.c.b16 %v1907, %v1898
    %v2844 = vpack.c.b16 %v1908, %v1899
    %v2845 = vpack.c.b16 %v1918, %v1909
    %v2846 = vpack.c.b16 %v1919, %v1910
    %v2847 = vpack.c.b16 %v1920, %v1911
    %v2848 = vpack.c.b16 %v1921, %v1912
    %v2849 = vpack.c.b16 %v1922, %v1913
    %v2850 = vpack.c.b16 %v1923, %v1914
    %v2851 = vpack.c.b16 %v1924, %v1915
    %v2852 = vpack.c.b16 %v1925, %v1916
    %v2853 = vpack.c.b16 %v1926, %v1917
    %v2854 = vpack.c.b16 %v1936, %v1927
    %v2855 = vpack.c.b16 %v1937, %v1928
    %v2856 = vpack.c.b16 %v1938, %v1929
    %v2857 = vpack.c.b16 %v1939, %v1930
    %v2858 = vpack.c.b16 %v1940, %v1931
    %v2859 = vpack.c.b16 %v1941, %v1932
    %v2860 = vpack.c.b16 %v1942, %v1933
    %v2861 = vpack.c.b16 %v1943, %v1934
    %v2862 = vpack.c.b16 %v1944, %v1935
    %v2863 = vpack.c.b16 %v1954, %v1945
    %v2864 = vpack.c.b16 %v1955, %v1946
    %v2865 = vpack.c.b16 %v1956, %v1947
    %v2866 = vpack.c.b16 %v1957, %v1948
    %v2867 = vpack.c.b16 %v1958, %v1949
    %v2868 = vpack.c.b16 %v1959, %v1950
    %v2869 = vpack.c.b16 %v1960, %v1951
    %v2870 = vpack.c.b16 %v1961, %v1952
    %v2871 = vpack.c.b16 %v1962, %v1953
    %v2872 = vpack.c.b16 %v1972, %v1963
    %v2873 = vpack.c.b16 %v1973, %v1964
    %v2874 = vpack.c.b16 %v1974, %v1965
    %v2875 = vpack.c.b16 %v1975, %v1966
    %v2876 = vpack.c.b16 %v1976, %v1967
    %v2877 = vpack.c.b16 %v1977, %v1968
    %v2878 = vpack.c.b16 %v1978, %v1969
    %v2879 = vpack.c.b16 %v1979, %v1970
    %v2880 = vpack.c.b16 %v1980, %v1971
    %v2881 = vpack.c.b16 %v1990, %v1981
    %v2882 = vpack.c.b16 %v1991, %v1982
    %v2883 = vpack.c.b16 %v1992, %v1983
    %v2884 = vpack.c.b16 %v1993, %v1984
    %v2885 = vpack.c.b16 %v1994, %v1985
    %v2886 = vpack.c.b16 %v1995, %v1986
    %v2887 = vpack.c.b16 %v1996, %v1987
    %v2888 = vpack.c.b16 %v1997, %v1988
    %v2889 = vpack.c.b16 %v1998, %v1989
    %v2890 = vpack.c.b16 %v2008, %v1999
    %v2891 = vpack.c.b16 %v2009, %v2000
    %v2892 = vpack.c.b16 %v2010, %v2001
    %v2893 = vpack.c.b16 %v2011, %v2002
    %v2894 = vpack.c.b16 %v2012, %v2003
    %v2895 = vpack.c.b16 %v2013, %v2004
    %v2896 = vpack.c.b16 %v2014, %v2005
    %v2897 = vpack.c.b16 %v2015, %v2006
    %v2898 = vpack.c.b16 %v2016, %v2007
    %v2899 = vpack.c.b16 %v2026, %v2017
    %v2900 = vpack.c.b16 %v2027, %v2018
    %v2901 = vpack.c.b16 %v2028, %v2019
    %v2902 = vpack.c.b16 %v2029, %v2020
    %v2903 = vpack.c.b16 %v2030, %v2021
    %v2904 = vpack.c.b16 %v2031, %v2022
    %v2905 = vpack.c.b16 %v2032, %v2023
    %v2906 = vpack.c.b16 %v2033, %v2024
    %v2907 = vpack.c.b16 %v2034, %v2025
    %v2908 = vpack.c.b16 %v2044, %v2035
    %v2909 = vpack.c.b16 %v2045, %v2036
    %v2910 = vpack.c.b16 %v2046, %v2037
    %v2911 = vpack.c.b16 %v2047, %v2038
    %v2912 = vpack.c.b16 %v2048, %v2039
    %v2913 = vpack.c.b16 %v2049, %v2040
    %v2914 = vpack.c.b16 %v2050, %v2041
    %v2915 = vpack.c.b16 %v2051, %v2042
    %v2916 = vpack.c.b16 %v2052, %v2043
    %v2917 = vpack.c.b16 %v2062, %v2053
    %v2918 = vpack.c.b16 %v2063, %v2054
    %v2919 = vpack.c.b16 %v2064, %v2055
    %v2920 = vpack.c.b16 %v2065, %v2056
    %v2921 = vpack.c.b16 %v2066, %v2057
    %v2922 = vpack.c.b16 %v2067, %v2058
    %v2923 = vpack.c.b16 %v2068, %v2059
    %v2924 = vpack.c.b16 %v2069, %v2060
    %v2925 = vpack.c.b16 %v2070, %v2061
    %v2926 = vpack.c.b16 %v2080, %v2071
    %v2927 = vpack.c.b16 %v2081, %v2072
    %v2928 = vpack.c.b16 %v2082, %v2073
    %v2929 = vpack.c.b16 %v2083, %v2074
    %v2930 = vpack.c.b16 %v2084, %v2075
    %v2931 = vpack.c.b16 %v2085, %v2076
    %v2932 = vpack.c.b16 %v2086, %v2077
    %v2933 = vpack.c.b16 %v2087, %v2078
    %v2934 = vpack.c.b16 %v2088, %v2079
    %v2935 = vpack.c.b16 %v2098, %v2089
    %v2936 = vpack.c.b16 %v2099, %v2090
    %v2937 = vpack.c.b16 %v2100, %v2091
    %v2938 = vpack.c.b16 %v2101, %v2092
    %v2939 = vpack.c.b16 %v2102, %v2093
    %v2940 = vpack.c.b16 %v2103, %v2094
    %v2941 = vpack.c.b16 %v2104, %v2095
    %v2942 = vpack.c.b16 %v2105, %v2096
    %v2943 = vpack.c.b16 %v2106, %v2097
    %v2944 = vpack.c.b16 %v2116, %v2107
    %v2945 = vpack.c.b16 %v2117, %v2108
    %v2946 = vpack.c.b16 %v2118, %v2109
    %v2947 = vpack.c.b16 %v2119, %v2110
    %v2948 = vpack.c.b16 %v2120, %v2111
    %v2949 = vpack.c.b16 %v2121, %v2112
    %v2950 = vpack.c.b16 %v2122, %v2113
    %v2951 = vpack.c.b16 %v2123, %v2114
    %v2952 = vpack.c.b16 %v2124, %v2115
    %v2953 = vpack.c.b16 %v2134, %v2125
    %v2954 = vpack.c.b16 %v2135, %v2126
    %v2955 = vpack.c.b16 %v2136, %v2127
    %v2956 = vpack.c.b16 %v2137, %v2128
    %v2957 = vpack.c.b16 %v2138, %v2129
    %v2958 = vpack.c.b16 %v2139, %v2130
    %v2959 = vpack.c.b16 %v2140, %v2131
    %v2960 = vpack.c.b16 %v2141, %v2132
    %v2961 = vpack.c.b16 %v2142, %v2133
    %v2962 = vpack.c.b16 %v2152, %v2143
    %v2963 = vpack.c.b16 %v2153, %v2144
    %v2964 = vpack.c.b16 %v2154, %v2145
    %v2965 = vpack.c.b16 %v2155, %v2146
    %v2966 = vpack.c.b16 %v2156, %v2147
    %v2967 = vpack.c.b16 %v2157, %v2148
    %v2968 = vpack.c.b16 %v2158, %v2149
    %v2969 = vpack.c.b16 %v2159, %v2150
    %v2970 = vpack.c.b16 %v2160, %v2151
    %v2971 = vpack.c.b16 %v2170, %v2161
    %v2972 = vpack.c.b16 %v2171, %v2162
    %v2973 = vpack.c.b16 %v2172, %v2163
    %v2974 = vpack.c.b16 %v2173, %v2164
    %v2975 = vpack.c.b16 %v2174, %v2165
    %v2976 = vpack.c.b16 %v2175, %v2166
    %v2977 = vpack.c.b16 %v2176, %v2167
    %v2978 = vpack.c.b16 %v2177, %v2168
    %v2979 = vpack.c.b16 %v2178, %v2169
    %v2980 = vpack.c.b16 %v2188, %v2179
    %v2981 = vpack.c.b16 %v2189, %v2180
    %v2982 = vpack.c.b16 %v2190, %v2181
    %v2983 = vpack.c.b16 %v2191, %v2182
    %v2984 = vpack.c.b16 %v2192, %v2183
    %v2985 = vpack.c.b16 %v2193, %v2184
    %v2986 = vpack.c.b16 %v2194, %v2185
    %v2987 = vpack.c.b16 %v2195, %v2186
    %v2988 = vpack.c.b16 %v2196, %v2187
    %v2989 = vpack.c.b16 %v2206, %v2197
    %v2990 = vpack.c.b16 %v2207, %v2198
    %v2991 = vpack.c.b16 %v2208, %v2199
    %v2992 = vpack.c.b16 %v2209, %v2200
    %v2993 = vpack.c.b16 %v2210, %v2201
    %v2994 = vpack.c.b16 %v2211, %v2202
    %v2995 = vpack.c.b16 %v2212, %v2203
    %v2996 = vpack.c.b16 %v2213, %v2204
    %v2997 = vpack.c.b16 %v2214, %v2205
    %v2998 = vpack.c.b16 %v2224, %v2215
    %v2999 = vpack.c.b16 %v2225, %v2216
    %v3000 = vpack.c.b16 %v2226, %v2217
    %v3001 = vpack.c.b16 %v2227, %v2218
    %v3002 = vpack.c.b16 %v2228, %v2219
    %v3003 = vpack.c.b16 %v2229, %v2220
    %v3004 = vpack.c.b16 %v2230, %v2221
    %v3005 = vpack.c.b16 %v2231, %v2222
    %v3006 = vpack.c.b16 %v2232, %v2223
    %v3007 = vpack.c.b16 %v2242, %v2233
    %v3008 = vpack.c.b16 %v2243, %v2234
    %v3009 = vpack.c.b16 %v2244, %v2235
    %v3010 = vpack.c.b16 %v2245, %v2236
    %v3011 = vpack.c.b16 %v2246, %v2237
    %v3012 = vpack.c.b16 %v2247, %v2238
    %v3013 = vpack.c.b16 %v2248, %v2239
    %v3014 = vpack.c.b16 %v2249, %v2240
    %v3015 = vpack.c.b16 %v2250, %v2241
    %v3016 = vpack.c.b16 %v2260, %v2251
    %v3017 = vpack.c.b16 %v2261, %v2252
    %v3018 = vpack.c.b16 %v2262, %v2253
    %v3019 = vpack.c.b16 %v2263, %v2254
    %v3020 = vpack.c.b16 %v2264, %v2255
    %v3021 = vpack.c.b16 %v2265, %v2256
    %v3022 = vpack.c.b16 %v2266, %v2257
    %v3023 = vpack.c.b16 %v2267, %v2258
    %v3024 = vpack.c.b16 %v2268, %v2259
    %v3025 = vpack.c.b16 %v2278, %v2269
    %v3026 = vpack.c.b16 %v2279, %v2270
    %v3027 = vpack.c.b16 %v2280, %v2271
    %v3028 = vpack.c.b16 %v2281, %v2272
    %v3029 = vpack.c.b16 %v2282, %v2273
    %v3030 = vpack.c.b16 %v2283, %v2274
    %v3031 = vpack.c.b16 %v2284, %v2275
    %v3032 = vpack.c.b16 %v2285, %v2276
    %v3033 = vpack.c.b16 %v2286, %v2277
    %v3034 = vpack.c.b16 %v2296, %v2287
    %v3035 = vpack.c.b16 %v2297, %v2288
    %v3036 = vpack.c.b16 %v2298, %v2289
    %v3037 = vpack.c.b16 %v2299, %v2290
    %v3038 = vpack.c.b16 %v2300, %v2291
    %v3039 = vpack.c.b16 %v2301, %v2292
    %v3040 = vpack.c.b16 %v2302, %v2293
    %v3041 = vpack.c.b16 %v2303, %v2294
    %v3042 = vpack.c.b16 %v2304, %v2295
    %v3043 = vpack.c.b16 %v2314, %v2305
    %v3044 = vpack.c.b16 %v2315, %v2306
    %v3045 = vpack.c.b16 %v2316, %v2307
    %v3046 = vpack.c.b16 %v2317, %v2308
    %v3047 = vpack.c.b16 %v2318, %v2309
    %v3048 = vpack.c.b16 %v2319, %v2310
    %v3049 = vpack.c.b16 %v2320, %v2311
    %v3050 = vpack.c.b16 %v2321, %v2312
    %v3051 = vpack.c.b16 %v2322, %v2313
    %v3052 = vpack.c.b16 %v2332, %v2323
    %v3053 = vpack.c.b16 %v2333, %v2324
    %v3054 = vpack.c.b16 %v2334, %v2325
    %v3055 = vpack.c.b16 %v2335, %v2326
    %v3056 = vpack.c.b16 %v2336, %v2327
    %v3057 = vpack.c.b16 %v2337, %v2328
    %v3058 = vpack.c.b16 %v2338, %v2329
    %v3059 = vpack.c.b16 %v2339, %v2330
    %v3060 = vpack.c.b16 %v2340, %v2331
    %v3061 = vpack.c.b16 %v2350, %v2341
    %v3062 = vpack.c.b16 %v2351, %v2342
    %v3063 = vpack.c.b16 %v2352, %v2343
    %v3064 = vpack.c.b16 %v2353, %v2344
    %v3065 = vpack.c.b16 %v2354, %v2345
    %v3066 = vpack.c.b16 %v2355, %v2346
    %v3067 = vpack.c.b16 %v2356, %v2347
    %v3068 = vpack.c.b16 %v2357, %v2348
    %v3069 = vpack.c.b16 %v2358, %v2349
    %v3070 = vpack.c.b16 %v2368, %v2359
    %v3071 = vpack.c.b16 %v2369, %v2360
    %v3072 = vpack.c.b16 %v2370, %v2361
    %v3073 = vpack.c.b16 %v2371, %v2362
    %v3074 = vpack.c.b16 %v2372, %v2363
    %v3075 = vpack.c.b16 %v2373, %v2364
    %v3076 = vpack.c.b16 %v2374, %v2365
    %v3077 = vpack.c.b16 %v2375, %v2366
    %v3078 = vpack.c.b16 %v2376, %v2367
    %v3079 = vpack.c.b16 %v2386, %v2377
    %v3080 = vpack.c.b16 %v2387, %v2378
    %v3081 = vpack.c.b16 %v2388, %v2379
    %v3082 = vpack.c.b16 %v2389, %v2380
    %v3083 = vpack.c.b16 %v2390, %v2381
    %v3084 = vpack.c.b16 %v2391, %v2382
    %v3085 = vpack.c.b16 %v2392, %v2383
    %v3086 = vpack.c.b16 %v2393, %v2384
    %v3087 = vpack.c.b16 %v2394, %v2385
    %v3088 = vpack.c.b16 %v2404, %v2395
    %v3089 = vpack.c.b16 %v2405, %v2396
    %v3090 = vpack.c.b16 %v2406, %v2397
    %v3091 = vpack.c.b16 %v2407, %v2398
    %v3092 = vpack.c.b16 %v2408, %v2399
    %v3093 = vpack.c.b16 %v2409, %v2400
    %v3094 = vpack.c.b16 %v2410, %v2401
    %v3095 = vpack.c.b16 %v2411, %v2402
    %v3096 = vpack.c.b16 %v2412, %v2403
    %v3097 = vpack.c.b16 %v2422, %v2413
    %v3098 = vpack.c.b16 %v2423, %v2414
    %v3099 = vpack.c.b16 %v2424, %v2415
    %v3100 = vpack.c.b16 %v2425, %v2416
    %v3101 = vpack.c.b16 %v2426, %v2417
    %v3102 = vpack.c.b16 %v2427, %v2418
    %v3103 = vpack.c.b16 %v2428, %v2419
    %v3104 = vpack.c.b16 %v2429, %v2420
    %v3105 = vpack.c.b16 %v2430, %v2421
    %v3106 = vpack.c.b16 %v2440, %v2431
    %v3107 = vpack.c.b16 %v2441, %v2432
    %v3108 = vpack.c.b16 %v2442, %v2433
    %v3109 = vpack.c.b16 %v2443, %v2434
    %v3110 = vpack.c.b16 %v2444, %v2435
    %v3111 = vpack.c.b16 %v2445, %v2436
    %v3112 = vpack.c.b16 %v2446, %v2437
    %v3113 = vpack.c.b16 %v2447, %v2438
    %v3114 = vpack.c.b16 %v2448, %v2439
    %v3115 = vpack.c.b16 %v2458, %v2449
    %v3116 = vpack.c.b16 %v2459, %v2450
    %v3117 = vpack.c.b16 %v2460, %v2451
    %v3118 = vpack.c.b16 %v2461, %v2452
    %v3119 = vpack.c.b16 %v2462, %v2453
    %v3120 = vpack.c.b16 %v2463, %v2454
    %v3121 = vpack.c.b16 %v2464, %v2455
    %v3122 = vpack.c.b16 %v2465, %v2456
    %v3123 = vpack.c.b16 %v2466, %v2457
    %v3124 = vpack.c.b16 %v2476, %v2467
    %v3125 = vpack.c.b16 %v2477, %v2468
    %v3126 = vpack.c.b16 %v2478, %v2469
    %v3127 = vpack.c.b16 %v2479, %v2470
    %v3128 = vpack.c.b16 %v2480, %v2471
    %v3129 = vpack.c.b16 %v2481, %v2472
    %v3130 = vpack.c.b16 %v2482, %v2473
    %v3131 = vpack.c.b16 %v2483, %v2474
    %v3132 = vpack.c.b16 %v2484, %v2475
    %v3133 = vpack.c.b16 %v2494, %v2485
    %v3134 = vpack.c.b16 %v2495, %v2486
    %v3135 = vpack.c.b16 %v2496, %v2487
    %v3136 = vpack.c.b16 %v2497, %v2488
    %v3137 = vpack.c.b16 %v2498, %v2489
    %v3138 = vpack.c.b16 %v2499, %v2490
    %v3139 = vpack.c.b16 %v2500, %v2491
    %v3140 = vpack.c.b16 %v2501, %v2492
    %v3141 = vpack.c.b16 %v2502, %v2493
    %v3142 = vpack.c.b16 %v2512, %v2503
    %v3143 = vpack.c.b16 %v2513, %v2504
    %v3144 = vpack.c.b16 %v2514, %v2505
    %v3145 = vpack.c.b16 %v2515, %v2506
    %v3146 = vpack.c.b16 %v2516, %v2507
    %v3147 = vpack.c.b16 %v2517, %v2508
    %v3148 = vpack.c.b16 %v2518, %v2509
    %v3149 = vpack.c.b16 %v2519, %v2510
    %v3150 = vpack.c.b16 %v2520, %v2511
    %v3151 = vpack.c.b16 %v2530, %v2521
    %v3152 = vpack.c.b16 %v2531, %v2522
    %v3153 = vpack.c.b16 %v2532, %v2523
    %v3154 = vpack.c.b16 %v2533, %v2524
    %v3155 = vpack.c.b16 %v2534, %v2525
    %v3156 = vpack.c.b16 %v2535, %v2526
    %v3157 = vpack.c.b16 %v2536, %v2527
    %v3158 = vpack.c.b16 %v2537, %v2528
    %v3159 = vpack.c.b16 %v2538, %v2529
    %v3160 = vpack.c.b16 %v2548, %v2539
    %v3161 = vpack.c.b16 %v2549, %v2540
    %v3162 = vpack.c.b16 %v2550, %v2541
    %v3163 = vpack.c.b16 %v2551, %v2542
    %v3164 = vpack.c.b16 %v2552, %v2543
    %v3165 = vpack.c.b16 %v2553, %v2544
    %v3166 = vpack.c.b16 %v2554, %v2545
    %v3167 = vpack.c.b16 %v2555, %v2546
    %v3168 = vpack.c.b16 %v2556, %v2547
    %v3169 = vpack.c.b16 %v2566, %v2557
    %v3170 = vpack.c.b16 %v2567, %v2558
    %v3171 = vpack.c.b16 %v2568, %v2559
    %v3172 = vpack.c.b16 %v2569, %v2560
    %v3173 = vpack.c.b16 %v2570, %v2561
    %v3174 = vpack.c.b16 %v2571, %v2562
    %v3175 = vpack.c.b16 %v2572, %v2563
    %v3176 = vpack.c.b16 %v2573, %v2564
    %v3177 = vpack.c.b16 %v2574, %v2565
    %v3178 = vpack.c.b16 %v2584, %v2575
    %v3179 = vpack.c.b16 %v2585, %v2576
    %v3180 = vpack.c.b16 %v2586, %v2577
    %v3181 = vpack.c.b16 %v2587, %v2578
    %v3182 = vpack.c.b16 %v2588, %v2579
    %v3183 = vpack.c.b16 %v2589, %v2580
    %v3184 = vpack.c.b16 %v2590, %v2581
    %v3185 = vpack.c.b16 %v2591, %v2582
    %v3186 = vpack.c.b16 %v2592, %v2583
    %v3187 = vpack.c.b16 %v2602, %v2593
    %v3188 = vpack.c.b16 %v2603, %v2594
    %v3189 = vpack.c.b16 %v2604, %v2595
    %v3190 = vpack.c.b16 %v2605, %v2596
    %v3191 = vpack.c.b16 %v2606, %v2597
    %v3192 = vpack.c.b16 %v2607, %v2598
    %v3193 = vpack.c.b16 %v2608, %v2599
    %v3194 = vpack.c.b16 %v2609, %v2600
    %v3195 = vpack.c.b16 %v2610, %v2601
    %v3196 = vpack.c.b16 %v2620, %v2611
    %v3197 = vpack.c.b16 %v2621, %v2612
    %v3198 = vpack.c.b16 %v2622, %v2613
    %v3199 = vpack.c.b16 %v2623, %v2614
    %v3200 = vpack.c.b16 %v2624, %v2615
    %v3201 = vpack.c.b16 %v2625, %v2616
    %v3202 = vpack.c.b16 %v2626, %v2617
    %v3203 = vpack.c.b16 %v2627, %v2618
    %v3204 = vpack.c.b16 %v2628, %v2619
    %v3925 = vunpack.c.l.b16 %v693
    %v3926 = vunpack.c.l.b16 %v694
    %v3927 = vunpack.c.l.b16 %v695
    %v3928 = vunpack.c.l.b16 %v696
    %v3929 = vunpack.c.l.b16 %v697
    %v3930 = vunpack.c.l.b16 %v698
    %v3931 = vunpack.c.l.b16 %v699
    %v3932 = vunpack.c.l.b16 %v700
    %v3933 = vunpack.c.l.b16 %v701
    %v3934 = vunpack.c.l.b16 %v702
    %v3935 = vunpack.c.l.b16 %v703
    %v3936 = vunpack.c.l.b16 %v704
    %v3937 = vunpack.c.l.b16 %v705
    %v3938 = vunpack.c.l.b16 %v706
    %v3939 = vunpack.c.l.b16 %v707
    %v3940 = vunpack.c.l.b16 %v708
    %v3941 = vunpack.c.l.b16 %v709
    %v3942 = vunpack.c.l.b16 %v710
    %v3943 = vunpack.c.l.b16 %v711
    %v3944 = vunpack.c.l.b16 %v712
    %v3945 = vunpack.c.l.b16 %v713
    %v3946 = vunpack.c.l.b16 %v714
    %v3947 = vunpack.c.l.b16 %v715
    %v3948 = vunpack.c.l.b16 %v716
    %v3949 = vunpack.c.l.b16 %v717
    %v3950 = vunpack.c.l.b16 %v718
    %v3951 = vunpack.c.l.b16 %v719
    %v3952 = vunpack.c.l.b16 %v720
    %v3953 = vunpack.c.l.b16 %v721
    %v3954 = vunpack.c.l.b16 %v722
    %v3955 = vunpack.c.l.b16 %v723
    %v3956 = vunpack.c.l.b16 %v724
    %v3957 = vunpack.c.l.b16 %v725
    %v3958 = vunpack.c.l.b16 %v726
    %v3959 = vunpack.c.l.b16 %v727
    %v3960 = vunpack.c.l.b16 %v728
    %v3961 = vunpack.c.l.b16 %v729
    %v3962 = vunpack.c.l.b16 %v730
    %v3963 = vunpack.c.l.b16 %v731
    %v3964 = vunpack.c.l.b16 %v732
    %v3965 = vunpack.c.l.b16 %v733
    %v3966 = vunpack.c.l.b16 %v734
    %v3967 = vunpack.c.l.b16 %v735
    %v3968 = vunpack.c.l.b16 %v736
    %v3969 = vunpack.c.l.b16 %v737
    %v3970 = vunpack.c.l.b16 %v738
    %v3971 = vunpack.c.l.b16 %v739
    %v3972 = vunpack.c.l.b16 %v740
    %v3973 = vunpack.c.l.b16 %v741
    %v3974 = vunpack.c.l.b16 %v742
    %v3975 = vunpack.c.l.b16 %v743
    %v3976 = vunpack.c.l.b16 %v744
    %v3977 = vunpack.c.l.b16 %v745
    %v3978 = vunpack.c.l.b16 %v746
    %v3979 = vunpack.c.l.b16 %v747
    %v3980 = vunpack.c.l.b16 %v748
    %v3981 = vunpack.c.l.b16 %v749
    %v3982 = vunpack.c.l.b16 %v750
    %v3983 = vunpack.c.l.b16 %v751
    %v3984 = vunpack.c.l.b16 %v752
    %v3985 = vunpack.c.l.b16 %v753
    %v3986 = vunpack.c.l.b16 %v754
    %v3987 = vunpack.c.l.b16 %v755
    %v3988 = vunpack.c.l.b16 %v756
    %v3989 = vunpack.c.l.b16 %v757
    %v3990 = vunpack.c.l.b16 %v758
    %v3991 = vunpack.c.l.b16 %v759
    %v3992 = vunpack.c.l.b16 %v760
    %v3993 = vunpack.c.l.b16 %v761
    %v3994 = vunpack.c.l.b16 %v762
    %v3995 = vunpack.c.l.b16 %v763
    %v3996 = vunpack.c.l.b16 %v764
    %v3997 = vunpack.c.l.b16 %v765
    %v3998 = vunpack.c.l.b16 %v766
    %v3999 = vunpack.c.l.b16 %v767
    %v4000 = vunpack.c.l.b16 %v768
    %v4001 = vunpack.c.l.b16 %v769
    %v4002 = vunpack.c.l.b16 %v770
    %v4003 = vunpack.c.l.b16 %v771
    %v4004 = vunpack.c.l.b16 %v772
    %v4005 = vunpack.c.l.b16 %v773
    %v4006 = vunpack.c.l.b16 %v774
    %v4007 = vunpack.c.l.b16 %v775
    %v4008 = vunpack.c.l.b16 %v776
    %v4009 = vunpack.c.l.b16 %v777
    %v4010 = vunpack.c.l.b16 %v778
    %v4011 = vunpack.c.l.b16 %v779
    %v4012 = vunpack.c.l.b16 %v780
    %v4013 = vunpack.c.l.b16 %v781
    %v4014 = vunpack.c.l.b16 %v782
    %v4015 = vunpack.c.l.b16 %v783
    %v4016 = vunpack.c.l.b16 %v784
    %v4017 = vunpack.c.l.b16 %v785
    %v4018 = vunpack.c.l.b16 %v786
    %v4019 = vunpack.c.l.b16 %v787
    %v4020 = vunpack.c.l.b16 %v788
    %v4021 = vunpack.c.l.b16 %v789
    %v4022 = vunpack.c.l.b16 %v790
    %v4023 = vunpack.c.l.b16 %v791
    %v4024 = vunpack.c.l.b16 %v792
    %v4025 = vunpack.c.l.b16 %v793
    %v4026 = vunpack.c.l.b16 %v794
    %v4027 = vunpack.c.l.b16 %v795
    %v4028 = vunpack.c.l.b16 %v796
    %v4029 = vunpack.c.l.b16 %v797
    %v4030 = vunpack.c.l.b16 %v798
    %v4031 = vunpack.c.l.b16 %v799
    %v4032 = vunpack.c.l.b16 %v800
    %v4033 = vunpack.c.l.b16 %v801
    %v4034 = vunpack.c.l.b16 %v802
    %v4035 = vunpack.c.l.b16 %v803
    %v4036 = vunpack.c.l.b16 %v804
    %v4037 = vunpack.c.l.b16 %v805
    %v4038 = vunpack.c.l.b16 %v806
    %v4039 = vunpack.c.l.b16 %v807
    %v4040 = vunpack.c.l.b16 %v808
    %v4041 = vunpack.c.l.b16 %v809
    %v4042 = vunpack.c.l.b16 %v810
    %v4043 = vunpack.c.l.b16 %v811
    %v4044 = vunpack.c.l.b16 %v812
    %v4045 = vunpack.c.l.b16 %v813
    %v4046 = vunpack.c.l.b16 %v814
    %v4047 = vunpack.c.l.b16 %v815
    %v4048 = vunpack.c.l.b16 %v816
    %v4049 = vunpack.c.l.b16 %v817
    %v4050 = vunpack.c.l.b16 %v818
    %v4051 = vunpack.c.l.b16 %v819
    %v4052 = vunpack.c.l.b16 %v820
    %v4053 = vunpack.c.l.b16 %v821
    %v4054 = vunpack.c.l.b16 %v822
    %v4055 = vunpack.c.l.b16 %v823
    %v4056 = vunpack.c.l.b16 %v824
    %v4057 = vunpack.c.l.b16 %v825
    %v4058 = vunpack.c.l.b16 %v826
    %v4059 = vunpack.c.l.b16 %v827
    %v4060 = vunpack.c.l.b16 %v828
    %v4061 = vunpack.c.l.b16 %v829
    %v4062 = vunpack.c.l.b16 %v830
    %v4063 = vunpack.c.l.b16 %v831
    %v4064 = vunpack.c.l.b16 %v832
    %v4065 = vunpack.c.l.b16 %v833
    %v4066 = vunpack.c.l.b16 %v834
    %v4067 = vunpack.c.l.b16 %v835
    %v4068 = vunpack.c.l.b16 %v836
    %v4069 = vpack.c.b16 %v3926, %v3925
    %v4070 = vpack.c.b16 %v3928, %v3927
    %v4071 = vpack.c.b16 %v3930, %v3929
    %v4072 = vpack.c.b16 %v3932, %v3931
    %v4073 = vpack.c.b16 %v3934, %v3933
    %v4074 = vpack.c.b16 %v3936, %v3935
    %v4075 = vpack.c.b16 %v3938, %v3937
    %v4076 = vpack.c.b16 %v3940, %v3939
    %v4077 = vpack.c.b16 %v3942, %v3941
    %v4078 = vpack.c.b16 %v3944, %v3943
    %v4079 = vpack.c.b16 %v3946, %v3945
    %v4080 = vpack.c.b16 %v3948, %v3947
    %v4081 = vpack.c.b16 %v3950, %v3949
    %v4082 = vpack.c.b16 %v3952, %v3951
    %v4083 = vpack.c.b16 %v3954, %v3953
    %v4084 = vpack.c.b16 %v3956, %v3955
    %v4085 = vpack.c.b16 %v3958, %v3957
    %v4086 = vpack.c.b16 %v3960, %v3959
    %v4087 = vpack.c.b16 %v3962, %v3961
    %v4088 = vpack.c.b16 %v3964, %v3963
    %v4089 = vpack.c.b16 %v3966, %v3965
    %v4090 = vpack.c.b16 %v3968, %v3967
    %v4091 = vpack.c.b16 %v3970, %v3969
    %v4092 = vpack.c.b16 %v3972, %v3971
    %v4093 = vpack.c.b16 %v3974, %v3973
    %v4094 = vpack.c.b16 %v3976, %v3975
    %v4095 = vpack.c.b16 %v3978, %v3977
    %v4096 = vpack.c.b16 %v3980, %v3979
    %v4097 = vpack.c.b16 %v3982, %v3981
    %v4098 = vpack.c.b16 %v3984, %v3983
    %v4099 = vpack.c.b16 %v3986, %v3985
    %v4100 = vpack.c.b16 %v3988, %v3987
    %v4101 = vpack.c.b16 %v3990, %v3989
    %v4102 = vpack.c.b16 %v3992, %v3991
    %v4103 = vpack.c.b16 %v3994, %v3993
    %v4104 = vpack.c.b16 %v3996, %v3995
    %v4105 = vpack.c.b16 %v3998, %v3997
    %v4106 = vpack.c.b16 %v4000, %v3999
    %v4107 = vpack.c.b16 %v4002, %v4001
    %v4108 = vpack.c.b16 %v4004, %v4003
    %v4109 = vpack.c.b16 %v4006, %v4005
    %v4110 = vpack.c.b16 %v4008, %v4007
    %v4111 = vpack.c.b16 %v4010, %v4009
    %v4112 = vpack.c.b16 %v4012, %v4011
    %v4113 = vpack.c.b16 %v4014, %v4013
    %v4114 = vpack.c.b16 %v4016, %v4015
    %v4115 = vpack.c.b16 %v4018, %v4017
    %v4116 = vpack.c.b16 %v4020, %v4019
    %v4117 = vpack.c.b16 %v4022, %v4021
    %v4118 = vpack.c.b16 %v4024, %v4023
    %v4119 = vpack.c.b16 %v4026, %v4025
    %v4120 = vpack.c.b16 %v4028, %v4027
    %v4121 = vpack.c.b16 %v4030, %v4029
    %v4122 = vpack.c.b16 %v4032, %v4031
    %v4123 = vpack.c.b16 %v4034, %v4033
    %v4124 = vpack.c.b16 %v4036, %v4035
    %v4125 = vpack.c.b16 %v4038, %v4037
    %v4126 = vpack.c.b16 %v4040, %v4039
    %v4127 = vpack.c.b16 %v4042, %v4041
    %v4128 = vpack.c.b16 %v4044, %v4043
    %v4129 = vpack.c.b16 %v4046, %v4045
    %v4130 = vpack.c.b16 %v4048, %v4047
    %v4131 = vpack.c.b16 %v4050, %v4049
    %v4132 = vpack.c.b16 %v4052, %v4051
    %v4133 = vpack.c.b16 %v4054, %v4053
    %v4134 = vpack.c.b16 %v4056, %v4055
    %v4135 = vpack.c.b16 %v4058, %v4057
    %v4136 = vpack.c.b16 %v4060, %v4059
    %v4137 = vpack.c.b16 %v4062, %v4061
    %v4138 = vpack.c.b16 %v4064, %v4063
    %v4139 = vpack.c.b16 %v4066, %v4065
    %v4140 = vpack.c.b16 %v4068, %v4067
    %4213 = vmatprep.subr.bf16.mxu0 0
    %4214 = vmatpush1.bf16.msra.mxu0 %v4069
    %4215 = vmatprep.subr.bf16.mxu0 0
    %4216 = vmatpush1.bf16.msra.mxu0 %v4070
    %4217 = vmatprep.subr.bf16.mxu0 0
    %4218 = vmatpush1.bf16.msra.mxu0 %v4071
    %4219 = vmatprep.subr.bf16.mxu0 0
    %4220 = vmatpush1.bf16.msra.mxu0 %v4072
    %4221 = vmatprep.subr.bf16.mxu0 0
    %4222 = vmatpush1.bf16.msra.mxu0 %v4073
    %4223 = vmatprep.subr.bf16.mxu0 0
    %4224 = vmatpush1.bf16.msra.mxu0 %v4074
    %4225 = vmatprep.subr.bf16.mxu0 0
    %4226 = vmatpush1.bf16.msra.mxu0 %v4075
    %4227 = vmatprep.subr.bf16.mxu0 0
    %4228 = vmatpush1.bf16.msra.mxu0 %v4076
    %4229 = vmatprep.subr.bf16.mxu0 0
    %4230 = vmatpush1.bf16.msra.mxu0 %v4077
    %4231 = vmatprep.subr.bf16.mxu0 0
    %4232 = vmatpush1.bf16.msra.mxu0 %v4078
    %4233 = vmatprep.subr.bf16.mxu0 0
    %4234 = vmatpush1.bf16.msra.mxu0 %v4079
    %4235 = vmatprep.subr.bf16.mxu0 0
    %4236 = vmatpush1.bf16.msra.mxu0 %v4080
    %4237 = vmatprep.subr.bf16.mxu0 0
    %4238 = vmatpush1.bf16.msra.mxu0 %v4081
    %4239 = vmatprep.subr.bf16.mxu0 0
    %4240 = vmatpush1.bf16.msra.mxu0 %v4082
    %4241 = vmatprep.subr.bf16.mxu0 0
    %4242 = vmatpush1.bf16.msra.mxu0 %v4083
    %4243 = vmatprep.subr.bf16.mxu0 0
    %4244 = vmatpush1.bf16.msra.mxu0 %v4084
    %4245 = vmatprep.mubr.bf16.mxu0 %v2630
    %4246 = vmatmul.mubr.bf16.gmra.mrb[0].mxu0 %v2629
    %v4247 = vpop.f32.mrb[0].mxu0
    %v4248 = vadd.f32 0.0, %v4247
    %v4249 = vpop.f32.mrb[0].mxu0
    %v4250 = vpop.f32.mrb[0].mxu0
    %v4251 = vadd.f32 0.0, %v4250
    %v4252 = vpop.f32.mrb[0].mxu0
    %4253 = vmatprep.mubr.bf16.mxu0 %v2639
    %4254 = vmatmul.mubr.bf16.gmra.mrb[0].mxu0 %v2638
    %v4255 = vpop.f32.mrb[0].mxu0
    %v4256 = vadd.f32 0.0, %v4255
    %v4257 = vpop.f32.mrb[0].mxu0
    %v4258 = vpop.f32.mrb[0].mxu0
    %v4259 = vadd.f32 0.0, %v4258
    %v4260 = vpop.f32.mrb[0].mxu0
    %4261 = vmatprep.mubr.bf16.mxu0 %v2648
    %4262 = vmatmul.mubr.bf16.gmra.mrb[0].mxu0 %v2647
    %v4263 = vpop.f32.mrb[0].mxu0
    %v4264 = vadd.f32 0.0, %v4263
    %v4265 = vpop.f32.mrb[0].mxu0
    %v4266 = vpop.f32.mrb[0].mxu0
    %v4267 = vadd.f32 0.0, %v4266
    %v4268 = vpop.f32.mrb[0].mxu0
    %4269 = vmatprep.mubr.bf16.mxu0 %v2657
    %4270 = vmatmul.mubr.bf16.gmra.mrb[0].mxu0 %v2656
    %v4271 = vpop.f32.mrb[0].mxu0
    %v4272 = vadd.f32 0.0, %v4271
    %v4273 = vpop.f32.mrb[0].mxu0
    %v4274 = vpop.f32.mrb[0].mxu0
    %v4275 = vadd.f32 0.0, %v4274
    %v4276 = vpop.f32.mrb[0].mxu0
    %4277 = vmatprep.mubr.bf16.mxu0 %v2666
    %4278 = vmatmul.mubr.bf16.gmra.mrb[0].mxu0 %v2665
    %v4279 = vpop.f32.mrb[0].mxu0
    %v4280 = vadd.f32 0.0, %v4279
    %v4281 = vpop.f32.mrb[0].mxu0
    %v4282 = vpop.f32.mrb[0].mxu0
    %v4283 = vadd.f32 0.0, %v4282
    %v4284 = vpop.f32.mrb[0].mxu0
    %4285 = vmatprep.mubr.bf16.mxu0 %v2675
    %4286 = vmatmul.mubr.bf16.gmra.mrb[0].mxu0 %v2674
    %v4287 = vpop.f32.mrb[0].mxu0
    %v4288 = vadd.f32 0.0, %v4287
    %v4289 = vpop.f32.mrb[0].mxu0
    %v4290 = vpop.f32.mrb[0].mxu0
    %v4291 = vadd.f32 0.0, %v4290
    %v4292 = vpop.f32.mrb[0].mxu0
    %4293 = vmatprep.mubr.bf16.mxu0 %v2684
    %4294 = vmatmul.mubr.bf16.gmra.mrb[0].mxu0 %v2683
    %v4295 = vpop.f32.mrb[0].mxu0
    %v4296 = vadd.f32 0.0, %v4295
    %v4297 = vpop.f32.mrb[0].mxu0
    %v4298 = vpop.f32.mrb[0].mxu0
    %v4299 = vadd.f32 0.0, %v4298
    %v4300 = vpop.f32.mrb[0].mxu0
    %4301 = vmatprep.mubr.bf16.mxu0 %v2693
    %4302 = vmatmul.mubr.bf16.gmra.mrb[0].mxu0 %v2692
    %v4303 = vpop.f32.mrb[0].mxu0
    %v4304 = vadd.f32 0.0, %v4303
    %v4305 = vpop.f32.mrb[0].mxu0
    %v4306 = vpop.f32.mrb[0].mxu0
    %v4307 = vadd.f32 0.0, %v4306
    %v4308 = vpop.f32.mrb[0].mxu0
    %4309 = vmatprep.mubr.bf16.mxu0 %v2702
    %4310 = vmatmul.mubr.bf16.gmra.mrb[0].mxu0 %v2701
    %v4311 = vpop.f32.mrb[0].mxu0
    %v4312 = vadd.f32 0.0, %v4311
    %v4313 = vpop.f32.mrb[0].mxu0
    %v4314 = vpop.f32.mrb[0].mxu0
    %v4315 = vadd.f32 0.0, %v4314
    %v4316 = vpop.f32.mrb[0].mxu0
    %4317 = vmatprep.mubr.bf16.mxu0 %v2711
    %4318 = vmatmul.mubr.bf16.gmra.mrb[0].mxu0 %v2710
    %v4319 = vpop.f32.mrb[0].mxu0
    %v4320 = vadd.f32 0.0, %v4319
    %v4321 = vpop.f32.mrb[0].mxu0
    %v4322 = vpop.f32.mrb[0].mxu0
    %v4323 = vadd.f32 0.0, %v4322
    %v4324 = vpop.f32.mrb[0].mxu0
    %4325 = vmatprep.mubr.bf16.mxu0 %v2720
    %4326 = vmatmul.mubr.bf16.gmra.mrb[0].mxu0 %v2719
    %v4327 = vpop.f32.mrb[0].mxu0
    %v4328 = vadd.f32 0.0, %v4327
    %v4329 = vpop.f32.mrb[0].mxu0
    %v4330 = vpop.f32.mrb[0].mxu0
    %v4331 = vadd.f32 0.0, %v4330
    %v4332 = vpop.f32.mrb[0].mxu0
    %4333 = vmatprep.mubr.bf16.mxu0 %v2729
    %4334 = vmatmul.mubr.bf16.gmra.mrb[0].mxu0 %v2728
    %v4335 = vpop.f32.mrb[0].mxu0
    %v4336 = vadd.f32 0.0, %v4335
    %v4337 = vpop.f32.mrb[0].mxu0
    %v4338 = vpop.f32.mrb[0].mxu0
    %v4339 = vadd.f32 0.0, %v4338
    %v4340 = vpop.f32.mrb[0].mxu0
    %4341 = vmatprep.mubr.bf16.mxu0 %v2738
    %4342 = vmatmul.mubr.bf16.gmra.mrb[0].mxu0 %v2737
    %v4343 = vpop.f32.mrb[0].mxu0
    %v4344 = vadd.f32 0.0, %v4343
    %v4345 = vpop.f32.mrb[0].mxu0
    %v4346 = vpop.f32.mrb[0].mxu0
    %v4347 = vadd.f32 0.0, %v4346
    %v4348 = vpop.f32.mrb[0].mxu0
    %4349 = vmatprep.mubr.bf16.mxu0 %v2747
    %4350 = vmatmul.mubr.bf16.gmra.mrb[0].mxu0 %v2746
    %v4351 = vpop.f32.mrb[0].mxu0
    %v4352 = vadd.f32 0.0, %v4351
    %v4353 = vpop.f32.mrb[0].mxu0
    %v4354 = vpop.f32.mrb[0].mxu0
    %v4355 = vadd.f32 0.0, %v4354
    %v4356 = vpop.f32.mrb[0].mxu0
    %4357 = vmatprep.mubr.bf16.mxu0 %v2756
    %4358 = vmatmul.mubr.bf16.gmra.mrb[0].mxu0 %v2755
    %v4359 = vpop.f32.mrb[0].mxu0
    %v4360 = vadd.f32 0.0, %v4359
    %v4361 = vpop.f32.mrb[0].mxu0
    %v4362 = vpop.f32.mrb[0].mxu0
    %v4363 = vadd.f32 0.0, %v4362
    %v4364 = vpop.f32.mrb[0].mxu0
    %4365 = vmatprep.mubr.bf16.mxu0 %v2765
    %4366 = vmatmul.mubr.bf16.gmra.mrb[0].mxu0 %v2764
    %v4367 = vpop.f32.mrb[0].mxu0
    %v4368 = vadd.f32 0.0, %v4367
    %v4369 = vpop.f32.mrb[0].mxu0
    %v4370 = vpop.f32.mrb[0].mxu0
    %v4371 = vadd.f32 0.0, %v4370
    %v4372 = vpop.f32.mrb[0].mxu0
    %4373 = vmatprep.mubr.bf16.mxu0 %v2774
    %4374 = vmatmul.mubr.bf16.gmra.mrb[0].mxu0 %v2773
    %v4375 = vpop.f32.mrb[0].mxu0
    %v4376 = vadd.f32 0.0, %v4375
    %v4377 = vpop.f32.mrb[0].mxu0
    %v4378 = vpop.f32.mrb[0].mxu0
    %v4379 = vadd.f32 0.0, %v4378
    %v4380 = vpop.f32.mrb[0].mxu0
    %4381 = vmatprep.mubr.bf16.mxu0 %v2783
    %4382 = vmatmul.mubr.bf16.gmra.mrb[0].mxu0 %v2782
    %v4383 = vpop.f32.mrb[0].mxu0
    %v4384 = vadd.f32 0.0, %v4383
    %v4385 = vpop.f32.mrb[0].mxu0
    %v4386 = vpop.f32.mrb[0].mxu0
    %v4387 = vadd.f32 0.0, %v4386
    %v4388 = vpop.f32.mrb[0].mxu0
    %4389 = vmatprep.mubr.bf16.mxu0 %v2792
    %4390 = vmatmul.mubr.bf16.gmra.mrb[0].mxu0 %v2791
    %v4391 = vpop.f32.mrb[0].mxu0
    %v4392 = vadd.f32 0.0, %v4391
    %v4393 = vpop.f32.mrb[0].mxu0
    %v4394 = vpop.f32.mrb[0].mxu0
    %v4395 = vadd.f32 0.0, %v4394
    %v4396 = vpop.f32.mrb[0].mxu0
    %4397 = vmatprep.mubr.bf16.mxu0 %v2801
    %4398 = vmatmul.mubr.bf16.gmra.mrb[0].mxu0 %v2800
    %v4399 = vpop.f32.mrb[0].mxu0
    %v4400 = vadd.f32 0.0, %v4399
    %v4401 = vpop.f32.mrb[0].mxu0
    %v4402 = vpop.f32.mrb[0].mxu0
    %v4403 = vadd.f32 0.0, %v4402
    %v4404 = vpop.f32.mrb[0].mxu0
    %4405 = vmatprep.mubr.bf16.mxu0 %v2810
    %4406 = vmatmul.mubr.bf16.gmra.mrb[0].mxu0 %v2809
    %v4407 = vpop.f32.mrb[0].mxu0
    %v4408 = vadd.f32 0.0, %v4407
    %v4409 = vpop.f32.mrb[0].mxu0
    %v4410 = vpop.f32.mrb[0].mxu0
    %v4411 = vadd.f32 0.0, %v4410
    %v4412 = vpop.f32.mrb[0].mxu0
    %4413 = vmatprep.mubr.bf16.mxu0 %v2819
    %4414 = vmatmul.mubr.bf16.gmra.mrb[0].mxu0 %v2818
    %v4415 = vpop.f32.mrb[0].mxu0
    %v4416 = vadd.f32 0.0, %v4415
    %v4417 = vpop.f32.mrb[0].mxu0
    %v4418 = vpop.f32.mrb[0].mxu0
    %v4419 = vadd.f32 0.0, %v4418
    %v4420 = vpop.f32.mrb[0].mxu0
    %4421 = vmatprep.mubr.bf16.mxu0 %v2828
    %4422 = vmatmul.mubr.bf16.gmra.mrb[0].mxu0 %v2827
    %v4423 = vpop.f32.mrb[0].mxu0
    %v4424 = vadd.f32 0.0, %v4423
    %v4425 = vpop.f32.mrb[0].mxu0
    %v4426 = vpop.f32.mrb[0].mxu0
    %v4427 = vadd.f32 0.0, %v4426
    %v4428 = vpop.f32.mrb[0].mxu0
    %4429 = vmatprep.mubr.bf16.mxu0 %v2837
    %4430 = vmatmul.mubr.bf16.gmra.mrb[0].mxu0 %v2836
    %v4431 = vpop.f32.mrb[0].mxu0
    %v4432 = vadd.f32 0.0, %v4431
    %v4433 = vpop.f32.mrb[0].mxu0
    %v4434 = vpop.f32.mrb[0].mxu0
    %v4435 = vadd.f32 0.0, %v4434
    %v4436 = vpop.f32.mrb[0].mxu0
    %4437 = vmatprep.mubr.bf16.mxu0 %v2846
    %4438 = vmatmul.mubr.bf16.gmra.mrb[0].mxu0 %v2845
    %v4439 = vpop.f32.mrb[0].mxu0
    %v4440 = vadd.f32 0.0, %v4439
    %v4441 = vpop.f32.mrb[0].mxu0
    %v4442 = vpop.f32.mrb[0].mxu0
    %v4443 = vadd.f32 0.0, %v4442
    %v4444 = vpop.f32.mrb[0].mxu0
    %4445 = vmatprep.mubr.bf16.mxu0 %v2855
    %4446 = vmatmul.mubr.bf16.gmra.mrb[0].mxu0 %v2854
    %v4447 = vpop.f32.mrb[0].mxu0
    %v4448 = vadd.f32 0.0, %v4447
    %v4449 = vpop.f32.mrb[0].mxu0
    %v4450 = vpop.f32.mrb[0].mxu0
    %v4451 = vadd.f32 0.0, %v4450
    %v4452 = vpop.f32.mrb[0].mxu0
    %4453 = vmatprep.mubr.bf16.mxu0 %v2864
    %4454 = vmatmul.mubr.bf16.gmra.mrb[0].mxu0 %v2863
    %v4455 = vpop.f32.mrb[0].mxu0
    %v4456 = vadd.f32 0.0, %v4455
    %v4457 = vpop.f32.mrb[0].mxu0
    %v4458 = vpop.f32.mrb[0].mxu0
    %v4459 = vadd.f32 0.0, %v4458
    %v4460 = vpop.f32.mrb[0].mxu0
    %4461 = vmatprep.mubr.bf16.mxu0 %v2873
    %4462 = vmatmul.mubr.bf16.gmra.mrb[0].mxu0 %v2872
    %v4463 = vpop.f32.mrb[0].mxu0
    %v4464 = vadd.f32 0.0, %v4463
    %v4465 = vpop.f32.mrb[0].mxu0
    %v4466 = vpop.f32.mrb[0].mxu0
    %v4467 = vadd.f32 0.0, %v4466
    %v4468 = vpop.f32.mrb[0].mxu0
    %4469 = vmatprep.mubr.bf16.mxu0 %v2882
    %4470 = vmatmul.mubr.bf16.gmra.mrb[0].mxu0 %v2881
    %v4471 = vpop.f32.mrb[0].mxu0
    %v4472 = vadd.f32 0.0, %v4471
    %v4473 = vpop.f32.mrb[0].mxu0
    %v4474 = vpop.f32.mrb[0].mxu0
    %v4475 = vadd.f32 0.0, %v4474
    %v4476 = vpop.f32.mrb[0].mxu0
    %4477 = vmatprep.mubr.bf16.mxu0 %v2891
    %4478 = vmatmul.mubr.bf16.gmra.mrb[0].mxu0 %v2890
    %v4479 = vpop.f32.mrb[0].mxu0
    %v4480 = vadd.f32 0.0, %v4479
    %v4481 = vpop.f32.mrb[0].mxu0
    %v4482 = vpop.f32.mrb[0].mxu0
    %v4483 = vadd.f32 0.0, %v4482
    %v4484 = vpop.f32.mrb[0].mxu0
    %4485 = vmatprep.mubr.bf16.mxu0 %v2900
    %4486 = vmatmul.mubr.bf16.gmra.mrb[0].mxu0 %v2899
    %v4487 = vpop.f32.mrb[0].mxu0
    %v4488 = vadd.f32 0.0, %v4487
    %v4489 = vpop.f32.mrb[0].mxu0
    %v4490 = vpop.f32.mrb[0].mxu0
    %v4491 = vadd.f32 0.0, %v4490
    %v4492 = vpop.f32.mrb[0].mxu0
    %4493 = vmatprep.mubr.bf16.mxu0 %v2909
    %4494 = vmatmul.mubr.bf16.gmra.mrb[0].mxu0 %v2908
    %v4495 = vpop.f32.mrb[0].mxu0
    %v4496 = vadd.f32 0.0, %v4495
    %v4497 = vpop.f32.mrb[0].mxu0
    %v4498 = vpop.f32.mrb[0].mxu0
    %v4499 = vadd.f32 0.0, %v4498
    %v4500 = vpop.f32.mrb[0].mxu0
    %4501 = vmatprep.mubr.bf16.mxu0 %v2918
    %4502 = vmatmul.mubr.bf16.gmra.mrb[0].mxu0 %v2917
    %v4503 = vpop.f32.mrb[0].mxu0
    %v4504 = vadd.f32 0.0, %v4503
    %v4505 = vpop.f32.mrb[0].mxu0
    %v4506 = vpop.f32.mrb[0].mxu0
    %v4507 = vadd.f32 0.0, %v4506
    %v4508 = vpop.f32.mrb[0].mxu0
    %4509 = vmatprep.mubr.bf16.mxu0 %v2927
    %4510 = vmatmul.mubr.bf16.gmra.mrb[0].mxu0 %v2926
    %v4511 = vpop.f32.mrb[0].mxu0
    %v4512 = vadd.f32 0.0, %v4511
    %v4513 = vpop.f32.mrb[0].mxu0
    %v4514 = vpop.f32.mrb[0].mxu0
    %v4515 = vadd.f32 0.0, %v4514
    %v4516 = vpop.f32.mrb[0].mxu0
    %4517 = vmatprep.mubr.bf16.mxu0 %v2936
    %4518 = vmatmul.mubr.bf16.gmra.mrb[0].mxu0 %v2935
    %v4519 = vpop.f32.mrb[0].mxu0
    %v4520 = vadd.f32 0.0, %v4519
    %v4521 = vpop.f32.mrb[0].mxu0
    %v4522 = vpop.f32.mrb[0].mxu0
    %v4523 = vadd.f32 0.0, %v4522
    %v4524 = vpop.f32.mrb[0].mxu0
    %4525 = vmatprep.mubr.bf16.mxu0 %v2945
    %4526 = vmatmul.mubr.bf16.gmra.mrb[0].mxu0 %v2944
    %v4527 = vpop.f32.mrb[0].mxu0
    %v4528 = vadd.f32 0.0, %v4527
    %v4529 = vpop.f32.mrb[0].mxu0
    %v4530 = vpop.f32.mrb[0].mxu0
    %v4531 = vadd.f32 0.0, %v4530
    %v4532 = vpop.f32.mrb[0].mxu0
    %4533 = vmatprep.mubr.bf16.mxu0 %v2954
    %4534 = vmatmul.mubr.bf16.gmra.mrb[0].mxu0 %v2953
    %v4535 = vpop.f32.mrb[0].mxu0
    %v4536 = vadd.f32 0.0, %v4535
    %v4537 = vpop.f32.mrb[0].mxu0
    %v4538 = vpop.f32.mrb[0].mxu0
    %v4539 = vadd.f32 0.0, %v4538
    %v4540 = vpop.f32.mrb[0].mxu0
    %4541 = vmatprep.mubr.bf16.mxu0 %v2963
    %4542 = vmatmul.mubr.bf16.gmra.mrb[0].mxu0 %v2962
    %v4543 = vpop.f32.mrb[0].mxu0
    %v4544 = vadd.f32 0.0, %v4543
    %v4545 = vpop.f32.mrb[0].mxu0
    %v4546 = vpop.f32.mrb[0].mxu0
    %v4547 = vadd.f32 0.0, %v4546
    %v4548 = vpop.f32.mrb[0].mxu0
    %4549 = vmatprep.mubr.bf16.mxu0 %v2972
    %4550 = vmatmul.mubr.bf16.gmra.mrb[0].mxu0 %v2971
    %v4551 = vpop.f32.mrb[0].mxu0
    %v4552 = vadd.f32 0.0, %v4551
    %v4553 = vpop.f32.mrb[0].mxu0
    %v4554 = vpop.f32.mrb[0].mxu0
    %v4555 = vadd.f32 0.0, %v4554
    %v4556 = vpop.f32.mrb[0].mxu0
    %4557 = vmatprep.mubr.bf16.mxu0 %v2981
    %4558 = vmatmul.mubr.bf16.gmra.mrb[0].mxu0 %v2980
    %v4559 = vpop.f32.mrb[0].mxu0
    %v4560 = vadd.f32 0.0, %v4559
    %v4561 = vpop.f32.mrb[0].mxu0
    %v4562 = vpop.f32.mrb[0].mxu0
    %v4563 = vadd.f32 0.0, %v4562
    %v4564 = vpop.f32.mrb[0].mxu0
    %4565 = vmatprep.mubr.bf16.mxu0 %v2990
    %4566 = vmatmul.mubr.bf16.gmra.mrb[0].mxu0 %v2989
    %v4567 = vpop.f32.mrb[0].mxu0
    %v4568 = vadd.f32 0.0, %v4567
    %v4569 = vpop.f32.mrb[0].mxu0
    %v4570 = vpop.f32.mrb[0].mxu0
    %v4571 = vadd.f32 0.0, %v4570
    %v4572 = vpop.f32.mrb[0].mxu0
    %4573 = vmatprep.mubr.bf16.mxu0 %v2999
    %4574 = vmatmul.mubr.bf16.gmra.mrb[0].mxu0 %v2998
    %v4575 = vpop.f32.mrb[0].mxu0
    %v4576 = vadd.f32 0.0, %v4575
    %v4577 = vpop.f32.mrb[0].mxu0
    %v4578 = vpop.f32.mrb[0].mxu0
    %v4579 = vadd.f32 0.0, %v4578
    %v4580 = vpop.f32.mrb[0].mxu0
    %4581 = vmatprep.mubr.bf16.mxu0 %v3008
    %4582 = vmatmul.mubr.bf16.gmra.mrb[0].mxu0 %v3007
    %v4583 = vpop.f32.mrb[0].mxu0
    %v4584 = vadd.f32 0.0, %v4583
    %v4585 = vpop.f32.mrb[0].mxu0
    %v4586 = vpop.f32.mrb[0].mxu0
    %v4587 = vadd.f32 0.0, %v4586
    %v4588 = vpop.f32.mrb[0].mxu0
    %4589 = vmatprep.mubr.bf16.mxu0 %v3017
    %4590 = vmatmul.mubr.bf16.gmra.mrb[0].mxu0 %v3016
    %v4591 = vpop.f32.mrb[0].mxu0
    %v4592 = vadd.f32 0.0, %v4591
    %v4593 = vpop.f32.mrb[0].mxu0
    %v4594 = vpop.f32.mrb[0].mxu0
    %v4595 = vadd.f32 0.0, %v4594
    %v4596 = vpop.f32.mrb[0].mxu0
    %4597 = vmatprep.mubr.bf16.mxu0 %v3026
    %4598 = vmatmul.mubr.bf16.gmra.mrb[0].mxu0 %v3025
    %v4599 = vpop.f32.mrb[0].mxu0
    %v4600 = vadd.f32 0.0, %v4599
    %v4601 = vpop.f32.mrb[0].mxu0
    %v4602 = vpop.f32.mrb[0].mxu0
    %v4603 = vadd.f32 0.0, %v4602
    %v4604 = vpop.f32.mrb[0].mxu0
    %4605 = vmatprep.mubr.bf16.mxu0 %v3035
    %4606 = vmatmul.mubr.bf16.gmra.mrb[0].mxu0 %v3034
    %v4607 = vpop.f32.mrb[0].mxu0
    %v4608 = vadd.f32 0.0, %v4607
    %v4609 = vpop.f32.mrb[0].mxu0
    %v4610 = vpop.f32.mrb[0].mxu0
    %v4611 = vadd.f32 0.0, %v4610
    %v4612 = vpop.f32.mrb[0].mxu0
    %4613 = vmatprep.mubr.bf16.mxu0 %v3044
    %4614 = vmatmul.mubr.bf16.gmra.mrb[0].mxu0 %v3043
    %v4615 = vpop.f32.mrb[0].mxu0
    %v4616 = vadd.f32 0.0, %v4615
    %v4617 = vpop.f32.mrb[0].mxu0
    %v4618 = vpop.f32.mrb[0].mxu0
    %v4619 = vadd.f32 0.0, %v4618
    %v4620 = vpop.f32.mrb[0].mxu0
    %4621 = vmatprep.mubr.bf16.mxu0 %v3053
    %4622 = vmatmul.mubr.bf16.gmra.mrb[0].mxu0 %v3052
    %v4623 = vpop.f32.mrb[0].mxu0
    %v4624 = vadd.f32 0.0, %v4623
    %v4625 = vpop.f32.mrb[0].mxu0
    %v4626 = vpop.f32.mrb[0].mxu0
    %v4627 = vadd.f32 0.0, %v4626
    %v4628 = vpop.f32.mrb[0].mxu0
    %4629 = vmatprep.mubr.bf16.mxu0 %v3062
    %4630 = vmatmul.mubr.bf16.gmra.mrb[0].mxu0 %v3061
    %v4631 = vpop.f32.mrb[0].mxu0
    %v4632 = vadd.f32 0.0, %v4631
    %v4633 = vpop.f32.mrb[0].mxu0
    %v4634 = vpop.f32.mrb[0].mxu0
    %v4635 = vadd.f32 0.0, %v4634
    %v4636 = vpop.f32.mrb[0].mxu0
    %4637 = vmatprep.mubr.bf16.mxu0 %v3071
    %4638 = vmatmul.mubr.bf16.gmra.mrb[0].mxu0 %v3070
    %v4639 = vpop.f32.mrb[0].mxu0
    %v4640 = vadd.f32 0.0, %v4639
    %v4641 = vpop.f32.mrb[0].mxu0
    %v4642 = vpop.f32.mrb[0].mxu0
    %v4643 = vadd.f32 0.0, %v4642
    %v4644 = vpop.f32.mrb[0].mxu0
    %4645 = vmatprep.mubr.bf16.mxu0 %v3080
    %4646 = vmatmul.mubr.bf16.gmra.mrb[0].mxu0 %v3079
    %v4647 = vpop.f32.mrb[0].mxu0
    %v4648 = vadd.f32 0.0, %v4647
    %v4649 = vpop.f32.mrb[0].mxu0
    %v4650 = vpop.f32.mrb[0].mxu0
    %v4651 = vadd.f32 0.0, %v4650
    %v4652 = vpop.f32.mrb[0].mxu0
    %4653 = vmatprep.mubr.bf16.mxu0 %v3089
    %4654 = vmatmul.mubr.bf16.gmra.mrb[0].mxu0 %v3088
    %v4655 = vpop.f32.mrb[0].mxu0
    %v4656 = vadd.f32 0.0, %v4655
    %v4657 = vpop.f32.mrb[0].mxu0
    %v4658 = vpop.f32.mrb[0].mxu0
    %v4659 = vadd.f32 0.0, %v4658
    %v4660 = vpop.f32.mrb[0].mxu0
    %4661 = vmatprep.mubr.bf16.mxu0 %v3098
    %4662 = vmatmul.mubr.bf16.gmra.mrb[0].mxu0 %v3097
    %v4663 = vpop.f32.mrb[0].mxu0
    %v4664 = vadd.f32 0.0, %v4663
    %v4665 = vpop.f32.mrb[0].mxu0
    %v4666 = vpop.f32.mrb[0].mxu0
    %v4667 = vadd.f32 0.0, %v4666
    %v4668 = vpop.f32.mrb[0].mxu0
    %4669 = vmatprep.mubr.bf16.mxu0 %v3107
    %4670 = vmatmul.mubr.bf16.gmra.mrb[0].mxu0 %v3106
    %v4671 = vpop.f32.mrb[0].mxu0
    %v4672 = vadd.f32 0.0, %v4671
    %v4673 = vpop.f32.mrb[0].mxu0
    %v4674 = vpop.f32.mrb[0].mxu0
    %v4675 = vadd.f32 0.0, %v4674
    %v4676 = vpop.f32.mrb[0].mxu0
    %4677 = vmatprep.mubr.bf16.mxu0 %v3116
    %4678 = vmatmul.mubr.bf16.gmra.mrb[0].mxu0 %v3115
    %v4679 = vpop.f32.mrb[0].mxu0
    %v4680 = vadd.f32 0.0, %v4679
    %v4681 = vpop.f32.mrb[0].mxu0
    %v4682 = vpop.f32.mrb[0].mxu0
    %v4683 = vadd.f32 0.0, %v4682
    %v4684 = vpop.f32.mrb[0].mxu0
    %4685 = vmatprep.mubr.bf16.mxu0 %v3125
    %4686 = vmatmul.mubr.bf16.gmra.mrb[0].mxu0 %v3124
    %v4687 = vpop.f32.mrb[0].mxu0
    %v4688 = vadd.f32 0.0, %v4687
    %v4689 = vpop.f32.mrb[0].mxu0
    %v4690 = vpop.f32.mrb[0].mxu0
    %v4691 = vadd.f32 0.0, %v4690
    %v4692 = vpop.f32.mrb[0].mxu0
    %4693 = vmatprep.mubr.bf16.mxu0 %v3134
    %4694 = vmatmul.mubr.bf16.gmra.mrb[0].mxu0 %v3133
    %v4695 = vpop.f32.mrb[0].mxu0
    %v4696 = vadd.f32 0.0, %v4695
    %v4697 = vpop.f32.mrb[0].mxu0
    %v4698 = vpop.f32.mrb[0].mxu0
    %v4699 = vadd.f32 0.0, %v4698
    %v4700 = vpop.f32.mrb[0].mxu0
    %4701 = vmatprep.mubr.bf16.mxu0 %v3143
    %4702 = vmatmul.mubr.bf16.gmra.mrb[0].mxu0 %v3142
    %v4703 = vpop.f32.mrb[0].mxu0
    %v4704 = vadd.f32 0.0, %v4703
    %v4705 = vpop.f32.mrb[0].mxu0
    %v4706 = vpop.f32.mrb[0].mxu0
    %v4707 = vadd.f32 0.0, %v4706
    %v4708 = vpop.f32.mrb[0].mxu0
    %4709 = vmatprep.mubr.bf16.mxu0 %v3152
    %4710 = vmatmul.mubr.bf16.gmra.mrb[0].mxu0 %v3151
    %v4711 = vpop.f32.mrb[0].mxu0
    %v4712 = vadd.f32 0.0, %v4711
    %v4713 = vpop.f32.mrb[0].mxu0
    %v4714 = vpop.f32.mrb[0].mxu0
    %v4715 = vadd.f32 0.0, %v4714
    %v4716 = vpop.f32.mrb[0].mxu0
    %4717 = vmatprep.mubr.bf16.mxu0 %v3161
    %4718 = vmatmul.mubr.bf16.gmra.mrb[0].mxu0 %v3160
    %v4719 = vpop.f32.mrb[0].mxu0
    %v4720 = vadd.f32 0.0, %v4719
    %v4721 = vpop.f32.mrb[0].mxu0
    %v4722 = vpop.f32.mrb[0].mxu0
    %v4723 = vadd.f32 0.0, %v4722
    %v4724 = vpop.f32.mrb[0].mxu0
    %4725 = vmatprep.mubr.bf16.mxu0 %v3170
    %4726 = vmatmul.mubr.bf16.gmra.mrb[0].mxu0 %v3169
    %v4727 = vpop.f32.mrb[0].mxu0
    %v4728 = vadd.f32 0.0, %v4727
    %v4729 = vpop.f32.mrb[0].mxu0
    %v4730 = vpop.f32.mrb[0].mxu0
    %v4731 = vadd.f32 0.0, %v4730
    %v4732 = vpop.f32.mrb[0].mxu0
    %4733 = vmatprep.mubr.bf16.mxu0 %v3179
    %4734 = vmatmul.mubr.bf16.gmra.mrb[0].mxu0 %v3178
    %v4735 = vpop.f32.mrb[0].mxu0
    %v4736 = vadd.f32 0.0, %v4735
    %v4737 = vpop.f32.mrb[0].mxu0
    %v4738 = vpop.f32.mrb[0].mxu0
    %v4739 = vadd.f32 0.0, %v4738
    %v4740 = vpop.f32.mrb[0].mxu0
    %4741 = vmatprep.mubr.bf16.mxu0 %v3188
    %4742 = vmatmul.mubr.bf16.gmra.mrb[0].mxu0 %v3187
    %v4743 = vpop.f32.mrb[0].mxu0
    %v4744 = vadd.f32 0.0, %v4743
    %v4745 = vpop.f32.mrb[0].mxu0
    %v4746 = vpop.f32.mrb[0].mxu0
    %v4747 = vadd.f32 0.0, %v4746
    %v4748 = vpop.f32.mrb[0].mxu0
    %4749 = vmatprep.mubr.bf16.mxu0 %v3197
    %4750 = vmatmul.mubr.bf16.gmra.mrb[0].mxu0 %v3196
    %v4751 = vpop.f32.mrb[0].mxu0
    %v4752 = vadd.f32 0.0, %v4751
    %v4753 = vpop.f32.mrb[0].mxu0
    %v4754 = vpop.f32.mrb[0].mxu0
    %v4755 = vadd.f32 0.0, %v4754
    %v4756 = vpop.f32.mrb[0].mxu0
    %4757 = vdwg.mxu0
    %4758 = vmatprep.subr.bf16.mxu0 0
    %4759 = vmatpush1.bf16.msra.mxu0 %v4085
    %4760 = vmatprep.subr.bf16.mxu0 0
    %4761 = vmatpush1.bf16.msra.mxu0 %v4086
    %4762 = vmatprep.subr.bf16.mxu0 0
    %4763 = vmatpush1.bf16.msra.mxu0 %v4087
    %4764 = vmatprep.subr.bf16.mxu0 0
    %4765 = vmatpush1.bf16.msra.mxu0 %v4088
    %4766 = vmatprep.subr.bf16.mxu0 0
    %4767 = vmatpush1.bf16.msra.mxu0 %v4089
    %4768 = vmatprep.subr.bf16.mxu0 0
    %4769 = vmatpush1.bf16.msra.mxu0 %v4090
    %4770 = vmatprep.subr.bf16.mxu0 0
    %4771 = vmatpush1.bf16.msra.mxu0 %v4091
    %4772 = vmatprep.subr.bf16.mxu0 0
    %4773 = vmatpush1.bf16.msra.mxu0 %v4092
    %4774 = vmatprep.subr.bf16.mxu0 0
    %4775 = vmatpush1.bf16.msra.mxu0 %v4093
    %4776 = vmatprep.subr.bf16.mxu0 0
    %4777 = vmatpush1.bf16.msra.mxu0 %v4094
    %4778 = vmatprep.subr.bf16.mxu0 0
    %4779 = vmatpush1.bf16.msra.mxu0 %v4095
    %4780 = vmatprep.subr.bf16.mxu0 0
    %4781 = vmatpush1.bf16.msra.mxu0 %v4096
    %4782 = vmatprep.subr.bf16.mxu0 0
    %4783 = vmatpush1.bf16.msra.mxu0 %v4097
    %4784 = vmatprep.subr.bf16.mxu0 0
    %4785 = vmatpush1.bf16.msra.mxu0 %v4098
    %4786 = vmatprep.subr.bf16.mxu0 0
    %4787 = vmatpush1.bf16.msra.mxu0 %v4099
    %4788 = vmatprep.subr.bf16.mxu0 0
    %4789 = vmatpush1.bf16.msra.mxu0 %v4100
    %4790 = vmatprep.mubr.bf16.mxu0 %v2632
    %4791 = vmatmul.mubr.bf16.gmra.mrb[0].mxu0 %v2631
    %v4792 = vpop.f32.mrb[0].mxu0
    %v4793 = vadd.f32 %v4248, %v4792
    %v4794 = vpop.f32.mrb[0].mxu0
    %v4795 = vpop.f32.mrb[0].mxu0
    %v4796 = vadd.f32 %v4251, %v4795
    %v4797 = vpop.f32.mrb[0].mxu0
    %4798 = vmatprep.mubr.bf16.mxu0 %v2641
    %4799 = vmatmul.mubr.bf16.gmra.mrb[0].mxu0 %v2640
    %v4800 = vpop.f32.mrb[0].mxu0
    %v4801 = vadd.f32 %v4256, %v4800
    %v4802 = vpop.f32.mrb[0].mxu0
    %v4803 = vpop.f32.mrb[0].mxu0
    %v4804 = vadd.f32 %v4259, %v4803
    %v4805 = vpop.f32.mrb[0].mxu0
    %4806 = vmatprep.mubr.bf16.mxu0 %v2650
    %4807 = vmatmul.mubr.bf16.gmra.mrb[0].mxu0 %v2649
    %v4808 = vpop.f32.mrb[0].mxu0
    %v4809 = vadd.f32 %v4264, %v4808
    %v4810 = vpop.f32.mrb[0].mxu0
    %v4811 = vpop.f32.mrb[0].mxu0
    %v4812 = vadd.f32 %v4267, %v4811
    %v4813 = vpop.f32.mrb[0].mxu0
    %4814 = vmatprep.mubr.bf16.mxu0 %v2659
    %4815 = vmatmul.mubr.bf16.gmra.mrb[0].mxu0 %v2658
    %v4816 = vpop.f32.mrb[0].mxu0
    %v4817 = vadd.f32 %v4272, %v4816
    %v4818 = vpop.f32.mrb[0].mxu0
    %v4819 = vpop.f32.mrb[0].mxu0
    %v4820 = vadd.f32 %v4275, %v4819
    %v4821 = vpop.f32.mrb[0].mxu0
    %4822 = vmatprep.mubr.bf16.mxu0 %v2668
    %4823 = vmatmul.mubr.bf16.gmra.mrb[0].mxu0 %v2667
    %v4824 = vpop.f32.mrb[0].mxu0
    %v4825 = vadd.f32 %v4280, %v4824
    %v4826 = vpop.f32.mrb[0].mxu0
    %v4827 = vpop.f32.mrb[0].mxu0
    %v4828 = vadd.f32 %v4283, %v4827
    %v4829 = vpop.f32.mrb[0].mxu0
    %4830 = vmatprep.mubr.bf16.mxu0 %v2677
    %4831 = vmatmul.mubr.bf16.gmra.mrb[0].mxu0 %v2676
    %v4832 = vpop.f32.mrb[0].mxu0
    %v4833 = vadd.f32 %v4288, %v4832
    %v4834 = vpop.f32.mrb[0].mxu0
    %v4835 = vpop.f32.mrb[0].mxu0
    %v4836 = vadd.f32 %v4291, %v4835
    %v4837 = vpop.f32.mrb[0].mxu0
    %4838 = vmatprep.mubr.bf16.mxu0 %v2686
    %4839 = vmatmul.mubr.bf16.gmra.mrb[0].mxu0 %v2685
    %v4840 = vpop.f32.mrb[0].mxu0
    %v4841 = vadd.f32 %v4296, %v4840
    %v4842 = vpop.f32.mrb[0].mxu0
    %v4843 = vpop.f32.mrb[0].mxu0
    %v4844 = vadd.f32 %v4299, %v4843
    %v4845 = vpop.f32.mrb[0].mxu0
    %4846 = vmatprep.mubr.bf16.mxu0 %v2695
    %4847 = vmatmul.mubr.bf16.gmra.mrb[0].mxu0 %v2694
    %v4848 = vpop.f32.mrb[0].mxu0
    %v4849 = vadd.f32 %v4304, %v4848
    %v4850 = vpop.f32.mrb[0].mxu0
    %v4851 = vpop.f32.mrb[0].mxu0
    %v4852 = vadd.f32 %v4307, %v4851
    %v4853 = vpop.f32.mrb[0].mxu0
    %4854 = vmatprep.mubr.bf16.mxu0 %v2704
    %4855 = vmatmul.mubr.bf16.gmra.mrb[0].mxu0 %v2703
    %v4856 = vpop.f32.mrb[0].mxu0
    %v4857 = vadd.f32 %v4312, %v4856
    %v4858 = vpop.f32.mrb[0].mxu0
    %v4859 = vpop.f32.mrb[0].mxu0
    %v4860 = vadd.f32 %v4315, %v4859
    %v4861 = vpop.f32.mrb[0].mxu0
    %4862 = vmatprep.mubr.bf16.mxu0 %v2713
    %4863 = vmatmul.mubr.bf16.gmra.mrb[0].mxu0 %v2712
    %v4864 = vpop.f32.mrb[0].mxu0
    %v4865 = vadd.f32 %v4320, %v4864
    %v4866 = vpop.f32.mrb[0].mxu0
    %v4867 = vpop.f32.mrb[0].mxu0
    %v4868 = vadd.f32 %v4323, %v4867
    %v4869 = vpop.f32.mrb[0].mxu0
    %4870 = vmatprep.mubr.bf16.mxu0 %v2722
    %4871 = vmatmul.mubr.bf16.gmra.mrb[0].mxu0 %v2721
    %v4872 = vpop.f32.mrb[0].mxu0
    %v4873 = vadd.f32 %v4328, %v4872
    %v4874 = vpop.f32.mrb[0].mxu0
    %v4875 = vpop.f32.mrb[0].mxu0
    %v4876 = vadd.f32 %v4331, %v4875
    %v4877 = vpop.f32.mrb[0].mxu0
    %4878 = vmatprep.mubr.bf16.mxu0 %v2731
    %4879 = vmatmul.mubr.bf16.gmra.mrb[0].mxu0 %v2730
    %v4880 = vpop.f32.mrb[0].mxu0
    %v4881 = vadd.f32 %v4336, %v4880
    %v4882 = vpop.f32.mrb[0].mxu0
    %v4883 = vpop.f32.mrb[0].mxu0
    %v4884 = vadd.f32 %v4339, %v4883
    %v4885 = vpop.f32.mrb[0].mxu0
    %4886 = vmatprep.mubr.bf16.mxu0 %v2740
    %4887 = vmatmul.mubr.bf16.gmra.mrb[0].mxu0 %v2739
    %v4888 = vpop.f32.mrb[0].mxu0
    %v4889 = vadd.f32 %v4344, %v4888
    %v4890 = vpop.f32.mrb[0].mxu0
    %v4891 = vpop.f32.mrb[0].mxu0
    %v4892 = vadd.f32 %v4347, %v4891
    %v4893 = vpop.f32.mrb[0].mxu0
    %4894 = vmatprep.mubr.bf16.mxu0 %v2749
    %4895 = vmatmul.mubr.bf16.gmra.mrb[0].mxu0 %v2748
    %v4896 = vpop.f32.mrb[0].mxu0
    %v4897 = vadd.f32 %v4352, %v4896
    %v4898 = vpop.f32.mrb[0].mxu0
    %v4899 = vpop.f32.mrb[0].mxu0
    %v4900 = vadd.f32 %v4355, %v4899
    %v4901 = vpop.f32.mrb[0].mxu0
    %4902 = vmatprep.mubr.bf16.mxu0 %v2758
    %4903 = vmatmul.mubr.bf16.gmra.mrb[0].mxu0 %v2757
    %v4904 = vpop.f32.mrb[0].mxu0
    %v4905 = vadd.f32 %v4360, %v4904
    %v4906 = vpop.f32.mrb[0].mxu0
    %v4907 = vpop.f32.mrb[0].mxu0
    %v4908 = vadd.f32 %v4363, %v4907
    %v4909 = vpop.f32.mrb[0].mxu0
    %4910 = vmatprep.mubr.bf16.mxu0 %v2767
    %4911 = vmatmul.mubr.bf16.gmra.mrb[0].mxu0 %v2766
    %v4912 = vpop.f32.mrb[0].mxu0
    %v4913 = vadd.f32 %v4368, %v4912
    %v4914 = vpop.f32.mrb[0].mxu0
    %v4915 = vpop.f32.mrb[0].mxu0
    %v4916 = vadd.f32 %v4371, %v4915
    %v4917 = vpop.f32.mrb[0].mxu0
    %4918 = vmatprep.mubr.bf16.mxu0 %v2776
    %4919 = vmatmul.mubr.bf16.gmra.mrb[0].mxu0 %v2775
    %v4920 = vpop.f32.mrb[0].mxu0
    %v4921 = vadd.f32 %v4376, %v4920
    %v4922 = vpop.f32.mrb[0].mxu0
    %v4923 = vpop.f32.mrb[0].mxu0
    %v4924 = vadd.f32 %v4379, %v4923
    %v4925 = vpop.f32.mrb[0].mxu0
    %4926 = vmatprep.mubr.bf16.mxu0 %v2785
    %4927 = vmatmul.mubr.bf16.gmra.mrb[0].mxu0 %v2784
    %v4928 = vpop.f32.mrb[0].mxu0
    %v4929 = vadd.f32 %v4384, %v4928
    %v4930 = vpop.f32.mrb[0].mxu0
    %v4931 = vpop.f32.mrb[0].mxu0
    %v4932 = vadd.f32 %v4387, %v4931
    %v4933 = vpop.f32.mrb[0].mxu0
    %4934 = vmatprep.mubr.bf16.mxu0 %v2794
    %4935 = vmatmul.mubr.bf16.gmra.mrb[0].mxu0 %v2793
    %v4936 = vpop.f32.mrb[0].mxu0
    %v4937 = vadd.f32 %v4392, %v4936
    %v4938 = vpop.f32.mrb[0].mxu0
    %v4939 = vpop.f32.mrb[0].mxu0
    %v4940 = vadd.f32 %v4395, %v4939
    %v4941 = vpop.f32.mrb[0].mxu0
    %4942 = vmatprep.mubr.bf16.mxu0 %v2803
    %4943 = vmatmul.mubr.bf16.gmra.mrb[0].mxu0 %v2802
    %v4944 = vpop.f32.mrb[0].mxu0
    %v4945 = vadd.f32 %v4400, %v4944
    %v4946 = vpop.f32.mrb[0].mxu0
    %v4947 = vpop.f32.mrb[0].mxu0
    %v4948 = vadd.f32 %v4403, %v4947
    %v4949 = vpop.f32.mrb[0].mxu0
    %4950 = vmatprep.mubr.bf16.mxu0 %v2812
    %4951 = vmatmul.mubr.bf16.gmra.mrb[0].mxu0 %v2811
    %v4952 = vpop.f32.mrb[0].mxu0
    %v4953 = vadd.f32 %v4408, %v4952
    %v4954 = vpop.f32.mrb[0].mxu0
    %v4955 = vpop.f32.mrb[0].mxu0
    %v4956 = vadd.f32 %v4411, %v4955
    %v4957 = vpop.f32.mrb[0].mxu0
    %4958 = vmatprep.mubr.bf16.mxu0 %v2821
    %4959 = vmatmul.mubr.bf16.gmra.mrb[0].mxu0 %v2820
    %v4960 = vpop.f32.mrb[0].mxu0
    %v4961 = vadd.f32 %v4416, %v4960
    %v4962 = vpop.f32.mrb[0].mxu0
    %v4963 = vpop.f32.mrb[0].mxu0
    %v4964 = vadd.f32 %v4419, %v4963
    %v4965 = vpop.f32.mrb[0].mxu0
    %4966 = vmatprep.mubr.bf16.mxu0 %v2830
    %4967 = vmatmul.mubr.bf16.gmra.mrb[0].mxu0 %v2829
    %v4968 = vpop.f32.mrb[0].mxu0
    %v4969 = vadd.f32 %v4424, %v4968
    %v4970 = vpop.f32.mrb[0].mxu0
    %v4971 = vpop.f32.mrb[0].mxu0
    %v4972 = vadd.f32 %v4427, %v4971
    %v4973 = vpop.f32.mrb[0].mxu0
    %4974 = vmatprep.mubr.bf16.mxu0 %v2839
    %4975 = vmatmul.mubr.bf16.gmra.mrb[0].mxu0 %v2838
    %v4976 = vpop.f32.mrb[0].mxu0
    %v4977 = vadd.f32 %v4432, %v4976
    %v4978 = vpop.f32.mrb[0].mxu0
    %v4979 = vpop.f32.mrb[0].mxu0
    %v4980 = vadd.f32 %v4435, %v4979
    %v4981 = vpop.f32.mrb[0].mxu0
    %4982 = vmatprep.mubr.bf16.mxu0 %v2848
    %4983 = vmatmul.mubr.bf16.gmra.mrb[0].mxu0 %v2847
    %v4984 = vpop.f32.mrb[0].mxu0
    %v4985 = vadd.f32 %v4440, %v4984
    %v4986 = vpop.f32.mrb[0].mxu0
    %v4987 = vpop.f32.mrb[0].mxu0
    %v4988 = vadd.f32 %v4443, %v4987
    %v4989 = vpop.f32.mrb[0].mxu0
    %4990 = vmatprep.mubr.bf16.mxu0 %v2857
    %4991 = vmatmul.mubr.bf16.gmra.mrb[0].mxu0 %v2856
    %v4992 = vpop.f32.mrb[0].mxu0
    %v4993 = vadd.f32 %v4448, %v4992
    %v4994 = vpop.f32.mrb[0].mxu0
    %v4995 = vpop.f32.mrb[0].mxu0
    %v4996 = vadd.f32 %v4451, %v4995
    %v4997 = vpop.f32.mrb[0].mxu0
    %4998 = vmatprep.mubr.bf16.mxu0 %v2866
    %4999 = vmatmul.mubr.bf16.gmra.mrb[0].mxu0 %v2865
    %v5000 = vpop.f32.mrb[0].mxu0
    %v5001 = vadd.f32 %v4456, %v5000
    %v5002 = vpop.f32.mrb[0].mxu0
    %v5003 = vpop.f32.mrb[0].mxu0
    %v5004 = vadd.f32 %v4459, %v5003
    %v5005 = vpop.f32.mrb[0].mxu0
    %5006 = vmatprep.mubr.bf16.mxu0 %v2875
    %5007 = vmatmul.mubr.bf16.gmra.mrb[0].mxu0 %v2874
    %v5008 = vpop.f32.mrb[0].mxu0
    %v5009 = vadd.f32 %v4464, %v5008
    %v5010 = vpop.f32.mrb[0].mxu0
    %v5011 = vpop.f32.mrb[0].mxu0
    %v5012 = vadd.f32 %v4467, %v5011
    %v5013 = vpop.f32.mrb[0].mxu0
    %5014 = vmatprep.mubr.bf16.mxu0 %v2884
    %5015 = vmatmul.mubr.bf16.gmra.mrb[0].mxu0 %v2883
    %v5016 = vpop.f32.mrb[0].mxu0
    %v5017 = vadd.f32 %v4472, %v5016
    %v5018 = vpop.f32.mrb[0].mxu0
    %v5019 = vpop.f32.mrb[0].mxu0
    %v5020 = vadd.f32 %v4475, %v5019
    %v5021 = vpop.f32.mrb[0].mxu0
    %5022 = vmatprep.mubr.bf16.mxu0 %v2893
    %5023 = vmatmul.mubr.bf16.gmra.mrb[0].mxu0 %v2892
    %v5024 = vpop.f32.mrb[0].mxu0
    %v5025 = vadd.f32 %v4480, %v5024
    %v5026 = vpop.f32.mrb[0].mxu0
    %v5027 = vpop.f32.mrb[0].mxu0
    %v5028 = vadd.f32 %v4483, %v5027
    %v5029 = vpop.f32.mrb[0].mxu0
    %5030 = vmatprep.mubr.bf16.mxu0 %v2902
    %5031 = vmatmul.mubr.bf16.gmra.mrb[0].mxu0 %v2901
    %v5032 = vpop.f32.mrb[0].mxu0
    %v5033 = vadd.f32 %v4488, %v5032
    %v5034 = vpop.f32.mrb[0].mxu0
    %v5035 = vpop.f32.mrb[0].mxu0
    %v5036 = vadd.f32 %v4491, %v5035
    %v5037 = vpop.f32.mrb[0].mxu0
    %5038 = vmatprep.mubr.bf16.mxu0 %v2911
    %5039 = vmatmul.mubr.bf16.gmra.mrb[0].mxu0 %v2910
    %v5040 = vpop.f32.mrb[0].mxu0
    %v5041 = vadd.f32 %v4496, %v5040
    %v5042 = vpop.f32.mrb[0].mxu0
    %v5043 = vpop.f32.mrb[0].mxu0
    %v5044 = vadd.f32 %v4499, %v5043
    %v5045 = vpop.f32.mrb[0].mxu0
    %5046 = vmatprep.mubr.bf16.mxu0 %v2920
    %5047 = vmatmul.mubr.bf16.gmra.mrb[0].mxu0 %v2919
    %v5048 = vpop.f32.mrb[0].mxu0
    %v5049 = vadd.f32 %v4504, %v5048
    %v5050 = vpop.f32.mrb[0].mxu0
    %v5051 = vpop.f32.mrb[0].mxu0
    %v5052 = vadd.f32 %v4507, %v5051
    %v5053 = vpop.f32.mrb[0].mxu0
    %5054 = vmatprep.mubr.bf16.mxu0 %v2929
    %5055 = vmatmul.mubr.bf16.gmra.mrb[0].mxu0 %v2928
    %v5056 = vpop.f32.mrb[0].mxu0
    %v5057 = vadd.f32 %v4512, %v5056
    %v5058 = vpop.f32.mrb[0].mxu0
    %v5059 = vpop.f32.mrb[0].mxu0
    %v5060 = vadd.f32 %v4515, %v5059
    %v5061 = vpop.f32.mrb[0].mxu0
    %5062 = vmatprep.mubr.bf16.mxu0 %v2938
    %5063 = vmatmul.mubr.bf16.gmra.mrb[0].mxu0 %v2937
    %v5064 = vpop.f32.mrb[0].mxu0
    %v5065 = vadd.f32 %v4520, %v5064
    %v5066 = vpop.f32.mrb[0].mxu0
    %v5067 = vpop.f32.mrb[0].mxu0
    %v5068 = vadd.f32 %v4523, %v5067
    %v5069 = vpop.f32.mrb[0].mxu0
    %5070 = vmatprep.mubr.bf16.mxu0 %v2947
    %5071 = vmatmul.mubr.bf16.gmra.mrb[0].mxu0 %v2946
    %v5072 = vpop.f32.mrb[0].mxu0
    %v5073 = vadd.f32 %v4528, %v5072
    %v5074 = vpop.f32.mrb[0].mxu0
    %v5075 = vpop.f32.mrb[0].mxu0
    %v5076 = vadd.f32 %v4531, %v5075
    %v5077 = vpop.f32.mrb[0].mxu0
    %5078 = vmatprep.mubr.bf16.mxu0 %v2956
    %5079 = vmatmul.mubr.bf16.gmra.mrb[0].mxu0 %v2955
    %v5080 = vpop.f32.mrb[0].mxu0
    %v5081 = vadd.f32 %v4536, %v5080
    %v5082 = vpop.f32.mrb[0].mxu0
    %v5083 = vpop.f32.mrb[0].mxu0
    %v5084 = vadd.f32 %v4539, %v5083
    %v5085 = vpop.f32.mrb[0].mxu0
    %5086 = vmatprep.mubr.bf16.mxu0 %v2965
    %5087 = vmatmul.mubr.bf16.gmra.mrb[0].mxu0 %v2964
    %v5088 = vpop.f32.mrb[0].mxu0
    %v5089 = vadd.f32 %v4544, %v5088
    %v5090 = vpop.f32.mrb[0].mxu0
    %v5091 = vpop.f32.mrb[0].mxu0
    %v5092 = vadd.f32 %v4547, %v5091
    %v5093 = vpop.f32.mrb[0].mxu0
    %5094 = vmatprep.mubr.bf16.mxu0 %v2974
    %5095 = vmatmul.mubr.bf16.gmra.mrb[0].mxu0 %v2973
    %v5096 = vpop.f32.mrb[0].mxu0
    %v5097 = vadd.f32 %v4552, %v5096
    %v5098 = vpop.f32.mrb[0].mxu0
    %v5099 = vpop.f32.mrb[0].mxu0
    %v5100 = vadd.f32 %v4555, %v5099
    %v5101 = vpop.f32.mrb[0].mxu0
    %5102 = vmatprep.mubr.bf16.mxu0 %v2983
    %5103 = vmatmul.mubr.bf16.gmra.mrb[0].mxu0 %v2982
    %v5104 = vpop.f32.mrb[0].mxu0
    %v5105 = vadd.f32 %v4560, %v5104
    %v5106 = vpop.f32.mrb[0].mxu0
    %v5107 = vpop.f32.mrb[0].mxu0
    %v5108 = vadd.f32 %v4563, %v5107
    %v5109 = vpop.f32.mrb[0].mxu0
    %5110 = vmatprep.mubr.bf16.mxu0 %v2992
    %5111 = vmatmul.mubr.bf16.gmra.mrb[0].mxu0 %v2991
    %v5112 = vpop.f32.mrb[0].mxu0
    %v5113 = vadd.f32 %v4568, %v5112
    %v5114 = vpop.f32.mrb[0].mxu0
    %v5115 = vpop.f32.mrb[0].mxu0
    %v5116 = vadd.f32 %v4571, %v5115
    %v5117 = vpop.f32.mrb[0].mxu0
    %5118 = vmatprep.mubr.bf16.mxu0 %v3001
    %5119 = vmatmul.mubr.bf16.gmra.mrb[0].mxu0 %v3000
    %v5120 = vpop.f32.mrb[0].mxu0
    %v5121 = vadd.f32 %v4576, %v5120
    %v5122 = vpop.f32.mrb[0].mxu0
    %v5123 = vpop.f32.mrb[0].mxu0
    %v5124 = vadd.f32 %v4579, %v5123
    %v5125 = vpop.f32.mrb[0].mxu0
    %5126 = vmatprep.mubr.bf16.mxu0 %v3010
    %5127 = vmatmul.mubr.bf16.gmra.mrb[0].mxu0 %v3009
    %v5128 = vpop.f32.mrb[0].mxu0
    %v5129 = vadd.f32 %v4584, %v5128
    %v5130 = vpop.f32.mrb[0].mxu0
    %v5131 = vpop.f32.mrb[0].mxu0
    %v5132 = vadd.f32 %v4587, %v5131
    %v5133 = vpop.f32.mrb[0].mxu0
    %5134 = vmatprep.mubr.bf16.mxu0 %v3019
    %5135 = vmatmul.mubr.bf16.gmra.mrb[0].mxu0 %v3018
    %v5136 = vpop.f32.mrb[0].mxu0
    %v5137 = vadd.f32 %v4592, %v5136
    %v5138 = vpop.f32.mrb[0].mxu0
    %v5139 = vpop.f32.mrb[0].mxu0
    %v5140 = vadd.f32 %v4595, %v5139
    %v5141 = vpop.f32.mrb[0].mxu0
    %5142 = vmatprep.mubr.bf16.mxu0 %v3028
    %5143 = vmatmul.mubr.bf16.gmra.mrb[0].mxu0 %v3027
    %v5144 = vpop.f32.mrb[0].mxu0
    %v5145 = vadd.f32 %v4600, %v5144
    %v5146 = vpop.f32.mrb[0].mxu0
    %v5147 = vpop.f32.mrb[0].mxu0
    %v5148 = vadd.f32 %v4603, %v5147
    %v5149 = vpop.f32.mrb[0].mxu0
    %5150 = vmatprep.mubr.bf16.mxu0 %v3037
    %5151 = vmatmul.mubr.bf16.gmra.mrb[0].mxu0 %v3036
    %v5152 = vpop.f32.mrb[0].mxu0
    %v5153 = vadd.f32 %v4608, %v5152
    %v5154 = vpop.f32.mrb[0].mxu0
    %v5155 = vpop.f32.mrb[0].mxu0
    %v5156 = vadd.f32 %v4611, %v5155
    %v5157 = vpop.f32.mrb[0].mxu0
    %5158 = vmatprep.mubr.bf16.mxu0 %v3046
    %5159 = vmatmul.mubr.bf16.gmra.mrb[0].mxu0 %v3045
    %v5160 = vpop.f32.mrb[0].mxu0
    %v5161 = vadd.f32 %v4616, %v5160
    %v5162 = vpop.f32.mrb[0].mxu0
    %v5163 = vpop.f32.mrb[0].mxu0
    %v5164 = vadd.f32 %v4619, %v5163
    %v5165 = vpop.f32.mrb[0].mxu0
    %5166 = vmatprep.mubr.bf16.mxu0 %v3055
    %5167 = vmatmul.mubr.bf16.gmra.mrb[0].mxu0 %v3054
    %v5168 = vpop.f32.mrb[0].mxu0
    %v5169 = vadd.f32 %v4624, %v5168
    %v5170 = vpop.f32.mrb[0].mxu0
    %v5171 = vpop.f32.mrb[0].mxu0
    %v5172 = vadd.f32 %v4627, %v5171
    %v5173 = vpop.f32.mrb[0].mxu0
    %5174 = vmatprep.mubr.bf16.mxu0 %v3064
    %5175 = vmatmul.mubr.bf16.gmra.mrb[0].mxu0 %v3063
    %v5176 = vpop.f32.mrb[0].mxu0
    %v5177 = vadd.f32 %v4632, %v5176
    %v5178 = vpop.f32.mrb[0].mxu0
    %v5179 = vpop.f32.mrb[0].mxu0
    %v5180 = vadd.f32 %v4635, %v5179
    %v5181 = vpop.f32.mrb[0].mxu0
    %5182 = vmatprep.mubr.bf16.mxu0 %v3073
    %5183 = vmatmul.mubr.bf16.gmra.mrb[0].mxu0 %v3072
    %v5184 = vpop.f32.mrb[0].mxu0
    %v5185 = vadd.f32 %v4640, %v5184
    %v5186 = vpop.f32.mrb[0].mxu0
    %v5187 = vpop.f32.mrb[0].mxu0
    %v5188 = vadd.f32 %v4643, %v5187
    %v5189 = vpop.f32.mrb[0].mxu0
    %5190 = vmatprep.mubr.bf16.mxu0 %v3082
    %5191 = vmatmul.mubr.bf16.gmra.mrb[0].mxu0 %v3081
    %v5192 = vpop.f32.mrb[0].mxu0
    %v5193 = vadd.f32 %v4648, %v5192
    %v5194 = vpop.f32.mrb[0].mxu0
    %v5195 = vpop.f32.mrb[0].mxu0
    %v5196 = vadd.f32 %v4651, %v5195
    %v5197 = vpop.f32.mrb[0].mxu0
    %5198 = vmatprep.mubr.bf16.mxu0 %v3091
    %5199 = vmatmul.mubr.bf16.gmra.mrb[0].mxu0 %v3090
    %v5200 = vpop.f32.mrb[0].mxu0
    %v5201 = vadd.f32 %v4656, %v5200
    %v5202 = vpop.f32.mrb[0].mxu0
    %v5203 = vpop.f32.mrb[0].mxu0
    %v5204 = vadd.f32 %v4659, %v5203
    %v5205 = vpop.f32.mrb[0].mxu0
    %5206 = vmatprep.mubr.bf16.mxu0 %v3100
    %5207 = vmatmul.mubr.bf16.gmra.mrb[0].mxu0 %v3099
    %v5208 = vpop.f32.mrb[0].mxu0
    %v5209 = vadd.f32 %v4664, %v5208
    %v5210 = vpop.f32.mrb[0].mxu0
    %v5211 = vpop.f32.mrb[0].mxu0
    %v5212 = vadd.f32 %v4667, %v5211
    %v5213 = vpop.f32.mrb[0].mxu0
    %5214 = vmatprep.mubr.bf16.mxu0 %v3109
    %5215 = vmatmul.mubr.bf16.gmra.mrb[0].mxu0 %v3108
    %v5216 = vpop.f32.mrb[0].mxu0
    %v5217 = vadd.f32 %v4672, %v5216
    %v5218 = vpop.f32.mrb[0].mxu0
    %v5219 = vpop.f32.mrb[0].mxu0
    %v5220 = vadd.f32 %v4675, %v5219
    %v5221 = vpop.f32.mrb[0].mxu0
    %5222 = vmatprep.mubr.bf16.mxu0 %v3118
    %5223 = vmatmul.mubr.bf16.gmra.mrb[0].mxu0 %v3117
    %v5224 = vpop.f32.mrb[0].mxu0
    %v5225 = vadd.f32 %v4680, %v5224
    %v5226 = vpop.f32.mrb[0].mxu0
    %v5227 = vpop.f32.mrb[0].mxu0
    %v5228 = vadd.f32 %v4683, %v5227
    %v5229 = vpop.f32.mrb[0].mxu0
    %5230 = vmatprep.mubr.bf16.mxu0 %v3127
    %5231 = vmatmul.mubr.bf16.gmra.mrb[0].mxu0 %v3126
    %v5232 = vpop.f32.mrb[0].mxu0
    %v5233 = vadd.f32 %v4688, %v5232
    %v5234 = vpop.f32.mrb[0].mxu0
    %v5235 = vpop.f32.mrb[0].mxu0
    %v5236 = vadd.f32 %v4691, %v5235
    %v5237 = vpop.f32.mrb[0].mxu0
    %5238 = vmatprep.mubr.bf16.mxu0 %v3136
    %5239 = vmatmul.mubr.bf16.gmra.mrb[0].mxu0 %v3135
    %v5240 = vpop.f32.mrb[0].mxu0
    %v5241 = vadd.f32 %v4696, %v5240
    %v5242 = vpop.f32.mrb[0].mxu0
    %v5243 = vpop.f32.mrb[0].mxu0
    %v5244 = vadd.f32 %v4699, %v5243
    %v5245 = vpop.f32.mrb[0].mxu0
    %5246 = vmatprep.mubr.bf16.mxu0 %v3145
    %5247 = vmatmul.mubr.bf16.gmra.mrb[0].mxu0 %v3144
    %v5248 = vpop.f32.mrb[0].mxu0
    %v5249 = vadd.f32 %v4704, %v5248
    %v5250 = vpop.f32.mrb[0].mxu0
    %v5251 = vpop.f32.mrb[0].mxu0
    %v5252 = vadd.f32 %v4707, %v5251
    %v5253 = vpop.f32.mrb[0].mxu0
    %5254 = vmatprep.mubr.bf16.mxu0 %v3154
    %5255 = vmatmul.mubr.bf16.gmra.mrb[0].mxu0 %v3153
    %v5256 = vpop.f32.mrb[0].mxu0
    %v5257 = vadd.f32 %v4712, %v5256
    %v5258 = vpop.f32.mrb[0].mxu0
    %v5259 = vpop.f32.mrb[0].mxu0
    %v5260 = vadd.f32 %v4715, %v5259
    %v5261 = vpop.f32.mrb[0].mxu0
    %5262 = vmatprep.mubr.bf16.mxu0 %v3163
    %5263 = vmatmul.mubr.bf16.gmra.mrb[0].mxu0 %v3162
    %v5264 = vpop.f32.mrb[0].mxu0
    %v5265 = vadd.f32 %v4720, %v5264
    %v5266 = vpop.f32.mrb[0].mxu0
    %v5267 = vpop.f32.mrb[0].mxu0
    %v5268 = vadd.f32 %v4723, %v5267
    %v5269 = vpop.f32.mrb[0].mxu0
    %5270 = vmatprep.mubr.bf16.mxu0 %v3172
    %5271 = vmatmul.mubr.bf16.gmra.mrb[0].mxu0 %v3171
    %v5272 = vpop.f32.mrb[0].mxu0
    %v5273 = vadd.f32 %v4728, %v5272
    %v5274 = vpop.f32.mrb[0].mxu0
    %v5275 = vpop.f32.mrb[0].mxu0
    %v5276 = vadd.f32 %v4731, %v5275
    %v5277 = vpop.f32.mrb[0].mxu0
    %5278 = vmatprep.mubr.bf16.mxu0 %v3181
    %5279 = vmatmul.mubr.bf16.gmra.mrb[0].mxu0 %v3180
    %v5280 = vpop.f32.mrb[0].mxu0
    %v5281 = vadd.f32 %v4736, %v5280
    %v5282 = vpop.f32.mrb[0].mxu0
    %v5283 = vpop.f32.mrb[0].mxu0
    %v5284 = vadd.f32 %v4739, %v5283
    %v5285 = vpop.f32.mrb[0].mxu0
    %5286 = vmatprep.mubr.bf16.mxu0 %v3190
    %5287 = vmatmul.mubr.bf16.gmra.mrb[0].mxu0 %v3189
    %v5288 = vpop.f32.mrb[0].mxu0
    %v5289 = vadd.f32 %v4744, %v5288
    %v5290 = vpop.f32.mrb[0].mxu0
    %v5291 = vpop.f32.mrb[0].mxu0
    %v5292 = vadd.f32 %v4747, %v5291
    %v5293 = vpop.f32.mrb[0].mxu0
    %5294 = vmatprep.mubr.bf16.mxu0 %v3199
    %5295 = vmatmul.mubr.bf16.gmra.mrb[0].mxu0 %v3198
    %v5296 = vpop.f32.mrb[0].mxu0
    %v5297 = vadd.f32 %v4752, %v5296
    %v5298 = vpop.f32.mrb[0].mxu0
    %v5299 = vpop.f32.mrb[0].mxu0
    %v5300 = vadd.f32 %v4755, %v5299
    %v5301 = vpop.f32.mrb[0].mxu0
    %5302 = vdwg.mxu0
    %5303 = vmatprep.subr.bf16.mxu0 0
    %5304 = vmatpush1.bf16.msra.mxu0 %v4101
    %5305 = vmatprep.subr.bf16.mxu0 0
    %5306 = vmatpush1.bf16.msra.mxu0 %v4102
    %5307 = vmatprep.subr.bf16.mxu0 0
    %5308 = vmatpush1.bf16.msra.mxu0 %v4103
    %5309 = vmatprep.subr.bf16.mxu0 0
    %5310 = vmatpush1.bf16.msra.mxu0 %v4104
    %5311 = vmatprep.subr.bf16.mxu0 0
    %5312 = vmatpush1.bf16.msra.mxu0 %v4105
    %5313 = vmatprep.subr.bf16.mxu0 0
    %5314 = vmatpush1.bf16.msra.mxu0 %v4106
    %5315 = vmatprep.subr.bf16.mxu0 0
    %5316 = vmatpush1.bf16.msra.mxu0 %v4107
    %5317 = vmatprep.subr.bf16.mxu0 0
    %5318 = vmatpush1.bf16.msra.mxu0 %v4108
    %5319 = vmatprep.subr.bf16.mxu0 0
    %5320 = vmatpush1.bf16.msra.mxu0 %v4109
    %5321 = vmatprep.subr.bf16.mxu0 0
    %5322 = vmatpush1.bf16.msra.mxu0 %v4110
    %5323 = vmatprep.subr.bf16.mxu0 0
    %5324 = vmatpush1.bf16.msra.mxu0 %v4111
    %5325 = vmatprep.subr.bf16.mxu0 0
    %5326 = vmatpush1.bf16.msra.mxu0 %v4112
    %5327 = vmatprep.subr.bf16.mxu0 0
    %5328 = vmatpush1.bf16.msra.mxu0 %v4113
    %5329 = vmatprep.subr.bf16.mxu0 0
    %5330 = vmatpush1.bf16.msra.mxu0 %v4114
    %5331 = vmatprep.subr.bf16.mxu0 0
    %5332 = vmatpush1.bf16.msra.mxu0 %v4115
    %5333 = vmatprep.subr.bf16.mxu0 0
    %5334 = vmatpush1.bf16.msra.mxu0 %v4116
    %5335 = vmatprep.mubr.bf16.mxu0 %v2634
    %5336 = vmatmul.mubr.bf16.gmra.mrb[0].mxu0 %v2633
    %v5337 = vpop.f32.mrb[0].mxu0
    %v5338 = vadd.f32 %v4793, %v5337
    %v5339 = vpop.f32.mrb[0].mxu0
    %v5340 = vpop.f32.mrb[0].mxu0
    %v5341 = vadd.f32 %v4796, %v5340
    %v5342 = vpop.f32.mrb[0].mxu0
    %5343 = vmatprep.mubr.bf16.mxu0 %v2643
    %5344 = vmatmul.mubr.bf16.gmra.mrb[0].mxu0 %v2642
    %v5345 = vpop.f32.mrb[0].mxu0
    %v5346 = vadd.f32 %v4801, %v5345
    %v5347 = vpop.f32.mrb[0].mxu0
    %v5348 = vpop.f32.mrb[0].mxu0
    %v5349 = vadd.f32 %v4804, %v5348
    %v5350 = vpop.f32.mrb[0].mxu0
    %5351 = vmatprep.mubr.bf16.mxu0 %v2652
    %5352 = vmatmul.mubr.bf16.gmra.mrb[0].mxu0 %v2651
    %v5353 = vpop.f32.mrb[0].mxu0
    %v5354 = vadd.f32 %v4809, %v5353
    %v5355 = vpop.f32.mrb[0].mxu0
    %v5356 = vpop.f32.mrb[0].mxu0
    %v5357 = vadd.f32 %v4812, %v5356
    %v5358 = vpop.f32.mrb[0].mxu0
    %5359 = vmatprep.mubr.bf16.mxu0 %v2661
    %5360 = vmatmul.mubr.bf16.gmra.mrb[0].mxu0 %v2660
    %v5361 = vpop.f32.mrb[0].mxu0
    %v5362 = vadd.f32 %v4817, %v5361
    %v5363 = vpop.f32.mrb[0].mxu0
    %v5364 = vpop.f32.mrb[0].mxu0
    %v5365 = vadd.f32 %v4820, %v5364
    %v5366 = vpop.f32.mrb[0].mxu0
    %5367 = vmatprep.mubr.bf16.mxu0 %v2670
    %5368 = vmatmul.mubr.bf16.gmra.mrb[0].mxu0 %v2669
    %v5369 = vpop.f32.mrb[0].mxu0
    %v5370 = vadd.f32 %v4825, %v5369
    %v5371 = vpop.f32.mrb[0].mxu0
    %v5372 = vpop.f32.mrb[0].mxu0
    %v5373 = vadd.f32 %v4828, %v5372
    %v5374 = vpop.f32.mrb[0].mxu0
    %5375 = vmatprep.mubr.bf16.mxu0 %v2679
    %5376 = vmatmul.mubr.bf16.gmra.mrb[0].mxu0 %v2678
    %v5377 = vpop.f32.mrb[0].mxu0
    %v5378 = vadd.f32 %v4833, %v5377
    %v5379 = vpop.f32.mrb[0].mxu0
    %v5380 = vpop.f32.mrb[0].mxu0
    %v5381 = vadd.f32 %v4836, %v5380
    %v5382 = vpop.f32.mrb[0].mxu0
    %5383 = vmatprep.mubr.bf16.mxu0 %v2688
    %5384 = vmatmul.mubr.bf16.gmra.mrb[0].mxu0 %v2687
    %v5385 = vpop.f32.mrb[0].mxu0
    %v5386 = vadd.f32 %v4841, %v5385
    %v5387 = vpop.f32.mrb[0].mxu0
    %v5388 = vpop.f32.mrb[0].mxu0
    %v5389 = vadd.f32 %v4844, %v5388
    %v5390 = vpop.f32.mrb[0].mxu0
    %5391 = vmatprep.mubr.bf16.mxu0 %v2697
    %5392 = vmatmul.mubr.bf16.gmra.mrb[0].mxu0 %v2696
    %v5393 = vpop.f32.mrb[0].mxu0
    %v5394 = vadd.f32 %v4849, %v5393
    %v5395 = vpop.f32.mrb[0].mxu0
    %v5396 = vpop.f32.mrb[0].mxu0
    %v5397 = vadd.f32 %v4852, %v5396
    %v5398 = vpop.f32.mrb[0].mxu0
    %5399 = vmatprep.mubr.bf16.mxu0 %v2706
    %5400 = vmatmul.mubr.bf16.gmra.mrb[0].mxu0 %v2705
    %v5401 = vpop.f32.mrb[0].mxu0
    %v5402 = vadd.f32 %v4857, %v5401
    %v5403 = vpop.f32.mrb[0].mxu0
    %v5404 = vpop.f32.mrb[0].mxu0
    %v5405 = vadd.f32 %v4860, %v5404
    %v5406 = vpop.f32.mrb[0].mxu0
    %5407 = vmatprep.mubr.bf16.mxu0 %v2715
    %5408 = vmatmul.mubr.bf16.gmra.mrb[0].mxu0 %v2714
    %v5409 = vpop.f32.mrb[0].mxu0
    %v5410 = vadd.f32 %v4865, %v5409
    %v5411 = vpop.f32.mrb[0].mxu0
    %v5412 = vpop.f32.mrb[0].mxu0
    %v5413 = vadd.f32 %v4868, %v5412
    %v5414 = vpop.f32.mrb[0].mxu0
    %5415 = vmatprep.mubr.bf16.mxu0 %v2724
    %5416 = vmatmul.mubr.bf16.gmra.mrb[0].mxu0 %v2723
    %v5417 = vpop.f32.mrb[0].mxu0
    %v5418 = vadd.f32 %v4873, %v5417
    %v5419 = vpop.f32.mrb[0].mxu0
    %v5420 = vpop.f32.mrb[0].mxu0
    %v5421 = vadd.f32 %v4876, %v5420
    %v5422 = vpop.f32.mrb[0].mxu0
    %5423 = vmatprep.mubr.bf16.mxu0 %v2733
    %5424 = vmatmul.mubr.bf16.gmra.mrb[0].mxu0 %v2732
    %v5425 = vpop.f32.mrb[0].mxu0
    %v5426 = vadd.f32 %v4881, %v5425
    %v5427 = vpop.f32.mrb[0].mxu0
    %v5428 = vpop.f32.mrb[0].mxu0
    %v5429 = vadd.f32 %v4884, %v5428
    %v5430 = vpop.f32.mrb[0].mxu0
    %5431 = vmatprep.mubr.bf16.mxu0 %v2742
    %5432 = vmatmul.mubr.bf16.gmra.mrb[0].mxu0 %v2741
    %v5433 = vpop.f32.mrb[0].mxu0
    %v5434 = vadd.f32 %v4889, %v5433
    %v5435 = vpop.f32.mrb[0].mxu0
    %v5436 = vpop.f32.mrb[0].mxu0
    %v5437 = vadd.f32 %v4892, %v5436
    %v5438 = vpop.f32.mrb[0].mxu0
    %5439 = vmatprep.mubr.bf16.mxu0 %v2751
    %5440 = vmatmul.mubr.bf16.gmra.mrb[0].mxu0 %v2750
    %v5441 = vpop.f32.mrb[0].mxu0
    %v5442 = vadd.f32 %v4897, %v5441
    %v5443 = vpop.f32.mrb[0].mxu0
    %v5444 = vpop.f32.mrb[0].mxu0
    %v5445 = vadd.f32 %v4900, %v5444
    %v5446 = vpop.f32.mrb[0].mxu0
    %5447 = vmatprep.mubr.bf16.mxu0 %v2760
    %5448 = vmatmul.mubr.bf16.gmra.mrb[0].mxu0 %v2759
    %v5449 = vpop.f32.mrb[0].mxu0
    %v5450 = vadd.f32 %v4905, %v5449
    %v5451 = vpop.f32.mrb[0].mxu0
    %v5452 = vpop.f32.mrb[0].mxu0
    %v5453 = vadd.f32 %v4908, %v5452
    %v5454 = vpop.f32.mrb[0].mxu0
    %5455 = vmatprep.mubr.bf16.mxu0 %v2769
    %5456 = vmatmul.mubr.bf16.gmra.mrb[0].mxu0 %v2768
    %v5457 = vpop.f32.mrb[0].mxu0
    %v5458 = vadd.f32 %v4913, %v5457
    %v5459 = vpop.f32.mrb[0].mxu0
    %v5460 = vpop.f32.mrb[0].mxu0
    %v5461 = vadd.f32 %v4916, %v5460
    %v5462 = vpop.f32.mrb[0].mxu0
    %5463 = vmatprep.mubr.bf16.mxu0 %v2778
    %5464 = vmatmul.mubr.bf16.gmra.mrb[0].mxu0 %v2777
    %v5465 = vpop.f32.mrb[0].mxu0
    %v5466 = vadd.f32 %v4921, %v5465
    %v5467 = vpop.f32.mrb[0].mxu0
    %v5468 = vpop.f32.mrb[0].mxu0
    %v5469 = vadd.f32 %v4924, %v5468
    %v5470 = vpop.f32.mrb[0].mxu0
    %5471 = vmatprep.mubr.bf16.mxu0 %v2787
    %5472 = vmatmul.mubr.bf16.gmra.mrb[0].mxu0 %v2786
    %v5473 = vpop.f32.mrb[0].mxu0
    %v5474 = vadd.f32 %v4929, %v5473
    %v5475 = vpop.f32.mrb[0].mxu0
    %v5476 = vpop.f32.mrb[0].mxu0
    %v5477 = vadd.f32 %v4932, %v5476
    %v5478 = vpop.f32.mrb[0].mxu0
    %5479 = vmatprep.mubr.bf16.mxu0 %v2796
    %5480 = vmatmul.mubr.bf16.gmra.mrb[0].mxu0 %v2795
    %v5481 = vpop.f32.mrb[0].mxu0
    %v5482 = vadd.f32 %v4937, %v5481
    %v5483 = vpop.f32.mrb[0].mxu0
    %v5484 = vpop.f32.mrb[0].mxu0
    %v5485 = vadd.f32 %v4940, %v5484
    %v5486 = vpop.f32.mrb[0].mxu0
    %5487 = vmatprep.mubr.bf16.mxu0 %v2805
    %5488 = vmatmul.mubr.bf16.gmra.mrb[0].mxu0 %v2804
    %v5489 = vpop.f32.mrb[0].mxu0
    %v5490 = vadd.f32 %v4945, %v5489
    %v5491 = vpop.f32.mrb[0].mxu0
    %v5492 = vpop.f32.mrb[0].mxu0
    %v5493 = vadd.f32 %v4948, %v5492
    %v5494 = vpop.f32.mrb[0].mxu0
    %5495 = vmatprep.mubr.bf16.mxu0 %v2814
    %5496 = vmatmul.mubr.bf16.gmra.mrb[0].mxu0 %v2813
    %v5497 = vpop.f32.mrb[0].mxu0
    %v5498 = vadd.f32 %v4953, %v5497
    %v5499 = vpop.f32.mrb[0].mxu0
    %v5500 = vpop.f32.mrb[0].mxu0
    %v5501 = vadd.f32 %v4956, %v5500
    %v5502 = vpop.f32.mrb[0].mxu0
    %5503 = vmatprep.mubr.bf16.mxu0 %v2823
    %5504 = vmatmul.mubr.bf16.gmra.mrb[0].mxu0 %v2822
    %v5505 = vpop.f32.mrb[0].mxu0
    %v5506 = vadd.f32 %v4961, %v5505
    %v5507 = vpop.f32.mrb[0].mxu0
    %v5508 = vpop.f32.mrb[0].mxu0
    %v5509 = vadd.f32 %v4964, %v5508
    %v5510 = vpop.f32.mrb[0].mxu0
    %5511 = vmatprep.mubr.bf16.mxu0 %v2832
    %5512 = vmatmul.mubr.bf16.gmra.mrb[0].mxu0 %v2831
    %v5513 = vpop.f32.mrb[0].mxu0
    %v5514 = vadd.f32 %v4969, %v5513
    %v5515 = vpop.f32.mrb[0].mxu0
    %v5516 = vpop.f32.mrb[0].mxu0
    %v5517 = vadd.f32 %v4972, %v5516
    %v5518 = vpop.f32.mrb[0].mxu0
    %5519 = vmatprep.mubr.bf16.mxu0 %v2841
    %5520 = vmatmul.mubr.bf16.gmra.mrb[0].mxu0 %v2840
    %v5521 = vpop.f32.mrb[0].mxu0
    %v5522 = vadd.f32 %v4977, %v5521
    %v5523 = vpop.f32.mrb[0].mxu0
    %v5524 = vpop.f32.mrb[0].mxu0
    %v5525 = vadd.f32 %v4980, %v5524
    %v5526 = vpop.f32.mrb[0].mxu0
    %5527 = vmatprep.mubr.bf16.mxu0 %v2850
    %5528 = vmatmul.mubr.bf16.gmra.mrb[0].mxu0 %v2849
    %v5529 = vpop.f32.mrb[0].mxu0
    %v5530 = vadd.f32 %v4985, %v5529
    %v5531 = vpop.f32.mrb[0].mxu0
    %v5532 = vpop.f32.mrb[0].mxu0
    %v5533 = vadd.f32 %v4988, %v5532
    %v5534 = vpop.f32.mrb[0].mxu0
    %5535 = vmatprep.mubr.bf16.mxu0 %v2859
    %5536 = vmatmul.mubr.bf16.gmra.mrb[0].mxu0 %v2858
    %v5537 = vpop.f32.mrb[0].mxu0
    %v5538 = vadd.f32 %v4993, %v5537
    %v5539 = vpop.f32.mrb[0].mxu0
    %v5540 = vpop.f32.mrb[0].mxu0
    %v5541 = vadd.f32 %v4996, %v5540
    %v5542 = vpop.f32.mrb[0].mxu0
    %5543 = vmatprep.mubr.bf16.mxu0 %v2868
    %5544 = vmatmul.mubr.bf16.gmra.mrb[0].mxu0 %v2867
    %v5545 = vpop.f32.mrb[0].mxu0
    %v5546 = vadd.f32 %v5001, %v5545
    %v5547 = vpop.f32.mrb[0].mxu0
    %v5548 = vpop.f32.mrb[0].mxu0
    %v5549 = vadd.f32 %v5004, %v5548
    %v5550 = vpop.f32.mrb[0].mxu0
    %5551 = vmatprep.mubr.bf16.mxu0 %v2877
    %5552 = vmatmul.mubr.bf16.gmra.mrb[0].mxu0 %v2876
    %v5553 = vpop.f32.mrb[0].mxu0
    %v5554 = vadd.f32 %v5009, %v5553
    %v5555 = vpop.f32.mrb[0].mxu0
    %v5556 = vpop.f32.mrb[0].mxu0
    %v5557 = vadd.f32 %v5012, %v5556
    %v5558 = vpop.f32.mrb[0].mxu0
    %5559 = vmatprep.mubr.bf16.mxu0 %v2886
    %5560 = vmatmul.mubr.bf16.gmra.mrb[0].mxu0 %v2885
    %v5561 = vpop.f32.mrb[0].mxu0
    %v5562 = vadd.f32 %v5017, %v5561
    %v5563 = vpop.f32.mrb[0].mxu0
    %v5564 = vpop.f32.mrb[0].mxu0
    %v5565 = vadd.f32 %v5020, %v5564
    %v5566 = vpop.f32.mrb[0].mxu0
    %5567 = vmatprep.mubr.bf16.mxu0 %v2895
    %5568 = vmatmul.mubr.bf16.gmra.mrb[0].mxu0 %v2894
    %v5569 = vpop.f32.mrb[0].mxu0
    %v5570 = vadd.f32 %v5025, %v5569
    %v5571 = vpop.f32.mrb[0].mxu0
    %v5572 = vpop.f32.mrb[0].mxu0
    %v5573 = vadd.f32 %v5028, %v5572
    %v5574 = vpop.f32.mrb[0].mxu0
    %5575 = vmatprep.mubr.bf16.mxu0 %v2904
    %5576 = vmatmul.mubr.bf16.gmra.mrb[0].mxu0 %v2903
    %v5577 = vpop.f32.mrb[0].mxu0
    %v5578 = vadd.f32 %v5033, %v5577
    %v5579 = vpop.f32.mrb[0].mxu0
    %v5580 = vpop.f32.mrb[0].mxu0
    %v5581 = vadd.f32 %v5036, %v5580
    %v5582 = vpop.f32.mrb[0].mxu0
    %5583 = vmatprep.mubr.bf16.mxu0 %v2913
    %5584 = vmatmul.mubr.bf16.gmra.mrb[0].mxu0 %v2912
    %v5585 = vpop.f32.mrb[0].mxu0
    %v5586 = vadd.f32 %v5041, %v5585
    %v5587 = vpop.f32.mrb[0].mxu0
    %v5588 = vpop.f32.mrb[0].mxu0
    %v5589 = vadd.f32 %v5044, %v5588
    %v5590 = vpop.f32.mrb[0].mxu0
    %5591 = vmatprep.mubr.bf16.mxu0 %v2922
    %5592 = vmatmul.mubr.bf16.gmra.mrb[0].mxu0 %v2921
    %v5593 = vpop.f32.mrb[0].mxu0
    %v5594 = vadd.f32 %v5049, %v5593
    %v5595 = vpop.f32.mrb[0].mxu0
    %v5596 = vpop.f32.mrb[0].mxu0
    %v5597 = vadd.f32 %v5052, %v5596
    %v5598 = vpop.f32.mrb[0].mxu0
    %5599 = vmatprep.mubr.bf16.mxu0 %v2931
    %5600 = vmatmul.mubr.bf16.gmra.mrb[0].mxu0 %v2930
    %v5601 = vpop.f32.mrb[0].mxu0
    %v5602 = vadd.f32 %v5057, %v5601
    %v5603 = vpop.f32.mrb[0].mxu0
    %v5604 = vpop.f32.mrb[0].mxu0
    %v5605 = vadd.f32 %v5060, %v5604
    %v5606 = vpop.f32.mrb[0].mxu0
    %5607 = vmatprep.mubr.bf16.mxu0 %v2940
    %5608 = vmatmul.mubr.bf16.gmra.mrb[0].mxu0 %v2939
    %v5609 = vpop.f32.mrb[0].mxu0
    %v5610 = vadd.f32 %v5065, %v5609
    %v5611 = vpop.f32.mrb[0].mxu0
    %v5612 = vpop.f32.mrb[0].mxu0
    %v5613 = vadd.f32 %v5068, %v5612
    %v5614 = vpop.f32.mrb[0].mxu0
    %5615 = vmatprep.mubr.bf16.mxu0 %v2949
    %5616 = vmatmul.mubr.bf16.gmra.mrb[0].mxu0 %v2948
    %v5617 = vpop.f32.mrb[0].mxu0
    %v5618 = vadd.f32 %v5073, %v5617
    %v5619 = vpop.f32.mrb[0].mxu0
    %v5620 = vpop.f32.mrb[0].mxu0
    %v5621 = vadd.f32 %v5076, %v5620
    %v5622 = vpop.f32.mrb[0].mxu0
    %5623 = vmatprep.mubr.bf16.mxu0 %v2958
    %5624 = vmatmul.mubr.bf16.gmra.mrb[0].mxu0 %v2957
    %v5625 = vpop.f32.mrb[0].mxu0
    %v5626 = vadd.f32 %v5081, %v5625
    %v5627 = vpop.f32.mrb[0].mxu0
    %v5628 = vpop.f32.mrb[0].mxu0
    %v5629 = vadd.f32 %v5084, %v5628
    %v5630 = vpop.f32.mrb[0].mxu0
    %5631 = vmatprep.mubr.bf16.mxu0 %v2967
    %5632 = vmatmul.mubr.bf16.gmra.mrb[0].mxu0 %v2966
    %v5633 = vpop.f32.mrb[0].mxu0
    %v5634 = vadd.f32 %v5089, %v5633
    %v5635 = vpop.f32.mrb[0].mxu0
    %v5636 = vpop.f32.mrb[0].mxu0
    %v5637 = vadd.f32 %v5092, %v5636
    %v5638 = vpop.f32.mrb[0].mxu0
    %5639 = vmatprep.mubr.bf16.mxu0 %v2976
    %5640 = vmatmul.mubr.bf16.gmra.mrb[0].mxu0 %v2975
    %v5641 = vpop.f32.mrb[0].mxu0
    %v5642 = vadd.f32 %v5097, %v5641
    %v5643 = vpop.f32.mrb[0].mxu0
    %v5644 = vpop.f32.mrb[0].mxu0
    %v5645 = vadd.f32 %v5100, %v5644
    %v5646 = vpop.f32.mrb[0].mxu0
    %5647 = vmatprep.mubr.bf16.mxu0 %v2985
    %5648 = vmatmul.mubr.bf16.gmra.mrb[0].mxu0 %v2984
    %v5649 = vpop.f32.mrb[0].mxu0
    %v5650 = vadd.f32 %v5105, %v5649
    %v5651 = vpop.f32.mrb[0].mxu0
    %v5652 = vpop.f32.mrb[0].mxu0
    %v5653 = vadd.f32 %v5108, %v5652
    %v5654 = vpop.f32.mrb[0].mxu0
    %5655 = vmatprep.mubr.bf16.mxu0 %v2994
    %5656 = vmatmul.mubr.bf16.gmra.mrb[0].mxu0 %v2993
    %v5657 = vpop.f32.mrb[0].mxu0
    %v5658 = vadd.f32 %v5113, %v5657
    %v5659 = vpop.f32.mrb[0].mxu0
    %v5660 = vpop.f32.mrb[0].mxu0
    %v5661 = vadd.f32 %v5116, %v5660
    %v5662 = vpop.f32.mrb[0].mxu0
    %5663 = vmatprep.mubr.bf16.mxu0 %v3003
    %5664 = vmatmul.mubr.bf16.gmra.mrb[0].mxu0 %v3002
    %v5665 = vpop.f32.mrb[0].mxu0
    %v5666 = vadd.f32 %v5121, %v5665
    %v5667 = vpop.f32.mrb[0].mxu0
    %v5668 = vpop.f32.mrb[0].mxu0
    %v5669 = vadd.f32 %v5124, %v5668
    %v5670 = vpop.f32.mrb[0].mxu0
    %5671 = vmatprep.mubr.bf16.mxu0 %v3012
    %5672 = vmatmul.mubr.bf16.gmra.mrb[0].mxu0 %v3011
    %v5673 = vpop.f32.mrb[0].mxu0
    %v5674 = vadd.f32 %v5129, %v5673
    %v5675 = vpop.f32.mrb[0].mxu0
    %v5676 = vpop.f32.mrb[0].mxu0
    %v5677 = vadd.f32 %v5132, %v5676
    %v5678 = vpop.f32.mrb[0].mxu0
    %5679 = vmatprep.mubr.bf16.mxu0 %v3021
    %5680 = vmatmul.mubr.bf16.gmra.mrb[0].mxu0 %v3020
    %v5681 = vpop.f32.mrb[0].mxu0
    %v5682 = vadd.f32 %v5137, %v5681
    %v5683 = vpop.f32.mrb[0].mxu0
    %v5684 = vpop.f32.mrb[0].mxu0
    %v5685 = vadd.f32 %v5140, %v5684
    %v5686 = vpop.f32.mrb[0].mxu0
    %5687 = vmatprep.mubr.bf16.mxu0 %v3030
    %5688 = vmatmul.mubr.bf16.gmra.mrb[0].mxu0 %v3029
    %v5689 = vpop.f32.mrb[0].mxu0
    %v5690 = vadd.f32 %v5145, %v5689
    %v5691 = vpop.f32.mrb[0].mxu0
    %v5692 = vpop.f32.mrb[0].mxu0
    %v5693 = vadd.f32 %v5148, %v5692
    %v5694 = vpop.f32.mrb[0].mxu0
    %5695 = vmatprep.mubr.bf16.mxu0 %v3039
    %5696 = vmatmul.mubr.bf16.gmra.mrb[0].mxu0 %v3038
    %v5697 = vpop.f32.mrb[0].mxu0
    %v5698 = vadd.f32 %v5153, %v5697
    %v5699 = vpop.f32.mrb[0].mxu0
    %v5700 = vpop.f32.mrb[0].mxu0
    %v5701 = vadd.f32 %v5156, %v5700
    %v5702 = vpop.f32.mrb[0].mxu0
    %5703 = vmatprep.mubr.bf16.mxu0 %v3048
    %5704 = vmatmul.mubr.bf16.gmra.mrb[0].mxu0 %v3047
    %v5705 = vpop.f32.mrb[0].mxu0
    %v5706 = vadd.f32 %v5161, %v5705
    %v5707 = vpop.f32.mrb[0].mxu0
    %v5708 = vpop.f32.mrb[0].mxu0
    %v5709 = vadd.f32 %v5164, %v5708
    %v5710 = vpop.f32.mrb[0].mxu0
    %5711 = vmatprep.mubr.bf16.mxu0 %v3057
    %5712 = vmatmul.mubr.bf16.gmra.mrb[0].mxu0 %v3056
    %v5713 = vpop.f32.mrb[0].mxu0
    %v5714 = vadd.f32 %v5169, %v5713
    %v5715 = vpop.f32.mrb[0].mxu0
    %v5716 = vpop.f32.mrb[0].mxu0
    %v5717 = vadd.f32 %v5172, %v5716
    %v5718 = vpop.f32.mrb[0].mxu0
    %5719 = vmatprep.mubr.bf16.mxu0 %v3066
    %5720 = vmatmul.mubr.bf16.gmra.mrb[0].mxu0 %v3065
    %v5721 = vpop.f32.mrb[0].mxu0
    %v5722 = vadd.f32 %v5177, %v5721
    %v5723 = vpop.f32.mrb[0].mxu0
    %v5724 = vpop.f32.mrb[0].mxu0
    %v5725 = vadd.f32 %v5180, %v5724
    %v5726 = vpop.f32.mrb[0].mxu0
    %5727 = vmatprep.mubr.bf16.mxu0 %v3075
    %5728 = vmatmul.mubr.bf16.gmra.mrb[0].mxu0 %v3074
    %v5729 = vpop.f32.mrb[0].mxu0
    %v5730 = vadd.f32 %v5185, %v5729
    %v5731 = vpop.f32.mrb[0].mxu0
    %v5732 = vpop.f32.mrb[0].mxu0
    %v5733 = vadd.f32 %v5188, %v5732
    %v5734 = vpop.f32.mrb[0].mxu0
    %5735 = vmatprep.mubr.bf16.mxu0 %v3084
    %5736 = vmatmul.mubr.bf16.gmra.mrb[0].mxu0 %v3083
    %v5737 = vpop.f32.mrb[0].mxu0
    %v5738 = vadd.f32 %v5193, %v5737
    %v5739 = vpop.f32.mrb[0].mxu0
    %v5740 = vpop.f32.mrb[0].mxu0
    %v5741 = vadd.f32 %v5196, %v5740
    %v5742 = vpop.f32.mrb[0].mxu0
    %5743 = vmatprep.mubr.bf16.mxu0 %v3093
    %5744 = vmatmul.mubr.bf16.gmra.mrb[0].mxu0 %v3092
    %v5745 = vpop.f32.mrb[0].mxu0
    %v5746 = vadd.f32 %v5201, %v5745
    %v5747 = vpop.f32.mrb[0].mxu0
    %v5748 = vpop.f32.mrb[0].mxu0
    %v5749 = vadd.f32 %v5204, %v5748
    %v5750 = vpop.f32.mrb[0].mxu0
    %5751 = vmatprep.mubr.bf16.mxu0 %v3102
    %5752 = vmatmul.mubr.bf16.gmra.mrb[0].mxu0 %v3101
    %v5753 = vpop.f32.mrb[0].mxu0
    %v5754 = vadd.f32 %v5209, %v5753
    %v5755 = vpop.f32.mrb[0].mxu0
    %v5756 = vpop.f32.mrb[0].mxu0
    %v5757 = vadd.f32 %v5212, %v5756
    %v5758 = vpop.f32.mrb[0].mxu0
    %5759 = vmatprep.mubr.bf16.mxu0 %v3111
    %5760 = vmatmul.mubr.bf16.gmra.mrb[0].mxu0 %v3110
    %v5761 = vpop.f32.mrb[0].mxu0
    %v5762 = vadd.f32 %v5217, %v5761
    %v5763 = vpop.f32.mrb[0].mxu0
    %v5764 = vpop.f32.mrb[0].mxu0
    %v5765 = vadd.f32 %v5220, %v5764
    %v5766 = vpop.f32.mrb[0].mxu0
    %5767 = vmatprep.mubr.bf16.mxu0 %v3120
    %5768 = vmatmul.mubr.bf16.gmra.mrb[0].mxu0 %v3119
    %v5769 = vpop.f32.mrb[0].mxu0
    %v5770 = vadd.f32 %v5225, %v5769
    %v5771 = vpop.f32.mrb[0].mxu0
    %v5772 = vpop.f32.mrb[0].mxu0
    %v5773 = vadd.f32 %v5228, %v5772
    %v5774 = vpop.f32.mrb[0].mxu0
    %5775 = vmatprep.mubr.bf16.mxu0 %v3129
    %5776 = vmatmul.mubr.bf16.gmra.mrb[0].mxu0 %v3128
    %v5777 = vpop.f32.mrb[0].mxu0
    %v5778 = vadd.f32 %v5233, %v5777
    %v5779 = vpop.f32.mrb[0].mxu0
    %v5780 = vpop.f32.mrb[0].mxu0
    %v5781 = vadd.f32 %v5236, %v5780
    %v5782 = vpop.f32.mrb[0].mxu0
    %5783 = vmatprep.mubr.bf16.mxu0 %v3138
    %5784 = vmatmul.mubr.bf16.gmra.mrb[0].mxu0 %v3137
    %v5785 = vpop.f32.mrb[0].mxu0
    %v5786 = vadd.f32 %v5241, %v5785
    %v5787 = vpop.f32.mrb[0].mxu0
    %v5788 = vpop.f32.mrb[0].mxu0
    %v5789 = vadd.f32 %v5244, %v5788
    %v5790 = vpop.f32.mrb[0].mxu0
    %5791 = vmatprep.mubr.bf16.mxu0 %v3147
    %5792 = vmatmul.mubr.bf16.gmra.mrb[0].mxu0 %v3146
    %v5793 = vpop.f32.mrb[0].mxu0
    %v5794 = vadd.f32 %v5249, %v5793
    %v5795 = vpop.f32.mrb[0].mxu0
    %v5796 = vpop.f32.mrb[0].mxu0
    %v5797 = vadd.f32 %v5252, %v5796
    %v5798 = vpop.f32.mrb[0].mxu0
    %5799 = vmatprep.mubr.bf16.mxu0 %v3156
    %5800 = vmatmul.mubr.bf16.gmra.mrb[0].mxu0 %v3155
    %v5801 = vpop.f32.mrb[0].mxu0
    %v5802 = vadd.f32 %v5257, %v5801
    %v5803 = vpop.f32.mrb[0].mxu0
    %v5804 = vpop.f32.mrb[0].mxu0
    %v5805 = vadd.f32 %v5260, %v5804
    %v5806 = vpop.f32.mrb[0].mxu0
    %5807 = vmatprep.mubr.bf16.mxu0 %v3165
    %5808 = vmatmul.mubr.bf16.gmra.mrb[0].mxu0 %v3164
    %v5809 = vpop.f32.mrb[0].mxu0
    %v5810 = vadd.f32 %v5265, %v5809
    %v5811 = vpop.f32.mrb[0].mxu0
    %v5812 = vpop.f32.mrb[0].mxu0
    %v5813 = vadd.f32 %v5268, %v5812
    %v5814 = vpop.f32.mrb[0].mxu0
    %5815 = vmatprep.mubr.bf16.mxu0 %v3174
    %5816 = vmatmul.mubr.bf16.gmra.mrb[0].mxu0 %v3173
    %v5817 = vpop.f32.mrb[0].mxu0
    %v5818 = vadd.f32 %v5273, %v5817
    %v5819 = vpop.f32.mrb[0].mxu0
    %v5820 = vpop.f32.mrb[0].mxu0
    %v5821 = vadd.f32 %v5276, %v5820
    %v5822 = vpop.f32.mrb[0].mxu0
    %5823 = vmatprep.mubr.bf16.mxu0 %v3183
    %5824 = vmatmul.mubr.bf16.gmra.mrb[0].mxu0 %v3182
    %v5825 = vpop.f32.mrb[0].mxu0
    %v5826 = vadd.f32 %v5281, %v5825
    %v5827 = vpop.f32.mrb[0].mxu0
    %v5828 = vpop.f32.mrb[0].mxu0
    %v5829 = vadd.f32 %v5284, %v5828
    %v5830 = vpop.f32.mrb[0].mxu0
    %5831 = vmatprep.mubr.bf16.mxu0 %v3192
    %5832 = vmatmul.mubr.bf16.gmra.mrb[0].mxu0 %v3191
    %v5833 = vpop.f32.mrb[0].mxu0
    %v5834 = vadd.f32 %v5289, %v5833
    %v5835 = vpop.f32.mrb[0].mxu0
    %v5836 = vpop.f32.mrb[0].mxu0
    %v5837 = vadd.f32 %v5292, %v5836
    %v5838 = vpop.f32.mrb[0].mxu0
    %5839 = vmatprep.mubr.bf16.mxu0 %v3201
    %5840 = vmatmul.mubr.bf16.gmra.mrb[0].mxu0 %v3200
    %v5841 = vpop.f32.mrb[0].mxu0
    %v5842 = vadd.f32 %v5297, %v5841
    %v5843 = vpop.f32.mrb[0].mxu0
    %v5844 = vpop.f32.mrb[0].mxu0
    %v5845 = vadd.f32 %v5300, %v5844
    %v5846 = vpop.f32.mrb[0].mxu0
    %5847 = vdwg.mxu0
    %5848 = vmatprep.subr.bf16.mxu0 0
    %5849 = vmatpush1.bf16.msra.mxu0 %v4117
    %5850 = vmatprep.subr.bf16.mxu0 0
    %5851 = vmatpush1.bf16.msra.mxu0 %v4118
    %5852 = vmatprep.subr.bf16.mxu0 0
    %5853 = vmatpush1.bf16.msra.mxu0 %v4119
    %5854 = vmatprep.subr.bf16.mxu0 0
    %5855 = vmatpush1.bf16.msra.mxu0 %v4120
    %5856 = vmatprep.subr.bf16.mxu0 0
    %5857 = vmatpush1.bf16.msra.mxu0 %v4121
    %5858 = vmatprep.subr.bf16.mxu0 0
    %5859 = vmatpush1.bf16.msra.mxu0 %v4122
    %5860 = vmatprep.subr.bf16.mxu0 0
    %5861 = vmatpush1.bf16.msra.mxu0 %v4123
    %5862 = vmatprep.subr.bf16.mxu0 0
    %5863 = vmatpush1.bf16.msra.mxu0 %v4124
    %5864 = vmatprep.subr.bf16.mxu0 0
    %5865 = vmatpush1.bf16.msra.mxu0 %v4125
    %5866 = vmatprep.subr.bf16.mxu0 0
    %5867 = vmatpush1.bf16.msra.mxu0 %v4126
    %5868 = vmatprep.subr.bf16.mxu0 0
    %5869 = vmatpush1.bf16.msra.mxu0 %v4127
    %5870 = vmatprep.subr.bf16.mxu0 0
    %5871 = vmatpush1.bf16.msra.mxu0 %v4128
    %5872 = vmatprep.subr.bf16.mxu0 0
    %5873 = vmatpush1.bf16.msra.mxu0 %v4129
    %5874 = vmatprep.subr.bf16.mxu0 0
    %5875 = vmatpush1.bf16.msra.mxu0 %v4130
    %5876 = vmatprep.subr.bf16.mxu0 0
    %5877 = vmatpush1.bf16.msra.mxu0 %v4131
    %5878 = vmatprep.subr.bf16.mxu0 0
    %5879 = vmatpush1.bf16.msra.mxu0 %v4132
    %5880 = vmatprep.mubr.bf16.mxu0 %v2636
    %5881 = vmatmul.mubr.bf16.gmra.mrb[0].mxu0 %v2635
    %v5882 = vpop.f32.mrb[0].mxu0
    %v5883 = vadd.f32 %v5338, %v5882
    %v5884 = vpop.f32.mrb[0].mxu0
    %v5885 = vpop.f32.mrb[0].mxu0
    %v5886 = vadd.f32 %v5341, %v5885
    %v5887 = vpop.f32.mrb[0].mxu0
    %5888 = vmatprep.mubr.bf16.mxu0 %v2645
    %5889 = vmatmul.mubr.bf16.gmra.mrb[0].mxu0 %v2644
    %v5890 = vpop.f32.mrb[0].mxu0
    %v5891 = vadd.f32 %v5346, %v5890
    %v5892 = vpop.f32.mrb[0].mxu0
    %v5893 = vpop.f32.mrb[0].mxu0
    %v5894 = vadd.f32 %v5349, %v5893
    %v5895 = vpop.f32.mrb[0].mxu0
    %5896 = vmatprep.mubr.bf16.mxu0 %v2654
    %5897 = vmatmul.mubr.bf16.gmra.mrb[0].mxu0 %v2653
    %v5898 = vpop.f32.mrb[0].mxu0
    %v5899 = vadd.f32 %v5354, %v5898
    %v5900 = vpop.f32.mrb[0].mxu0
    %v5901 = vpop.f32.mrb[0].mxu0
    %v5902 = vadd.f32 %v5357, %v5901
    %v5903 = vpop.f32.mrb[0].mxu0
    %5904 = vmatprep.mubr.bf16.mxu0 %v2663
    %5905 = vmatmul.mubr.bf16.gmra.mrb[0].mxu0 %v2662
    %v5906 = vpop.f32.mrb[0].mxu0
    %v5907 = vadd.f32 %v5362, %v5906
    %v5908 = vpop.f32.mrb[0].mxu0
    %v5909 = vpop.f32.mrb[0].mxu0
    %v5910 = vadd.f32 %v5365, %v5909
    %v5911 = vpop.f32.mrb[0].mxu0
    %5912 = vmatprep.mubr.bf16.mxu0 %v2672
    %5913 = vmatmul.mubr.bf16.gmra.mrb[0].mxu0 %v2671
    %v5914 = vpop.f32.mrb[0].mxu0
    %v5915 = vadd.f32 %v5370, %v5914
    %v5916 = vpop.f32.mrb[0].mxu0
    %v5917 = vpop.f32.mrb[0].mxu0
    %v5918 = vadd.f32 %v5373, %v5917
    %v5919 = vpop.f32.mrb[0].mxu0
    %5920 = vmatprep.mubr.bf16.mxu0 %v2681
    %5921 = vmatmul.mubr.bf16.gmra.mrb[0].mxu0 %v2680
    %v5922 = vpop.f32.mrb[0].mxu0
    %v5923 = vadd.f32 %v5378, %v5922
    %v5924 = vpop.f32.mrb[0].mxu0
    %v5925 = vpop.f32.mrb[0].mxu0
    %v5926 = vadd.f32 %v5381, %v5925
    %v5927 = vpop.f32.mrb[0].mxu0
    %5928 = vmatprep.mubr.bf16.mxu0 %v2690
    %5929 = vmatmul.mubr.bf16.gmra.mrb[0].mxu0 %v2689
    %v5930 = vpop.f32.mrb[0].mxu0
    %v5931 = vadd.f32 %v5386, %v5930
    %v5932 = vpop.f32.mrb[0].mxu0
    %v5933 = vpop.f32.mrb[0].mxu0
    %v5934 = vadd.f32 %v5389, %v5933
    %v5935 = vpop.f32.mrb[0].mxu0
    %5936 = vmatprep.mubr.bf16.mxu0 %v2699
    %5937 = vmatmul.mubr.bf16.gmra.mrb[0].mxu0 %v2698
    %v5938 = vpop.f32.mrb[0].mxu0
    %v5939 = vadd.f32 %v5394, %v5938
    %v5940 = vpop.f32.mrb[0].mxu0
    %v5941 = vpop.f32.mrb[0].mxu0
    %v5942 = vadd.f32 %v5397, %v5941
    %v5943 = vpop.f32.mrb[0].mxu0
    %5944 = vmatprep.mubr.bf16.mxu0 %v2708
    %5945 = vmatmul.mubr.bf16.gmra.mrb[0].mxu0 %v2707
    %v5946 = vpop.f32.mrb[0].mxu0
    %v5947 = vadd.f32 %v5402, %v5946
    %v5948 = vpop.f32.mrb[0].mxu0
    %v5949 = vpop.f32.mrb[0].mxu0
    %v5950 = vadd.f32 %v5405, %v5949
    %v5951 = vpop.f32.mrb[0].mxu0
    %5952 = vmatprep.mubr.bf16.mxu0 %v2717
    %5953 = vmatmul.mubr.bf16.gmra.mrb[0].mxu0 %v2716
    %v5954 = vpop.f32.mrb[0].mxu0
    %v5955 = vadd.f32 %v5410, %v5954
    %v5956 = vpop.f32.mrb[0].mxu0
    %v5957 = vpop.f32.mrb[0].mxu0
    %v5958 = vadd.f32 %v5413, %v5957
    %v5959 = vpop.f32.mrb[0].mxu0
    %5960 = vmatprep.mubr.bf16.mxu0 %v2726
    %5961 = vmatmul.mubr.bf16.gmra.mrb[0].mxu0 %v2725
    %v5962 = vpop.f32.mrb[0].mxu0
    %v5963 = vadd.f32 %v5418, %v5962
    %v5964 = vpop.f32.mrb[0].mxu0
    %v5965 = vpop.f32.mrb[0].mxu0
    %v5966 = vadd.f32 %v5421, %v5965
    %v5967 = vpop.f32.mrb[0].mxu0
    %5968 = vmatprep.mubr.bf16.mxu0 %v2735
    %5969 = vmatmul.mubr.bf16.gmra.mrb[0].mxu0 %v2734
    %v5970 = vpop.f32.mrb[0].mxu0
    %v5971 = vadd.f32 %v5426, %v5970
    %v5972 = vpop.f32.mrb[0].mxu0
    %v5973 = vpop.f32.mrb[0].mxu0
    %v5974 = vadd.f32 %v5429, %v5973
    %v5975 = vpop.f32.mrb[0].mxu0
    %5976 = vmatprep.mubr.bf16.mxu0 %v2744
    %5977 = vmatmul.mubr.bf16.gmra.mrb[0].mxu0 %v2743
    %v5978 = vpop.f32.mrb[0].mxu0
    %v5979 = vadd.f32 %v5434, %v5978
    %v5980 = vpop.f32.mrb[0].mxu0
    %v5981 = vpop.f32.mrb[0].mxu0
    %v5982 = vadd.f32 %v5437, %v5981
    %v5983 = vpop.f32.mrb[0].mxu0
    %5984 = vmatprep.mubr.bf16.mxu0 %v2753
    %5985 = vmatmul.mubr.bf16.gmra.mrb[0].mxu0 %v2752
    %v5986 = vpop.f32.mrb[0].mxu0
    %v5987 = vadd.f32 %v5442, %v5986
    %v5988 = vpop.f32.mrb[0].mxu0
    %v5989 = vpop.f32.mrb[0].mxu0
    %v5990 = vadd.f32 %v5445, %v5989
    %v5991 = vpop.f32.mrb[0].mxu0
    %5992 = vmatprep.mubr.bf16.mxu0 %v2762
    %5993 = vmatmul.mubr.bf16.gmra.mrb[0].mxu0 %v2761
    %v5994 = vpop.f32.mrb[0].mxu0
    %v5995 = vadd.f32 %v5450, %v5994
    %v5996 = vpop.f32.mrb[0].mxu0
    %v5997 = vpop.f32.mrb[0].mxu0
    %v5998 = vadd.f32 %v5453, %v5997
    %v5999 = vpop.f32.mrb[0].mxu0
    %6000 = vmatprep.mubr.bf16.mxu0 %v2771
    %6001 = vmatmul.mubr.bf16.gmra.mrb[0].mxu0 %v2770
    %v6002 = vpop.f32.mrb[0].mxu0
    %v6003 = vadd.f32 %v5458, %v6002
    %v6004 = vpop.f32.mrb[0].mxu0
    %v6005 = vpop.f32.mrb[0].mxu0
    %v6006 = vadd.f32 %v5461, %v6005
    %v6007 = vpop.f32.mrb[0].mxu0
    %6008 = vmatprep.mubr.bf16.mxu0 %v2780
    %6009 = vmatmul.mubr.bf16.gmra.mrb[0].mxu0 %v2779
    %v6010 = vpop.f32.mrb[0].mxu0
    %v6011 = vadd.f32 %v5466, %v6010
    %v6012 = vpop.f32.mrb[0].mxu0
    %v6013 = vpop.f32.mrb[0].mxu0
    %v6014 = vadd.f32 %v5469, %v6013
    %v6015 = vpop.f32.mrb[0].mxu0
    %6016 = vmatprep.mubr.bf16.mxu0 %v2789
    %6017 = vmatmul.mubr.bf16.gmra.mrb[0].mxu0 %v2788
    %v6018 = vpop.f32.mrb[0].mxu0
    %v6019 = vadd.f32 %v5474, %v6018
    %v6020 = vpop.f32.mrb[0].mxu0
    %v6021 = vpop.f32.mrb[0].mxu0
    %v6022 = vadd.f32 %v5477, %v6021
    %v6023 = vpop.f32.mrb[0].mxu0
    %6024 = vmatprep.mubr.bf16.mxu0 %v2798
    %6025 = vmatmul.mubr.bf16.gmra.mrb[0].mxu0 %v2797
    %v6026 = vpop.f32.mrb[0].mxu0
    %v6027 = vadd.f32 %v5482, %v6026
    %v6028 = vpop.f32.mrb[0].mxu0
    %v6029 = vpop.f32.mrb[0].mxu0
    %v6030 = vadd.f32 %v5485, %v6029
    %v6031 = vpop.f32.mrb[0].mxu0
    %6032 = vmatprep.mubr.bf16.mxu0 %v2807
    %6033 = vmatmul.mubr.bf16.gmra.mrb[0].mxu0 %v2806
    %v6034 = vpop.f32.mrb[0].mxu0
    %v6035 = vadd.f32 %v5490, %v6034
    %v6036 = vpop.f32.mrb[0].mxu0
    %v6037 = vpop.f32.mrb[0].mxu0
    %v6038 = vadd.f32 %v5493, %v6037
    %v6039 = vpop.f32.mrb[0].mxu0
    %6040 = vmatprep.mubr.bf16.mxu0 %v2816
    %6041 = vmatmul.mubr.bf16.gmra.mrb[0].mxu0 %v2815
    %v6042 = vpop.f32.mrb[0].mxu0
    %v6043 = vadd.f32 %v5498, %v6042
    %v6044 = vpop.f32.mrb[0].mxu0
    %v6045 = vpop.f32.mrb[0].mxu0
    %v6046 = vadd.f32 %v5501, %v6045
    %v6047 = vpop.f32.mrb[0].mxu0
    %6048 = vmatprep.mubr.bf16.mxu0 %v2825
    %6049 = vmatmul.mubr.bf16.gmra.mrb[0].mxu0 %v2824
    %v6050 = vpop.f32.mrb[0].mxu0
    %v6051 = vadd.f32 %v5506, %v6050
    %v6052 = vpop.f32.mrb[0].mxu0
    %v6053 = vpop.f32.mrb[0].mxu0
    %v6054 = vadd.f32 %v5509, %v6053
    %v6055 = vpop.f32.mrb[0].mxu0
    %6056 = vmatprep.mubr.bf16.mxu0 %v2834
    %6057 = vmatmul.mubr.bf16.gmra.mrb[0].mxu0 %v2833
    %v6058 = vpop.f32.mrb[0].mxu0
    %v6059 = vadd.f32 %v5514, %v6058
    %v6060 = vpop.f32.mrb[0].mxu0
    %v6061 = vpop.f32.mrb[0].mxu0
    %v6062 = vadd.f32 %v5517, %v6061
    %v6063 = vpop.f32.mrb[0].mxu0
    %6064 = vmatprep.mubr.bf16.mxu0 %v2843
    %6065 = vmatmul.mubr.bf16.gmra.mrb[0].mxu0 %v2842
    %v6066 = vpop.f32.mrb[0].mxu0
    %v6067 = vadd.f32 %v5522, %v6066
    %v6068 = vpop.f32.mrb[0].mxu0
    %v6069 = vpop.f32.mrb[0].mxu0
    %v6070 = vadd.f32 %v5525, %v6069
    %v6071 = vpop.f32.mrb[0].mxu0
    %6072 = vmatprep.mubr.bf16.mxu0 %v2852
    %6073 = vmatmul.mubr.bf16.gmra.mrb[0].mxu0 %v2851
    %v6074 = vpop.f32.mrb[0].mxu0
    %v6075 = vadd.f32 %v5530, %v6074
    %v6076 = vpop.f32.mrb[0].mxu0
    %v6077 = vpop.f32.mrb[0].mxu0
    %v6078 = vadd.f32 %v5533, %v6077
    %v6079 = vpop.f32.mrb[0].mxu0
    %6080 = vmatprep.mubr.bf16.mxu0 %v2861
    %6081 = vmatmul.mubr.bf16.gmra.mrb[0].mxu0 %v2860
    %v6082 = vpop.f32.mrb[0].mxu0
    %v6083 = vadd.f32 %v5538, %v6082
    %v6084 = vpop.f32.mrb[0].mxu0
    %v6085 = vpop.f32.mrb[0].mxu0
    %v6086 = vadd.f32 %v5541, %v6085
    %v6087 = vpop.f32.mrb[0].mxu0
    %6088 = vmatprep.mubr.bf16.mxu0 %v2870
    %6089 = vmatmul.mubr.bf16.gmra.mrb[0].mxu0 %v2869
    %v6090 = vpop.f32.mrb[0].mxu0
    %v6091 = vadd.f32 %v5546, %v6090
    %v6092 = vpop.f32.mrb[0].mxu0
    %v6093 = vpop.f32.mrb[0].mxu0
    %v6094 = vadd.f32 %v5549, %v6093
    %v6095 = vpop.f32.mrb[0].mxu0
    %6096 = vmatprep.mubr.bf16.mxu0 %v2879
    %6097 = vmatmul.mubr.bf16.gmra.mrb[0].mxu0 %v2878
    %v6098 = vpop.f32.mrb[0].mxu0
    %v6099 = vadd.f32 %v5554, %v6098
    %v6100 = vpop.f32.mrb[0].mxu0
    %v6101 = vpop.f32.mrb[0].mxu0
    %v6102 = vadd.f32 %v5557, %v6101
    %v6103 = vpop.f32.mrb[0].mxu0
    %6104 = vmatprep.mubr.bf16.mxu0 %v2888
    %6105 = vmatmul.mubr.bf16.gmra.mrb[0].mxu0 %v2887
    %v6106 = vpop.f32.mrb[0].mxu0
    %v6107 = vadd.f32 %v5562, %v6106
    %v6108 = vpop.f32.mrb[0].mxu0
    %v6109 = vpop.f32.mrb[0].mxu0
    %v6110 = vadd.f32 %v5565, %v6109
    %v6111 = vpop.f32.mrb[0].mxu0
    %6112 = vmatprep.mubr.bf16.mxu0 %v2897
    %6113 = vmatmul.mubr.bf16.gmra.mrb[0].mxu0 %v2896
    %v6114 = vpop.f32.mrb[0].mxu0
    %v6115 = vadd.f32 %v5570, %v6114
    %v6116 = vpop.f32.mrb[0].mxu0
    %v6117 = vpop.f32.mrb[0].mxu0
    %v6118 = vadd.f32 %v5573, %v6117
    %v6119 = vpop.f32.mrb[0].mxu0
    %6120 = vmatprep.mubr.bf16.mxu0 %v2906
    %6121 = vmatmul.mubr.bf16.gmra.mrb[0].mxu0 %v2905
    %v6122 = vpop.f32.mrb[0].mxu0
    %v6123 = vadd.f32 %v5578, %v6122
    %v6124 = vpop.f32.mrb[0].mxu0
    %v6125 = vpop.f32.mrb[0].mxu0
    %v6126 = vadd.f32 %v5581, %v6125
    %v6127 = vpop.f32.mrb[0].mxu0
    %6128 = vmatprep.mubr.bf16.mxu0 %v2915
    %6129 = vmatmul.mubr.bf16.gmra.mrb[0].mxu0 %v2914
    %v6130 = vpop.f32.mrb[0].mxu0
    %v6131 = vadd.f32 %v5586, %v6130
    %v6132 = vpop.f32.mrb[0].mxu0
    %v6133 = vpop.f32.mrb[0].mxu0
    %v6134 = vadd.f32 %v5589, %v6133
    %v6135 = vpop.f32.mrb[0].mxu0
    %6136 = vmatprep.mubr.bf16.mxu0 %v2924
    %6137 = vmatmul.mubr.bf16.gmra.mrb[0].mxu0 %v2923
    %v6138 = vpop.f32.mrb[0].mxu0
    %v6139 = vadd.f32 %v5594, %v6138
    %v6140 = vpop.f32.mrb[0].mxu0
    %v6141 = vpop.f32.mrb[0].mxu0
    %v6142 = vadd.f32 %v5597, %v6141
    %v6143 = vpop.f32.mrb[0].mxu0
    %6144 = vmatprep.mubr.bf16.mxu0 %v2933
    %6145 = vmatmul.mubr.bf16.gmra.mrb[0].mxu0 %v2932
    %v6146 = vpop.f32.mrb[0].mxu0
    %v6147 = vadd.f32 %v5602, %v6146
    %v6148 = vpop.f32.mrb[0].mxu0
    %v6149 = vpop.f32.mrb[0].mxu0
    %v6150 = vadd.f32 %v5605, %v6149
    %v6151 = vpop.f32.mrb[0].mxu0
    %6152 = vmatprep.mubr.bf16.mxu0 %v2942
    %6153 = vmatmul.mubr.bf16.gmra.mrb[0].mxu0 %v2941
    %v6154 = vpop.f32.mrb[0].mxu0
    %v6155 = vadd.f32 %v5610, %v6154
    %v6156 = vpop.f32.mrb[0].mxu0
    %v6157 = vpop.f32.mrb[0].mxu0
    %v6158 = vadd.f32 %v5613, %v6157
    %v6159 = vpop.f32.mrb[0].mxu0
    %6160 = vmatprep.mubr.bf16.mxu0 %v2951
    %6161 = vmatmul.mubr.bf16.gmra.mrb[0].mxu0 %v2950
    %v6162 = vpop.f32.mrb[0].mxu0
    %v6163 = vadd.f32 %v5618, %v6162
    %v6164 = vpop.f32.mrb[0].mxu0
    %v6165 = vpop.f32.mrb[0].mxu0
    %v6166 = vadd.f32 %v5621, %v6165
    %v6167 = vpop.f32.mrb[0].mxu0
    %6168 = vmatprep.mubr.bf16.mxu0 %v2960
    %6169 = vmatmul.mubr.bf16.gmra.mrb[0].mxu0 %v2959
    %v6170 = vpop.f32.mrb[0].mxu0
    %v6171 = vadd.f32 %v5626, %v6170
    %v6172 = vpop.f32.mrb[0].mxu0
    %v6173 = vpop.f32.mrb[0].mxu0
    %v6174 = vadd.f32 %v5629, %v6173
    %v6175 = vpop.f32.mrb[0].mxu0
    %6176 = vmatprep.mubr.bf16.mxu0 %v2969
    %6177 = vmatmul.mubr.bf16.gmra.mrb[0].mxu0 %v2968
    %v6178 = vpop.f32.mrb[0].mxu0
    %v6179 = vadd.f32 %v5634, %v6178
    %v6180 = vpop.f32.mrb[0].mxu0
    %v6181 = vpop.f32.mrb[0].mxu0
    %v6182 = vadd.f32 %v5637, %v6181
    %v6183 = vpop.f32.mrb[0].mxu0
    %6184 = vmatprep.mubr.bf16.mxu0 %v2978
    %6185 = vmatmul.mubr.bf16.gmra.mrb[0].mxu0 %v2977
    %v6186 = vpop.f32.mrb[0].mxu0
    %v6187 = vadd.f32 %v5642, %v6186
    %v6188 = vpop.f32.mrb[0].mxu0
    %v6189 = vpop.f32.mrb[0].mxu0
    %v6190 = vadd.f32 %v5645, %v6189
    %v6191 = vpop.f32.mrb[0].mxu0
    %6192 = vmatprep.mubr.bf16.mxu0 %v2987
    %6193 = vmatmul.mubr.bf16.gmra.mrb[0].mxu0 %v2986
    %v6194 = vpop.f32.mrb[0].mxu0
    %v6195 = vadd.f32 %v5650, %v6194
    %v6196 = vpop.f32.mrb[0].mxu0
    %v6197 = vpop.f32.mrb[0].mxu0
    %v6198 = vadd.f32 %v5653, %v6197
    %v6199 = vpop.f32.mrb[0].mxu0
    %6200 = vmatprep.mubr.bf16.mxu0 %v2996
    %6201 = vmatmul.mubr.bf16.gmra.mrb[0].mxu0 %v2995
    %v6202 = vpop.f32.mrb[0].mxu0
    %v6203 = vadd.f32 %v5658, %v6202
    %v6204 = vpop.f32.mrb[0].mxu0
    %v6205 = vpop.f32.mrb[0].mxu0
    %v6206 = vadd.f32 %v5661, %v6205
    %v6207 = vpop.f32.mrb[0].mxu0
    %6208 = vmatprep.mubr.bf16.mxu0 %v3005
    %6209 = vmatmul.mubr.bf16.gmra.mrb[0].mxu0 %v3004
    %v6210 = vpop.f32.mrb[0].mxu0
    %v6211 = vadd.f32 %v5666, %v6210
    %v6212 = vpop.f32.mrb[0].mxu0
    %v6213 = vpop.f32.mrb[0].mxu0
    %v6214 = vadd.f32 %v5669, %v6213
    %v6215 = vpop.f32.mrb[0].mxu0
    %6216 = vmatprep.mubr.bf16.mxu0 %v3014
    %6217 = vmatmul.mubr.bf16.gmra.mrb[0].mxu0 %v3013
    %v6218 = vpop.f32.mrb[0].mxu0
    %v6219 = vadd.f32 %v5674, %v6218
    %v6220 = vpop.f32.mrb[0].mxu0
    %v6221 = vpop.f32.mrb[0].mxu0
    %v6222 = vadd.f32 %v5677, %v6221
    %v6223 = vpop.f32.mrb[0].mxu0
    %6224 = vmatprep.mubr.bf16.mxu0 %v3023
    %6225 = vmatmul.mubr.bf16.gmra.mrb[0].mxu0 %v3022
    %v6226 = vpop.f32.mrb[0].mxu0
    %v6227 = vadd.f32 %v5682, %v6226
    %v6228 = vpop.f32.mrb[0].mxu0
    %v6229 = vpop.f32.mrb[0].mxu0
    %v6230 = vadd.f32 %v5685, %v6229
    %v6231 = vpop.f32.mrb[0].mxu0
    %6232 = vmatprep.mubr.bf16.mxu0 %v3032
    %6233 = vmatmul.mubr.bf16.gmra.mrb[0].mxu0 %v3031
    %v6234 = vpop.f32.mrb[0].mxu0
    %v6235 = vadd.f32 %v5690, %v6234
    %v6236 = vpop.f32.mrb[0].mxu0
    %v6237 = vpop.f32.mrb[0].mxu0
    %v6238 = vadd.f32 %v5693, %v6237
    %v6239 = vpop.f32.mrb[0].mxu0
    %6240 = vmatprep.mubr.bf16.mxu0 %v3041
    %6241 = vmatmul.mubr.bf16.gmra.mrb[0].mxu0 %v3040
    %v6242 = vpop.f32.mrb[0].mxu0
    %v6243 = vadd.f32 %v5698, %v6242
    %v6244 = vpop.f32.mrb[0].mxu0
    %v6245 = vpop.f32.mrb[0].mxu0
    %v6246 = vadd.f32 %v5701, %v6245
    %v6247 = vpop.f32.mrb[0].mxu0
    %6248 = vmatprep.mubr.bf16.mxu0 %v3050
    %6249 = vmatmul.mubr.bf16.gmra.mrb[0].mxu0 %v3049
    %v6250 = vpop.f32.mrb[0].mxu0
    %v6251 = vadd.f32 %v5706, %v6250
    %v6252 = vpop.f32.mrb[0].mxu0
    %v6253 = vpop.f32.mrb[0].mxu0
    %v6254 = vadd.f32 %v5709, %v6253
    %v6255 = vpop.f32.mrb[0].mxu0
    %6256 = vmatprep.mubr.bf16.mxu0 %v3059
    %6257 = vmatmul.mubr.bf16.gmra.mrb[0].mxu0 %v3058
    %v6258 = vpop.f32.mrb[0].mxu0
    %v6259 = vadd.f32 %v5714, %v6258
    %v6260 = vpop.f32.mrb[0].mxu0
    %v6261 = vpop.f32.mrb[0].mxu0
    %v6262 = vadd.f32 %v5717, %v6261
    %v6263 = vpop.f32.mrb[0].mxu0
    %6264 = vmatprep.mubr.bf16.mxu0 %v3068
    %6265 = vmatmul.mubr.bf16.gmra.mrb[0].mxu0 %v3067
    %v6266 = vpop.f32.mrb[0].mxu0
    %v6267 = vadd.f32 %v5722, %v6266
    %v6268 = vpop.f32.mrb[0].mxu0
    %v6269 = vpop.f32.mrb[0].mxu0
    %v6270 = vadd.f32 %v5725, %v6269
    %v6271 = vpop.f32.mrb[0].mxu0
    %6272 = vmatprep.mubr.bf16.mxu0 %v3077
    %6273 = vmatmul.mubr.bf16.gmra.mrb[0].mxu0 %v3076
    %v6274 = vpop.f32.mrb[0].mxu0
    %v6275 = vadd.f32 %v5730, %v6274
    %v6276 = vpop.f32.mrb[0].mxu0
    %v6277 = vpop.f32.mrb[0].mxu0
    %v6278 = vadd.f32 %v5733, %v6277
    %v6279 = vpop.f32.mrb[0].mxu0
    %6280 = vmatprep.mubr.bf16.mxu0 %v3086
    %6281 = vmatmul.mubr.bf16.gmra.mrb[0].mxu0 %v3085
    %v6282 = vpop.f32.mrb[0].mxu0
    %v6283 = vadd.f32 %v5738, %v6282
    %v6284 = vpop.f32.mrb[0].mxu0
    %v6285 = vpop.f32.mrb[0].mxu0
    %v6286 = vadd.f32 %v5741, %v6285
    %v6287 = vpop.f32.mrb[0].mxu0
    %6288 = vmatprep.mubr.bf16.mxu0 %v3095
    %6289 = vmatmul.mubr.bf16.gmra.mrb[0].mxu0 %v3094
    %v6290 = vpop.f32.mrb[0].mxu0
    %v6291 = vadd.f32 %v5746, %v6290
    %v6292 = vpop.f32.mrb[0].mxu0
    %v6293 = vpop.f32.mrb[0].mxu0
    %v6294 = vadd.f32 %v5749, %v6293
    %v6295 = vpop.f32.mrb[0].mxu0
    %6296 = vmatprep.mubr.bf16.mxu0 %v3104
    %6297 = vmatmul.mubr.bf16.gmra.mrb[0].mxu0 %v3103
    %v6298 = vpop.f32.mrb[0].mxu0
    %v6299 = vadd.f32 %v5754, %v6298
    %v6300 = vpop.f32.mrb[0].mxu0
    %v6301 = vpop.f32.mrb[0].mxu0
    %v6302 = vadd.f32 %v5757, %v6301
    %v6303 = vpop.f32.mrb[0].mxu0
    %6304 = vmatprep.mubr.bf16.mxu0 %v3113
    %6305 = vmatmul.mubr.bf16.gmra.mrb[0].mxu0 %v3112
    %v6306 = vpop.f32.mrb[0].mxu0
    %v6307 = vadd.f32 %v5762, %v6306
    %v6308 = vpop.f32.mrb[0].mxu0
    %v6309 = vpop.f32.mrb[0].mxu0
    %v6310 = vadd.f32 %v5765, %v6309
    %v6311 = vpop.f32.mrb[0].mxu0
    %6312 = vmatprep.mubr.bf16.mxu0 %v3122
    %6313 = vmatmul.mubr.bf16.gmra.mrb[0].mxu0 %v3121
    %v6314 = vpop.f32.mrb[0].mxu0
    %v6315 = vadd.f32 %v5770, %v6314
    %v6316 = vpop.f32.mrb[0].mxu0
    %v6317 = vpop.f32.mrb[0].mxu0
    %v6318 = vadd.f32 %v5773, %v6317
    %v6319 = vpop.f32.mrb[0].mxu0
    %6320 = vmatprep.mubr.bf16.mxu0 %v3131
    %6321 = vmatmul.mubr.bf16.gmra.mrb[0].mxu0 %v3130
    %v6322 = vpop.f32.mrb[0].mxu0
    %v6323 = vadd.f32 %v5778, %v6322
    %v6324 = vpop.f32.mrb[0].mxu0
    %v6325 = vpop.f32.mrb[0].mxu0
    %v6326 = vadd.f32 %v5781, %v6325
    %v6327 = vpop.f32.mrb[0].mxu0
    %6328 = vmatprep.mubr.bf16.mxu0 %v3140
    %6329 = vmatmul.mubr.bf16.gmra.mrb[0].mxu0 %v3139
    %v6330 = vpop.f32.mrb[0].mxu0
    %v6331 = vadd.f32 %v5786, %v6330
    %v6332 = vpop.f32.mrb[0].mxu0
    %v6333 = vpop.f32.mrb[0].mxu0
    %v6334 = vadd.f32 %v5789, %v6333
    %v6335 = vpop.f32.mrb[0].mxu0
    %6336 = vmatprep.mubr.bf16.mxu0 %v3149
    %6337 = vmatmul.mubr.bf16.gmra.mrb[0].mxu0 %v3148
    %v6338 = vpop.f32.mrb[0].mxu0
    %v6339 = vadd.f32 %v5794, %v6338
    %v6340 = vpop.f32.mrb[0].mxu0
    %v6341 = vpop.f32.mrb[0].mxu0
    %v6342 = vadd.f32 %v5797, %v6341
    %v6343 = vpop.f32.mrb[0].mxu0
    %6344 = vmatprep.mubr.bf16.mxu0 %v3158
    %6345 = vmatmul.mubr.bf16.gmra.mrb[0].mxu0 %v3157
    %v6346 = vpop.f32.mrb[0].mxu0
    %v6347 = vadd.f32 %v5802, %v6346
    %v6348 = vpop.f32.mrb[0].mxu0
    %v6349 = vpop.f32.mrb[0].mxu0
    %v6350 = vadd.f32 %v5805, %v6349
    %v6351 = vpop.f32.mrb[0].mxu0
    %6352 = vmatprep.mubr.bf16.mxu0 %v3167
    %6353 = vmatmul.mubr.bf16.gmra.mrb[0].mxu0 %v3166
    %v6354 = vpop.f32.mrb[0].mxu0
    %v6355 = vadd.f32 %v5810, %v6354
    %v6356 = vpop.f32.mrb[0].mxu0
    %v6357 = vpop.f32.mrb[0].mxu0
    %v6358 = vadd.f32 %v5813, %v6357
    %v6359 = vpop.f32.mrb[0].mxu0
    %6360 = vmatprep.mubr.bf16.mxu0 %v3176
    %6361 = vmatmul.mubr.bf16.gmra.mrb[0].mxu0 %v3175
    %v6362 = vpop.f32.mrb[0].mxu0
    %v6363 = vadd.f32 %v5818, %v6362
    %v6364 = vpop.f32.mrb[0].mxu0
    %v6365 = vpop.f32.mrb[0].mxu0
    %v6366 = vadd.f32 %v5821, %v6365
    %v6367 = vpop.f32.mrb[0].mxu0
    %6368 = vmatprep.mubr.bf16.mxu0 %v3185
    %6369 = vmatmul.mubr.bf16.gmra.mrb[0].mxu0 %v3184
    %v6370 = vpop.f32.mrb[0].mxu0
    %v6371 = vadd.f32 %v5826, %v6370
    %v6372 = vpop.f32.mrb[0].mxu0
    %v6373 = vpop.f32.mrb[0].mxu0
    %v6374 = vadd.f32 %v5829, %v6373
    %v6375 = vpop.f32.mrb[0].mxu0
    %6376 = vmatprep.mubr.bf16.mxu0 %v3194
    %6377 = vmatmul.mubr.bf16.gmra.mrb[0].mxu0 %v3193
    %v6378 = vpop.f32.mrb[0].mxu0
    %v6379 = vadd.f32 %v5834, %v6378
    %v6380 = vpop.f32.mrb[0].mxu0
    %v6381 = vpop.f32.mrb[0].mxu0
    %v6382 = vadd.f32 %v5837, %v6381
    %v6383 = vpop.f32.mrb[0].mxu0
    %6384 = vmatprep.mubr.bf16.mxu0 %v3203
    %6385 = vmatmul.mubr.bf16.gmra.mrb[0].mxu0 %v3202
    %v6386 = vpop.f32.mrb[0].mxu0
    %v6387 = vadd.f32 %v5842, %v6386
    %v6388 = vpop.f32.mrb[0].mxu0
    %v6389 = vpop.f32.mrb[0].mxu0
    %v6390 = vadd.f32 %v5845, %v6389
    %v6391 = vpop.f32.mrb[0].mxu0
    %6392 = vdwg.mxu0
    %6393 = vmatprep.subr.bf16.mxu0 0
    %6394 = vmatpush1.bf16.msra.mxu0 %v4133
    %6395 = vmatprep.subr.bf16.mxu0 0
    %6396 = vmatpush1.bf16.msra.mxu0 %v4134
    %6397 = vmatprep.subr.bf16.mxu0 0
    %6398 = vmatpush1.bf16.msra.mxu0 %v4135
    %6399 = vmatprep.subr.bf16.mxu0 0
    %6400 = vmatpush1.bf16.msra.mxu0 %v4136
    %6401 = vmatprep.subr.bf16.mxu0 0
    %6402 = vmatpush1.bf16.msra.mxu0 %v4137
    %6403 = vmatprep.subr.bf16.mxu0 0
    %6404 = vmatpush1.bf16.msra.mxu0 %v4138
    %6405 = vmatprep.subr.bf16.mxu0 0
    %6406 = vmatpush1.bf16.msra.mxu0 %v4139
    %6407 = vmatprep.subr.bf16.mxu0 0
    %6408 = vmatpush1.bf16.msra.mxu0 %v4140
    %6409 = vmatprep.subr.bf16.mxu0 0
    %6410 = vmatpush1.bf16.msra.mxu0 0
    %6411 = vmatprep.subr.bf16.mxu0 0
    %6412 = vmatpush1.bf16.msra.mxu0 0
    %6413 = vmatprep.subr.bf16.mxu0 0
    %6414 = vmatpush1.bf16.msra.mxu0 0
    %6415 = vmatprep.subr.bf16.mxu0 0
    %6416 = vmatpush1.bf16.msra.mxu0 0
    %6417 = vmatprep.subr.bf16.mxu0 0
    %6418 = vmatpush1.bf16.msra.mxu0 0
    %6419 = vmatprep.subr.bf16.mxu0 0
    %6420 = vmatpush1.bf16.msra.mxu0 0
    %6421 = vmatprep.subr.bf16.mxu0 0
    %6422 = vmatpush1.bf16.msra.mxu0 0
    %6423 = vmatprep.subr.bf16.mxu0 0
    %6424 = vmatpush1.bf16.msra.mxu0 0
    %6425 = vmatprep.mubr.bf16.mxu0 0
    %6426 = vmatmul.mubr.bf16.gmra.mrb[0].mxu0 %v2637
    %v6427 = vpop.f32.mrb[0].mxu0
    %v6428 = vadd.f32 %v5883, %v6427
    %v6429 = vpop.f32.mrb[0].mxu0
    %v6430 = vpop.f32.mrb[0].mxu0
    %v6431 = vadd.f32 %v5886, %v6430
    %v6432 = vpop.f32.mrb[0].mxu0
    %6433 = vmatprep.mubr.bf16.mxu0 0
    %6434 = vmatmul.mubr.bf16.gmra.mrb[0].mxu0 %v2646
    %v6435 = vpop.f32.mrb[0].mxu0
    %v6436 = vadd.f32 %v5891, %v6435
    %v6437 = vpop.f32.mrb[0].mxu0
    %v6438 = vpop.f32.mrb[0].mxu0
    %v6439 = vadd.f32 %v5894, %v6438
    %v6440 = vpop.f32.mrb[0].mxu0
    %6441 = vmatprep.mubr.bf16.mxu0 0
    %6442 = vmatmul.mubr.bf16.gmra.mrb[0].mxu0 %v2655
    %v6443 = vpop.f32.mrb[0].mxu0
    %v6444 = vadd.f32 %v5899, %v6443
    %v6445 = vpop.f32.mrb[0].mxu0
    %v6446 = vpop.f32.mrb[0].mxu0
    %v6447 = vadd.f32 %v5902, %v6446
    %v6448 = vpop.f32.mrb[0].mxu0
    %6449 = vmatprep.mubr.bf16.mxu0 0
    %6450 = vmatmul.mubr.bf16.gmra.mrb[0].mxu0 %v2664
    %v6451 = vpop.f32.mrb[0].mxu0
    %v6452 = vadd.f32 %v5907, %v6451
    %v6453 = vpop.f32.mrb[0].mxu0
    %v6454 = vpop.f32.mrb[0].mxu0
    %v6455 = vadd.f32 %v5910, %v6454
    %v6456 = vpop.f32.mrb[0].mxu0
    %6457 = vmatprep.mubr.bf16.mxu0 0
    %6458 = vmatmul.mubr.bf16.gmra.mrb[0].mxu0 %v2673
    %v6459 = vpop.f32.mrb[0].mxu0
    %v6460 = vadd.f32 %v5915, %v6459
    %v6461 = vpop.f32.mrb[0].mxu0
    %v6462 = vpop.f32.mrb[0].mxu0
    %v6463 = vadd.f32 %v5918, %v6462
    %v6464 = vpop.f32.mrb[0].mxu0
    %6465 = vmatprep.mubr.bf16.mxu0 0
    %6466 = vmatmul.mubr.bf16.gmra.mrb[0].mxu0 %v2682
    %v6467 = vpop.f32.mrb[0].mxu0
    %v6468 = vadd.f32 %v5923, %v6467
    %v6469 = vpop.f32.mrb[0].mxu0
    %v6470 = vpop.f32.mrb[0].mxu0
    %v6471 = vadd.f32 %v5926, %v6470
    %v6472 = vpop.f32.mrb[0].mxu0
    %6473 = vmatprep.mubr.bf16.mxu0 0
    %6474 = vmatmul.mubr.bf16.gmra.mrb[0].mxu0 %v2691
    %v6475 = vpop.f32.mrb[0].mxu0
    %v6476 = vadd.f32 %v5931, %v6475
    %v6477 = vpop.f32.mrb[0].mxu0
    %v6478 = vpop.f32.mrb[0].mxu0
    %v6479 = vadd.f32 %v5934, %v6478
    %v6480 = vpop.f32.mrb[0].mxu0
    %6481 = vmatprep.mubr.bf16.mxu0 0
    %6482 = vmatmul.mubr.bf16.gmra.mrb[0].mxu0 %v2700
    %v6483 = vpop.f32.mrb[0].mxu0
    %v6484 = vadd.f32 %v5939, %v6483
    %v6485 = vpop.f32.mrb[0].mxu0
    %v6486 = vpop.f32.mrb[0].mxu0
    %v6487 = vadd.f32 %v5942, %v6486
    %v6488 = vpop.f32.mrb[0].mxu0
    %6489 = vmatprep.mubr.bf16.mxu0 0
    %6490 = vmatmul.mubr.bf16.gmra.mrb[0].mxu0 %v2709
    %v6491 = vpop.f32.mrb[0].mxu0
    %v6492 = vadd.f32 %v5947, %v6491
    %v6493 = vpop.f32.mrb[0].mxu0
    %v6494 = vpop.f32.mrb[0].mxu0
    %v6495 = vadd.f32 %v5950, %v6494
    %v6496 = vpop.f32.mrb[0].mxu0
    %6497 = vmatprep.mubr.bf16.mxu0 0
    %6498 = vmatmul.mubr.bf16.gmra.mrb[0].mxu0 %v2718
    %v6499 = vpop.f32.mrb[0].mxu0
    %v6500 = vadd.f32 %v5955, %v6499
    %v6501 = vpop.f32.mrb[0].mxu0
    %v6502 = vpop.f32.mrb[0].mxu0
    %v6503 = vadd.f32 %v5958, %v6502
    %v6504 = vpop.f32.mrb[0].mxu0
    %6505 = vmatprep.mubr.bf16.mxu0 0
    %6506 = vmatmul.mubr.bf16.gmra.mrb[0].mxu0 %v2727
    %v6507 = vpop.f32.mrb[0].mxu0
    %v6508 = vadd.f32 %v5963, %v6507
    %v6509 = vpop.f32.mrb[0].mxu0
    %v6510 = vpop.f32.mrb[0].mxu0
    %v6511 = vadd.f32 %v5966, %v6510
    %v6512 = vpop.f32.mrb[0].mxu0
    %6513 = vmatprep.mubr.bf16.mxu0 0
    %6514 = vmatmul.mubr.bf16.gmra.mrb[0].mxu0 %v2736
    %v6515 = vpop.f32.mrb[0].mxu0
    %v6516 = vadd.f32 %v5971, %v6515
    %v6517 = vpop.f32.mrb[0].mxu0
    %v6518 = vpop.f32.mrb[0].mxu0
    %v6519 = vadd.f32 %v5974, %v6518
    %v6520 = vpop.f32.mrb[0].mxu0
    %6521 = vmatprep.mubr.bf16.mxu0 0
    %6522 = vmatmul.mubr.bf16.gmra.mrb[0].mxu0 %v2745
    %v6523 = vpop.f32.mrb[0].mxu0
    %v6524 = vadd.f32 %v5979, %v6523
    %v6525 = vpop.f32.mrb[0].mxu0
    %v6526 = vpop.f32.mrb[0].mxu0
    %v6527 = vadd.f32 %v5982, %v6526
    %v6528 = vpop.f32.mrb[0].mxu0
    %6529 = vmatprep.mubr.bf16.mxu0 0
    %6530 = vmatmul.mubr.bf16.gmra.mrb[0].mxu0 %v2754
    %v6531 = vpop.f32.mrb[0].mxu0
    %v6532 = vadd.f32 %v5987, %v6531
    %v6533 = vpop.f32.mrb[0].mxu0
    %v6534 = vpop.f32.mrb[0].mxu0
    %v6535 = vadd.f32 %v5990, %v6534
    %v6536 = vpop.f32.mrb[0].mxu0
    %6537 = vmatprep.mubr.bf16.mxu0 0
    %6538 = vmatmul.mubr.bf16.gmra.mrb[0].mxu0 %v2763
    %v6539 = vpop.f32.mrb[0].mxu0
    %v6540 = vadd.f32 %v5995, %v6539
    %v6541 = vpop.f32.mrb[0].mxu0
    %v6542 = vpop.f32.mrb[0].mxu0
    %v6543 = vadd.f32 %v5998, %v6542
    %v6544 = vpop.f32.mrb[0].mxu0
    %6545 = vmatprep.mubr.bf16.mxu0 0
    %6546 = vmatmul.mubr.bf16.gmra.mrb[0].mxu0 %v2772
    %v6547 = vpop.f32.mrb[0].mxu0
    %v6548 = vadd.f32 %v6003, %v6547
    %v6549 = vpop.f32.mrb[0].mxu0
    %v6550 = vpop.f32.mrb[0].mxu0
    %v6551 = vadd.f32 %v6006, %v6550
    %v6552 = vpop.f32.mrb[0].mxu0
    %6553 = vmatprep.mubr.bf16.mxu0 0
    %6554 = vmatmul.mubr.bf16.gmra.mrb[0].mxu0 %v2781
    %v6555 = vpop.f32.mrb[0].mxu0
    %v6556 = vadd.f32 %v6011, %v6555
    %v6557 = vpop.f32.mrb[0].mxu0
    %v6558 = vpop.f32.mrb[0].mxu0
    %v6559 = vadd.f32 %v6014, %v6558
    %v6560 = vpop.f32.mrb[0].mxu0
    %6561 = vmatprep.mubr.bf16.mxu0 0
    %6562 = vmatmul.mubr.bf16.gmra.mrb[0].mxu0 %v2790
    %v6563 = vpop.f32.mrb[0].mxu0
    %v6564 = vadd.f32 %v6019, %v6563
    %v6565 = vpop.f32.mrb[0].mxu0
    %v6566 = vpop.f32.mrb[0].mxu0
    %v6567 = vadd.f32 %v6022, %v6566
    %v6568 = vpop.f32.mrb[0].mxu0
    %6569 = vmatprep.mubr.bf16.mxu0 0
    %6570 = vmatmul.mubr.bf16.gmra.mrb[0].mxu0 %v2799
    %v6571 = vpop.f32.mrb[0].mxu0
    %v6572 = vadd.f32 %v6027, %v6571
    %v6573 = vpop.f32.mrb[0].mxu0
    %v6574 = vpop.f32.mrb[0].mxu0
    %v6575 = vadd.f32 %v6030, %v6574
    %v6576 = vpop.f32.mrb[0].mxu0
    %6577 = vmatprep.mubr.bf16.mxu0 0
    %6578 = vmatmul.mubr.bf16.gmra.mrb[0].mxu0 %v2808
    %v6579 = vpop.f32.mrb[0].mxu0
    %v6580 = vadd.f32 %v6035, %v6579
    %v6581 = vpop.f32.mrb[0].mxu0
    %v6582 = vpop.f32.mrb[0].mxu0
    %v6583 = vadd.f32 %v6038, %v6582
    %v6584 = vpop.f32.mrb[0].mxu0
    %6585 = vmatprep.mubr.bf16.mxu0 0
    %6586 = vmatmul.mubr.bf16.gmra.mrb[0].mxu0 %v2817
    %v6587 = vpop.f32.mrb[0].mxu0
    %v6588 = vadd.f32 %v6043, %v6587
    %v6589 = vpop.f32.mrb[0].mxu0
    %v6590 = vpop.f32.mrb[0].mxu0
    %v6591 = vadd.f32 %v6046, %v6590
    %v6592 = vpop.f32.mrb[0].mxu0
    %6593 = vmatprep.mubr.bf16.mxu0 0
    %6594 = vmatmul.mubr.bf16.gmra.mrb[0].mxu0 %v2826
    %v6595 = vpop.f32.mrb[0].mxu0
    %v6596 = vadd.f32 %v6051, %v6595
    %v6597 = vpop.f32.mrb[0].mxu0
    %v6598 = vpop.f32.mrb[0].mxu0
    %v6599 = vadd.f32 %v6054, %v6598
    %v6600 = vpop.f32.mrb[0].mxu0
    %6601 = vmatprep.mubr.bf16.mxu0 0
    %6602 = vmatmul.mubr.bf16.gmra.mrb[0].mxu0 %v2835
    %v6603 = vpop.f32.mrb[0].mxu0
    %v6604 = vadd.f32 %v6059, %v6603
    %v6605 = vpop.f32.mrb[0].mxu0
    %v6606 = vpop.f32.mrb[0].mxu0
    %v6607 = vadd.f32 %v6062, %v6606
    %v6608 = vpop.f32.mrb[0].mxu0
    %6609 = vmatprep.mubr.bf16.mxu0 0
    %6610 = vmatmul.mubr.bf16.gmra.mrb[0].mxu0 %v2844
    %v6611 = vpop.f32.mrb[0].mxu0
    %v6612 = vadd.f32 %v6067, %v6611
    %v6613 = vpop.f32.mrb[0].mxu0
    %v6614 = vpop.f32.mrb[0].mxu0
    %v6615 = vadd.f32 %v6070, %v6614
    %v6616 = vpop.f32.mrb[0].mxu0
    %6617 = vmatprep.mubr.bf16.mxu0 0
    %6618 = vmatmul.mubr.bf16.gmra.mrb[0].mxu0 %v2853
    %v6619 = vpop.f32.mrb[0].mxu0
    %v6620 = vadd.f32 %v6075, %v6619
    %v6621 = vpop.f32.mrb[0].mxu0
    %v6622 = vpop.f32.mrb[0].mxu0
    %v6623 = vadd.f32 %v6078, %v6622
    %v6624 = vpop.f32.mrb[0].mxu0
    %6625 = vmatprep.mubr.bf16.mxu0 0
    %6626 = vmatmul.mubr.bf16.gmra.mrb[0].mxu0 %v2862
    %v6627 = vpop.f32.mrb[0].mxu0
    %v6628 = vadd.f32 %v6083, %v6627
    %v6629 = vpop.f32.mrb[0].mxu0
    %v6630 = vpop.f32.mrb[0].mxu0
    %v6631 = vadd.f32 %v6086, %v6630
    %v6632 = vpop.f32.mrb[0].mxu0
    %6633 = vmatprep.mubr.bf16.mxu0 0
    %6634 = vmatmul.mubr.bf16.gmra.mrb[0].mxu0 %v2871
    %v6635 = vpop.f32.mrb[0].mxu0
    %v6636 = vadd.f32 %v6091, %v6635
    %v6637 = vpop.f32.mrb[0].mxu0
    %v6638 = vpop.f32.mrb[0].mxu0
    %v6639 = vadd.f32 %v6094, %v6638
    %v6640 = vpop.f32.mrb[0].mxu0
    %6641 = vmatprep.mubr.bf16.mxu0 0
    %6642 = vmatmul.mubr.bf16.gmra.mrb[0].mxu0 %v2880
    %v6643 = vpop.f32.mrb[0].mxu0
    %v6644 = vadd.f32 %v6099, %v6643
    %v6645 = vpop.f32.mrb[0].mxu0
    %v6646 = vpop.f32.mrb[0].mxu0
    %v6647 = vadd.f32 %v6102, %v6646
    %v6648 = vpop.f32.mrb[0].mxu0
    %6649 = vmatprep.mubr.bf16.mxu0 0
    %6650 = vmatmul.mubr.bf16.gmra.mrb[0].mxu0 %v2889
    %v6651 = vpop.f32.mrb[0].mxu0
    %v6652 = vadd.f32 %v6107, %v6651
    %v6653 = vpop.f32.mrb[0].mxu0
    %v6654 = vpop.f32.mrb[0].mxu0
    %v6655 = vadd.f32 %v6110, %v6654
    %v6656 = vpop.f32.mrb[0].mxu0
    %6657 = vmatprep.mubr.bf16.mxu0 0
    %6658 = vmatmul.mubr.bf16.gmra.mrb[0].mxu0 %v2898
    %v6659 = vpop.f32.mrb[0].mxu0
    %v6660 = vadd.f32 %v6115, %v6659
    %v6661 = vpop.f32.mrb[0].mxu0
    %v6662 = vpop.f32.mrb[0].mxu0
    %v6663 = vadd.f32 %v6118, %v6662
    %v6664 = vpop.f32.mrb[0].mxu0
    %6665 = vmatprep.mubr.bf16.mxu0 0
    %6666 = vmatmul.mubr.bf16.gmra.mrb[0].mxu0 %v2907
    %v6667 = vpop.f32.mrb[0].mxu0
    %v6668 = vadd.f32 %v6123, %v6667
    %v6669 = vpop.f32.mrb[0].mxu0
    %v6670 = vpop.f32.mrb[0].mxu0
    %v6671 = vadd.f32 %v6126, %v6670
    %v6672 = vpop.f32.mrb[0].mxu0
    %6673 = vmatprep.mubr.bf16.mxu0 0
    %6674 = vmatmul.mubr.bf16.gmra.mrb[0].mxu0 %v2916
    %v6675 = vpop.f32.mrb[0].mxu0
    %v6676 = vadd.f32 %v6131, %v6675
    %v6677 = vpop.f32.mrb[0].mxu0
    %v6678 = vpop.f32.mrb[0].mxu0
    %v6679 = vadd.f32 %v6134, %v6678
    %v6680 = vpop.f32.mrb[0].mxu0
    %6681 = vmatprep.mubr.bf16.mxu0 0
    %6682 = vmatmul.mubr.bf16.gmra.mrb[0].mxu0 %v2925
    %v6683 = vpop.f32.mrb[0].mxu0
    %v6684 = vadd.f32 %v6139, %v6683
    %v6685 = vpop.f32.mrb[0].mxu0
    %v6686 = vpop.f32.mrb[0].mxu0
    %v6687 = vadd.f32 %v6142, %v6686
    %v6688 = vpop.f32.mrb[0].mxu0
    %6689 = vmatprep.mubr.bf16.mxu0 0
    %6690 = vmatmul.mubr.bf16.gmra.mrb[0].mxu0 %v2934
    %v6691 = vpop.f32.mrb[0].mxu0
    %v6692 = vadd.f32 %v6147, %v6691
    %v6693 = vpop.f32.mrb[0].mxu0
    %v6694 = vpop.f32.mrb[0].mxu0
    %v6695 = vadd.f32 %v6150, %v6694
    %v6696 = vpop.f32.mrb[0].mxu0
    %6697 = vmatprep.mubr.bf16.mxu0 0
    %6698 = vmatmul.mubr.bf16.gmra.mrb[0].mxu0 %v2943
    %v6699 = vpop.f32.mrb[0].mxu0
    %v6700 = vadd.f32 %v6155, %v6699
    %v6701 = vpop.f32.mrb[0].mxu0
    %v6702 = vpop.f32.mrb[0].mxu0
    %v6703 = vadd.f32 %v6158, %v6702
    %v6704 = vpop.f32.mrb[0].mxu0
    %6705 = vmatprep.mubr.bf16.mxu0 0
    %6706 = vmatmul.mubr.bf16.gmra.mrb[0].mxu0 %v2952
    %v6707 = vpop.f32.mrb[0].mxu0
    %v6708 = vadd.f32 %v6163, %v6707
    %v6709 = vpop.f32.mrb[0].mxu0
    %v6710 = vpop.f32.mrb[0].mxu0
    %v6711 = vadd.f32 %v6166, %v6710
    %v6712 = vpop.f32.mrb[0].mxu0
    %6713 = vmatprep.mubr.bf16.mxu0 0
    %6714 = vmatmul.mubr.bf16.gmra.mrb[0].mxu0 %v2961
    %v6715 = vpop.f32.mrb[0].mxu0
    %v6716 = vadd.f32 %v6171, %v6715
    %v6717 = vpop.f32.mrb[0].mxu0
    %v6718 = vpop.f32.mrb[0].mxu0
    %v6719 = vadd.f32 %v6174, %v6718
    %v6720 = vpop.f32.mrb[0].mxu0
    %6721 = vmatprep.mubr.bf16.mxu0 0
    %6722 = vmatmul.mubr.bf16.gmra.mrb[0].mxu0 %v2970
    %v6723 = vpop.f32.mrb[0].mxu0
    %v6724 = vadd.f32 %v6179, %v6723
    %v6725 = vpop.f32.mrb[0].mxu0
    %v6726 = vpop.f32.mrb[0].mxu0
    %v6727 = vadd.f32 %v6182, %v6726
    %v6728 = vpop.f32.mrb[0].mxu0
    %6729 = vmatprep.mubr.bf16.mxu0 0
    %6730 = vmatmul.mubr.bf16.gmra.mrb[0].mxu0 %v2979
    %v6731 = vpop.f32.mrb[0].mxu0
    %v6732 = vadd.f32 %v6187, %v6731
    %v6733 = vpop.f32.mrb[0].mxu0
    %v6734 = vpop.f32.mrb[0].mxu0
    %v6735 = vadd.f32 %v6190, %v6734
    %v6736 = vpop.f32.mrb[0].mxu0
    %6737 = vmatprep.mubr.bf16.mxu0 0
    %6738 = vmatmul.mubr.bf16.gmra.mrb[0].mxu0 %v2988
    %v6739 = vpop.f32.mrb[0].mxu0
    %v6740 = vadd.f32 %v6195, %v6739
    %v6741 = vpop.f32.mrb[0].mxu0
    %v6742 = vpop.f32.mrb[0].mxu0
    %v6743 = vadd.f32 %v6198, %v6742
    %v6744 = vpop.f32.mrb[0].mxu0
    %6745 = vmatprep.mubr.bf16.mxu0 0
    %6746 = vmatmul.mubr.bf16.gmra.mrb[0].mxu0 %v2997
    %v6747 = vpop.f32.mrb[0].mxu0
    %v6748 = vadd.f32 %v6203, %v6747
    %v6749 = vpop.f32.mrb[0].mxu0
    %v6750 = vpop.f32.mrb[0].mxu0
    %v6751 = vadd.f32 %v6206, %v6750
    %v6752 = vpop.f32.mrb[0].mxu0
    %6753 = vmatprep.mubr.bf16.mxu0 0
    %6754 = vmatmul.mubr.bf16.gmra.mrb[0].mxu0 %v3006
    %v6755 = vpop.f32.mrb[0].mxu0
    %v6756 = vadd.f32 %v6211, %v6755
    %v6757 = vpop.f32.mrb[0].mxu0
    %v6758 = vpop.f32.mrb[0].mxu0
    %v6759 = vadd.f32 %v6214, %v6758
    %v6760 = vpop.f32.mrb[0].mxu0
    %6761 = vmatprep.mubr.bf16.mxu0 0
    %6762 = vmatmul.mubr.bf16.gmra.mrb[0].mxu0 %v3015
    %v6763 = vpop.f32.mrb[0].mxu0
    %v6764 = vadd.f32 %v6219, %v6763
    %v6765 = vpop.f32.mrb[0].mxu0
    %v6766 = vpop.f32.mrb[0].mxu0
    %v6767 = vadd.f32 %v6222, %v6766
    %v6768 = vpop.f32.mrb[0].mxu0
    %6769 = vmatprep.mubr.bf16.mxu0 0
    %6770 = vmatmul.mubr.bf16.gmra.mrb[0].mxu0 %v3024
    %v6771 = vpop.f32.mrb[0].mxu0
    %v6772 = vadd.f32 %v6227, %v6771
    %v6773 = vpop.f32.mrb[0].mxu0
    %v6774 = vpop.f32.mrb[0].mxu0
    %v6775 = vadd.f32 %v6230, %v6774
    %v6776 = vpop.f32.mrb[0].mxu0
    %6777 = vmatprep.mubr.bf16.mxu0 0
    %6778 = vmatmul.mubr.bf16.gmra.mrb[0].mxu0 %v3033
    %v6779 = vpop.f32.mrb[0].mxu0
    %v6780 = vadd.f32 %v6235, %v6779
    %v6781 = vpop.f32.mrb[0].mxu0
    %v6782 = vpop.f32.mrb[0].mxu0
    %v6783 = vadd.f32 %v6238, %v6782
    %v6784 = vpop.f32.mrb[0].mxu0
    %6785 = vmatprep.mubr.bf16.mxu0 0
    %6786 = vmatmul.mubr.bf16.gmra.mrb[0].mxu0 %v3042
    %v6787 = vpop.f32.mrb[0].mxu0
    %v6788 = vadd.f32 %v6243, %v6787
    %v6789 = vpop.f32.mrb[0].mxu0
    %v6790 = vpop.f32.mrb[0].mxu0
    %v6791 = vadd.f32 %v6246, %v6790
    %v6792 = vpop.f32.mrb[0].mxu0
    %6793 = vmatprep.mubr.bf16.mxu0 0
    %6794 = vmatmul.mubr.bf16.gmra.mrb[0].mxu0 %v3051
    %v6795 = vpop.f32.mrb[0].mxu0
    %v6796 = vadd.f32 %v6251, %v6795
    %v6797 = vpop.f32.mrb[0].mxu0
    %v6798 = vpop.f32.mrb[0].mxu0
    %v6799 = vadd.f32 %v6254, %v6798
    %v6800 = vpop.f32.mrb[0].mxu0
    %6801 = vmatprep.mubr.bf16.mxu0 0
    %6802 = vmatmul.mubr.bf16.gmra.mrb[0].mxu0 %v3060
    %v6803 = vpop.f32.mrb[0].mxu0
    %v6804 = vadd.f32 %v6259, %v6803
    %v6805 = vpop.f32.mrb[0].mxu0
    %v6806 = vpop.f32.mrb[0].mxu0
    %v6807 = vadd.f32 %v6262, %v6806
    %v6808 = vpop.f32.mrb[0].mxu0
    %6809 = vmatprep.mubr.bf16.mxu0 0
    %6810 = vmatmul.mubr.bf16.gmra.mrb[0].mxu0 %v3069
    %v6811 = vpop.f32.mrb[0].mxu0
    %v6812 = vadd.f32 %v6267, %v6811
    %v6813 = vpop.f32.mrb[0].mxu0
    %v6814 = vpop.f32.mrb[0].mxu0
    %v6815 = vadd.f32 %v6270, %v6814
    %v6816 = vpop.f32.mrb[0].mxu0
    %6817 = vmatprep.mubr.bf16.mxu0 0
    %6818 = vmatmul.mubr.bf16.gmra.mrb[0].mxu0 %v3078
    %v6819 = vpop.f32.mrb[0].mxu0
    %v6820 = vadd.f32 %v6275, %v6819
    %v6821 = vpop.f32.mrb[0].mxu0
    %v6822 = vpop.f32.mrb[0].mxu0
    %v6823 = vadd.f32 %v6278, %v6822
    %v6824 = vpop.f32.mrb[0].mxu0
    %6825 = vmatprep.mubr.bf16.mxu0 0
    %6826 = vmatmul.mubr.bf16.gmra.mrb[0].mxu0 %v3087
    %v6827 = vpop.f32.mrb[0].mxu0
    %v6828 = vadd.f32 %v6283, %v6827
    %v6829 = vpop.f32.mrb[0].mxu0
    %v6830 = vpop.f32.mrb[0].mxu0
    %v6831 = vadd.f32 %v6286, %v6830
    %v6832 = vpop.f32.mrb[0].mxu0
    %6833 = vmatprep.mubr.bf16.mxu0 0
    %6834 = vmatmul.mubr.bf16.gmra.mrb[0].mxu0 %v3096
    %v6835 = vpop.f32.mrb[0].mxu0
    %v6836 = vadd.f32 %v6291, %v6835
    %v6837 = vpop.f32.mrb[0].mxu0
    %v6838 = vpop.f32.mrb[0].mxu0
    %v6839 = vadd.f32 %v6294, %v6838
    %v6840 = vpop.f32.mrb[0].mxu0
    %6841 = vmatprep.mubr.bf16.mxu0 0
    %6842 = vmatmul.mubr.bf16.gmra.mrb[0].mxu0 %v3105
    %v6843 = vpop.f32.mrb[0].mxu0
    %v6844 = vadd.f32 %v6299, %v6843
    %v6845 = vpop.f32.mrb[0].mxu0
    %v6846 = vpop.f32.mrb[0].mxu0
    %v6847 = vadd.f32 %v6302, %v6846
    %v6848 = vpop.f32.mrb[0].mxu0
    %6849 = vmatprep.mubr.bf16.mxu0 0
    %6850 = vmatmul.mubr.bf16.gmra.mrb[0].mxu0 %v3114
    %v6851 = vpop.f32.mrb[0].mxu0
    %v6852 = vadd.f32 %v6307, %v6851
    %v6853 = vpop.f32.mrb[0].mxu0
    %v6854 = vpop.f32.mrb[0].mxu0
    %v6855 = vadd.f32 %v6310, %v6854
    %v6856 = vpop.f32.mrb[0].mxu0
    %6857 = vmatprep.mubr.bf16.mxu0 0
    %6858 = vmatmul.mubr.bf16.gmra.mrb[0].mxu0 %v3123
    %v6859 = vpop.f32.mrb[0].mxu0
    %v6860 = vadd.f32 %v6315, %v6859
    %v6861 = vpop.f32.mrb[0].mxu0
    %v6862 = vpop.f32.mrb[0].mxu0
    %v6863 = vadd.f32 %v6318, %v6862
    %v6864 = vpop.f32.mrb[0].mxu0
    %6865 = vmatprep.mubr.bf16.mxu0 0
    %6866 = vmatmul.mubr.bf16.gmra.mrb[0].mxu0 %v3132
    %v6867 = vpop.f32.mrb[0].mxu0
    %v6868 = vadd.f32 %v6323, %v6867
    %v6869 = vpop.f32.mrb[0].mxu0
    %v6870 = vpop.f32.mrb[0].mxu0
    %v6871 = vadd.f32 %v6326, %v6870
    %v6872 = vpop.f32.mrb[0].mxu0
    %6873 = vmatprep.mubr.bf16.mxu0 0
    %6874 = vmatmul.mubr.bf16.gmra.mrb[0].mxu0 %v3141
    %v6875 = vpop.f32.mrb[0].mxu0
    %v6876 = vadd.f32 %v6331, %v6875
    %v6877 = vpop.f32.mrb[0].mxu0
    %v6878 = vpop.f32.mrb[0].mxu0
    %v6879 = vadd.f32 %v6334, %v6878
    %v6880 = vpop.f32.mrb[0].mxu0
    %6881 = vmatprep.mubr.bf16.mxu0 0
    %6882 = vmatmul.mubr.bf16.gmra.mrb[0].mxu0 %v3150
    %v6883 = vpop.f32.mrb[0].mxu0
    %v6884 = vadd.f32 %v6339, %v6883
    %v6885 = vpop.f32.mrb[0].mxu0
    %v6886 = vpop.f32.mrb[0].mxu0
    %v6887 = vadd.f32 %v6342, %v6886
    %v6888 = vpop.f32.mrb[0].mxu0
    %6889 = vmatprep.mubr.bf16.mxu0 0
    %6890 = vmatmul.mubr.bf16.gmra.mrb[0].mxu0 %v3159
    %v6891 = vpop.f32.mrb[0].mxu0
    %v6892 = vadd.f32 %v6347, %v6891
    %v6893 = vpop.f32.mrb[0].mxu0
    %v6894 = vpop.f32.mrb[0].mxu0
    %v6895 = vadd.f32 %v6350, %v6894
    %v6896 = vpop.f32.mrb[0].mxu0
    %6897 = vmatprep.mubr.bf16.mxu0 0
    %6898 = vmatmul.mubr.bf16.gmra.mrb[0].mxu0 %v3168
    %v6899 = vpop.f32.mrb[0].mxu0
    %v6900 = vadd.f32 %v6355, %v6899
    %v6901 = vpop.f32.mrb[0].mxu0
    %v6902 = vpop.f32.mrb[0].mxu0
    %v6903 = vadd.f32 %v6358, %v6902
    %v6904 = vpop.f32.mrb[0].mxu0
    %6905 = vmatprep.mubr.bf16.mxu0 0
    %6906 = vmatmul.mubr.bf16.gmra.mrb[0].mxu0 %v3177
    %v6907 = vpop.f32.mrb[0].mxu0
    %v6908 = vadd.f32 %v6363, %v6907
    %v6909 = vpop.f32.mrb[0].mxu0
    %v6910 = vpop.f32.mrb[0].mxu0
    %v6911 = vadd.f32 %v6366, %v6910
    %v6912 = vpop.f32.mrb[0].mxu0
    %6913 = vmatprep.mubr.bf16.mxu0 0
    %6914 = vmatmul.mubr.bf16.gmra.mrb[0].mxu0 %v3186
    %v6915 = vpop.f32.mrb[0].mxu0
    %v6916 = vadd.f32 %v6371, %v6915
    %v6917 = vpop.f32.mrb[0].mxu0
    %v6918 = vpop.f32.mrb[0].mxu0
    %v6919 = vadd.f32 %v6374, %v6918
    %v6920 = vpop.f32.mrb[0].mxu0
    %6921 = vmatprep.mubr.bf16.mxu0 0
    %6922 = vmatmul.mubr.bf16.gmra.mrb[0].mxu0 %v3195
    %v6923 = vpop.f32.mrb[0].mxu0
    %v6924 = vadd.f32 %v6379, %v6923
    %v6925 = vpop.f32.mrb[0].mxu0
    %v6926 = vpop.f32.mrb[0].mxu0
    %v6927 = vadd.f32 %v6382, %v6926
    %v6928 = vpop.f32.mrb[0].mxu0
    %6929 = vmatprep.mubr.bf16.mxu0 0
    %6930 = vmatmul.mubr.bf16.gmra.mrb[0].mxu0 %v3204
    %v6931 = vpop.f32.mrb[0].mxu0
    %v6932 = vadd.f32 %v6387, %v6931
    %v6933 = vpop.f32.mrb[0].mxu0
    %v6934 = vpop.f32.mrb[0].mxu0
    %v6935 = vadd.f32 %v6390, %v6934
    %v6936 = vpop.f32.mrb[0].mxu0
    %6937 = vdwg.mxu0
    %v6938 = vadd.f32 %v6428, %v6431
    %v6939 = vadd.f32 %v6938, %v6436
    %v6940 = vadd.f32 %v6939, %v6439
    %v6941 = vadd.f32 %v6940, %v6444
    %v6942 = vadd.f32 %v6941, %v6447
    %v6943 = vadd.f32 %v6942, %v6452
    %v6944 = vadd.f32 %v6943, %v6455
    %v6945 = vadd.f32 %v6944, %v6460
    %v6946 = vadd.f32 %v6945, %v6463
    %v6947 = vadd.f32 %v6946, %v6468
    %v6948 = vadd.f32 %v6947, %v6471
    %v6949 = vadd.f32 %v6948, %v6476
    %v6950 = vadd.f32 %v6949, %v6479
    %v6951 = vadd.f32 %v6950, %v6484
    %v6952 = vadd.f32 %v6951, %v6487
    %v6953 = vadd.f32 %v6952, %v6492
    %v6954 = vadd.f32 %v6953, %v6495
    %v6955 = vadd.f32 %v6954, %v6500
    %v6956 = vadd.f32 %v6955, %v6503
    %v6957 = vadd.f32 %v6956, %v6508
    %v6958 = vadd.f32 %v6957, %v6511
    %v6959 = vadd.f32 %v6958, %v6516
    %v6960 = vadd.f32 %v6959, %v6519
    %v6961 = vadd.f32 %v6960, %v6524
    %v6962 = vadd.f32 %v6961, %v6527
    %v6963 = vadd.f32 %v6962, %v6532
    %v6964 = vadd.f32 %v6963, %v6535
    %v6965 = vadd.f32 %v6964, %v6540
    %v6966 = vadd.f32 %v6965, %v6543
    %v6967 = vadd.f32 %v6966, %v6548
    %v6968 = vadd.f32 %v6967, %v6551
    %6969 = vadd.xlane.f32.xlu0 %v6968
    %v6970 = vpop.xlane.xlu0 %6969
    %v6971 = vrot.slane %v6970, 4
    %v6972 = vadd.f32 %v6970, %v6971
    %v6973 = vrot.slane %v6972, 2
    %v6974 = vadd.f32 %v6972, %v6973
    %v6975 = vrot.slane %v6974, 1
    %v6976 = vadd.f32 %v6974, %v6975
    %s6977 = vtos %v6976
    %v6978 = vrcp.pop 32768.0
    %s6979 = vtos %v6978
    %s6980 = smul.f32 %s6977, %s6979
    %v6981 = vstv %s6980
    %v6982 = vsub.f32 %v6428, %v6981
    %v6983 = vsub.f32 %v6431, %v6981
    %v6984 = vsub.f32 %v6436, %v6981
    %v6985 = vsub.f32 %v6439, %v6981
    %v6986 = vsub.f32 %v6444, %v6981
    %v6987 = vsub.f32 %v6447, %v6981
    %v6988 = vsub.f32 %v6452, %v6981
    %v6989 = vsub.f32 %v6455, %v6981
    %v6990 = vsub.f32 %v6460, %v6981
    %v6991 = vsub.f32 %v6463, %v6981
    %v6992 = vsub.f32 %v6468, %v6981
    %v6993 = vsub.f32 %v6471, %v6981
    %v6994 = vsub.f32 %v6476, %v6981
    %v6995 = vsub.f32 %v6479, %v6981
    %v6996 = vsub.f32 %v6484, %v6981
    %v6997 = vsub.f32 %v6487, %v6981
    %v6998 = vsub.f32 %v6492, %v6981
    %v6999 = vsub.f32 %v6495, %v6981
    %v7000 = vsub.f32 %v6500, %v6981
    %v7001 = vsub.f32 %v6503, %v6981
    %v7002 = vsub.f32 %v6508, %v6981
    %v7003 = vsub.f32 %v6511, %v6981
    %v7004 = vsub.f32 %v6516, %v6981
    %v7005 = vsub.f32 %v6519, %v6981
    %v7006 = vsub.f32 %v6524, %v6981
    %v7007 = vsub.f32 %v6527, %v6981
    %v7008 = vsub.f32 %v6532, %v6981
    %v7009 = vsub.f32 %v6535, %v6981
    %v7010 = vsub.f32 %v6540, %v6981
    %v7011 = vsub.f32 %v6543, %v6981
    %v7012 = vsub.f32 %v6548, %v6981
    %v7013 = vsub.f32 %v6551, %v6981
    %v7014 = vmul.f32 %v6982, %v6982
    %v7015 = vmul.f32 %v6983, %v6983
    %v7016 = vmul.f32 %v6984, %v6984
    %v7017 = vmul.f32 %v6985, %v6985
    %v7018 = vmul.f32 %v6986, %v6986
    %v7019 = vmul.f32 %v6987, %v6987
    %v7020 = vmul.f32 %v6988, %v6988
    %v7021 = vmul.f32 %v6989, %v6989
    %v7022 = vmul.f32 %v6990, %v6990
    %v7023 = vmul.f32 %v6991, %v6991
    %v7024 = vmul.f32 %v6992, %v6992
    %v7025 = vmul.f32 %v6993, %v6993
    %v7026 = vmul.f32 %v6994, %v6994
    %v7027 = vmul.f32 %v6995, %v6995
    %v7028 = vmul.f32 %v6996, %v6996
    %v7029 = vmul.f32 %v6997, %v6997
    %v7030 = vmul.f32 %v6998, %v6998
    %v7031 = vmul.f32 %v6999, %v6999
    %v7032 = vmul.f32 %v7000, %v7000
    %v7033 = vmul.f32 %v7001, %v7001
    %v7034 = vmul.f32 %v7002, %v7002
    %v7035 = vmul.f32 %v7003, %v7003
    %v7036 = vmul.f32 %v7004, %v7004
    %v7037 = vmul.f32 %v7005, %v7005
    %v7038 = vmul.f32 %v7006, %v7006
    %v7039 = vmul.f32 %v7007, %v7007
    %v7040 = vmul.f32 %v7008, %v7008
    %v7041 = vmul.f32 %v7009, %v7009
    %v7042 = vmul.f32 %v7010, %v7010
    %v7043 = vmul.f32 %v7011, %v7011
    %v7044 = vmul.f32 %v7012, %v7012
    %v7045 = vmul.f32 %v7013, %v7013
    %v7046 = vadd.f32 %v7014, %v7015
    %v7047 = vadd.f32 %v7046, %v7016
    %v7048 = vadd.f32 %v7047, %v7017
    %v7049 = vadd.f32 %v7048, %v7018
    %v7050 = vadd.f32 %v7049, %v7019
    %v7051 = vadd.f32 %v7050, %v7020
    %v7052 = vadd.f32 %v7051, %v7021
    %v7053 = vadd.f32 %v7052, %v7022
    %v7054 = vadd.f32 %v7053, %v7023
    %v7055 = vadd.f32 %v7054, %v7024
    %v7056 = vadd.f32 %v7055, %v7025
    %v7057 = vadd.f32 %v7056, %v7026
    %v7058 = vadd.f32 %v7057, %v7027
    %v7059 = vadd.f32 %v7058, %v7028
    %v7060 = vadd.f32 %v7059, %v7029
    %v7061 = vadd.f32 %v7060, %v7030
    %v7062 = vadd.f32 %v7061, %v7031
    %v7063 = vadd.f32 %v7062, %v7032
    %v7064 = vadd.f32 %v7063, %v7033
    %v7065 = vadd.f32 %v7064, %v7034
    %v7066 = vadd.f32 %v7065, %v7035
    %v7067 = vadd.f32 %v7066, %v7036
    %v7068 = vadd.f32 %v7067, %v7037
    %v7069 = vadd.f32 %v7068, %v7038
    %v7070 = vadd.f32 %v7069, %v7039
    %v7071 = vadd.f32 %v7070, %v7040
    %v7072 = vadd.f32 %v7071, %v7041
    %v7073 = vadd.f32 %v7072, %v7042
    %v7074 = vadd.f32 %v7073, %v7043
    %v7075 = vadd.f32 %v7074, %v7044
    %v7076 = vadd.f32 %v7075, %v7045
    %7077 = vadd.xlane.f32.xlu0 %v7076
    %v7078 = vpop.xlane.xlu0 %7077
    %v7079 = vrot.slane %v7078, 4
    %v7080 = vadd.f32 %v7078, %v7079
    %v7081 = vrot.slane %v7080, 2
    %v7082 = vadd.f32 %v7080, %v7081
    %v7083 = vrot.slane %v7082, 1
    %v7084 = vadd.f32 %v7082, %v7083
    %s7085 = vtos %v7084
    %v7086 = vrcp.pop 32768.0
    %s7087 = vtos %v7086
    %s7088 = smul.f32 %s7085, %s7087
    %s7089 = sld [smem:[#allocation5]]
    %s7090 = sadd.f32 %s7088, 1e-05
    %v7091 = vstv %s7090
    %v7092 = vrsqrt.pop %v7091
    %s7093 = vtos %v7092
    %s7094 = smul.f32 %s7089, %s7093
    %s7095 = sld [smem:[#allocation8]]
    %s7096 = smul.f32 %s6980, %s7094
    %s7097 = ssub.f32 %s7095, %s7096
    %v7098 = vstv %s7094
    %v7099 = vmul.f32 %v6428, %v7098
    %v7100 = vmul.f32 %v6431, %v7098
    %v7101 = vmul.f32 %v6436, %v7098
    %v7102 = vmul.f32 %v6439, %v7098
    %v7103 = vmul.f32 %v6444, %v7098
    %v7104 = vmul.f32 %v6447, %v7098
    %v7105 = vmul.f32 %v6452, %v7098
    %v7106 = vmul.f32 %v6455, %v7098
    %v7107 = vmul.f32 %v6460, %v7098
    %v7108 = vmul.f32 %v6463, %v7098
    %v7109 = vmul.f32 %v6468, %v7098
    %v7110 = vmul.f32 %v6471, %v7098
    %v7111 = vmul.f32 %v6476, %v7098
    %v7112 = vmul.f32 %v6479, %v7098
    %v7113 = vmul.f32 %v6484, %v7098
    %v7114 = vmul.f32 %v6487, %v7098
    %v7115 = vmul.f32 %v6492, %v7098
    %v7116 = vmul.f32 %v6495, %v7098
    %v7117 = vmul.f32 %v6500, %v7098
    %v7118 = vmul.f32 %v6503, %v7098
    %v7119 = vmul.f32 %v6508, %v7098
    %v7120 = vmul.f32 %v6511, %v7098
    %v7121 = vmul.f32 %v6516, %v7098
    %v7122 = vmul.f32 %v6519, %v7098
    %v7123 = vmul.f32 %v6524, %v7098
    %v7124 = vmul.f32 %v6527, %v7098
    %v7125 = vmul.f32 %v6532, %v7098
    %v7126 = vmul.f32 %v6535, %v7098
    %v7127 = vmul.f32 %v6540, %v7098
    %v7128 = vmul.f32 %v6543, %v7098
    %v7129 = vmul.f32 %v6548, %v7098
    %v7130 = vmul.f32 %v6551, %v7098
    %v7131 = vstv %s7097
    %v7132 = vadd.f32 %v7099, %v7131
    %v7133 = vadd.f32 %v7100, %v7131
    %v7134 = vadd.f32 %v7101, %v7131
    %v7135 = vadd.f32 %v7102, %v7131
    %v7136 = vadd.f32 %v7103, %v7131
    %v7137 = vadd.f32 %v7104, %v7131
    %v7138 = vadd.f32 %v7105, %v7131
    %v7139 = vadd.f32 %v7106, %v7131
    %v7140 = vadd.f32 %v7107, %v7131
    %v7141 = vadd.f32 %v7108, %v7131
    %v7142 = vadd.f32 %v7109, %v7131
    %v7143 = vadd.f32 %v7110, %v7131
    %v7144 = vadd.f32 %v7111, %v7131
    %v7145 = vadd.f32 %v7112, %v7131
    %v7146 = vadd.f32 %v7113, %v7131
    %v7147 = vadd.f32 %v7114, %v7131
    %v7148 = vadd.f32 %v7115, %v7131
    %v7149 = vadd.f32 %v7116, %v7131
    %v7150 = vadd.f32 %v7117, %v7131
    %v7151 = vadd.f32 %v7118, %v7131
    %v7152 = vadd.f32 %v7119, %v7131
    %v7153 = vadd.f32 %v7120, %v7131
    %v7154 = vadd.f32 %v7121, %v7131
    %v7155 = vadd.f32 %v7122, %v7131
    %v7156 = vadd.f32 %v7123, %v7131
    %v7157 = vadd.f32 %v7124, %v7131
    %v7158 = vadd.f32 %v7125, %v7131
    %v7159 = vadd.f32 %v7126, %v7131
    %v7160 = vadd.f32 %v7127, %v7131
    %v7161 = vadd.f32 %v7128, %v7131
    %v7162 = vadd.f32 %v7129, %v7131
    %v7163 = vadd.f32 %v7130, %v7131
    %vm7164 = vcmp.gt.f32.partialorder %v7132, 0.0
    %vm7165 = vcmp.gt.f32.partialorder %v7133, 0.0
    %vm7166 = vcmp.gt.f32.partialorder %v7134, 0.0
    %vm7167 = vcmp.gt.f32.partialorder %v7135, 0.0
    %vm7168 = vcmp.gt.f32.partialorder %v7136, 0.0
    %vm7169 = vcmp.gt.f32.partialorder %v7137, 0.0
    %vm7170 = vcmp.gt.f32.partialorder %v7138, 0.0
    %vm7171 = vcmp.gt.f32.partialorder %v7139, 0.0
    %vm7172 = vcmp.gt.f32.partialorder %v7140, 0.0
    %vm7173 = vcmp.gt.f32.partialorder %v7141, 0.0
    %vm7174 = vcmp.gt.f32.partialorder %v7142, 0.0
    %vm7175 = vcmp.gt.f32.partialorder %v7143, 0.0
    %vm7176 = vcmp.gt.f32.partialorder %v7144, 0.0
    %vm7177 = vcmp.gt.f32.partialorder %v7145, 0.0
    %vm7178 = vcmp.gt.f32.partialorder %v7146, 0.0
    %vm7179 = vcmp.gt.f32.partialorder %v7147, 0.0
    %vm7180 = vcmp.gt.f32.partialorder %v7148, 0.0
    %vm7181 = vcmp.gt.f32.partialorder %v7149, 0.0
    %vm7182 = vcmp.gt.f32.partialorder %v7150, 0.0
    %vm7183 = vcmp.gt.f32.partialorder %v7151, 0.0
    %vm7184 = vcmp.gt.f32.partialorder %v7152, 0.0
    %vm7185 = vcmp.gt.f32.partialorder %v7153, 0.0
    %vm7186 = vcmp.gt.f32.partialorder %v7154, 0.0
    %vm7187 = vcmp.gt.f32.partialorder %v7155, 0.0
    %vm7188 = vcmp.gt.f32.partialorder %v7156, 0.0
    %vm7189 = vcmp.gt.f32.partialorder %v7157, 0.0
    %vm7190 = vcmp.gt.f32.partialorder %v7158, 0.0
    %vm7191 = vcmp.gt.f32.partialorder %v7159, 0.0
    %vm7192 = vcmp.gt.f32.partialorder %v7160, 0.0
    %vm7193 = vcmp.gt.f32.partialorder %v7161, 0.0
    %vm7194 = vcmp.gt.f32.partialorder %v7162, 0.0
    %vm7195 = vcmp.gt.f32.partialorder %v7163, 0.0
    %v7196 = vmul.f32 %v7132, 0.2
    %v7197 = vmul.f32 %v7133, 0.2
    %v7198 = vmul.f32 %v7134, 0.2
    %v7199 = vmul.f32 %v7135, 0.2
    %v7200 = vmul.f32 %v7136, 0.2
    %v7201 = vmul.f32 %v7137, 0.2
    %v7202 = vmul.f32 %v7138, 0.2
    %v7203 = vmul.f32 %v7139, 0.2
    %v7204 = vmul.f32 %v7140, 0.2
    %v7205 = vmul.f32 %v7141, 0.2
    %v7206 = vmul.f32 %v7142, 0.2
    %v7207 = vmul.f32 %v7143, 0.2
    %v7208 = vmul.f32 %v7144, 0.2
    %v7209 = vmul.f32 %v7145, 0.2
    %v7210 = vmul.f32 %v7146, 0.2
    %v7211 = vmul.f32 %v7147, 0.2
    %v7212 = vmul.f32 %v7148, 0.2
    %v7213 = vmul.f32 %v7149, 0.2
    %v7214 = vmul.f32 %v7150, 0.2
    %v7215 = vmul.f32 %v7151, 0.2
    %v7216 = vmul.f32 %v7152, 0.2
    %v7217 = vmul.f32 %v7153, 0.2
    %v7218 = vmul.f32 %v7154, 0.2
    %v7219 = vmul.f32 %v7155, 0.2
    %v7220 = vmul.f32 %v7156, 0.2
    %v7221 = vmul.f32 %v7157, 0.2
    %v7222 = vmul.f32 %v7158, 0.2
    %v7223 = vmul.f32 %v7159, 0.2
    %v7224 = vmul.f32 %v7160, 0.2
    %v7225 = vmul.f32 %v7161, 0.2
    %v7226 = vmul.f32 %v7162, 0.2
    %v7227 = vmul.f32 %v7163, 0.2
    %v7228 = vsel %vm7164, %v7132, %v7196
    %v7229 = vsel %vm7165, %v7133, %v7197
    %v7230 = vsel %vm7166, %v7134, %v7198
    %v7231 = vsel %vm7167, %v7135, %v7199
    %v7232 = vsel %vm7168, %v7136, %v7200
    %v7233 = vsel %vm7169, %v7137, %v7201
    %v7234 = vsel %vm7170, %v7138, %v7202
    %v7235 = vsel %vm7171, %v7139, %v7203
    %v7236 = vsel %vm7172, %v7140, %v7204
    %v7237 = vsel %vm7173, %v7141, %v7205
    %v7238 = vsel %vm7174, %v7142, %v7206
    %v7239 = vsel %vm7175, %v7143, %v7207
    %v7240 = vsel %vm7176, %v7144, %v7208
    %v7241 = vsel %vm7177, %v7145, %v7209
    %v7242 = vsel %vm7178, %v7146, %v7210
    %v7243 = vsel %vm7179, %v7147, %v7211
    %v7244 = vsel %vm7180, %v7148, %v7212
    %v7245 = vsel %vm7181, %v7149, %v7213
    %v7246 = vsel %vm7182, %v7150, %v7214
    %v7247 = vsel %vm7183, %v7151, %v7215
    %v7248 = vsel %vm7184, %v7152, %v7216
    %v7249 = vsel %vm7185, %v7153, %v7217
    %v7250 = vsel %vm7186, %v7154, %v7218
    %v7251 = vsel %vm7187, %v7155, %v7219
    %v7252 = vsel %vm7188, %v7156, %v7220
    %v7253 = vsel %vm7189, %v7157, %v7221
    %v7254 = vsel %vm7190, %v7158, %v7222
    %v7255 = vsel %vm7191, %v7159, %v7223
    %v7256 = vsel %vm7192, %v7160, %v7224
    %v7257 = vsel %vm7193, %v7161, %v7225
    %v7258 = vsel %vm7194, %v7162, %v7226
    %v7259 = vsel %vm7195, %v7163, %v7227
    %v7260 = vpack.c.bf16 %v7229, %v7228
    %v7261 = vpack.c.bf16 %v7231, %v7230
    %v7262 = vpack.c.bf16 %v7233, %v7232
    %v7263 = vpack.c.bf16 %v7235, %v7234
    %v7264 = vpack.c.bf16 %v7237, %v7236
    %v7265 = vpack.c.bf16 %v7239, %v7238
    %v7266 = vpack.c.bf16 %v7241, %v7240
    %v7267 = vpack.c.bf16 %v7243, %v7242
    %v7268 = vpack.c.bf16 %v7245, %v7244
    %v7269 = vpack.c.bf16 %v7247, %v7246
    %v7270 = vpack.c.bf16 %v7249, %v7248
    %v7271 = vpack.c.bf16 %v7251, %v7250
    %v7272 = vpack.c.bf16 %v7253, %v7252
    %v7273 = vpack.c.bf16 %v7255, %v7254
    %v7274 = vpack.c.bf16 %v7257, %v7256
    %v7275 = vpack.c.bf16 %v7259, %v7258
    %7276 = vst [vmem:[#allocation2] sm:$0xff] %v7260
    %7277 = vst [vmem:[#allocation2 + $0x8] sm:$0xff] %v7261
    %7278 = vst [vmem:[#allocation2 + $0x10] sm:$0xff] %v7262
    %7279 = vst [vmem:[#allocation2 + $0x18] sm:$0xff] %v7263
    %7280 = vst [vmem:[#allocation2 + $0x20] sm:$0xff] %v7264
    %7281 = vst [vmem:[#allocation2 + $0x28] sm:$0xff] %v7265
    %7282 = vst [vmem:[#allocation2 + $0x30] sm:$0xff] %v7266
    %7283 = vst [vmem:[#allocation2 + $0x38] sm:$0xff] %v7267
    %7284 = vst [vmem:[#allocation2 + $0x40] sm:$0xff] %v7268
    %7285 = vst [vmem:[#allocation2 + $0x48] sm:$0xff] %v7269
    %7286 = vst [vmem:[#allocation2 + $0x50] sm:$0xff] %v7270
    %7287 = vst [vmem:[#allocation2 + $0x58] sm:$0xff] %v7271
    %7288 = vst [vmem:[#allocation2 + $0x60] sm:$0xff] %v7272
    %7289 = vst [vmem:[#allocation2 + $0x68] sm:$0xff] %v7273
    %7290 = vst [vmem:[#allocation2 + $0x70] sm:$0xff] %v7274
    %7291 = vst [vmem:[#allocation2 + $0x78] sm:$0xff] %v7275
    %v7292 = vadd.f32 %v6556, %v6559
    %v7293 = vadd.f32 %v7292, %v6564
    %v7294 = vadd.f32 %v7293, %v6567
    %v7295 = vadd.f32 %v7294, %v6572
    %v7296 = vadd.f32 %v7295, %v6575
    %v7297 = vadd.f32 %v7296, %v6580
    %v7298 = vadd.f32 %v7297, %v6583
    %v7299 = vadd.f32 %v7298, %v6588
    %v7300 = vadd.f32 %v7299, %v6591
    %v7301 = vadd.f32 %v7300, %v6596
    %v7302 = vadd.f32 %v7301, %v6599
    %v7303 = vadd.f32 %v7302, %v6604
    %v7304 = vadd.f32 %v7303, %v6607
    %v7305 = vadd.f32 %v7304, %v6612
    %v7306 = vadd.f32 %v7305, %v6615
    %v7307 = vadd.f32 %v7306, %v6620
    %v7308 = vadd.f32 %v7307, %v6623
    %v7309 = vadd.f32 %v7308, %v6628
    %v7310 = vadd.f32 %v7309, %v6631
    %v7311 = vadd.f32 %v7310, %v6636
    %v7312 = vadd.f32 %v7311, %v6639
    %v7313 = vadd.f32 %v7312, %v6644
    %v7314 = vadd.f32 %v7313, %v6647
    %v7315 = vadd.f32 %v7314, %v6652
    %v7316 = vadd.f32 %v7315, %v6655
    %v7317 = vadd.f32 %v7316, %v6660
    %v7318 = vadd.f32 %v7317, %v6663
    %v7319 = vadd.f32 %v7318, %v6668
    %v7320 = vadd.f32 %v7319, %v6671
    %v7321 = vadd.f32 %v7320, %v6676
    %v7322 = vadd.f32 %v7321, %v6679
    %7323 = vadd.xlane.f32.xlu0 %v7322
    %v7324 = vpop.xlane.xlu0 %7323
    %v7325 = vrot.slane %v7324, 4
    %v7326 = vadd.f32 %v7324, %v7325
    %v7327 = vrot.slane %v7326, 2
    %v7328 = vadd.f32 %v7326, %v7327
    %v7329 = vrot.slane %v7328, 1
    %v7330 = vadd.f32 %v7328, %v7329
    %s7331 = vtos %v7330
    %v7332 = vrcp.pop 32768.0
    %s7333 = vtos %v7332
    %s7334 = smul.f32 %s7331, %s7333
    %v7335 = vstv %s7334
    %v7336 = vsub.f32 %v6556, %v7335
    %v7337 = vsub.f32 %v6559, %v7335
    %v7338 = vsub.f32 %v6564, %v7335
    %v7339 = vsub.f32 %v6567, %v7335
    %v7340 = vsub.f32 %v6572, %v7335
    %v7341 = vsub.f32 %v6575, %v7335
    %v7342 = vsub.f32 %v6580, %v7335
    %v7343 = vsub.f32 %v6583, %v7335
    %v7344 = vsub.f32 %v6588, %v7335
    %v7345 = vsub.f32 %v6591, %v7335
    %v7346 = vsub.f32 %v6596, %v7335
    %v7347 = vsub.f32 %v6599, %v7335
    %v7348 = vsub.f32 %v6604, %v7335
    %v7349 = vsub.f32 %v6607, %v7335
    %v7350 = vsub.f32 %v6612, %v7335
    %v7351 = vsub.f32 %v6615, %v7335
    %v7352 = vsub.f32 %v6620, %v7335
    %v7353 = vsub.f32 %v6623, %v7335
    %v7354 = vsub.f32 %v6628, %v7335
    %v7355 = vsub.f32 %v6631, %v7335
    %v7356 = vsub.f32 %v6636, %v7335
    %v7357 = vsub.f32 %v6639, %v7335
    %v7358 = vsub.f32 %v6644, %v7335
    %v7359 = vsub.f32 %v6647, %v7335
    %v7360 = vsub.f32 %v6652, %v7335
    %v7361 = vsub.f32 %v6655, %v7335
    %v7362 = vsub.f32 %v6660, %v7335
    %v7363 = vsub.f32 %v6663, %v7335
    %v7364 = vsub.f32 %v6668, %v7335
    %v7365 = vsub.f32 %v6671, %v7335
    %v7366 = vsub.f32 %v6676, %v7335
    %v7367 = vsub.f32 %v6679, %v7335
    %v7368 = vmul.f32 %v7336, %v7336
    %v7369 = vmul.f32 %v7337, %v7337
    %v7370 = vmul.f32 %v7338, %v7338
    %v7371 = vmul.f32 %v7339, %v7339
    %v7372 = vmul.f32 %v7340, %v7340
    %v7373 = vmul.f32 %v7341, %v7341
    %v7374 = vmul.f32 %v7342, %v7342
    %v7375 = vmul.f32 %v7343, %v7343
    %v7376 = vmul.f32 %v7344, %v7344
    %v7377 = vmul.f32 %v7345, %v7345
    %v7378 = vmul.f32 %v7346, %v7346
    %v7379 = vmul.f32 %v7347, %v7347
    %v7380 = vmul.f32 %v7348, %v7348
    %v7381 = vmul.f32 %v7349, %v7349
    %v7382 = vmul.f32 %v7350, %v7350
    %v7383 = vmul.f32 %v7351, %v7351
    %v7384 = vmul.f32 %v7352, %v7352
    %v7385 = vmul.f32 %v7353, %v7353
    %v7386 = vmul.f32 %v7354, %v7354
    %v7387 = vmul.f32 %v7355, %v7355
    %v7388 = vmul.f32 %v7356, %v7356
    %v7389 = vmul.f32 %v7357, %v7357
    %v7390 = vmul.f32 %v7358, %v7358
    %v7391 = vmul.f32 %v7359, %v7359
    %v7392 = vmul.f32 %v7360, %v7360
    %v7393 = vmul.f32 %v7361, %v7361
    %v7394 = vmul.f32 %v7362, %v7362
    %v7395 = vmul.f32 %v7363, %v7363
    %v7396 = vmul.f32 %v7364, %v7364
    %v7397 = vmul.f32 %v7365, %v7365
    %v7398 = vmul.f32 %v7366, %v7366
    %v7399 = vmul.f32 %v7367, %v7367
    %v7400 = vadd.f32 %v7368, %v7369
    %v7401 = vadd.f32 %v7400, %v7370
    %v7402 = vadd.f32 %v7401, %v7371
    %v7403 = vadd.f32 %v7402, %v7372
    %v7404 = vadd.f32 %v7403, %v7373
    %v7405 = vadd.f32 %v7404, %v7374
    %v7406 = vadd.f32 %v7405, %v7375
    %v7407 = vadd.f32 %v7406, %v7376
    %v7408 = vadd.f32 %v7407, %v7377
    %v7409 = vadd.f32 %v7408, %v7378
    %v7410 = vadd.f32 %v7409, %v7379
    %v7411 = vadd.f32 %v7410, %v7380
    %v7412 = vadd.f32 %v7411, %v7381
    %v7413 = vadd.f32 %v7412, %v7382
    %v7414 = vadd.f32 %v7413, %v7383
    %v7415 = vadd.f32 %v7414, %v7384
    %v7416 = vadd.f32 %v7415, %v7385
    %v7417 = vadd.f32 %v7416, %v7386
    %v7418 = vadd.f32 %v7417, %v7387
    %v7419 = vadd.f32 %v7418, %v7388
    %v7420 = vadd.f32 %v7419, %v7389
    %v7421 = vadd.f32 %v7420, %v7390
    %v7422 = vadd.f32 %v7421, %v7391
    %v7423 = vadd.f32 %v7422, %v7392
    %v7424 = vadd.f32 %v7423, %v7393
    %v7425 = vadd.f32 %v7424, %v7394
    %v7426 = vadd.f32 %v7425, %v7395
    %v7427 = vadd.f32 %v7426, %v7396
    %v7428 = vadd.f32 %v7427, %v7397
    %v7429 = vadd.f32 %v7428, %v7398
    %v7430 = vadd.f32 %v7429, %v7399
    %7431 = vadd.xlane.f32.xlu0 %v7430
    %v7432 = vpop.xlane.xlu0 %7431
    %v7433 = vrot.slane %v7432, 4
    %v7434 = vadd.f32 %v7432, %v7433
    %v7435 = vrot.slane %v7434, 2
    %v7436 = vadd.f32 %v7434, %v7435
    %v7437 = vrot.slane %v7436, 1
    %v7438 = vadd.f32 %v7436, %v7437
    %s7439 = vtos %v7438
    %v7440 = vrcp.pop 32768.0
    %s7441 = vtos %v7440
    %s7442 = smul.f32 %s7439, %s7441
    %s7443 = sld [smem:[#allocation5 + $0x1]]
    %s7444 = sadd.f32 %s7442, 1e-05
    %v7445 = vstv %s7444
    %v7446 = vrsqrt.pop %v7445
    %s7447 = vtos %v7446
    %s7448 = smul.f32 %s7443, %s7447
    %s7449 = sld [smem:[#allocation8 + $0x1]]
    %s7450 = smul.f32 %s7334, %s7448
    %s7451 = ssub.f32 %s7449, %s7450
    %v7452 = vstv %s7448
    %v7453 = vmul.f32 %v6556, %v7452
    %v7454 = vmul.f32 %v6559, %v7452
    %v7455 = vmul.f32 %v6564, %v7452
    %v7456 = vmul.f32 %v6567, %v7452
    %v7457 = vmul.f32 %v6572, %v7452
    %v7458 = vmul.f32 %v6575, %v7452
    %v7459 = vmul.f32 %v6580, %v7452
    %v7460 = vmul.f32 %v6583, %v7452
    %v7461 = vmul.f32 %v6588, %v7452
    %v7462 = vmul.f32 %v6591, %v7452
    %v7463 = vmul.f32 %v6596, %v7452
    %v7464 = vmul.f32 %v6599, %v7452
    %v7465 = vmul.f32 %v6604, %v7452
    %v7466 = vmul.f32 %v6607, %v7452
    %v7467 = vmul.f32 %v6612, %v7452
    %v7468 = vmul.f32 %v6615, %v7452
    %v7469 = vmul.f32 %v6620, %v7452
    %v7470 = vmul.f32 %v6623, %v7452
    %v7471 = vmul.f32 %v6628, %v7452
    %v7472 = vmul.f32 %v6631, %v7452
    %v7473 = vmul.f32 %v6636, %v7452
    %v7474 = vmul.f32 %v6639, %v7452
    %v7475 = vmul.f32 %v6644, %v7452
    %v7476 = vmul.f32 %v6647, %v7452
    %v7477 = vmul.f32 %v6652, %v7452
    %v7478 = vmul.f32 %v6655, %v7452
    %v7479 = vmul.f32 %v6660, %v7452
    %v7480 = vmul.f32 %v6663, %v7452
    %v7481 = vmul.f32 %v6668, %v7452
    %v7482 = vmul.f32 %v6671, %v7452
    %v7483 = vmul.f32 %v6676, %v7452
    %v7484 = vmul.f32 %v6679, %v7452
    %v7485 = vstv %s7451
    %v7486 = vadd.f32 %v7453, %v7485
    %v7487 = vadd.f32 %v7454, %v7485
    %v7488 = vadd.f32 %v7455, %v7485
    %v7489 = vadd.f32 %v7456, %v7485
    %v7490 = vadd.f32 %v7457, %v7485
    %v7491 = vadd.f32 %v7458, %v7485
    %v7492 = vadd.f32 %v7459, %v7485
    %v7493 = vadd.f32 %v7460, %v7485
    %v7494 = vadd.f32 %v7461, %v7485
    %v7495 = vadd.f32 %v7462, %v7485
    %v7496 = vadd.f32 %v7463, %v7485
    %v7497 = vadd.f32 %v7464, %v7485
    %v7498 = vadd.f32 %v7465, %v7485
    %v7499 = vadd.f32 %v7466, %v7485
    %v7500 = vadd.f32 %v7467, %v7485
    %v7501 = vadd.f32 %v7468, %v7485
    %v7502 = vadd.f32 %v7469, %v7485
    %v7503 = vadd.f32 %v7470, %v7485
    %v7504 = vadd.f32 %v7471, %v7485
    %v7505 = vadd.f32 %v7472, %v7485
    %v7506 = vadd.f32 %v7473, %v7485
    %v7507 = vadd.f32 %v7474, %v7485
    %v7508 = vadd.f32 %v7475, %v7485
    %v7509 = vadd.f32 %v7476, %v7485
    %v7510 = vadd.f32 %v7477, %v7485
    %v7511 = vadd.f32 %v7478, %v7485
    %v7512 = vadd.f32 %v7479, %v7485
    %v7513 = vadd.f32 %v7480, %v7485
    %v7514 = vadd.f32 %v7481, %v7485
    %v7515 = vadd.f32 %v7482, %v7485
    %v7516 = vadd.f32 %v7483, %v7485
    %v7517 = vadd.f32 %v7484, %v7485
    %vm7518 = vcmp.gt.f32.partialorder %v7486, 0.0
    %vm7519 = vcmp.gt.f32.partialorder %v7487, 0.0
    %vm7520 = vcmp.gt.f32.partialorder %v7488, 0.0
    %vm7521 = vcmp.gt.f32.partialorder %v7489, 0.0
    %vm7522 = vcmp.gt.f32.partialorder %v7490, 0.0
    %vm7523 = vcmp.gt.f32.partialorder %v7491, 0.0
    %vm7524 = vcmp.gt.f32.partialorder %v7492, 0.0
    %vm7525 = vcmp.gt.f32.partialorder %v7493, 0.0
    %vm7526 = vcmp.gt.f32.partialorder %v7494, 0.0
    %vm7527 = vcmp.gt.f32.partialorder %v7495, 0.0
    %vm7528 = vcmp.gt.f32.partialorder %v7496, 0.0
    %vm7529 = vcmp.gt.f32.partialorder %v7497, 0.0
    %vm7530 = vcmp.gt.f32.partialorder %v7498, 0.0
    %vm7531 = vcmp.gt.f32.partialorder %v7499, 0.0
    %vm7532 = vcmp.gt.f32.partialorder %v7500, 0.0
    %vm7533 = vcmp.gt.f32.partialorder %v7501, 0.0
    %vm7534 = vcmp.gt.f32.partialorder %v7502, 0.0
    %vm7535 = vcmp.gt.f32.partialorder %v7503, 0.0
    %vm7536 = vcmp.gt.f32.partialorder %v7504, 0.0
    %vm7537 = vcmp.gt.f32.partialorder %v7505, 0.0
    %vm7538 = vcmp.gt.f32.partialorder %v7506, 0.0
    %vm7539 = vcmp.gt.f32.partialorder %v7507, 0.0
    %vm7540 = vcmp.gt.f32.partialorder %v7508, 0.0
    %vm7541 = vcmp.gt.f32.partialorder %v7509, 0.0
    %vm7542 = vcmp.gt.f32.partialorder %v7510, 0.0
    %vm7543 = vcmp.gt.f32.partialorder %v7511, 0.0
    %vm7544 = vcmp.gt.f32.partialorder %v7512, 0.0
    %vm7545 = vcmp.gt.f32.partialorder %v7513, 0.0
    %vm7546 = vcmp.gt.f32.partialorder %v7514, 0.0
    %vm7547 = vcmp.gt.f32.partialorder %v7515, 0.0
    %vm7548 = vcmp.gt.f32.partialorder %v7516, 0.0
    %vm7549 = vcmp.gt.f32.partialorder %v7517, 0.0
    %v7550 = vmul.f32 %v7486, 0.2
    %v7551 = vmul.f32 %v7487, 0.2
    %v7552 = vmul.f32 %v7488, 0.2
    %v7553 = vmul.f32 %v7489, 0.2
    %v7554 = vmul.f32 %v7490, 0.2
    %v7555 = vmul.f32 %v7491, 0.2
    %v7556 = vmul.f32 %v7492, 0.2
    %v7557 = vmul.f32 %v7493, 0.2
    %v7558 = vmul.f32 %v7494, 0.2
    %v7559 = vmul.f32 %v7495, 0.2
    %v7560 = vmul.f32 %v7496, 0.2
    %v7561 = vmul.f32 %v7497, 0.2
    %v7562 = vmul.f32 %v7498, 0.2
    %v7563 = vmul.f32 %v7499, 0.2
    %v7564 = vmul.f32 %v7500, 0.2
    %v7565 = vmul.f32 %v7501, 0.2
    %v7566 = vmul.f32 %v7502, 0.2
    %v7567 = vmul.f32 %v7503, 0.2
    %v7568 = vmul.f32 %v7504, 0.2
    %v7569 = vmul.f32 %v7505, 0.2
    %v7570 = vmul.f32 %v7506, 0.2
    %v7571 = vmul.f32 %v7507, 0.2
    %v7572 = vmul.f32 %v7508, 0.2
    %v7573 = vmul.f32 %v7509, 0.2
    %v7574 = vmul.f32 %v7510, 0.2
    %v7575 = vmul.f32 %v7511, 0.2
    %v7576 = vmul.f32 %v7512, 0.2
    %v7577 = vmul.f32 %v7513, 0.2
    %v7578 = vmul.f32 %v7514, 0.2
    %v7579 = vmul.f32 %v7515, 0.2
    %v7580 = vmul.f32 %v7516, 0.2
    %v7581 = vmul.f32 %v7517, 0.2
    %v7582 = vsel %vm7518, %v7486, %v7550
    %v7583 = vsel %vm7519, %v7487, %v7551
    %v7584 = vsel %vm7520, %v7488, %v7552
    %v7585 = vsel %vm7521, %v7489, %v7553
    %v7586 = vsel %vm7522, %v7490, %v7554
    %v7587 = vsel %vm7523, %v7491, %v7555
    %v7588 = vsel %vm7524, %v7492, %v7556
    %v7589 = vsel %vm7525, %v7493, %v7557
    %v7590 = vsel %vm7526, %v7494, %v7558
    %v7591 = vsel %vm7527, %v7495, %v7559
    %v7592 = vsel %vm7528, %v7496, %v7560
    %v7593 = vsel %vm7529, %v7497, %v7561
    %v7594 = vsel %vm7530, %v7498, %v7562
    %v7595 = vsel %vm7531, %v7499, %v7563
    %v7596 = vsel %vm7532, %v7500, %v7564
    %v7597 = vsel %vm7533, %v7501, %v7565
    %v7598 = vsel %vm7534, %v7502, %v7566
    %v7599 = vsel %vm7535, %v7503, %v7567
    %v7600 = vsel %vm7536, %v7504, %v7568
    %v7601 = vsel %vm7537, %v7505, %v7569
    %v7602 = vsel %vm7538, %v7506, %v7570
    %v7603 = vsel %vm7539, %v7507, %v7571
    %v7604 = vsel %vm7540, %v7508, %v7572
    %v7605 = vsel %vm7541, %v7509, %v7573
    %v7606 = vsel %vm7542, %v7510, %v7574
    %v7607 = vsel %vm7543, %v7511, %v7575
    %v7608 = vsel %vm7544, %v7512, %v7576
    %v7609 = vsel %vm7545, %v7513, %v7577
    %v7610 = vsel %vm7546, %v7514, %v7578
    %v7611 = vsel %vm7547, %v7515, %v7579
    %v7612 = vsel %vm7548, %v7516, %v7580
    %v7613 = vsel %vm7549, %v7517, %v7581
    %v7614 = vpack.c.bf16 %v7583, %v7582
    %v7615 = vpack.c.bf16 %v7585, %v7584
    %v7616 = vpack.c.bf16 %v7587, %v7586
    %v7617 = vpack.c.bf16 %v7589, %v7588
    %v7618 = vpack.c.bf16 %v7591, %v7590
    %v7619 = vpack.c.bf16 %v7593, %v7592
    %v7620 = vpack.c.bf16 %v7595, %v7594
    %v7621 = vpack.c.bf16 %v7597, %v7596
    %v7622 = vpack.c.bf16 %v7599, %v7598
    %v7623 = vpack.c.bf16 %v7601, %v7600
    %v7624 = vpack.c.bf16 %v7603, %v7602
    %v7625 = vpack.c.bf16 %v7605, %v7604
    %v7626 = vpack.c.bf16 %v7607, %v7606
    %v7627 = vpack.c.bf16 %v7609, %v7608
    %v7628 = vpack.c.bf16 %v7611, %v7610
    %v7629 = vpack.c.bf16 %v7613, %v7612
    %7630 = vst [vmem:[#allocation2 + $0x80] sm:$0xff] %v7614
    %7631 = vst [vmem:[#allocation2 + $0x88] sm:$0xff] %v7615
    %7632 = vst [vmem:[#allocation2 + $0x90] sm:$0xff] %v7616
    %7633 = vst [vmem:[#allocation2 + $0x98] sm:$0xff] %v7617
    %7634 = vst [vmem:[#allocation2 + $0xa0] sm:$0xff] %v7618
    %7635 = vst [vmem:[#allocation2 + $0xa8] sm:$0xff] %v7619
    %7636 = vst [vmem:[#allocation2 + $0xb0] sm:$0xff] %v7620
    %7637 = vst [vmem:[#allocation2 + $0xb8] sm:$0xff] %v7621
    %7638 = vst [vmem:[#allocation2 + $0xc0] sm:$0xff] %v7622
    %7639 = vst [vmem:[#allocation2 + $0xc8] sm:$0xff] %v7623
    %7640 = vst [vmem:[#allocation2 + $0xd0] sm:$0xff] %v7624
    %7641 = vst [vmem:[#allocation2 + $0xd8] sm:$0xff] %v7625
    %7642 = vst [vmem:[#allocation2 + $0xe0] sm:$0xff] %v7626
    %7643 = vst [vmem:[#allocation2 + $0xe8] sm:$0xff] %v7627
    %7644 = vst [vmem:[#allocation2 + $0xf0] sm:$0xff] %v7628
    %7645 = vst [vmem:[#allocation2 + $0xf8] sm:$0xff] %v7629
    %v7646 = vadd.f32 %v6684, %v6687
    %v7647 = vadd.f32 %v7646, %v6692
    %v7648 = vadd.f32 %v7647, %v6695
    %v7649 = vadd.f32 %v7648, %v6700
    %v7650 = vadd.f32 %v7649, %v6703
    %v7651 = vadd.f32 %v7650, %v6708
    %v7652 = vadd.f32 %v7651, %v6711
    %v7653 = vadd.f32 %v7652, %v6716
    %v7654 = vadd.f32 %v7653, %v6719
    %v7655 = vadd.f32 %v7654, %v6724
    %v7656 = vadd.f32 %v7655, %v6727
    %v7657 = vadd.f32 %v7656, %v6732
    %v7658 = vadd.f32 %v7657, %v6735
    %v7659 = vadd.f32 %v7658, %v6740
    %v7660 = vadd.f32 %v7659, %v6743
    %v7661 = vadd.f32 %v7660, %v6748
    %v7662 = vadd.f32 %v7661, %v6751
    %v7663 = vadd.f32 %v7662, %v6756
    %v7664 = vadd.f32 %v7663, %v6759
    %v7665 = vadd.f32 %v7664, %v6764
    %v7666 = vadd.f32 %v7665, %v6767
    %v7667 = vadd.f32 %v7666, %v6772
    %v7668 = vadd.f32 %v7667, %v6775
    %v7669 = vadd.f32 %v7668, %v6780
    %v7670 = vadd.f32 %v7669, %v6783
    %v7671 = vadd.f32 %v7670, %v6788
    %v7672 = vadd.f32 %v7671, %v6791
    %v7673 = vadd.f32 %v7672, %v6796
    %v7674 = vadd.f32 %v7673, %v6799
    %v7675 = vadd.f32 %v7674, %v6804
    %v7676 = vadd.f32 %v7675, %v6807
    %7677 = vadd.xlane.f32.xlu0 %v7676
    %v7678 = vpop.xlane.xlu0 %7677
    %v7679 = vrot.slane %v7678, 4
    %v7680 = vadd.f32 %v7678, %v7679
    %v7681 = vrot.slane %v7680, 2
    %v7682 = vadd.f32 %v7680, %v7681
    %v7683 = vrot.slane %v7682, 1
    %v7684 = vadd.f32 %v7682, %v7683
    %s7685 = vtos %v7684
    %v7686 = vrcp.pop 32768.0
    %s7687 = vtos %v7686
    %s7688 = smul.f32 %s7685, %s7687
    %v7689 = vstv %s7688
    %v7690 = vsub.f32 %v6684, %v7689
    %v7691 = vsub.f32 %v6687, %v7689
    %v7692 = vsub.f32 %v6692, %v7689
    %v7693 = vsub.f32 %v6695, %v7689
    %v7694 = vsub.f32 %v6700, %v7689
    %v7695 = vsub.f32 %v6703, %v7689
    %v7696 = vsub.f32 %v6708, %v7689
    %v7697 = vsub.f32 %v6711, %v7689
    %v7698 = vsub.f32 %v6716, %v7689
    %v7699 = vsub.f32 %v6719, %v7689
    %v7700 = vsub.f32 %v6724, %v7689
    %v7701 = vsub.f32 %v6727, %v7689
    %v7702 = vsub.f32 %v6732, %v7689
    %v7703 = vsub.f32 %v6735, %v7689
    %v7704 = vsub.f32 %v6740, %v7689
    %v7705 = vsub.f32 %v6743, %v7689
    %v7706 = vsub.f32 %v6748, %v7689
    %v7707 = vsub.f32 %v6751, %v7689
    %v7708 = vsub.f32 %v6756, %v7689
    %v7709 = vsub.f32 %v6759, %v7689
    %v7710 = vsub.f32 %v6764, %v7689
    %v7711 = vsub.f32 %v6767, %v7689
    %v7712 = vsub.f32 %v6772, %v7689
    %v7713 = vsub.f32 %v6775, %v7689
    %v7714 = vsub.f32 %v6780, %v7689
    %v7715 = vsub.f32 %v6783, %v7689
    %v7716 = vsub.f32 %v6788, %v7689
    %v7717 = vsub.f32 %v6791, %v7689
    %v7718 = vsub.f32 %v6796, %v7689
    %v7719 = vsub.f32 %v6799, %v7689
    %v7720 = vsub.f32 %v6804, %v7689
    %v7721 = vsub.f32 %v6807, %v7689
    %v7722 = vmul.f32 %v7690, %v7690
    %v7723 = vmul.f32 %v7691, %v7691
    %v7724 = vmul.f32 %v7692, %v7692
    %v7725 = vmul.f32 %v7693, %v7693
    %v7726 = vmul.f32 %v7694, %v7694
    %v7727 = vmul.f32 %v7695, %v7695
    %v7728 = vmul.f32 %v7696, %v7696
    %v7729 = vmul.f32 %v7697, %v7697
    %v7730 = vmul.f32 %v7698, %v7698
    %v7731 = vmul.f32 %v7699, %v7699
    %v7732 = vmul.f32 %v7700, %v7700
    %v7733 = vmul.f32 %v7701, %v7701
    %v7734 = vmul.f32 %v7702, %v7702
    %v7735 = vmul.f32 %v7703, %v7703
    %v7736 = vmul.f32 %v7704, %v7704
    %v7737 = vmul.f32 %v7705, %v7705
    %v7738 = vmul.f32 %v7706, %v7706
    %v7739 = vmul.f32 %v7707, %v7707
    %v7740 = vmul.f32 %v7708, %v7708
    %v7741 = vmul.f32 %v7709, %v7709
    %v7742 = vmul.f32 %v7710, %v7710
    %v7743 = vmul.f32 %v7711, %v7711
    %v7744 = vmul.f32 %v7712, %v7712
    %v7745 = vmul.f32 %v7713, %v7713
    %v7746 = vmul.f32 %v7714, %v7714
    %v7747 = vmul.f32 %v7715, %v7715
    %v7748 = vmul.f32 %v7716, %v7716
    %v7749 = vmul.f32 %v7717, %v7717
    %v7750 = vmul.f32 %v7718, %v7718
    %v7751 = vmul.f32 %v7719, %v7719
    %v7752 = vmul.f32 %v7720, %v7720
    %v7753 = vmul.f32 %v7721, %v7721
    %v7754 = vadd.f32 %v7722, %v7723
    %v7755 = vadd.f32 %v7754, %v7724
    %v7756 = vadd.f32 %v7755, %v7725
    %v7757 = vadd.f32 %v7756, %v7726
    %v7758 = vadd.f32 %v7757, %v7727
    %v7759 = vadd.f32 %v7758, %v7728
    %v7760 = vadd.f32 %v7759, %v7729
    %v7761 = vadd.f32 %v7760, %v7730
    %v7762 = vadd.f32 %v7761, %v7731
    %v7763 = vadd.f32 %v7762, %v7732
    %v7764 = vadd.f32 %v7763, %v7733
    %v7765 = vadd.f32 %v7764, %v7734
    %v7766 = vadd.f32 %v7765, %v7735
    %v7767 = vadd.f32 %v7766, %v7736
    %v7768 = vadd.f32 %v7767, %v7737
    %v7769 = vadd.f32 %v7768, %v7738
    %v7770 = vadd.f32 %v7769, %v7739
    %v7771 = vadd.f32 %v7770, %v7740
    %v7772 = vadd.f32 %v7771, %v7741
    %v7773 = vadd.f32 %v7772, %v7742
    %v7774 = vadd.f32 %v7773, %v7743
    %v7775 = vadd.f32 %v7774, %v7744
    %v7776 = vadd.f32 %v7775, %v7745
    %v7777 = vadd.f32 %v7776, %v7746
    %v7778 = vadd.f32 %v7777, %v7747
    %v7779 = vadd.f32 %v7778, %v7748
    %v7780 = vadd.f32 %v7779, %v7749
    %v7781 = vadd.f32 %v7780, %v7750
    %v7782 = vadd.f32 %v7781, %v7751
    %v7783 = vadd.f32 %v7782, %v7752
    %v7784 = vadd.f32 %v7783, %v7753
    %7785 = vadd.xlane.f32.xlu0 %v7784
    %v7786 = vpop.xlane.xlu0 %7785
    %v7787 = vrot.slane %v7786, 4
    %v7788 = vadd.f32 %v7786, %v7787
    %v7789 = vrot.slane %v7788, 2
    %v7790 = vadd.f32 %v7788, %v7789
    %v7791 = vrot.slane %v7790, 1
    %v7792 = vadd.f32 %v7790, %v7791
    %s7793 = vtos %v7792
    %v7794 = vrcp.pop 32768.0
    %s7795 = vtos %v7794
    %s7796 = smul.f32 %s7793, %s7795
    %s7797 = sld [smem:[#allocation5 + $0x2]]
    %s7798 = sadd.f32 %s7796, 1e-05
    %v7799 = vstv %s7798
    %v7800 = vrsqrt.pop %v7799
    %s7801 = vtos %v7800
    %s7802 = smul.f32 %s7797, %s7801
    %s7803 = sld [smem:[#allocation8 + $0x2]]
    %s7804 = smul.f32 %s7688, %s7802
    %s7805 = ssub.f32 %s7803, %s7804
    %v7806 = vstv %s7802
    %v7807 = vmul.f32 %v6684, %v7806
    %v7808 = vmul.f32 %v6687, %v7806
    %v7809 = vmul.f32 %v6692, %v7806
    %v7810 = vmul.f32 %v6695, %v7806
    %v7811 = vmul.f32 %v6700, %v7806
    %v7812 = vmul.f32 %v6703, %v7806
    %v7813 = vmul.f32 %v6708, %v7806
    %v7814 = vmul.f32 %v6711, %v7806
    %v7815 = vmul.f32 %v6716, %v7806
    %v7816 = vmul.f32 %v6719, %v7806
    %v7817 = vmul.f32 %v6724, %v7806
    %v7818 = vmul.f32 %v6727, %v7806
    %v7819 = vmul.f32 %v6732, %v7806
    %v7820 = vmul.f32 %v6735, %v7806
    %v7821 = vmul.f32 %v6740, %v7806
    %v7822 = vmul.f32 %v6743, %v7806
    %v7823 = vmul.f32 %v6748, %v7806
    %v7824 = vmul.f32 %v6751, %v7806
    %v7825 = vmul.f32 %v6756, %v7806
    %v7826 = vmul.f32 %v6759, %v7806
    %v7827 = vmul.f32 %v6764, %v7806
    %v7828 = vmul.f32 %v6767, %v7806
    %v7829 = vmul.f32 %v6772, %v7806
    %v7830 = vmul.f32 %v6775, %v7806
    %v7831 = vmul.f32 %v6780, %v7806
    %v7832 = vmul.f32 %v6783, %v7806
    %v7833 = vmul.f32 %v6788, %v7806
    %v7834 = vmul.f32 %v6791, %v7806
    %v7835 = vmul.f32 %v6796, %v7806
    %v7836 = vmul.f32 %v6799, %v7806
    %v7837 = vmul.f32 %v6804, %v7806
    %v7838 = vmul.f32 %v6807, %v7806
    %v7839 = vstv %s7805
    %v7840 = vadd.f32 %v7807, %v7839
    %v7841 = vadd.f32 %v7808, %v7839
    %v7842 = vadd.f32 %v7809, %v7839
    %v7843 = vadd.f32 %v7810, %v7839
    %v7844 = vadd.f32 %v7811, %v7839
    %v7845 = vadd.f32 %v7812, %v7839
    %v7846 = vadd.f32 %v7813, %v7839
    %v7847 = vadd.f32 %v7814, %v7839
    %v7848 = vadd.f32 %v7815, %v7839
    %v7849 = vadd.f32 %v7816, %v7839
    %v7850 = vadd.f32 %v7817, %v7839
    %v7851 = vadd.f32 %v7818, %v7839
    %v7852 = vadd.f32 %v7819, %v7839
    %v7853 = vadd.f32 %v7820, %v7839
    %v7854 = vadd.f32 %v7821, %v7839
    %v7855 = vadd.f32 %v7822, %v7839
    %v7856 = vadd.f32 %v7823, %v7839
    %v7857 = vadd.f32 %v7824, %v7839
    %v7858 = vadd.f32 %v7825, %v7839
    %v7859 = vadd.f32 %v7826, %v7839
    %v7860 = vadd.f32 %v7827, %v7839
    %v7861 = vadd.f32 %v7828, %v7839
    %v7862 = vadd.f32 %v7829, %v7839
    %v7863 = vadd.f32 %v7830, %v7839
    %v7864 = vadd.f32 %v7831, %v7839
    %v7865 = vadd.f32 %v7832, %v7839
    %v7866 = vadd.f32 %v7833, %v7839
    %v7867 = vadd.f32 %v7834, %v7839
    %v7868 = vadd.f32 %v7835, %v7839
    %v7869 = vadd.f32 %v7836, %v7839
    %v7870 = vadd.f32 %v7837, %v7839
    %v7871 = vadd.f32 %v7838, %v7839
    %vm7872 = vcmp.gt.f32.partialorder %v7840, 0.0
    %vm7873 = vcmp.gt.f32.partialorder %v7841, 0.0
    %vm7874 = vcmp.gt.f32.partialorder %v7842, 0.0
    %vm7875 = vcmp.gt.f32.partialorder %v7843, 0.0
    %vm7876 = vcmp.gt.f32.partialorder %v7844, 0.0
    %vm7877 = vcmp.gt.f32.partialorder %v7845, 0.0
    %vm7878 = vcmp.gt.f32.partialorder %v7846, 0.0
    %vm7879 = vcmp.gt.f32.partialorder %v7847, 0.0
    %vm7880 = vcmp.gt.f32.partialorder %v7848, 0.0
    %vm7881 = vcmp.gt.f32.partialorder %v7849, 0.0
    %vm7882 = vcmp.gt.f32.partialorder %v7850, 0.0
    %vm7883 = vcmp.gt.f32.partialorder %v7851, 0.0
    %vm7884 = vcmp.gt.f32.partialorder %v7852, 0.0
    %vm7885 = vcmp.gt.f32.partialorder %v7853, 0.0
    %vm7886 = vcmp.gt.f32.partialorder %v7854, 0.0
    %vm7887 = vcmp.gt.f32.partialorder %v7855, 0.0
    %vm7888 = vcmp.gt.f32.partialorder %v7856, 0.0
    %vm7889 = vcmp.gt.f32.partialorder %v7857, 0.0
    %vm7890 = vcmp.gt.f32.partialorder %v7858, 0.0
    %vm7891 = vcmp.gt.f32.partialorder %v7859, 0.0
    %vm7892 = vcmp.gt.f32.partialorder %v7860, 0.0
    %vm7893 = vcmp.gt.f32.partialorder %v7861, 0.0
    %vm7894 = vcmp.gt.f32.partialorder %v7862, 0.0
    %vm7895 = vcmp.gt.f32.partialorder %v7863, 0.0
    %vm7896 = vcmp.gt.f32.partialorder %v7864, 0.0
    %vm7897 = vcmp.gt.f32.partialorder %v7865, 0.0
    %vm7898 = vcmp.gt.f32.partialorder %v7866, 0.0
    %vm7899 = vcmp.gt.f32.partialorder %v7867, 0.0
    %vm7900 = vcmp.gt.f32.partialorder %v7868, 0.0
    %vm7901 = vcmp.gt.f32.partialorder %v7869, 0.0
    %vm7902 = vcmp.gt.f32.partialorder %v7870, 0.0
    %vm7903 = vcmp.gt.f32.partialorder %v7871, 0.0
    %v7904 = vmul.f32 %v7840, 0.2
    %v7905 = vmul.f32 %v7841, 0.2
    %v7906 = vmul.f32 %v7842, 0.2
    %v7907 = vmul.f32 %v7843, 0.2
    %v7908 = vmul.f32 %v7844, 0.2
    %v7909 = vmul.f32 %v7845, 0.2
    %v7910 = vmul.f32 %v7846, 0.2
    %v7911 = vmul.f32 %v7847, 0.2
    %v7912 = vmul.f32 %v7848, 0.2
    %v7913 = vmul.f32 %v7849, 0.2
    %v7914 = vmul.f32 %v7850, 0.2
    %v7915 = vmul.f32 %v7851, 0.2
    %v7916 = vmul.f32 %v7852, 0.2
    %v7917 = vmul.f32 %v7853, 0.2
    %v7918 = vmul.f32 %v7854, 0.2
    %v7919 = vmul.f32 %v7855, 0.2
    %v7920 = vmul.f32 %v7856, 0.2
    %v7921 = vmul.f32 %v7857, 0.2
    %v7922 = vmul.f32 %v7858, 0.2
    %v7923 = vmul.f32 %v7859, 0.2
    %v7924 = vmul.f32 %v7860, 0.2
    %v7925 = vmul.f32 %v7861, 0.2
    %v7926 = vmul.f32 %v7862, 0.2
    %v7927 = vmul.f32 %v7863, 0.2
    %v7928 = vmul.f32 %v7864, 0.2
    %v7929 = vmul.f32 %v7865, 0.2
    %v7930 = vmul.f32 %v7866, 0.2
    %v7931 = vmul.f32 %v7867, 0.2
    %v7932 = vmul.f32 %v7868, 0.2
    %v7933 = vmul.f32 %v7869, 0.2
    %v7934 = vmul.f32 %v7870, 0.2
    %v7935 = vmul.f32 %v7871, 0.2
    %v7936 = vsel %vm7872, %v7840, %v7904
    %v7937 = vsel %vm7873, %v7841, %v7905
    %v7938 = vsel %vm7874, %v7842, %v7906
    %v7939 = vsel %vm7875, %v7843, %v7907
    %v7940 = vsel %vm7876, %v7844, %v7908
    %v7941 = vsel %vm7877, %v7845, %v7909
    %v7942 = vsel %vm7878, %v7846, %v7910
    %v7943 = vsel %vm7879, %v7847, %v7911
    %v7944 = vsel %vm7880, %v7848, %v7912
    %v7945 = vsel %vm7881, %v7849, %v7913
    %v7946 = vsel %vm7882, %v7850, %v7914
    %v7947 = vsel %vm7883, %v7851, %v7915
    %v7948 = vsel %vm7884, %v7852, %v7916
    %v7949 = vsel %vm7885, %v7853, %v7917
    %v7950 = vsel %vm7886, %v7854, %v7918
    %v7951 = vsel %vm7887, %v7855, %v7919
    %v7952 = vsel %vm7888, %v7856, %v7920
    %v7953 = vsel %vm7889, %v7857, %v7921
    %v7954 = vsel %vm7890, %v7858, %v7922
    %v7955 = vsel %vm7891, %v7859, %v7923
    %v7956 = vsel %vm7892, %v7860, %v7924
    %v7957 = vsel %vm7893, %v7861, %v7925
    %v7958 = vsel %vm7894, %v7862, %v7926
    %v7959 = vsel %vm7895, %v7863, %v7927
    %v7960 = vsel %vm7896, %v7864, %v7928
    %v7961 = vsel %vm7897, %v7865, %v7929
    %v7962 = vsel %vm7898, %v7866, %v7930
    %v7963 = vsel %vm7899, %v7867, %v7931
    %v7964 = vsel %vm7900, %v7868, %v7932
    %v7965 = vsel %vm7901, %v7869, %v7933
    %v7966 = vsel %vm7902, %v7870, %v7934
    %v7967 = vsel %vm7903, %v7871, %v7935
    %v7968 = vpack.c.bf16 %v7937, %v7936
    %v7969 = vpack.c.bf16 %v7939, %v7938
    %v7970 = vpack.c.bf16 %v7941, %v7940
    %v7971 = vpack.c.bf16 %v7943, %v7942
    %v7972 = vpack.c.bf16 %v7945, %v7944
    %v7973 = vpack.c.bf16 %v7947, %v7946
    %v7974 = vpack.c.bf16 %v7949, %v7948
    %v7975 = vpack.c.bf16 %v7951, %v7950
    %v7976 = vpack.c.bf16 %v7953, %v7952
    %v7977 = vpack.c.bf16 %v7955, %v7954
    %v7978 = vpack.c.bf16 %v7957, %v7956
    %v7979 = vpack.c.bf16 %v7959, %v7958
    %v7980 = vpack.c.bf16 %v7961, %v7960
    %v7981 = vpack.c.bf16 %v7963, %v7962
    %v7982 = vpack.c.bf16 %v7965, %v7964
    %v7983 = vpack.c.bf16 %v7967, %v7966
    %7984 = vst [vmem:[#allocation2 + $0x100] sm:$0xff] %v7968
    %7985 = vst [vmem:[#allocation2 + $0x108] sm:$0xff] %v7969
    %7986 = vst [vmem:[#allocation2 + $0x110] sm:$0xff] %v7970
    %7987 = vst [vmem:[#allocation2 + $0x118] sm:$0xff] %v7971
    %7988 = vst [vmem:[#allocation2 + $0x120] sm:$0xff] %v7972
    %7989 = vst [vmem:[#allocation2 + $0x128] sm:$0xff] %v7973
    %7990 = vst [vmem:[#allocation2 + $0x130] sm:$0xff] %v7974
    %7991 = vst [vmem:[#allocation2 + $0x138] sm:$0xff] %v7975
    %7992 = vst [vmem:[#allocation2 + $0x140] sm:$0xff] %v7976
    %7993 = vst [vmem:[#allocation2 + $0x148] sm:$0xff] %v7977
    %7994 = vst [vmem:[#allocation2 + $0x150] sm:$0xff] %v7978
    %7995 = vst [vmem:[#allocation2 + $0x158] sm:$0xff] %v7979
    %7996 = vst [vmem:[#allocation2 + $0x160] sm:$0xff] %v7980
    %7997 = vst [vmem:[#allocation2 + $0x168] sm:$0xff] %v7981
    %7998 = vst [vmem:[#allocation2 + $0x170] sm:$0xff] %v7982
    %7999 = vst [vmem:[#allocation2 + $0x178] sm:$0xff] %v7983
    %v8000 = vadd.f32 %v6812, %v6815
    %v8001 = vadd.f32 %v8000, %v6820
    %v8002 = vadd.f32 %v8001, %v6823
    %v8003 = vadd.f32 %v8002, %v6828
    %v8004 = vadd.f32 %v8003, %v6831
    %v8005 = vadd.f32 %v8004, %v6836
    %v8006 = vadd.f32 %v8005, %v6839
    %v8007 = vadd.f32 %v8006, %v6844
    %v8008 = vadd.f32 %v8007, %v6847
    %v8009 = vadd.f32 %v8008, %v6852
    %v8010 = vadd.f32 %v8009, %v6855
    %v8011 = vadd.f32 %v8010, %v6860
    %v8012 = vadd.f32 %v8011, %v6863
    %v8013 = vadd.f32 %v8012, %v6868
    %v8014 = vadd.f32 %v8013, %v6871
    %v8015 = vadd.f32 %v8014, %v6876
    %v8016 = vadd.f32 %v8015, %v6879
    %v8017 = vadd.f32 %v8016, %v6884
    %v8018 = vadd.f32 %v8017, %v6887
    %v8019 = vadd.f32 %v8018, %v6892
    %v8020 = vadd.f32 %v8019, %v6895
    %v8021 = vadd.f32 %v8020, %v6900
    %v8022 = vadd.f32 %v8021, %v6903
    %v8023 = vadd.f32 %v8022, %v6908
    %v8024 = vadd.f32 %v8023, %v6911
    %v8025 = vadd.f32 %v8024, %v6916
    %v8026 = vadd.f32 %v8025, %v6919
    %v8027 = vadd.f32 %v8026, %v6924
    %v8028 = vadd.f32 %v8027, %v6927
    %v8029 = vadd.f32 %v8028, %v6932
    %v8030 = vadd.f32 %v8029, %v6935
    %8031 = vadd.xlane.f32.xlu0 %v8030
    %v8032 = vpop.xlane.xlu0 %8031
    %v8033 = vrot.slane %v8032, 4
    %v8034 = vadd.f32 %v8032, %v8033
    %v8035 = vrot.slane %v8034, 2
    %v8036 = vadd.f32 %v8034, %v8035
    %v8037 = vrot.slane %v8036, 1
    %v8038 = vadd.f32 %v8036, %v8037
    %s8039 = vtos %v8038
    %v8040 = vrcp.pop 32768.0
    %s8041 = vtos %v8040
    %s8042 = smul.f32 %s8039, %s8041
    %v8043 = vstv %s8042
    %v8044 = vsub.f32 %v6812, %v8043
    %v8045 = vsub.f32 %v6815, %v8043
    %v8046 = vsub.f32 %v6820, %v8043
    %v8047 = vsub.f32 %v6823, %v8043
    %v8048 = vsub.f32 %v6828, %v8043
    %v8049 = vsub.f32 %v6831, %v8043
    %v8050 = vsub.f32 %v6836, %v8043
    %v8051 = vsub.f32 %v6839, %v8043
    %v8052 = vsub.f32 %v6844, %v8043
    %v8053 = vsub.f32 %v6847, %v8043
    %v8054 = vsub.f32 %v6852, %v8043
    %v8055 = vsub.f32 %v6855, %v8043
    %v8056 = vsub.f32 %v6860, %v8043
    %v8057 = vsub.f32 %v6863, %v8043
    %v8058 = vsub.f32 %v6868, %v8043
    %v8059 = vsub.f32 %v6871, %v8043
    %v8060 = vsub.f32 %v6876, %v8043
    %v8061 = vsub.f32 %v6879, %v8043
    %v8062 = vsub.f32 %v6884, %v8043
    %v8063 = vsub.f32 %v6887, %v8043
    %v8064 = vsub.f32 %v6892, %v8043
    %v8065 = vsub.f32 %v6895, %v8043
    %v8066 = vsub.f32 %v6900, %v8043
    %v8067 = vsub.f32 %v6903, %v8043
    %v8068 = vsub.f32 %v6908, %v8043
    %v8069 = vsub.f32 %v6911, %v8043
    %v8070 = vsub.f32 %v6916, %v8043
    %v8071 = vsub.f32 %v6919, %v8043
    %v8072 = vsub.f32 %v6924, %v8043
    %v8073 = vsub.f32 %v6927, %v8043
    %v8074 = vsub.f32 %v6932, %v8043
    %v8075 = vsub.f32 %v6935, %v8043
    %v8076 = vmul.f32 %v8044, %v8044
    %v8077 = vmul.f32 %v8045, %v8045
    %v8078 = vmul.f32 %v8046, %v8046
    %v8079 = vmul.f32 %v8047, %v8047
    %v8080 = vmul.f32 %v8048, %v8048
    %v8081 = vmul.f32 %v8049, %v8049
    %v8082 = vmul.f32 %v8050, %v8050
    %v8083 = vmul.f32 %v8051, %v8051
    %v8084 = vmul.f32 %v8052, %v8052
    %v8085 = vmul.f32 %v8053, %v8053
    %v8086 = vmul.f32 %v8054, %v8054
    %v8087 = vmul.f32 %v8055, %v8055
    %v8088 = vmul.f32 %v8056, %v8056
    %v8089 = vmul.f32 %v8057, %v8057
    %v8090 = vmul.f32 %v8058, %v8058
    %v8091 = vmul.f32 %v8059, %v8059
    %v8092 = vmul.f32 %v8060, %v8060
    %v8093 = vmul.f32 %v8061, %v8061
    %v8094 = vmul.f32 %v8062, %v8062
    %v8095 = vmul.f32 %v8063, %v8063
    %v8096 = vmul.f32 %v8064, %v8064
    %v8097 = vmul.f32 %v8065, %v8065
    %v8098 = vmul.f32 %v8066, %v8066
    %v8099 = vmul.f32 %v8067, %v8067
    %v8100 = vmul.f32 %v8068, %v8068
    %v8101 = vmul.f32 %v8069, %v8069
    %v8102 = vmul.f32 %v8070, %v8070
    %v8103 = vmul.f32 %v8071, %v8071
    %v8104 = vmul.f32 %v8072, %v8072
    %v8105 = vmul.f32 %v8073, %v8073
    %v8106 = vmul.f32 %v8074, %v8074
    %v8107 = vmul.f32 %v8075, %v8075
    %v8108 = vadd.f32 %v8076, %v8077
    %v8109 = vadd.f32 %v8108, %v8078
    %v8110 = vadd.f32 %v8109, %v8079
    %v8111 = vadd.f32 %v8110, %v8080
    %v8112 = vadd.f32 %v8111, %v8081
    %v8113 = vadd.f32 %v8112, %v8082
    %v8114 = vadd.f32 %v8113, %v8083
    %v8115 = vadd.f32 %v8114, %v8084
    %v8116 = vadd.f32 %v8115, %v8085
    %v8117 = vadd.f32 %v8116, %v8086
    %v8118 = vadd.f32 %v8117, %v8087
    %v8119 = vadd.f32 %v8118, %v8088
    %v8120 = vadd.f32 %v8119, %v8089
    %v8121 = vadd.f32 %v8120, %v8090
    %v8122 = vadd.f32 %v8121, %v8091
    %v8123 = vadd.f32 %v8122, %v8092
    %v8124 = vadd.f32 %v8123, %v8093
    %v8125 = vadd.f32 %v8124, %v8094
    %v8126 = vadd.f32 %v8125, %v8095
    %v8127 = vadd.f32 %v8126, %v8096
    %v8128 = vadd.f32 %v8127, %v8097
    %v8129 = vadd.f32 %v8128, %v8098
    %v8130 = vadd.f32 %v8129, %v8099
    %v8131 = vadd.f32 %v8130, %v8100
    %v8132 = vadd.f32 %v8131, %v8101
    %v8133 = vadd.f32 %v8132, %v8102
    %v8134 = vadd.f32 %v8133, %v8103
    %v8135 = vadd.f32 %v8134, %v8104
    %v8136 = vadd.f32 %v8135, %v8105
    %v8137 = vadd.f32 %v8136, %v8106
    %v8138 = vadd.f32 %v8137, %v8107
    %8139 = vadd.xlane.f32.xlu0 %v8138
    %v8140 = vpop.xlane.xlu0 %8139
    %v8141 = vrot.slane %v8140, 4
    %v8142 = vadd.f32 %v8140, %v8141
    %v8143 = vrot.slane %v8142, 2
    %v8144 = vadd.f32 %v8142, %v8143
    %v8145 = vrot.slane %v8144, 1
    %v8146 = vadd.f32 %v8144, %v8145
    %s8147 = vtos %v8146
    %v8148 = vrcp.pop 32768.0
    %s8149 = vtos %v8148
    %s8150 = smul.f32 %s8147, %s8149
    %s8151 = sld [smem:[#allocation5 + $0x3]]
    %s8152 = sadd.f32 %s8150, 1e-05
    %v8153 = vstv %s8152
    %v8154 = vrsqrt.pop %v8153
    %s8155 = vtos %v8154
    %s8156 = smul.f32 %s8151, %s8155
    %s8157 = sld [smem:[#allocation8 + $0x3]]
    %s8158 = smul.f32 %s8042, %s8156
    %s8159 = ssub.f32 %s8157, %s8158
    %v8160 = vstv %s8156
    %v8161 = vmul.f32 %v6812, %v8160
    %v8162 = vmul.f32 %v6815, %v8160
    %v8163 = vmul.f32 %v6820, %v8160
    %v8164 = vmul.f32 %v6823, %v8160
    %v8165 = vmul.f32 %v6828, %v8160
    %v8166 = vmul.f32 %v6831, %v8160
    %v8167 = vmul.f32 %v6836, %v8160
    %v8168 = vmul.f32 %v6839, %v8160
    %v8169 = vmul.f32 %v6844, %v8160
    %v8170 = vmul.f32 %v6847, %v8160
    %v8171 = vmul.f32 %v6852, %v8160
    %v8172 = vmul.f32 %v6855, %v8160
    %v8173 = vmul.f32 %v6860, %v8160
    %v8174 = vmul.f32 %v6863, %v8160
    %v8175 = vmul.f32 %v6868, %v8160
    %v8176 = vmul.f32 %v6871, %v8160
    %v8177 = vmul.f32 %v6876, %v8160
    %v8178 = vmul.f32 %v6879, %v8160
    %v8179 = vmul.f32 %v6884, %v8160
    %v8180 = vmul.f32 %v6887, %v8160
    %v8181 = vmul.f32 %v6892, %v8160
    %v8182 = vmul.f32 %v6895, %v8160
    %v8183 = vmul.f32 %v6900, %v8160
    %v8184 = vmul.f32 %v6903, %v8160
    %v8185 = vmul.f32 %v6908, %v8160
    %v8186 = vmul.f32 %v6911, %v8160
    %v8187 = vmul.f32 %v6916, %v8160
    %v8188 = vmul.f32 %v6919, %v8160
    %v8189 = vmul.f32 %v6924, %v8160
    %v8190 = vmul.f32 %v6927, %v8160
    %v8191 = vmul.f32 %v6932, %v8160
    %v8192 = vmul.f32 %v6935, %v8160
    %v8193 = vstv %s8159
    %v8194 = vadd.f32 %v8161, %v8193
    %v8195 = vadd.f32 %v8162, %v8193
    %v8196 = vadd.f32 %v8163, %v8193
    %v8197 = vadd.f32 %v8164, %v8193
    %v8198 = vadd.f32 %v8165, %v8193
    %v8199 = vadd.f32 %v8166, %v8193
    %v8200 = vadd.f32 %v8167, %v8193
    %v8201 = vadd.f32 %v8168, %v8193
    %v8202 = vadd.f32 %v8169, %v8193
    %v8203 = vadd.f32 %v8170, %v8193
    %v8204 = vadd.f32 %v8171, %v8193
    %v8205 = vadd.f32 %v8172, %v8193
    %v8206 = vadd.f32 %v8173, %v8193
    %v8207 = vadd.f32 %v8174, %v8193
    %v8208 = vadd.f32 %v8175, %v8193
    %v8209 = vadd.f32 %v8176, %v8193
    %v8210 = vadd.f32 %v8177, %v8193
    %v8211 = vadd.f32 %v8178, %v8193
    %v8212 = vadd.f32 %v8179, %v8193
    %v8213 = vadd.f32 %v8180, %v8193
    %v8214 = vadd.f32 %v8181, %v8193
    %v8215 = vadd.f32 %v8182, %v8193
    %v8216 = vadd.f32 %v8183, %v8193
    %v8217 = vadd.f32 %v8184, %v8193
    %v8218 = vadd.f32 %v8185, %v8193
    %v8219 = vadd.f32 %v8186, %v8193
    %v8220 = vadd.f32 %v8187, %v8193
    %v8221 = vadd.f32 %v8188, %v8193
    %v8222 = vadd.f32 %v8189, %v8193
    %v8223 = vadd.f32 %v8190, %v8193
    %v8224 = vadd.f32 %v8191, %v8193
    %v8225 = vadd.f32 %v8192, %v8193
    %vm8226 = vcmp.gt.f32.partialorder %v8194, 0.0
    %vm8227 = vcmp.gt.f32.partialorder %v8195, 0.0
    %vm8228 = vcmp.gt.f32.partialorder %v8196, 0.0
    %vm8229 = vcmp.gt.f32.partialorder %v8197, 0.0
    %vm8230 = vcmp.gt.f32.partialorder %v8198, 0.0
    %vm8231 = vcmp.gt.f32.partialorder %v8199, 0.0
    %vm8232 = vcmp.gt.f32.partialorder %v8200, 0.0
    %vm8233 = vcmp.gt.f32.partialorder %v8201, 0.0
    %vm8234 = vcmp.gt.f32.partialorder %v8202, 0.0
    %vm8235 = vcmp.gt.f32.partialorder %v8203, 0.0
    %vm8236 = vcmp.gt.f32.partialorder %v8204, 0.0
    %vm8237 = vcmp.gt.f32.partialorder %v8205, 0.0
    %vm8238 = vcmp.gt.f32.partialorder %v8206, 0.0
    %vm8239 = vcmp.gt.f32.partialorder %v8207, 0.0
    %vm8240 = vcmp.gt.f32.partialorder %v8208, 0.0
    %vm8241 = vcmp.gt.f32.partialorder %v8209, 0.0
    %vm8242 = vcmp.gt.f32.partialorder %v8210, 0.0
    %vm8243 = vcmp.gt.f32.partialorder %v8211, 0.0
    %vm8244 = vcmp.gt.f32.partialorder %v8212, 0.0
    %vm8245 = vcmp.gt.f32.partialorder %v8213, 0.0
    %vm8246 = vcmp.gt.f32.partialorder %v8214, 0.0
    %vm8247 = vcmp.gt.f32.partialorder %v8215, 0.0
    %vm8248 = vcmp.gt.f32.partialorder %v8216, 0.0
    %vm8249 = vcmp.gt.f32.partialorder %v8217, 0.0
    %vm8250 = vcmp.gt.f32.partialorder %v8218, 0.0
    %vm8251 = vcmp.gt.f32.partialorder %v8219, 0.0
    %vm8252 = vcmp.gt.f32.partialorder %v8220, 0.0
    %vm8253 = vcmp.gt.f32.partialorder %v8221, 0.0
    %vm8254 = vcmp.gt.f32.partialorder %v8222, 0.0
    %vm8255 = vcmp.gt.f32.partialorder %v8223, 0.0
    %vm8256 = vcmp.gt.f32.partialorder %v8224, 0.0
    %vm8257 = vcmp.gt.f32.partialorder %v8225, 0.0
    %v8258 = vmul.f32 %v8194, 0.2
    %v8259 = vmul.f32 %v8195, 0.2
    %v8260 = vmul.f32 %v8196, 0.2
    %v8261 = vmul.f32 %v8197, 0.2
    %v8262 = vmul.f32 %v8198, 0.2
    %v8263 = vmul.f32 %v8199, 0.2
    %v8264 = vmul.f32 %v8200, 0.2
    %v8265 = vmul.f32 %v8201, 0.2
    %v8266 = vmul.f32 %v8202, 0.2
    %v8267 = vmul.f32 %v8203, 0.2
    %v8268 = vmul.f32 %v8204, 0.2
    %v8269 = vmul.f32 %v8205, 0.2
    %v8270 = vmul.f32 %v8206, 0.2
    %v8271 = vmul.f32 %v8207, 0.2
    %v8272 = vmul.f32 %v8208, 0.2
    %v8273 = vmul.f32 %v8209, 0.2
    %v8274 = vmul.f32 %v8210, 0.2
    %v8275 = vmul.f32 %v8211, 0.2
    %v8276 = vmul.f32 %v8212, 0.2
    %v8277 = vmul.f32 %v8213, 0.2
    %v8278 = vmul.f32 %v8214, 0.2
    %v8279 = vmul.f32 %v8215, 0.2
    %v8280 = vmul.f32 %v8216, 0.2
    %v8281 = vmul.f32 %v8217, 0.2
    %v8282 = vmul.f32 %v8218, 0.2
    %v8283 = vmul.f32 %v8219, 0.2
    %v8284 = vmul.f32 %v8220, 0.2
    %v8285 = vmul.f32 %v8221, 0.2
    %v8286 = vmul.f32 %v8222, 0.2
    %v8287 = vmul.f32 %v8223, 0.2
    %v8288 = vmul.f32 %v8224, 0.2
    %v8289 = vmul.f32 %v8225, 0.2
    %v8290 = vsel %vm8226, %v8194, %v8258
    %v8291 = vsel %vm8227, %v8195, %v8259
    %v8292 = vsel %vm8228, %v8196, %v8260
    %v8293 = vsel %vm8229, %v8197, %v8261
    %v8294 = vsel %vm8230, %v8198, %v8262
    %v8295 = vsel %vm8231, %v8199, %v8263
    %v8296 = vsel %vm8232, %v8200, %v8264
    %v8297 = vsel %vm8233, %v8201, %v8265
    %v8298 = vsel %vm8234, %v8202, %v8266
    %v8299 = vsel %vm8235, %v8203, %v8267
    %v8300 = vsel %vm8236, %v8204, %v8268
    %v8301 = vsel %vm8237, %v8205, %v8269
    %v8302 = vsel %vm8238, %v8206, %v8270
    %v8303 = vsel %vm8239, %v8207, %v8271
    %v8304 = vsel %vm8240, %v8208, %v8272
    %v8305 = vsel %vm8241, %v8209, %v8273
    %v8306 = vsel %vm8242, %v8210, %v8274
    %v8307 = vsel %vm8243, %v8211, %v8275
    %v8308 = vsel %vm8244, %v8212, %v8276
    %v8309 = vsel %vm8245, %v8213, %v8277
    %v8310 = vsel %vm8246, %v8214, %v8278
    %v8311 = vsel %vm8247, %v8215, %v8279
    %v8312 = vsel %vm8248, %v8216, %v8280
    %v8313 = vsel %vm8249, %v8217, %v8281
    %v8314 = vsel %vm8250, %v8218, %v8282
    %v8315 = vsel %vm8251, %v8219, %v8283
    %v8316 = vsel %vm8252, %v8220, %v8284
    %v8317 = vsel %vm8253, %v8221, %v8285
    %v8318 = vsel %vm8254, %v8222, %v8286
    %v8319 = vsel %vm8255, %v8223, %v8287
    %v8320 = vsel %vm8256, %v8224, %v8288
    %v8321 = vsel %vm8257, %v8225, %v8289
    %v8322 = vpack.c.bf16 %v8291, %v8290
    %v8323 = vpack.c.bf16 %v8293, %v8292
    %v8324 = vpack.c.bf16 %v8295, %v8294
    %v8325 = vpack.c.bf16 %v8297, %v8296
    %v8326 = vpack.c.bf16 %v8299, %v8298
    %v8327 = vpack.c.bf16 %v8301, %v8300
    %v8328 = vpack.c.bf16 %v8303, %v8302
    %v8329 = vpack.c.bf16 %v8305, %v8304
    %v8330 = vpack.c.bf16 %v8307, %v8306
    %v8331 = vpack.c.bf16 %v8309, %v8308
    %v8332 = vpack.c.bf16 %v8311, %v8310
    %v8333 = vpack.c.bf16 %v8313, %v8312
    %v8334 = vpack.c.bf16 %v8315, %v8314
    %v8335 = vpack.c.bf16 %v8317, %v8316
    %v8336 = vpack.c.bf16 %v8319, %v8318
    %v8337 = vpack.c.bf16 %v8321, %v8320
    %8338 = vst [vmem:[#allocation2 + $0x180] sm:$0xff] %v8322
    %8339 = vst [vmem:[#allocation2 + $0x188] sm:$0xff] %v8323
    %8340 = vst [vmem:[#allocation2 + $0x190] sm:$0xff] %v8324
    %8341 = vst [vmem:[#allocation2 + $0x198] sm:$0xff] %v8325
    %8342 = vst [vmem:[#allocation2 + $0x1a0] sm:$0xff] %v8326
    %8343 = vst [vmem:[#allocation2 + $0x1a8] sm:$0xff] %v8327
    %8344 = vst [vmem:[#allocation2 + $0x1b0] sm:$0xff] %v8328
    %8345 = vst [vmem:[#allocation2 + $0x1b8] sm:$0xff] %v8329
    %8346 = vst [vmem:[#allocation2 + $0x1c0] sm:$0xff] %v8330
    %8347 = vst [vmem:[#allocation2 + $0x1c8] sm:$0xff] %v8331
    %8348 = vst [vmem:[#allocation2 + $0x1d0] sm:$0xff] %v8332
    %8349 = vst [vmem:[#allocation2 + $0x1d8] sm:$0xff] %v8333
    %8350 = vst [vmem:[#allocation2 + $0x1e0] sm:$0xff] %v8334
    %8351 = vst [vmem:[#allocation2 + $0x1e8] sm:$0xff] %v8335
    %8352 = vst [vmem:[#allocation2 + $0x1f0] sm:$0xff] %v8336
    %8353 = vst [vmem:[#allocation2 + $0x1f8] sm:$0xff] %v8337
    %v8354 = vld [vmem:[%s2] sm:$0xff]
    %v8355 = vld [vmem:[%s2 + $0x8] sm:$0xff]
    %v8356 = vld [vmem:[%s2 + $0x10] sm:$0xff]
    %v8357 = vld [vmem:[%s2 + $0x18] sm:$0xff]
    %v8358 = vld [vmem:[%s2 + $0x20] sm:$0xff]
    %v8359 = vld [vmem:[%s2 + $0x28] sm:$0xff]
    %v8360 = vld [vmem:[%s2 + $0x30] sm:$0xff]
    %v8361 = vld [vmem:[%s2 + $0x38] sm:$0xff]
    %v8362 = vld [vmem:[%s2 + $0x40] sm:$0xff]
    %v8363 = vld [vmem:[%s2 + $0x48] sm:$0xff]
    %v8364 = vld [vmem:[%s2 + $0x50] sm:$0xff]
    %v8365 = vld [vmem:[%s2 + $0x58] sm:$0xff]
    %v8366 = vld [vmem:[%s2 + $0x60] sm:$0xff]
    %v8367 = vld [vmem:[%s2 + $0x68] sm:$0xff]
    %v8368 = vld [vmem:[%s2 + $0x70] sm:$0xff]
    %v8369 = vld [vmem:[%s2 + $0x78] sm:$0xff]
    %v8370 = vld [vmem:[%s2 + $0x80] sm:$0xff]
    %v8371 = vld [vmem:[%s2 + $0x88] sm:$0xff]
    %v8372 = vld [vmem:[%s2 + $0x90] sm:$0xff]
    %v8373 = vld [vmem:[%s2 + $0x98] sm:$0xff]
    %v8374 = vld [vmem:[%s2 + $0xa0] sm:$0xff]
    %v8375 = vld [vmem:[%s2 + $0xa8] sm:$0xff]
    %v8376 = vld [vmem:[%s2 + $0xb0] sm:$0xff]
    %v8377 = vld [vmem:[%s2 + $0xb8] sm:$0xff]
    %v8378 = vld [vmem:[%s2 + $0xc0] sm:$0xff]
    %v8379 = vld [vmem:[%s2 + $0xc8] sm:$0xff]
    %v8380 = vld [vmem:[%s2 + $0xd0] sm:$0xff]
    %v8381 = vld [vmem:[%s2 + $0xd8] sm:$0xff]
    %v8382 = vld [vmem:[%s2 + $0xe0] sm:$0xff]
    %v8383 = vld [vmem:[%s2 + $0xe8] sm:$0xff]
    %v8384 = vld [vmem:[%s2 + $0xf0] sm:$0xff]
    %v8385 = vld [vmem:[%s2 + $0xf8] sm:$0xff]
    %v8386 = vld [vmem:[%s2 + $0x100] sm:$0xff]
    %v8387 = vld [vmem:[%s2 + $0x108] sm:$0xff]
    %v8388 = vld [vmem:[%s2 + $0x110] sm:$0xff]
    %v8389 = vld [vmem:[%s2 + $0x118] sm:$0xff]
    %v8390 = vld [vmem:[%s2 + $0x120] sm:$0xff]
    %v8391 = vld [vmem:[%s2 + $0x128] sm:$0xff]
    %v8392 = vld [vmem:[%s2 + $0x130] sm:$0xff]
    %v8393 = vld [vmem:[%s2 + $0x138] sm:$0xff]
    %v8394 = vld [vmem:[%s2 + $0x140] sm:$0xff]
    %v8395 = vld [vmem:[%s2 + $0x148] sm:$0xff]
    %v8396 = vld [vmem:[%s2 + $0x150] sm:$0xff]
    %v8397 = vld [vmem:[%s2 + $0x158] sm:$0xff]
    %v8398 = vld [vmem:[%s2 + $0x160] sm:$0xff]
    %v8399 = vld [vmem:[%s2 + $0x168] sm:$0xff]
    %v8400 = vld [vmem:[%s2 + $0x170] sm:$0xff]
    %v8401 = vld [vmem:[%s2 + $0x178] sm:$0xff]
    %v8402 = vld [vmem:[%s2 + $0x180] sm:$0xff]
    %v8403 = vld [vmem:[%s2 + $0x188] sm:$0xff]
    %v8404 = vld [vmem:[%s2 + $0x190] sm:$0xff]
    %v8405 = vld [vmem:[%s2 + $0x198] sm:$0xff]
    %v8406 = vld [vmem:[%s2 + $0x1a0] sm:$0xff]
    %v8407 = vld [vmem:[%s2 + $0x1a8] sm:$0xff]
    %v8408 = vld [vmem:[%s2 + $0x1b0] sm:$0xff]
    %v8409 = vld [vmem:[%s2 + $0x1b8] sm:$0xff]
    %v8410 = vld [vmem:[%s2 + $0x1c0] sm:$0xff]
    %v8411 = vld [vmem:[%s2 + $0x1c8] sm:$0xff]
    %v8412 = vld [vmem:[%s2 + $0x1d0] sm:$0xff]
    %v8413 = vld [vmem:[%s2 + $0x1d8] sm:$0xff]
    %v8414 = vld [vmem:[%s2 + $0x1e0] sm:$0xff]
    %v8415 = vld [vmem:[%s2 + $0x1e8] sm:$0xff]
    %v8416 = vld [vmem:[%s2 + $0x1f0] sm:$0xff]
    %v8417 = vld [vmem:[%s2 + $0x1f8] sm:$0xff]
    %v8418 = vld [vmem:[%s2 + $0x200] sm:$0xff]
    %v8419 = vld [vmem:[%s2 + $0x208] sm:$0xff]
    %v8420 = vld [vmem:[%s2 + $0x210] sm:$0xff]
    %v8421 = vld [vmem:[%s2 + $0x218] sm:$0xff]
    %v8422 = vld [vmem:[%s2 + $0x220] sm:$0xff]
    %v8423 = vld [vmem:[%s2 + $0x228] sm:$0xff]
    %v8424 = vld [vmem:[%s2 + $0x230] sm:$0xff]
    %v8425 = vld [vmem:[%s2 + $0x238] sm:$0xff]
    %v8426 = vld [vmem:[%s2 + $0x240] sm:$0xff]
    %v8427 = vld [vmem:[%s2 + $0x248] sm:$0xff]
    %v8428 = vld [vmem:[%s2 + $0x250] sm:$0xff]
    %v8429 = vld [vmem:[%s2 + $0x258] sm:$0xff]
    %v8430 = vld [vmem:[%s2 + $0x260] sm:$0xff]
    %v8431 = vld [vmem:[%s2 + $0x268] sm:$0xff]
    %v8432 = vld [vmem:[%s2 + $0x270] sm:$0xff]
    %v8433 = vld [vmem:[%s2 + $0x278] sm:$0xff]
    %v8434 = vld [vmem:[%s2 + $0x280] sm:$0xff]
    %v8435 = vld [vmem:[%s2 + $0x288] sm:$0xff]
    %v8436 = vld [vmem:[%s2 + $0x290] sm:$0xff]
    %v8437 = vld [vmem:[%s2 + $0x298] sm:$0xff]
    %v8438 = vld [vmem:[%s2 + $0x2a0] sm:$0xff]
    %v8439 = vld [vmem:[%s2 + $0x2a8] sm:$0xff]
    %v8440 = vld [vmem:[%s2 + $0x2b0] sm:$0xff]
    %v8441 = vld [vmem:[%s2 + $0x2b8] sm:$0xff]
    %v8442 = vld [vmem:[%s2 + $0x2c0] sm:$0xff]
    %v8443 = vld [vmem:[%s2 + $0x2c8] sm:$0xff]
    %v8444 = vld [vmem:[%s2 + $0x2d0] sm:$0xff]
    %v8445 = vld [vmem:[%s2 + $0x2d8] sm:$0xff]
    %v8446 = vld [vmem:[%s2 + $0x2e0] sm:$0xff]
    %v8447 = vld [vmem:[%s2 + $0x2e8] sm:$0xff]
    %v8448 = vld [vmem:[%s2 + $0x2f0] sm:$0xff]
    %v8449 = vld [vmem:[%s2 + $0x2f8] sm:$0xff]
    %v8450 = vld [vmem:[%s2 + $0x300] sm:$0xff]
    %v8451 = vld [vmem:[%s2 + $0x308] sm:$0xff]
    %v8452 = vld [vmem:[%s2 + $0x310] sm:$0xff]
    %v8453 = vld [vmem:[%s2 + $0x318] sm:$0xff]
    %v8454 = vld [vmem:[%s2 + $0x320] sm:$0xff]
    %v8455 = vld [vmem:[%s2 + $0x328] sm:$0xff]
    %v8456 = vld [vmem:[%s2 + $0x330] sm:$0xff]
    %v8457 = vld [vmem:[%s2 + $0x338] sm:$0xff]
    %v8458 = vld [vmem:[%s2 + $0x340] sm:$0xff]
    %v8459 = vld [vmem:[%s2 + $0x348] sm:$0xff]
    %v8460 = vld [vmem:[%s2 + $0x350] sm:$0xff]
    %v8461 = vld [vmem:[%s2 + $0x358] sm:$0xff]
    %v8462 = vld [vmem:[%s2 + $0x360] sm:$0xff]
    %v8463 = vld [vmem:[%s2 + $0x368] sm:$0xff]
    %v8464 = vld [vmem:[%s2 + $0x370] sm:$0xff]
    %v8465 = vld [vmem:[%s2 + $0x378] sm:$0xff]
    %v8466 = vld [vmem:[%s2 + $0x380] sm:$0xff]
    %v8467 = vld [vmem:[%s2 + $0x388] sm:$0xff]
    %v8468 = vld [vmem:[%s2 + $0x390] sm:$0xff]
    %v8469 = vld [vmem:[%s2 + $0x398] sm:$0xff]
    %v8470 = vld [vmem:[%s2 + $0x3a0] sm:$0xff]
    %v8471 = vld [vmem:[%s2 + $0x3a8] sm:$0xff]
    %v8472 = vld [vmem:[%s2 + $0x3b0] sm:$0xff]
    %v8473 = vld [vmem:[%s2 + $0x3b8] sm:$0xff]
    %v8474 = vld [vmem:[%s2 + $0x3c0] sm:$0xff]
    %v8475 = vld [vmem:[%s2 + $0x3c8] sm:$0xff]
    %v8476 = vld [vmem:[%s2 + $0x3d0] sm:$0xff]
    %v8477 = vld [vmem:[%s2 + $0x3d8] sm:$0xff]
    %v8478 = vld [vmem:[%s2 + $0x3e0] sm:$0xff]
    %v8479 = vld [vmem:[%s2 + $0x3e8] sm:$0xff]
    %v8480 = vld [vmem:[%s2 + $0x3f0] sm:$0xff]
    %v8481 = vld [vmem:[%s2 + $0x3f8] sm:$0xff]
    %v8482 = vld [vmem:[#allocation2] sm:$0xff]
    %v8483 = vld [vmem:[#allocation2 + $0x8] sm:$0xff]
    %v8484 = vld [vmem:[#allocation2 + $0x10] sm:$0xff]
    %v8485 = vld [vmem:[#allocation2 + $0x18] sm:$0xff]
    %v8486 = vld [vmem:[#allocation2 + $0x20] sm:$0xff]
    %v8487 = vld [vmem:[#allocation2 + $0x28] sm:$0xff]
    %v8488 = vld [vmem:[#allocation2 + $0x30] sm:$0xff]
    %v8489 = vld [vmem:[#allocation2 + $0x38] sm:$0xff]
    %v8490 = vld [vmem:[#allocation2 + $0x40] sm:$0xff]
    %v8491 = vld [vmem:[#allocation2 + $0x48] sm:$0xff]
    %v8492 = vld [vmem:[#allocation2 + $0x50] sm:$0xff]
    %v8493 = vld [vmem:[#allocation2 + $0x58] sm:$0xff]
    %v8494 = vld [vmem:[#allocation2 + $0x60] sm:$0xff]
    %v8495 = vld [vmem:[#allocation2 + $0x68] sm:$0xff]
    %v8496 = vld [vmem:[#allocation2 + $0x70] sm:$0xff]
    %v8497 = vld [vmem:[#allocation2 + $0x78] sm:$0xff]
    %v8498 = vld [vmem:[#allocation2 + $0x80] sm:$0xff]
    %v8499 = vld [vmem:[#allocation2 + $0x88] sm:$0xff]
    %v8500 = vld [vmem:[#allocation2 + $0x90] sm:$0xff]
    %v8501 = vld [vmem:[#allocation2 + $0x98] sm:$0xff]
    %v8502 = vld [vmem:[#allocation2 + $0xa0] sm:$0xff]
    %v8503 = vld [vmem:[#allocation2 + $0xa8] sm:$0xff]
    %v8504 = vld [vmem:[#allocation2 + $0xb0] sm:$0xff]
    %v8505 = vld [vmem:[#allocation2 + $0xb8] sm:$0xff]
    %v8506 = vld [vmem:[#allocation2 + $0xc0] sm:$0xff]
    %v8507 = vld [vmem:[#allocation2 + $0xc8] sm:$0xff]
    %v8508 = vld [vmem:[#allocation2 + $0xd0] sm:$0xff]
    %v8509 = vld [vmem:[#allocation2 + $0xd8] sm:$0xff]
    %v8510 = vld [vmem:[#allocation2 + $0xe0] sm:$0xff]
    %v8511 = vld [vmem:[#allocation2 + $0xe8] sm:$0xff]
    %v8512 = vld [vmem:[#allocation2 + $0xf0] sm:$0xff]
    %v8513 = vld [vmem:[#allocation2 + $0xf8] sm:$0xff]
    %v8514 = vld [vmem:[#allocation2 + $0x100] sm:$0xff]
    %v8515 = vld [vmem:[#allocation2 + $0x108] sm:$0xff]
    %v8516 = vld [vmem:[#allocation2 + $0x110] sm:$0xff]
    %v8517 = vld [vmem:[#allocation2 + $0x118] sm:$0xff]
    %v8518 = vld [vmem:[#allocation2 + $0x120] sm:$0xff]
    %v8519 = vld [vmem:[#allocation2 + $0x128] sm:$0xff]
    %v8520 = vld [vmem:[#allocation2 + $0x130] sm:$0xff]
    %v8521 = vld [vmem:[#allocation2 + $0x138] sm:$0xff]
    %v8522 = vld [vmem:[#allocation2 + $0x140] sm:$0xff]
    %v8523 = vld [vmem:[#allocation2 + $0x148] sm:$0xff]
    %v8524 = vld [vmem:[#allocation2 + $0x150] sm:$0xff]
    %v8525 = vld [vmem:[#allocation2 + $0x158] sm:$0xff]
    %v8526 = vld [vmem:[#allocation2 + $0x160] sm:$0xff]
    %v8527 = vld [vmem:[#allocation2 + $0x168] sm:$0xff]
    %v8528 = vld [vmem:[#allocation2 + $0x170] sm:$0xff]
    %v8529 = vld [vmem:[#allocation2 + $0x178] sm:$0xff]
    %v8530 = vld [vmem:[#allocation2 + $0x180] sm:$0xff]
    %v8531 = vld [vmem:[#allocation2 + $0x188] sm:$0xff]
    %v8532 = vld [vmem:[#allocation2 + $0x190] sm:$0xff]
    %v8533 = vld [vmem:[#allocation2 + $0x198] sm:$0xff]
    %v8534 = vld [vmem:[#allocation2 + $0x1a0] sm:$0xff]
    %v8535 = vld [vmem:[#allocation2 + $0x1a8] sm:$0xff]
    %v8536 = vld [vmem:[#allocation2 + $0x1b0] sm:$0xff]
    %v8537 = vld [vmem:[#allocation2 + $0x1b8] sm:$0xff]
    %v8538 = vld [vmem:[#allocation2 + $0x1c0] sm:$0xff]
    %v8539 = vld [vmem:[#allocation2 + $0x1c8] sm:$0xff]
    %v8540 = vld [vmem:[#allocation2 + $0x1d0] sm:$0xff]
    %v8541 = vld [vmem:[#allocation2 + $0x1d8] sm:$0xff]
    %v8542 = vld [vmem:[#allocation2 + $0x1e0] sm:$0xff]
    %v8543 = vld [vmem:[#allocation2 + $0x1e8] sm:$0xff]
    %v8544 = vld [vmem:[#allocation2 + $0x1f0] sm:$0xff]
    %v8545 = vld [vmem:[#allocation2 + $0x1f8] sm:$0xff]
    %v8674 = vunpack.c.l.b16 %v8354
    %v8675 = vunpack.c.h.b16 %v8354
    %v8676 = vunpack.c.l.b16 %v8355
    %v8677 = vunpack.c.h.b16 %v8355
    %v8678 = vunpack.c.l.b16 %v8356
    %v8679 = vunpack.c.h.b16 %v8356
    %v8680 = vunpack.c.l.b16 %v8357
    %v8681 = vunpack.c.h.b16 %v8357
    %v8682 = vunpack.c.l.b16 %v8358
    %v8683 = vunpack.c.h.b16 %v8358
    %v8684 = vunpack.c.l.b16 %v8359
    %v8685 = vunpack.c.h.b16 %v8359
    %v8686 = vunpack.c.l.b16 %v8360
    %v8687 = vunpack.c.h.b16 %v8360
    %v8688 = vunpack.c.l.b16 %v8361
    %v8689 = vunpack.c.h.b16 %v8361
    %v8690 = vunpack.c.l.b16 %v8362
    %v8691 = vunpack.c.h.b16 %v8362
    %v8692 = vunpack.c.l.b16 %v8363
    %v8693 = vunpack.c.h.b16 %v8363
    %v8694 = vunpack.c.l.b16 %v8364
    %v8695 = vunpack.c.h.b16 %v8364
    %v8696 = vunpack.c.l.b16 %v8365
    %v8697 = vunpack.c.h.b16 %v8365
    %v8698 = vunpack.c.l.b16 %v8366
    %v8699 = vunpack.c.h.b16 %v8366
    %v8700 = vunpack.c.l.b16 %v8367
    %v8701 = vunpack.c.h.b16 %v8367
    %v8702 = vunpack.c.l.b16 %v8368
    %v8703 = vunpack.c.h.b16 %v8368
    %v8704 = vunpack.c.l.b16 %v8369
    %v8705 = vunpack.c.h.b16 %v8369
    %v8706 = vunpack.c.l.b16 %v8370
    %v8707 = vunpack.c.h.b16 %v8370
    %v8708 = vunpack.c.l.b16 %v8371
    %v8709 = vunpack.c.h.b16 %v8371
    %v8710 = vunpack.c.l.b16 %v8372
    %v8711 = vunpack.c.h.b16 %v8372
    %v8712 = vunpack.c.l.b16 %v8373
    %v8713 = vunpack.c.h.b16 %v8373
    %v8714 = vunpack.c.l.b16 %v8374
    %v8715 = vunpack.c.h.b16 %v8374
    %v8716 = vunpack.c.l.b16 %v8375
    %v8717 = vunpack.c.h.b16 %v8375
    %v8718 = vunpack.c.l.b16 %v8376
    %v8719 = vunpack.c.h.b16 %v8376
    %v8720 = vunpack.c.l.b16 %v8377
    %v8721 = vunpack.c.h.b16 %v8377
    %v8722 = vunpack.c.l.b16 %v8378
    %v8723 = vunpack.c.h.b16 %v8378
    %v8724 = vunpack.c.l.b16 %v8379
    %v8725 = vunpack.c.h.b16 %v8379
    %v8726 = vunpack.c.l.b16 %v8380
    %v8727 = vunpack.c.h.b16 %v8380
    %v8728 = vunpack.c.l.b16 %v8381
    %v8729 = vunpack.c.h.b16 %v8381
    %v8730 = vunpack.c.l.b16 %v8382
    %v8731 = vunpack.c.h.b16 %v8382
    %v8732 = vunpack.c.l.b16 %v8383
    %v8733 = vunpack.c.h.b16 %v8383
    %v8734 = vunpack.c.l.b16 %v8384
    %v8735 = vunpack.c.h.b16 %v8384
    %v8736 = vunpack.c.l.b16 %v8385
    %v8737 = vunpack.c.h.b16 %v8385
    %v8738 = vunpack.c.l.b16 %v8386
    %v8739 = vunpack.c.h.b16 %v8386
    %v8740 = vunpack.c.l.b16 %v8387
    %v8741 = vunpack.c.h.b16 %v8387
    %v8742 = vunpack.c.l.b16 %v8388
    %v8743 = vunpack.c.h.b16 %v8388
    %v8744 = vunpack.c.l.b16 %v8389
    %v8745 = vunpack.c.h.b16 %v8389
    %v8746 = vunpack.c.l.b16 %v8390
    %v8747 = vunpack.c.h.b16 %v8390
    %v8748 = vunpack.c.l.b16 %v8391
    %v8749 = vunpack.c.h.b16 %v8391
    %v8750 = vunpack.c.l.b16 %v8392
    %v8751 = vunpack.c.h.b16 %v8392
    %v8752 = vunpack.c.l.b16 %v8393
    %v8753 = vunpack.c.h.b16 %v8393
    %v8754 = vunpack.c.l.b16 %v8394
    %v8755 = vunpack.c.h.b16 %v8394
    %v8756 = vunpack.c.l.b16 %v8395
    %v8757 = vunpack.c.h.b16 %v8395
    %v8758 = vunpack.c.l.b16 %v8396
    %v8759 = vunpack.c.h.b16 %v8396
    %v8760 = vunpack.c.l.b16 %v8397
    %v8761 = vunpack.c.h.b16 %v8397
    %v8762 = vunpack.c.l.b16 %v8398
    %v8763 = vunpack.c.h.b16 %v8398
    %v8764 = vunpack.c.l.b16 %v8399
    %v8765 = vunpack.c.h.b16 %v8399
    %v8766 = vunpack.c.l.b16 %v8400
    %v8767 = vunpack.c.h.b16 %v8400
    %v8768 = vunpack.c.l.b16 %v8401
    %v8769 = vunpack.c.h.b16 %v8401
    %v8770 = vunpack.c.l.b16 %v8402
    %v8771 = vunpack.c.h.b16 %v8402
    %v8772 = vunpack.c.l.b16 %v8403
    %v8773 = vunpack.c.h.b16 %v8403
    %v8774 = vunpack.c.l.b16 %v8404
    %v8775 = vunpack.c.h.b16 %v8404
    %v8776 = vunpack.c.l.b16 %v8405
    %v8777 = vunpack.c.h.b16 %v8405
    %v8778 = vunpack.c.l.b16 %v8406
    %v8779 = vunpack.c.h.b16 %v8406
    %v8780 = vunpack.c.l.b16 %v8407
    %v8781 = vunpack.c.h.b16 %v8407
    %v8782 = vunpack.c.l.b16 %v8408
    %v8783 = vunpack.c.h.b16 %v8408
    %v8784 = vunpack.c.l.b16 %v8409
    %v8785 = vunpack.c.h.b16 %v8409
    %v8786 = vunpack.c.l.b16 %v8410
    %v8787 = vunpack.c.h.b16 %v8410
    %v8788 = vunpack.c.l.b16 %v8411
    %v8789 = vunpack.c.h.b16 %v8411
    %v8790 = vunpack.c.l.b16 %v8412
    %v8791 = vunpack.c.h.b16 %v8412
    %v8792 = vunpack.c.l.b16 %v8413
    %v8793 = vunpack.c.h.b16 %v8413
    %v8794 = vunpack.c.l.b16 %v8414
    %v8795 = vunpack.c.h.b16 %v8414
    %v8796 = vunpack.c.l.b16 %v8415
    %v8797 = vunpack.c.h.b16 %v8415
    %v8798 = vunpack.c.l.b16 %v8416
    %v8799 = vunpack.c.h.b16 %v8416
    %v8800 = vunpack.c.l.b16 %v8417
    %v8801 = vunpack.c.h.b16 %v8417
    %v8802 = vunpack.c.l.b16 %v8418
    %v8803 = vunpack.c.h.b16 %v8418
    %v8804 = vunpack.c.l.b16 %v8419
    %v8805 = vunpack.c.h.b16 %v8419
    %v8806 = vunpack.c.l.b16 %v8420
    %v8807 = vunpack.c.h.b16 %v8420
    %v8808 = vunpack.c.l.b16 %v8421
    %v8809 = vunpack.c.h.b16 %v8421
    %v8810 = vunpack.c.l.b16 %v8422
    %v8811 = vunpack.c.h.b16 %v8422
    %v8812 = vunpack.c.l.b16 %v8423
    %v8813 = vunpack.c.h.b16 %v8423
    %v8814 = vunpack.c.l.b16 %v8424
    %v8815 = vunpack.c.h.b16 %v8424
    %v8816 = vunpack.c.l.b16 %v8425
    %v8817 = vunpack.c.h.b16 %v8425
    %v8818 = vunpack.c.l.b16 %v8426
    %v8819 = vunpack.c.h.b16 %v8426
    %v8820 = vunpack.c.l.b16 %v8427
    %v8821 = vunpack.c.h.b16 %v8427
    %v8822 = vunpack.c.l.b16 %v8428
    %v8823 = vunpack.c.h.b16 %v8428
    %v8824 = vunpack.c.l.b16 %v8429
    %v8825 = vunpack.c.h.b16 %v8429
    %v8826 = vunpack.c.l.b16 %v8430
    %v8827 = vunpack.c.h.b16 %v8430
    %v8828 = vunpack.c.l.b16 %v8431
    %v8829 = vunpack.c.h.b16 %v8431
    %v8830 = vunpack.c.l.b16 %v8432
    %v8831 = vunpack.c.h.b16 %v8432
    %v8832 = vunpack.c.l.b16 %v8433
    %v8833 = vunpack.c.h.b16 %v8433
    %v8834 = vunpack.c.l.b16 %v8434
    %v8835 = vunpack.c.h.b16 %v8434
    %v8836 = vunpack.c.l.b16 %v8435
    %v8837 = vunpack.c.h.b16 %v8435
    %v8838 = vunpack.c.l.b16 %v8436
    %v8839 = vunpack.c.h.b16 %v8436
    %v8840 = vunpack.c.l.b16 %v8437
    %v8841 = vunpack.c.h.b16 %v8437
    %v8842 = vunpack.c.l.b16 %v8438
    %v8843 = vunpack.c.h.b16 %v8438
    %v8844 = vunpack.c.l.b16 %v8439
    %v8845 = vunpack.c.h.b16 %v8439
    %v8846 = vunpack.c.l.b16 %v8440
    %v8847 = vunpack.c.h.b16 %v8440
    %v8848 = vunpack.c.l.b16 %v8441
    %v8849 = vunpack.c.h.b16 %v8441
    %v8850 = vunpack.c.l.b16 %v8442
    %v8851 = vunpack.c.h.b16 %v8442
    %v8852 = vunpack.c.l.b16 %v8443
    %v8853 = vunpack.c.h.b16 %v8443
    %v8854 = vunpack.c.l.b16 %v8444
    %v8855 = vunpack.c.h.b16 %v8444
    %v8856 = vunpack.c.l.b16 %v8445
    %v8857 = vunpack.c.h.b16 %v8445
    %v8858 = vunpack.c.l.b16 %v8446
    %v8859 = vunpack.c.h.b16 %v8446
    %v8860 = vunpack.c.l.b16 %v8447
    %v8861 = vunpack.c.h.b16 %v8447
    %v8862 = vunpack.c.l.b16 %v8448
    %v8863 = vunpack.c.h.b16 %v8448
    %v8864 = vunpack.c.l.b16 %v8449
    %v8865 = vunpack.c.h.b16 %v8449
    %v8866 = vunpack.c.l.b16 %v8450
    %v8867 = vunpack.c.h.b16 %v8450
    %v8868 = vunpack.c.l.b16 %v8451
    %v8869 = vunpack.c.h.b16 %v8451
    %v8870 = vunpack.c.l.b16 %v8452
    %v8871 = vunpack.c.h.b16 %v8452
    %v8872 = vunpack.c.l.b16 %v8453
    %v8873 = vunpack.c.h.b16 %v8453
    %v8874 = vunpack.c.l.b16 %v8454
    %v8875 = vunpack.c.h.b16 %v8454
    %v8876 = vunpack.c.l.b16 %v8455
    %v8877 = vunpack.c.h.b16 %v8455
    %v8878 = vunpack.c.l.b16 %v8456
    %v8879 = vunpack.c.h.b16 %v8456
    %v8880 = vunpack.c.l.b16 %v8457
    %v8881 = vunpack.c.h.b16 %v8457
    %v8882 = vunpack.c.l.b16 %v8458
    %v8883 = vunpack.c.h.b16 %v8458
    %v8884 = vunpack.c.l.b16 %v8459
    %v8885 = vunpack.c.h.b16 %v8459
    %v8886 = vunpack.c.l.b16 %v8460
    %v8887 = vunpack.c.h.b16 %v8460
    %v8888 = vunpack.c.l.b16 %v8461
    %v8889 = vunpack.c.h.b16 %v8461
    %v8890 = vunpack.c.l.b16 %v8462
    %v8891 = vunpack.c.h.b16 %v8462
    %v8892 = vunpack.c.l.b16 %v8463
    %v8893 = vunpack.c.h.b16 %v8463
    %v8894 = vunpack.c.l.b16 %v8464
    %v8895 = vunpack.c.h.b16 %v8464
    %v8896 = vunpack.c.l.b16 %v8465
    %v8897 = vunpack.c.h.b16 %v8465
    %v8898 = vunpack.c.l.b16 %v8466
    %v8899 = vunpack.c.h.b16 %v8466
    %v8900 = vunpack.c.l.b16 %v8467
    %v8901 = vunpack.c.h.b16 %v8467
    %v8902 = vunpack.c.l.b16 %v8468
    %v8903 = vunpack.c.h.b16 %v8468
    %v8904 = vunpack.c.l.b16 %v8469
    %v8905 = vunpack.c.h.b16 %v8469
    %v8906 = vunpack.c.l.b16 %v8470
    %v8907 = vunpack.c.h.b16 %v8470
    %v8908 = vunpack.c.l.b16 %v8471
    %v8909 = vunpack.c.h.b16 %v8471
    %v8910 = vunpack.c.l.b16 %v8472
    %v8911 = vunpack.c.h.b16 %v8472
    %v8912 = vunpack.c.l.b16 %v8473
    %v8913 = vunpack.c.h.b16 %v8473
    %v8914 = vunpack.c.l.b16 %v8474
    %v8915 = vunpack.c.h.b16 %v8474
    %v8916 = vunpack.c.l.b16 %v8475
    %v8917 = vunpack.c.h.b16 %v8475
    %v8918 = vunpack.c.l.b16 %v8476
    %v8919 = vunpack.c.h.b16 %v8476
    %v8920 = vunpack.c.l.b16 %v8477
    %v8921 = vunpack.c.h.b16 %v8477
    %v8922 = vunpack.c.l.b16 %v8478
    %v8923 = vunpack.c.h.b16 %v8478
    %v8924 = vunpack.c.l.b16 %v8479
    %v8925 = vunpack.c.h.b16 %v8479
    %v8926 = vunpack.c.l.b16 %v8480
    %v8927 = vunpack.c.h.b16 %v8480
    %v8928 = vunpack.c.l.b16 %v8481
    %v8929 = vunpack.c.h.b16 %v8481
    %v8930 = vpack.c.b16 %v8682, %v8674
    %v8931 = vpack.c.b16 %v8683, %v8675
    %v8932 = vpack.c.b16 %v8684, %v8676
    %v8933 = vpack.c.b16 %v8685, %v8677
    %v8934 = vpack.c.b16 %v8686, %v8678
    %v8935 = vpack.c.b16 %v8687, %v8679
    %v8936 = vpack.c.b16 %v8688, %v8680
    %v8937 = vpack.c.b16 %v8689, %v8681
    %v8938 = vpack.c.b16 %v8698, %v8690
    %v8939 = vpack.c.b16 %v8699, %v8691
    %v8940 = vpack.c.b16 %v8700, %v8692
    %v8941 = vpack.c.b16 %v8701, %v8693
    %v8942 = vpack.c.b16 %v8702, %v8694
    %v8943 = vpack.c.b16 %v8703, %v8695
    %v8944 = vpack.c.b16 %v8704, %v8696
    %v8945 = vpack.c.b16 %v8705, %v8697
    %v8946 = vpack.c.b16 %v8714, %v8706
    %v8947 = vpack.c.b16 %v8715, %v8707
    %v8948 = vpack.c.b16 %v8716, %v8708
    %v8949 = vpack.c.b16 %v8717, %v8709
    %v8950 = vpack.c.b16 %v8718, %v8710
    %v8951 = vpack.c.b16 %v8719, %v8711
    %v8952 = vpack.c.b16 %v8720, %v8712
    %v8953 = vpack.c.b16 %v8721, %v8713
    %v8954 = vpack.c.b16 %v8730, %v8722
    %v8955 = vpack.c.b16 %v8731, %v8723
    %v8956 = vpack.c.b16 %v8732, %v8724
    %v8957 = vpack.c.b16 %v8733, %v8725
    %v8958 = vpack.c.b16 %v8734, %v8726
    %v8959 = vpack.c.b16 %v8735, %v8727
    %v8960 = vpack.c.b16 %v8736, %v8728
    %v8961 = vpack.c.b16 %v8737, %v8729
    %v8962 = vpack.c.b16 %v8746, %v8738
    %v8963 = vpack.c.b16 %v8747, %v8739
    %v8964 = vpack.c.b16 %v8748, %v8740
    %v8965 = vpack.c.b16 %v8749, %v8741
    %v8966 = vpack.c.b16 %v8750, %v8742
    %v8967 = vpack.c.b16 %v8751, %v8743
    %v8968 = vpack.c.b16 %v8752, %v8744
    %v8969 = vpack.c.b16 %v8753, %v8745
    %v8970 = vpack.c.b16 %v8762, %v8754
    %v8971 = vpack.c.b16 %v8763, %v8755
    %v8972 = vpack.c.b16 %v8764, %v8756
    %v8973 = vpack.c.b16 %v8765, %v8757
    %v8974 = vpack.c.b16 %v8766, %v8758
    %v8975 = vpack.c.b16 %v8767, %v8759
    %v8976 = vpack.c.b16 %v8768, %v8760
    %v8977 = vpack.c.b16 %v8769, %v8761
    %v8978 = vpack.c.b16 %v8778, %v8770
    %v8979 = vpack.c.b16 %v8779, %v8771
    %v8980 = vpack.c.b16 %v8780, %v8772
    %v8981 = vpack.c.b16 %v8781, %v8773
    %v8982 = vpack.c.b16 %v8782, %v8774
    %v8983 = vpack.c.b16 %v8783, %v8775
    %v8984 = vpack.c.b16 %v8784, %v8776
    %v8985 = vpack.c.b16 %v8785, %v8777
    %v8986 = vpack.c.b16 %v8794, %v8786
    %v8987 = vpack.c.b16 %v8795, %v8787
    %v8988 = vpack.c.b16 %v8796, %v8788
    %v8989 = vpack.c.b16 %v8797, %v8789
    %v8990 = vpack.c.b16 %v8798, %v8790
    %v8991 = vpack.c.b16 %v8799, %v8791
    %v8992 = vpack.c.b16 %v8800, %v8792
    %v8993 = vpack.c.b16 %v8801, %v8793
    %v8994 = vpack.c.b16 %v8810, %v8802
    %v8995 = vpack.c.b16 %v8811, %v8803
    %v8996 = vpack.c.b16 %v8812, %v8804
    %v8997 = vpack.c.b16 %v8813, %v8805
    %v8998 = vpack.c.b16 %v8814, %v8806
    %v8999 = vpack.c.b16 %v8815, %v8807
    %v9000 = vpack.c.b16 %v8816, %v8808
    %v9001 = vpack.c.b16 %v8817, %v8809
    %v9002 = vpack.c.b16 %v8826, %v8818
    %v9003 = vpack.c.b16 %v8827, %v8819
    %v9004 = vpack.c.b16 %v8828, %v8820
    %v9005 = vpack.c.b16 %v8829, %v8821
    %v9006 = vpack.c.b16 %v8830, %v8822
    %v9007 = vpack.c.b16 %v8831, %v8823
    %v9008 = vpack.c.b16 %v8832, %v8824
    %v9009 = vpack.c.b16 %v8833, %v8825
    %v9010 = vpack.c.b16 %v8842, %v8834
    %v9011 = vpack.c.b16 %v8843, %v8835
    %v9012 = vpack.c.b16 %v8844, %v8836
    %v9013 = vpack.c.b16 %v8845, %v8837
    %v9014 = vpack.c.b16 %v8846, %v8838
    %v9015 = vpack.c.b16 %v8847, %v8839
    %v9016 = vpack.c.b16 %v8848, %v8840
    %v9017 = vpack.c.b16 %v8849, %v8841
    %v9018 = vpack.c.b16 %v8858, %v8850
    %v9019 = vpack.c.b16 %v8859, %v8851
    %v9020 = vpack.c.b16 %v8860, %v8852
    %v9021 = vpack.c.b16 %v8861, %v8853
    %v9022 = vpack.c.b16 %v8862, %v8854
    %v9023 = vpack.c.b16 %v8863, %v8855
    %v9024 = vpack.c.b16 %v8864, %v8856
    %v9025 = vpack.c.b16 %v8865, %v8857
    %v9026 = vpack.c.b16 %v8874, %v8866
    %v9027 = vpack.c.b16 %v8875, %v8867
    %v9028 = vpack.c.b16 %v8876, %v8868
    %v9029 = vpack.c.b16 %v8877, %v8869
    %v9030 = vpack.c.b16 %v8878, %v8870
    %v9031 = vpack.c.b16 %v8879, %v8871
    %v9032 = vpack.c.b16 %v8880, %v8872
    %v9033 = vpack.c.b16 %v8881, %v8873
    %v9034 = vpack.c.b16 %v8890, %v8882
    %v9035 = vpack.c.b16 %v8891, %v8883
    %v9036 = vpack.c.b16 %v8892, %v8884
    %v9037 = vpack.c.b16 %v8893, %v8885
    %v9038 = vpack.c.b16 %v8894, %v8886
    %v9039 = vpack.c.b16 %v8895, %v8887
    %v9040 = vpack.c.b16 %v8896, %v8888
    %v9041 = vpack.c.b16 %v8897, %v8889
    %v9042 = vpack.c.b16 %v8906, %v8898
    %v9043 = vpack.c.b16 %v8907, %v8899
    %v9044 = vpack.c.b16 %v8908, %v8900
    %v9045 = vpack.c.b16 %v8909, %v8901
    %v9046 = vpack.c.b16 %v8910, %v8902
    %v9047 = vpack.c.b16 %v8911, %v8903
    %v9048 = vpack.c.b16 %v8912, %v8904
    %v9049 = vpack.c.b16 %v8913, %v8905
    %v9050 = vpack.c.b16 %v8922, %v8914
    %v9051 = vpack.c.b16 %v8923, %v8915
    %v9052 = vpack.c.b16 %v8924, %v8916
    %v9053 = vpack.c.b16 %v8925, %v8917
    %v9054 = vpack.c.b16 %v8926, %v8918
    %v9055 = vpack.c.b16 %v8927, %v8919
    %v9056 = vpack.c.b16 %v8928, %v8920
    %v9057 = vpack.c.b16 %v8929, %v8921
    %9186 = vmatprep.subr.bf16.mxu0 0
    %9187 = vmatpush1.bf16.msra.mxu0 %v8482
    %9188 = vmatprep.subr.bf16.mxu0 0
    %9189 = vmatpush1.bf16.msra.mxu0 %v8483
    %9190 = vmatprep.subr.bf16.mxu0 0
    %9191 = vmatpush1.bf16.msra.mxu0 %v8484
    %9192 = vmatprep.subr.bf16.mxu0 0
    %9193 = vmatpush1.bf16.msra.mxu0 %v8485
    %9194 = vmatprep.subr.bf16.mxu0 0
    %9195 = vmatpush1.bf16.msra.mxu0 %v8486
    %9196 = vmatprep.subr.bf16.mxu0 0
    %9197 = vmatpush1.bf16.msra.mxu0 %v8487
    %9198 = vmatprep.subr.bf16.mxu0 0
    %9199 = vmatpush1.bf16.msra.mxu0 %v8488
    %9200 = vmatprep.subr.bf16.mxu0 0
    %9201 = vmatpush1.bf16.msra.mxu0 %v8489
    %9202 = vmatprep.subr.bf16.mxu0 0
    %9203 = vmatpush1.bf16.msra.mxu0 %v8490
    %9204 = vmatprep.subr.bf16.mxu0 0
    %9205 = vmatpush1.bf16.msra.mxu0 %v8491
    %9206 = vmatprep.subr.bf16.mxu0 0
    %9207 = vmatpush1.bf16.msra.mxu0 %v8492
    %9208 = vmatprep.subr.bf16.mxu0 0
    %9209 = vmatpush1.bf16.msra.mxu0 %v8493
    %9210 = vmatprep.subr.bf16.mxu0 0
    %9211 = vmatpush1.bf16.msra.mxu0 %v8494
    %9212 = vmatprep.subr.bf16.mxu0 0
    %9213 = vmatpush1.bf16.msra.mxu0 %v8495
    %9214 = vmatprep.subr.bf16.mxu0 0
    %9215 = vmatpush1.bf16.msra.mxu0 %v8496
    %9216 = vmatprep.subr.bf16.mxu0 0
    %9217 = vmatpush1.bf16.msra.mxu0 %v8497
    %9218 = vmatprep.mubr.bf16.mxu0 %v8931
    %9219 = vmatmul.mubr.bf16.gmra.mrb[0].mxu0 %v8930
    %v9220 = vpop.f32.mrb[0].mxu0
    %v9221 = vadd.f32 0.0, %v9220
    %v9222 = vpop.f32.mrb[0].mxu0
    %v9223 = vpop.f32.mrb[0].mxu0
    %v9224 = vadd.f32 0.0, %v9223
    %v9225 = vpop.f32.mrb[0].mxu0
    %9226 = vmatprep.mubr.bf16.mxu0 %v8939
    %9227 = vmatmul.mubr.bf16.gmra.mrb[0].mxu0 %v8938
    %v9228 = vpop.f32.mrb[0].mxu0
    %v9229 = vadd.f32 0.0, %v9228
    %v9230 = vpop.f32.mrb[0].mxu0
    %v9231 = vpop.f32.mrb[0].mxu0
    %v9232 = vadd.f32 0.0, %v9231
    %v9233 = vpop.f32.mrb[0].mxu0
    %9234 = vmatprep.mubr.bf16.mxu0 %v8947
    %9235 = vmatmul.mubr.bf16.gmra.mrb[0].mxu0 %v8946
    %v9236 = vpop.f32.mrb[0].mxu0
    %v9237 = vadd.f32 0.0, %v9236
    %v9238 = vpop.f32.mrb[0].mxu0
    %v9239 = vpop.f32.mrb[0].mxu0
    %v9240 = vadd.f32 0.0, %v9239
    %v9241 = vpop.f32.mrb[0].mxu0
    %9242 = vmatprep.mubr.bf16.mxu0 %v8955
    %9243 = vmatmul.mubr.bf16.gmra.mrb[0].mxu0 %v8954
    %v9244 = vpop.f32.mrb[0].mxu0
    %v9245 = vadd.f32 0.0, %v9244
    %v9246 = vpop.f32.mrb[0].mxu0
    %v9247 = vpop.f32.mrb[0].mxu0
    %v9248 = vadd.f32 0.0, %v9247
    %v9249 = vpop.f32.mrb[0].mxu0
    %9250 = vmatprep.mubr.bf16.mxu0 %v8963
    %9251 = vmatmul.mubr.bf16.gmra.mrb[0].mxu0 %v8962
    %v9252 = vpop.f32.mrb[0].mxu0
    %v9253 = vadd.f32 0.0, %v9252
    %v9254 = vpop.f32.mrb[0].mxu0
    %v9255 = vpop.f32.mrb[0].mxu0
    %v9256 = vadd.f32 0.0, %v9255
    %v9257 = vpop.f32.mrb[0].mxu0
    %9258 = vmatprep.mubr.bf16.mxu0 %v8971
    %9259 = vmatmul.mubr.bf16.gmra.mrb[0].mxu0 %v8970
    %v9260 = vpop.f32.mrb[0].mxu0
    %v9261 = vadd.f32 0.0, %v9260
    %v9262 = vpop.f32.mrb[0].mxu0
    %v9263 = vpop.f32.mrb[0].mxu0
    %v9264 = vadd.f32 0.0, %v9263
    %v9265 = vpop.f32.mrb[0].mxu0
    %9266 = vmatprep.mubr.bf16.mxu0 %v8979
    %9267 = vmatmul.mubr.bf16.gmra.mrb[0].mxu0 %v8978
    %v9268 = vpop.f32.mrb[0].mxu0
    %v9269 = vadd.f32 0.0, %v9268
    %v9270 = vpop.f32.mrb[0].mxu0
    %v9271 = vpop.f32.mrb[0].mxu0
    %v9272 = vadd.f32 0.0, %v9271
    %v9273 = vpop.f32.mrb[0].mxu0
    %9274 = vmatprep.mubr.bf16.mxu0 %v8987
    %9275 = vmatmul.mubr.bf16.gmra.mrb[0].mxu0 %v8986
    %v9276 = vpop.f32.mrb[0].mxu0
    %v9277 = vadd.f32 0.0, %v9276
    %v9278 = vpop.f32.mrb[0].mxu0
    %v9279 = vpop.f32.mrb[0].mxu0
    %v9280 = vadd.f32 0.0, %v9279
    %v9281 = vpop.f32.mrb[0].mxu0
    %9282 = vmatprep.mubr.bf16.mxu0 %v8995
    %9283 = vmatmul.mubr.bf16.gmra.mrb[0].mxu0 %v8994
    %v9284 = vpop.f32.mrb[0].mxu0
    %v9285 = vadd.f32 0.0, %v9284
    %v9286 = vpop.f32.mrb[0].mxu0
    %v9287 = vpop.f32.mrb[0].mxu0
    %v9288 = vadd.f32 0.0, %v9287
    %v9289 = vpop.f32.mrb[0].mxu0
    %9290 = vmatprep.mubr.bf16.mxu0 %v9003
    %9291 = vmatmul.mubr.bf16.gmra.mrb[0].mxu0 %v9002
    %v9292 = vpop.f32.mrb[0].mxu0
    %v9293 = vadd.f32 0.0, %v9292
    %v9294 = vpop.f32.mrb[0].mxu0
    %v9295 = vpop.f32.mrb[0].mxu0
    %v9296 = vadd.f32 0.0, %v9295
    %v9297 = vpop.f32.mrb[0].mxu0
    %9298 = vmatprep.mubr.bf16.mxu0 %v9011
    %9299 = vmatmul.mubr.bf16.gmra.mrb[0].mxu0 %v9010
    %v9300 = vpop.f32.mrb[0].mxu0
    %v9301 = vadd.f32 0.0, %v9300
    %v9302 = vpop.f32.mrb[0].mxu0
    %v9303 = vpop.f32.mrb[0].mxu0
    %v9304 = vadd.f32 0.0, %v9303
    %v9305 = vpop.f32.mrb[0].mxu0
    %9306 = vmatprep.mubr.bf16.mxu0 %v9019
    %9307 = vmatmul.mubr.bf16.gmra.mrb[0].mxu0 %v9018
    %v9308 = vpop.f32.mrb[0].mxu0
    %v9309 = vadd.f32 0.0, %v9308
    %v9310 = vpop.f32.mrb[0].mxu0
    %v9311 = vpop.f32.mrb[0].mxu0
    %v9312 = vadd.f32 0.0, %v9311
    %v9313 = vpop.f32.mrb[0].mxu0
    %9314 = vmatprep.mubr.bf16.mxu0 %v9027
    %9315 = vmatmul.mubr.bf16.gmra.mrb[0].mxu0 %v9026
    %v9316 = vpop.f32.mrb[0].mxu0
    %v9317 = vadd.f32 0.0, %v9316
    %v9318 = vpop.f32.mrb[0].mxu0
    %v9319 = vpop.f32.mrb[0].mxu0
    %v9320 = vadd.f32 0.0, %v9319
    %v9321 = vpop.f32.mrb[0].mxu0
    %9322 = vmatprep.mubr.bf16.mxu0 %v9035
    %9323 = vmatmul.mubr.bf16.gmra.mrb[0].mxu0 %v9034
    %v9324 = vpop.f32.mrb[0].mxu0
    %v9325 = vadd.f32 0.0, %v9324
    %v9326 = vpop.f32.mrb[0].mxu0
    %v9327 = vpop.f32.mrb[0].mxu0
    %v9328 = vadd.f32 0.0, %v9327
    %v9329 = vpop.f32.mrb[0].mxu0
    %9330 = vmatprep.mubr.bf16.mxu0 %v9043
    %9331 = vmatmul.mubr.bf16.gmra.mrb[0].mxu0 %v9042
    %v9332 = vpop.f32.mrb[0].mxu0
    %v9333 = vadd.f32 0.0, %v9332
    %v9334 = vpop.f32.mrb[0].mxu0
    %v9335 = vpop.f32.mrb[0].mxu0
    %v9336 = vadd.f32 0.0, %v9335
    %v9337 = vpop.f32.mrb[0].mxu0
    %9338 = vmatprep.mubr.bf16.mxu0 %v9051
    %9339 = vmatmul.mubr.bf16.gmra.mrb[0].mxu0 %v9050
    %v9340 = vpop.f32.mrb[0].mxu0
    %v9341 = vadd.f32 0.0, %v9340
    %v9342 = vpop.f32.mrb[0].mxu0
    %v9343 = vpop.f32.mrb[0].mxu0
    %v9344 = vadd.f32 0.0, %v9343
    %v9345 = vpop.f32.mrb[0].mxu0
    %9346 = vdwg.mxu0
    %9347 = vmatprep.subr.bf16.mxu0 0
    %9348 = vmatpush1.bf16.msra.mxu0 %v8498
    %9349 = vmatprep.subr.bf16.mxu0 0
    %9350 = vmatpush1.bf16.msra.mxu0 %v8499
    %9351 = vmatprep.subr.bf16.mxu0 0
    %9352 = vmatpush1.bf16.msra.mxu0 %v8500
    %9353 = vmatprep.subr.bf16.mxu0 0
    %9354 = vmatpush1.bf16.msra.mxu0 %v8501
    %9355 = vmatprep.subr.bf16.mxu0 0
    %9356 = vmatpush1.bf16.msra.mxu0 %v8502
    %9357 = vmatprep.subr.bf16.mxu0 0
    %9358 = vmatpush1.bf16.msra.mxu0 %v8503
    %9359 = vmatprep.subr.bf16.mxu0 0
    %9360 = vmatpush1.bf16.msra.mxu0 %v8504
    %9361 = vmatprep.subr.bf16.mxu0 0
    %9362 = vmatpush1.bf16.msra.mxu0 %v8505
    %9363 = vmatprep.subr.bf16.mxu0 0
    %9364 = vmatpush1.bf16.msra.mxu0 %v8506
    %9365 = vmatprep.subr.bf16.mxu0 0
    %9366 = vmatpush1.bf16.msra.mxu0 %v8507
    %9367 = vmatprep.subr.bf16.mxu0 0
    %9368 = vmatpush1.bf16.msra.mxu0 %v8508
    %9369 = vmatprep.subr.bf16.mxu0 0
    %9370 = vmatpush1.bf16.msra.mxu0 %v8509
    %9371 = vmatprep.subr.bf16.mxu0 0
    %9372 = vmatpush1.bf16.msra.mxu0 %v8510
    %9373 = vmatprep.subr.bf16.mxu0 0
    %9374 = vmatpush1.bf16.msra.mxu0 %v8511
    %9375 = vmatprep.subr.bf16.mxu0 0
    %9376 = vmatpush1.bf16.msra.mxu0 %v8512
    %9377 = vmatprep.subr.bf16.mxu0 0
    %9378 = vmatpush1.bf16.msra.mxu0 %v8513
    %9379 = vmatprep.mubr.bf16.mxu0 %v8933
    %9380 = vmatmul.mubr.bf16.gmra.mrb[0].mxu0 %v8932
    %v9381 = vpop.f32.mrb[0].mxu0
    %v9382 = vadd.f32 %v9221, %v9381
    %v9383 = vpop.f32.mrb[0].mxu0
    %v9384 = vpop.f32.mrb[0].mxu0
    %v9385 = vadd.f32 %v9224, %v9384
    %v9386 = vpop.f32.mrb[0].mxu0
    %9387 = vmatprep.mubr.bf16.mxu0 %v8941
    %9388 = vmatmul.mubr.bf16.gmra.mrb[0].mxu0 %v8940
    %v9389 = vpop.f32.mrb[0].mxu0
    %v9390 = vadd.f32 %v9229, %v9389
    %v9391 = vpop.f32.mrb[0].mxu0
    %v9392 = vpop.f32.mrb[0].mxu0
    %v9393 = vadd.f32 %v9232, %v9392
    %v9394 = vpop.f32.mrb[0].mxu0
    %9395 = vmatprep.mubr.bf16.mxu0 %v8949
    %9396 = vmatmul.mubr.bf16.gmra.mrb[0].mxu0 %v8948
    %v9397 = vpop.f32.mrb[0].mxu0
    %v9398 = vadd.f32 %v9237, %v9397
    %v9399 = vpop.f32.mrb[0].mxu0
    %v9400 = vpop.f32.mrb[0].mxu0
    %v9401 = vadd.f32 %v9240, %v9400
    %v9402 = vpop.f32.mrb[0].mxu0
    %9403 = vmatprep.mubr.bf16.mxu0 %v8957
    %9404 = vmatmul.mubr.bf16.gmra.mrb[0].mxu0 %v8956
    %v9405 = vpop.f32.mrb[0].mxu0
    %v9406 = vadd.f32 %v9245, %v9405
    %v9407 = vpop.f32.mrb[0].mxu0
    %v9408 = vpop.f32.mrb[0].mxu0
    %v9409 = vadd.f32 %v9248, %v9408
    %v9410 = vpop.f32.mrb[0].mxu0
    %9411 = vmatprep.mubr.bf16.mxu0 %v8965
    %9412 = vmatmul.mubr.bf16.gmra.mrb[0].mxu0 %v8964
    %v9413 = vpop.f32.mrb[0].mxu0
    %v9414 = vadd.f32 %v9253, %v9413
    %v9415 = vpop.f32.mrb[0].mxu0
    %v9416 = vpop.f32.mrb[0].mxu0
    %v9417 = vadd.f32 %v9256, %v9416
    %v9418 = vpop.f32.mrb[0].mxu0
    %9419 = vmatprep.mubr.bf16.mxu0 %v8973
    %9420 = vmatmul.mubr.bf16.gmra.mrb[0].mxu0 %v8972
    %v9421 = vpop.f32.mrb[0].mxu0
    %v9422 = vadd.f32 %v9261, %v9421
    %v9423 = vpop.f32.mrb[0].mxu0
    %v9424 = vpop.f32.mrb[0].mxu0
    %v9425 = vadd.f32 %v9264, %v9424
    %v9426 = vpop.f32.mrb[0].mxu0
    %9427 = vmatprep.mubr.bf16.mxu0 %v8981
    %9428 = vmatmul.mubr.bf16.gmra.mrb[0].mxu0 %v8980
    %v9429 = vpop.f32.mrb[0].mxu0
    %v9430 = vadd.f32 %v9269, %v9429
    %v9431 = vpop.f32.mrb[0].mxu0
    %v9432 = vpop.f32.mrb[0].mxu0
    %v9433 = vadd.f32 %v9272, %v9432
    %v9434 = vpop.f32.mrb[0].mxu0
    %9435 = vmatprep.mubr.bf16.mxu0 %v8989
    %9436 = vmatmul.mubr.bf16.gmra.mrb[0].mxu0 %v8988
    %v9437 = vpop.f32.mrb[0].mxu0
    %v9438 = vadd.f32 %v9277, %v9437
    %v9439 = vpop.f32.mrb[0].mxu0
    %v9440 = vpop.f32.mrb[0].mxu0
    %v9441 = vadd.f32 %v9280, %v9440
    %v9442 = vpop.f32.mrb[0].mxu0
    %9443 = vmatprep.mubr.bf16.mxu0 %v8997
    %9444 = vmatmul.mubr.bf16.gmra.mrb[0].mxu0 %v8996
    %v9445 = vpop.f32.mrb[0].mxu0
    %v9446 = vadd.f32 %v9285, %v9445
    %v9447 = vpop.f32.mrb[0].mxu0
    %v9448 = vpop.f32.mrb[0].mxu0
    %v9449 = vadd.f32 %v9288, %v9448
    %v9450 = vpop.f32.mrb[0].mxu0
    %9451 = vmatprep.mubr.bf16.mxu0 %v9005
    %9452 = vmatmul.mubr.bf16.gmra.mrb[0].mxu0 %v9004
    %v9453 = vpop.f32.mrb[0].mxu0
    %v9454 = vadd.f32 %v9293, %v9453
    %v9455 = vpop.f32.mrb[0].mxu0
    %v9456 = vpop.f32.mrb[0].mxu0
    %v9457 = vadd.f32 %v9296, %v9456
    %v9458 = vpop.f32.mrb[0].mxu0
    %9459 = vmatprep.mubr.bf16.mxu0 %v9013
    %9460 = vmatmul.mubr.bf16.gmra.mrb[0].mxu0 %v9012
    %v9461 = vpop.f32.mrb[0].mxu0
    %v9462 = vadd.f32 %v9301, %v9461
    %v9463 = vpop.f32.mrb[0].mxu0
    %v9464 = vpop.f32.mrb[0].mxu0
    %v9465 = vadd.f32 %v9304, %v9464
    %v9466 = vpop.f32.mrb[0].mxu0
    %9467 = vmatprep.mubr.bf16.mxu0 %v9021
    %9468 = vmatmul.mubr.bf16.gmra.mrb[0].mxu0 %v9020
    %v9469 = vpop.f32.mrb[0].mxu0
    %v9470 = vadd.f32 %v9309, %v9469
    %v9471 = vpop.f32.mrb[0].mxu0
    %v9472 = vpop.f32.mrb[0].mxu0
    %v9473 = vadd.f32 %v9312, %v9472
    %v9474 = vpop.f32.mrb[0].mxu0
    %9475 = vmatprep.mubr.bf16.mxu0 %v9029
    %9476 = vmatmul.mubr.bf16.gmra.mrb[0].mxu0 %v9028
    %v9477 = vpop.f32.mrb[0].mxu0
    %v9478 = vadd.f32 %v9317, %v9477
    %v9479 = vpop.f32.mrb[0].mxu0
    %v9480 = vpop.f32.mrb[0].mxu0
    %v9481 = vadd.f32 %v9320, %v9480
    %v9482 = vpop.f32.mrb[0].mxu0
    %9483 = vmatprep.mubr.bf16.mxu0 %v9037
    %9484 = vmatmul.mubr.bf16.gmra.mrb[0].mxu0 %v9036
    %v9485 = vpop.f32.mrb[0].mxu0
    %v9486 = vadd.f32 %v9325, %v9485
    %v9487 = vpop.f32.mrb[0].mxu0
    %v9488 = vpop.f32.mrb[0].mxu0
    %v9489 = vadd.f32 %v9328, %v9488
    %v9490 = vpop.f32.mrb[0].mxu0
    %9491 = vmatprep.mubr.bf16.mxu0 %v9045
    %9492 = vmatmul.mubr.bf16.gmra.mrb[0].mxu0 %v9044
    %v9493 = vpop.f32.mrb[0].mxu0
    %v9494 = vadd.f32 %v9333, %v9493
    %v9495 = vpop.f32.mrb[0].mxu0
    %v9496 = vpop.f32.mrb[0].mxu0
    %v9497 = vadd.f32 %v9336, %v9496
    %v9498 = vpop.f32.mrb[0].mxu0
    %9499 = vmatprep.mubr.bf16.mxu0 %v9053
    %9500 = vmatmul.mubr.bf16.gmra.mrb[0].mxu0 %v9052
    %v9501 = vpop.f32.mrb[0].mxu0
    %v9502 = vadd.f32 %v9341, %v9501
    %v9503 = vpop.f32.mrb[0].mxu0
    %v9504 = vpop.f32.mrb[0].mxu0
    %v9505 = vadd.f32 %v9344, %v9504
    %v9506 = vpop.f32.mrb[0].mxu0
    %9507 = vdwg.mxu0
    %9508 = vmatprep.subr.bf16.mxu0 0
    %9509 = vmatpush1.bf16.msra.mxu0 %v8514
    %9510 = vmatprep.subr.bf16.mxu0 0
    %9511 = vmatpush1.bf16.msra.mxu0 %v8515
    %9512 = vmatprep.subr.bf16.mxu0 0
    %9513 = vmatpush1.bf16.msra.mxu0 %v8516
    %9514 = vmatprep.subr.bf16.mxu0 0
    %9515 = vmatpush1.bf16.msra.mxu0 %v8517
    %9516 = vmatprep.subr.bf16.mxu0 0
    %9517 = vmatpush1.bf16.msra.mxu0 %v8518
    %9518 = vmatprep.subr.bf16.mxu0 0
    %9519 = vmatpush1.bf16.msra.mxu0 %v8519
    %9520 = vmatprep.subr.bf16.mxu0 0
    %9521 = vmatpush1.bf16.msra.mxu0 %v8520
    %9522 = vmatprep.subr.bf16.mxu0 0
    %9523 = vmatpush1.bf16.msra.mxu0 %v8521
    %9524 = vmatprep.subr.bf16.mxu0 0
    %9525 = vmatpush1.bf16.msra.mxu0 %v8522
    %9526 = vmatprep.subr.bf16.mxu0 0
    %9527 = vmatpush1.bf16.msra.mxu0 %v8523
    %9528 = vmatprep.subr.bf16.mxu0 0
    %9529 = vmatpush1.bf16.msra.mxu0 %v8524
    %9530 = vmatprep.subr.bf16.mxu0 0
    %9531 = vmatpush1.bf16.msra.mxu0 %v8525
    %9532 = vmatprep.subr.bf16.mxu0 0
    %9533 = vmatpush1.bf16.msra.mxu0 %v8526
    %9534 = vmatprep.subr.bf16.mxu0 0
    %9535 = vmatpush1.bf16.msra.mxu0 %v8527
    %9536 = vmatprep.subr.bf16.mxu0 0
    %9537 = vmatpush1.bf16.msra.mxu0 %v8528
    %9538 = vmatprep.subr.bf16.mxu0 0
    %9539 = vmatpush1.bf16.msra.mxu0 %v8529
    %9540 = vmatprep.mubr.bf16.mxu0 %v8935
    %9541 = vmatmul.mubr.bf16.gmra.mrb[0].mxu0 %v8934
    %v9542 = vpop.f32.mrb[0].mxu0
    %v9543 = vadd.f32 %v9382, %v9542
    %v9544 = vpop.f32.mrb[0].mxu0
    %v9545 = vpop.f32.mrb[0].mxu0
    %v9546 = vadd.f32 %v9385, %v9545
    %v9547 = vpop.f32.mrb[0].mxu0
    %9548 = vmatprep.mubr.bf16.mxu0 %v8943
    %9549 = vmatmul.mubr.bf16.gmra.mrb[0].mxu0 %v8942
    %v9550 = vpop.f32.mrb[0].mxu0
    %v9551 = vadd.f32 %v9390, %v9550
    %v9552 = vpop.f32.mrb[0].mxu0
    %v9553 = vpop.f32.mrb[0].mxu0
    %v9554 = vadd.f32 %v9393, %v9553
    %v9555 = vpop.f32.mrb[0].mxu0
    %9556 = vmatprep.mubr.bf16.mxu0 %v8951
    %9557 = vmatmul.mubr.bf16.gmra.mrb[0].mxu0 %v8950
    %v9558 = vpop.f32.mrb[0].mxu0
    %v9559 = vadd.f32 %v9398, %v9558
    %v9560 = vpop.f32.mrb[0].mxu0
    %v9561 = vpop.f32.mrb[0].mxu0
    %v9562 = vadd.f32 %v9401, %v9561
    %v9563 = vpop.f32.mrb[0].mxu0
    %9564 = vmatprep.mubr.bf16.mxu0 %v8959
    %9565 = vmatmul.mubr.bf16.gmra.mrb[0].mxu0 %v8958
    %v9566 = vpop.f32.mrb[0].mxu0
    %v9567 = vadd.f32 %v9406, %v9566
    %v9568 = vpop.f32.mrb[0].mxu0
    %v9569 = vpop.f32.mrb[0].mxu0
    %v9570 = vadd.f32 %v9409, %v9569
    %v9571 = vpop.f32.mrb[0].mxu0
    %9572 = vmatprep.mubr.bf16.mxu0 %v8967
    %9573 = vmatmul.mubr.bf16.gmra.mrb[0].mxu0 %v8966
    %v9574 = vpop.f32.mrb[0].mxu0
    %v9575 = vadd.f32 %v9414, %v9574
    %v9576 = vpop.f32.mrb[0].mxu0
    %v9577 = vpop.f32.mrb[0].mxu0
    %v9578 = vadd.f32 %v9417, %v9577
    %v9579 = vpop.f32.mrb[0].mxu0
    %9580 = vmatprep.mubr.bf16.mxu0 %v8975
    %9581 = vmatmul.mubr.bf16.gmra.mrb[0].mxu0 %v8974
    %v9582 = vpop.f32.mrb[0].mxu0
    %v9583 = vadd.f32 %v9422, %v9582
    %v9584 = vpop.f32.mrb[0].mxu0
    %v9585 = vpop.f32.mrb[0].mxu0
    %v9586 = vadd.f32 %v9425, %v9585
    %v9587 = vpop.f32.mrb[0].mxu0
    %9588 = vmatprep.mubr.bf16.mxu0 %v8983
    %9589 = vmatmul.mubr.bf16.gmra.mrb[0].mxu0 %v8982
    %v9590 = vpop.f32.mrb[0].mxu0
    %v9591 = vadd.f32 %v9430, %v9590
    %v9592 = vpop.f32.mrb[0].mxu0
    %v9593 = vpop.f32.mrb[0].mxu0
    %v9594 = vadd.f32 %v9433, %v9593
    %v9595 = vpop.f32.mrb[0].mxu0
    %9596 = vmatprep.mubr.bf16.mxu0 %v8991
    %9597 = vmatmul.mubr.bf16.gmra.mrb[0].mxu0 %v8990
    %v9598 = vpop.f32.mrb[0].mxu0
    %v9599 = vadd.f32 %v9438, %v9598
    %v9600 = vpop.f32.mrb[0].mxu0
    %v9601 = vpop.f32.mrb[0].mxu0
    %v9602 = vadd.f32 %v9441, %v9601
    %v9603 = vpop.f32.mrb[0].mxu0
    %9604 = vmatprep.mubr.bf16.mxu0 %v8999
    %9605 = vmatmul.mubr.bf16.gmra.mrb[0].mxu0 %v8998
    %v9606 = vpop.f32.mrb[0].mxu0
    %v9607 = vadd.f32 %v9446, %v9606
    %v9608 = vpop.f32.mrb[0].mxu0
    %v9609 = vpop.f32.mrb[0].mxu0
    %v9610 = vadd.f32 %v9449, %v9609
    %v9611 = vpop.f32.mrb[0].mxu0
    %9612 = vmatprep.mubr.bf16.mxu0 %v9007
    %9613 = vmatmul.mubr.bf16.gmra.mrb[0].mxu0 %v9006
    %v9614 = vpop.f32.mrb[0].mxu0
    %v9615 = vadd.f32 %v9454, %v9614
    %v9616 = vpop.f32.mrb[0].mxu0
    %v9617 = vpop.f32.mrb[0].mxu0
    %v9618 = vadd.f32 %v9457, %v9617
    %v9619 = vpop.f32.mrb[0].mxu0
    %9620 = vmatprep.mubr.bf16.mxu0 %v9015
    %9621 = vmatmul.mubr.bf16.gmra.mrb[0].mxu0 %v9014
    %v9622 = vpop.f32.mrb[0].mxu0
    %v9623 = vadd.f32 %v9462, %v9622
    %v9624 = vpop.f32.mrb[0].mxu0
    %v9625 = vpop.f32.mrb[0].mxu0
    %v9626 = vadd.f32 %v9465, %v9625
    %v9627 = vpop.f32.mrb[0].mxu0
    %9628 = vmatprep.mubr.bf16.mxu0 %v9023
    %9629 = vmatmul.mubr.bf16.gmra.mrb[0].mxu0 %v9022
    %v9630 = vpop.f32.mrb[0].mxu0
    %v9631 = vadd.f32 %v9470, %v9630
    %v9632 = vpop.f32.mrb[0].mxu0
    %v9633 = vpop.f32.mrb[0].mxu0
    %v9634 = vadd.f32 %v9473, %v9633
    %v9635 = vpop.f32.mrb[0].mxu0
    %9636 = vmatprep.mubr.bf16.mxu0 %v9031
    %9637 = vmatmul.mubr.bf16.gmra.mrb[0].mxu0 %v9030
    %v9638 = vpop.f32.mrb[0].mxu0
    %v9639 = vadd.f32 %v9478, %v9638
    %v9640 = vpop.f32.mrb[0].mxu0
    %v9641 = vpop.f32.mrb[0].mxu0
    %v9642 = vadd.f32 %v9481, %v9641
    %v9643 = vpop.f32.mrb[0].mxu0
    %9644 = vmatprep.mubr.bf16.mxu0 %v9039
    %9645 = vmatmul.mubr.bf16.gmra.mrb[0].mxu0 %v9038
    %v9646 = vpop.f32.mrb[0].mxu0
    %v9647 = vadd.f32 %v9486, %v9646
    %v9648 = vpop.f32.mrb[0].mxu0
    %v9649 = vpop.f32.mrb[0].mxu0
    %v9650 = vadd.f32 %v9489, %v9649
    %v9651 = vpop.f32.mrb[0].mxu0
    %9652 = vmatprep.mubr.bf16.mxu0 %v9047
    %9653 = vmatmul.mubr.bf16.gmra.mrb[0].mxu0 %v9046
    %v9654 = vpop.f32.mrb[0].mxu0
    %v9655 = vadd.f32 %v9494, %v9654
    %v9656 = vpop.f32.mrb[0].mxu0
    %v9657 = vpop.f32.mrb[0].mxu0
    %v9658 = vadd.f32 %v9497, %v9657
    %v9659 = vpop.f32.mrb[0].mxu0
    %9660 = vmatprep.mubr.bf16.mxu0 %v9055
    %9661 = vmatmul.mubr.bf16.gmra.mrb[0].mxu0 %v9054
    %v9662 = vpop.f32.mrb[0].mxu0
    %v9663 = vadd.f32 %v9502, %v9662
    %v9664 = vpop.f32.mrb[0].mxu0
    %v9665 = vpop.f32.mrb[0].mxu0
    %v9666 = vadd.f32 %v9505, %v9665
    %v9667 = vpop.f32.mrb[0].mxu0
    %9668 = vdwg.mxu0
    %9669 = vmatprep.subr.bf16.mxu0 0
    %9670 = vmatpush1.bf16.msra.mxu0 %v8530
    %9671 = vmatprep.subr.bf16.mxu0 0
    %9672 = vmatpush1.bf16.msra.mxu0 %v8531
    %9673 = vmatprep.subr.bf16.mxu0 0
    %9674 = vmatpush1.bf16.msra.mxu0 %v8532
    %9675 = vmatprep.subr.bf16.mxu0 0
    %9676 = vmatpush1.bf16.msra.mxu0 %v8533
    %9677 = vmatprep.subr.bf16.mxu0 0
    %9678 = vmatpush1.bf16.msra.mxu0 %v8534
    %9679 = vmatprep.subr.bf16.mxu0 0
    %9680 = vmatpush1.bf16.msra.mxu0 %v8535
    %9681 = vmatprep.subr.bf16.mxu0 0
    %9682 = vmatpush1.bf16.msra.mxu0 %v8536
    %9683 = vmatprep.subr.bf16.mxu0 0
    %9684 = vmatpush1.bf16.msra.mxu0 %v8537
    %9685 = vmatprep.subr.bf16.mxu0 0
    %9686 = vmatpush1.bf16.msra.mxu0 %v8538
    %9687 = vmatprep.subr.bf16.mxu0 0
    %9688 = vmatpush1.bf16.msra.mxu0 %v8539
    %9689 = vmatprep.subr.bf16.mxu0 0
    %9690 = vmatpush1.bf16.msra.mxu0 %v8540
    %9691 = vmatprep.subr.bf16.mxu0 0
    %9692 = vmatpush1.bf16.msra.mxu0 %v8541
    %9693 = vmatprep.subr.bf16.mxu0 0
    %9694 = vmatpush1.bf16.msra.mxu0 %v8542
    %9695 = vmatprep.subr.bf16.mxu0 0
    %9696 = vmatpush1.bf16.msra.mxu0 %v8543
    %9697 = vmatprep.subr.bf16.mxu0 0
    %9698 = vmatpush1.bf16.msra.mxu0 %v8544
    %9699 = vmatprep.subr.bf16.mxu0 0
    %9700 = vmatpush1.bf16.msra.mxu0 %v8545
    %9701 = vmatprep.mubr.bf16.mxu0 %v8937
    %9702 = vmatmul.mubr.bf16.gmra.mrb[0].mxu0 %v8936
    %v9703 = vpop.f32.mrb[0].mxu0
    %v9704 = vadd.f32 %v9543, %v9703
    %v9705 = vpop.f32.mrb[0].mxu0
    %v9706 = vpop.f32.mrb[0].mxu0
    %v9707 = vadd.f32 %v9546, %v9706
    %v9708 = vpop.f32.mrb[0].mxu0
    %9709 = vmatprep.mubr.bf16.mxu0 %v8945
    %9710 = vmatmul.mubr.bf16.gmra.mrb[0].mxu0 %v8944
    %v9711 = vpop.f32.mrb[0].mxu0
    %v9712 = vadd.f32 %v9551, %v9711
    %v9713 = vpop.f32.mrb[0].mxu0
    %v9714 = vpop.f32.mrb[0].mxu0
    %v9715 = vadd.f32 %v9554, %v9714
    %v9716 = vpop.f32.mrb[0].mxu0
    %9717 = vmatprep.mubr.bf16.mxu0 %v8953
    %9718 = vmatmul.mubr.bf16.gmra.mrb[0].mxu0 %v8952
    %v9719 = vpop.f32.mrb[0].mxu0
    %v9720 = vadd.f32 %v9559, %v9719
    %v9721 = vpop.f32.mrb[0].mxu0
    %v9722 = vpop.f32.mrb[0].mxu0
    %v9723 = vadd.f32 %v9562, %v9722
    %v9724 = vpop.f32.mrb[0].mxu0
    %9725 = vmatprep.mubr.bf16.mxu0 %v8961
    %9726 = vmatmul.mubr.bf16.gmra.mrb[0].mxu0 %v8960
    %v9727 = vpop.f32.mrb[0].mxu0
    %v9728 = vadd.f32 %v9567, %v9727
    %v9729 = vpop.f32.mrb[0].mxu0
    %v9730 = vpop.f32.mrb[0].mxu0
    %v9731 = vadd.f32 %v9570, %v9730
    %v9732 = vpop.f32.mrb[0].mxu0
    %9733 = vmatprep.mubr.bf16.mxu0 %v8969
    %9734 = vmatmul.mubr.bf16.gmra.mrb[0].mxu0 %v8968
    %v9735 = vpop.f32.mrb[0].mxu0
    %v9736 = vadd.f32 %v9575, %v9735
    %v9737 = vpop.f32.mrb[0].mxu0
    %v9738 = vpop.f32.mrb[0].mxu0
    %v9739 = vadd.f32 %v9578, %v9738
    %v9740 = vpop.f32.mrb[0].mxu0
    %9741 = vmatprep.mubr.bf16.mxu0 %v8977
    %9742 = vmatmul.mubr.bf16.gmra.mrb[0].mxu0 %v8976
    %v9743 = vpop.f32.mrb[0].mxu0
    %v9744 = vadd.f32 %v9583, %v9743
    %v9745 = vpop.f32.mrb[0].mxu0
    %v9746 = vpop.f32.mrb[0].mxu0
    %v9747 = vadd.f32 %v9586, %v9746
    %v9748 = vpop.f32.mrb[0].mxu0
    %9749 = vmatprep.mubr.bf16.mxu0 %v8985
    %9750 = vmatmul.mubr.bf16.gmra.mrb[0].mxu0 %v8984
    %v9751 = vpop.f32.mrb[0].mxu0
    %v9752 = vadd.f32 %v9591, %v9751
    %v9753 = vpop.f32.mrb[0].mxu0
    %v9754 = vpop.f32.mrb[0].mxu0
    %v9755 = vadd.f32 %v9594, %v9754
    %v9756 = vpop.f32.mrb[0].mxu0
    %9757 = vmatprep.mubr.bf16.mxu0 %v8993
    %9758 = vmatmul.mubr.bf16.gmra.mrb[0].mxu0 %v8992
    %v9759 = vpop.f32.mrb[0].mxu0
    %v9760 = vadd.f32 %v9599, %v9759
    %v9761 = vpop.f32.mrb[0].mxu0
    %v9762 = vpop.f32.mrb[0].mxu0
    %v9763 = vadd.f32 %v9602, %v9762
    %v9764 = vpop.f32.mrb[0].mxu0
    %9765 = vmatprep.mubr.bf16.mxu0 %v9001
    %9766 = vmatmul.mubr.bf16.gmra.mrb[0].mxu0 %v9000
    %v9767 = vpop.f32.mrb[0].mxu0
    %v9768 = vadd.f32 %v9607, %v9767
    %v9769 = vpop.f32.mrb[0].mxu0
    %v9770 = vpop.f32.mrb[0].mxu0
    %v9771 = vadd.f32 %v9610, %v9770
    %v9772 = vpop.f32.mrb[0].mxu0
    %9773 = vmatprep.mubr.bf16.mxu0 %v9009
    %9774 = vmatmul.mubr.bf16.gmra.mrb[0].mxu0 %v9008
    %v9775 = vpop.f32.mrb[0].mxu0
    %v9776 = vadd.f32 %v9615, %v9775
    %v9777 = vpop.f32.mrb[0].mxu0
    %v9778 = vpop.f32.mrb[0].mxu0
    %v9779 = vadd.f32 %v9618, %v9778
    %v9780 = vpop.f32.mrb[0].mxu0
    %9781 = vmatprep.mubr.bf16.mxu0 %v9017
    %9782 = vmatmul.mubr.bf16.gmra.mrb[0].mxu0 %v9016
    %v9783 = vpop.f32.mrb[0].mxu0
    %v9784 = vadd.f32 %v9623, %v9783
    %v9785 = vpop.f32.mrb[0].mxu0
    %v9786 = vpop.f32.mrb[0].mxu0
    %v9787 = vadd.f32 %v9626, %v9786
    %v9788 = vpop.f32.mrb[0].mxu0
    %9789 = vmatprep.mubr.bf16.mxu0 %v9025
    %9790 = vmatmul.mubr.bf16.gmra.mrb[0].mxu0 %v9024
    %v9791 = vpop.f32.mrb[0].mxu0
    %v9792 = vadd.f32 %v9631, %v9791
    %v9793 = vpop.f32.mrb[0].mxu0
    %v9794 = vpop.f32.mrb[0].mxu0
    %v9795 = vadd.f32 %v9634, %v9794
    %v9796 = vpop.f32.mrb[0].mxu0
    %9797 = vmatprep.mubr.bf16.mxu0 %v9033
    %9798 = vmatmul.mubr.bf16.gmra.mrb[0].mxu0 %v9032
    %v9799 = vpop.f32.mrb[0].mxu0
    %v9800 = vadd.f32 %v9639, %v9799
    %v9801 = vpop.f32.mrb[0].mxu0
    %v9802 = vpop.f32.mrb[0].mxu0
    %v9803 = vadd.f32 %v9642, %v9802
    %v9804 = vpop.f32.mrb[0].mxu0
    %9805 = vmatprep.mubr.bf16.mxu0 %v9041
    %9806 = vmatmul.mubr.bf16.gmra.mrb[0].mxu0 %v9040
    %v9807 = vpop.f32.mrb[0].mxu0
    %v9808 = vadd.f32 %v9647, %v9807
    %v9809 = vpop.f32.mrb[0].mxu0
    %v9810 = vpop.f32.mrb[0].mxu0
    %v9811 = vadd.f32 %v9650, %v9810
    %v9812 = vpop.f32.mrb[0].mxu0
    %9813 = vmatprep.mubr.bf16.mxu0 %v9049
    %9814 = vmatmul.mubr.bf16.gmra.mrb[0].mxu0 %v9048
    %v9815 = vpop.f32.mrb[0].mxu0
    %v9816 = vadd.f32 %v9655, %v9815
    %v9817 = vpop.f32.mrb[0].mxu0
    %v9818 = vpop.f32.mrb[0].mxu0
    %v9819 = vadd.f32 %v9658, %v9818
    %v9820 = vpop.f32.mrb[0].mxu0
    %9821 = vmatprep.mubr.bf16.mxu0 %v9057
    %9822 = vmatmul.mubr.bf16.gmra.mrb[0].mxu0 %v9056
    %v9823 = vpop.f32.mrb[0].mxu0
    %v9824 = vadd.f32 %v9663, %v9823
    %v9825 = vpop.f32.mrb[0].mxu0
    %v9826 = vpop.f32.mrb[0].mxu0
    %v9827 = vadd.f32 %v9666, %v9826
    %v9828 = vpop.f32.mrb[0].mxu0
    %9829 = vdwg.mxu0
    %v9830 = vadd.f32 %v9704, %v9707
    %v9831 = vadd.f32 %v9830, %v9712
    %v9832 = vadd.f32 %v9831, %v9715
    %v9833 = vadd.f32 %v9832, %v9720
    %v9834 = vadd.f32 %v9833, %v9723
    %v9835 = vadd.f32 %v9834, %v9728
    %v9836 = vadd.f32 %v9835, %v9731
    %9837 = vadd.xlane.f32.xlu0 %v9836
    %v9838 = vpop.xlane.xlu0 %9837
    %v9839 = vrot.slane %v9838, 4
    %v9840 = vadd.f32 %v9838, %v9839
    %v9841 = vrot.slane %v9840, 2
    %v9842 = vadd.f32 %v9840, %v9841
    %v9843 = vrot.slane %v9842, 1
    %v9844 = vadd.f32 %v9842, %v9843
    %s9845 = vtos %v9844
    %v9846 = vrcp.pop 8192.0
    %s9847 = vtos %v9846
    %s9848 = smul.f32 %s9845, %s9847
    %v9849 = vstv %s9848
    %v9850 = vsub.f32 %v9704, %v9849
    %v9851 = vsub.f32 %v9707, %v9849
    %v9852 = vsub.f32 %v9712, %v9849
    %v9853 = vsub.f32 %v9715, %v9849
    %v9854 = vsub.f32 %v9720, %v9849
    %v9855 = vsub.f32 %v9723, %v9849
    %v9856 = vsub.f32 %v9728, %v9849
    %v9857 = vsub.f32 %v9731, %v9849
    %v9858 = vmul.f32 %v9850, %v9850
    %v9859 = vmul.f32 %v9851, %v9851
    %v9860 = vmul.f32 %v9852, %v9852
    %v9861 = vmul.f32 %v9853, %v9853
    %v9862 = vmul.f32 %v9854, %v9854
    %v9863 = vmul.f32 %v9855, %v9855
    %v9864 = vmul.f32 %v9856, %v9856
    %v9865 = vmul.f32 %v9857, %v9857
    %v9866 = vadd.f32 %v9858, %v9859
    %v9867 = vadd.f32 %v9866, %v9860
    %v9868 = vadd.f32 %v9867, %v9861
    %v9869 = vadd.f32 %v9868, %v9862
    %v9870 = vadd.f32 %v9869, %v9863
    %v9871 = vadd.f32 %v9870, %v9864
    %v9872 = vadd.f32 %v9871, %v9865
    %9873 = vadd.xlane.f32.xlu0 %v9872
    %v9874 = vpop.xlane.xlu0 %9873
    %v9875 = vrot.slane %v9874, 4
    %v9876 = vadd.f32 %v9874, %v9875
    %v9877 = vrot.slane %v9876, 2
    %v9878 = vadd.f32 %v9876, %v9877
    %v9879 = vrot.slane %v9878, 1
    %v9880 = vadd.f32 %v9878, %v9879
    %s9881 = vtos %v9880
    %v9882 = vrcp.pop 8192.0
    %s9883 = vtos %v9882
    %s9884 = smul.f32 %s9881, %s9883
    %s9885 = sld [smem:[#allocation5 + $0x80]]
    %s9886 = sadd.f32 %s9884, 1e-05
    %v9887 = vstv %s9886
    %v9888 = vrsqrt.pop %v9887
    %s9889 = vtos %v9888
    %s9890 = smul.f32 %s9885, %s9889
    %s9891 = sld [smem:[#allocation8 + $0x80]]
    %s9892 = smul.f32 %s9848, %s9890
    %s9893 = ssub.f32 %s9891, %s9892
    %v9894 = vstv %s9890
    %v9895 = vmul.f32 %v9704, %v9894
    %v9896 = vmul.f32 %v9707, %v9894
    %v9897 = vmul.f32 %v9712, %v9894
    %v9898 = vmul.f32 %v9715, %v9894
    %v9899 = vmul.f32 %v9720, %v9894
    %v9900 = vmul.f32 %v9723, %v9894
    %v9901 = vmul.f32 %v9728, %v9894
    %v9902 = vmul.f32 %v9731, %v9894
    %v9903 = vstv %s9893
    %v9904 = vadd.f32 %v9895, %v9903
    %v9905 = vadd.f32 %v9896, %v9903
    %v9906 = vadd.f32 %v9897, %v9903
    %v9907 = vadd.f32 %v9898, %v9903
    %v9908 = vadd.f32 %v9899, %v9903
    %v9909 = vadd.f32 %v9900, %v9903
    %v9910 = vadd.f32 %v9901, %v9903
    %v9911 = vadd.f32 %v9902, %v9903
    %vm9912 = vcmp.gt.f32.partialorder %v9904, 0.0
    %vm9913 = vcmp.gt.f32.partialorder %v9905, 0.0
    %vm9914 = vcmp.gt.f32.partialorder %v9906, 0.0
    %vm9915 = vcmp.gt.f32.partialorder %v9907, 0.0
    %vm9916 = vcmp.gt.f32.partialorder %v9908, 0.0
    %vm9917 = vcmp.gt.f32.partialorder %v9909, 0.0
    %vm9918 = vcmp.gt.f32.partialorder %v9910, 0.0
    %vm9919 = vcmp.gt.f32.partialorder %v9911, 0.0
    %v9920 = vmul.f32 %v9904, 0.2
    %v9921 = vmul.f32 %v9905, 0.2
    %v9922 = vmul.f32 %v9906, 0.2
    %v9923 = vmul.f32 %v9907, 0.2
    %v9924 = vmul.f32 %v9908, 0.2
    %v9925 = vmul.f32 %v9909, 0.2
    %v9926 = vmul.f32 %v9910, 0.2
    %v9927 = vmul.f32 %v9911, 0.2
    %v9928 = vsel %vm9912, %v9904, %v9920
    %v9929 = vsel %vm9913, %v9905, %v9921
    %v9930 = vsel %vm9914, %v9906, %v9922
    %v9931 = vsel %vm9915, %v9907, %v9923
    %v9932 = vsel %vm9916, %v9908, %v9924
    %v9933 = vsel %vm9917, %v9909, %v9925
    %v9934 = vsel %vm9918, %v9910, %v9926
    %v9935 = vsel %vm9919, %v9911, %v9927
    %v9936 = vpack.c.bf16 %v9929, %v9928
    %v9937 = vpack.c.bf16 %v9931, %v9930
    %v9938 = vpack.c.bf16 %v9933, %v9932
    %v9939 = vpack.c.bf16 %v9935, %v9934
    %9940 = vst [vmem:[#allocation3] sm:$0xff] %v9936
    %9941 = vst [vmem:[#allocation3 + $0x8] sm:$0xff] %v9937
    %9942 = vst [vmem:[#allocation3 + $0x10] sm:$0xff] %v9938
    %9943 = vst [vmem:[#allocation3 + $0x18] sm:$0xff] %v9939
    %v9944 = vadd.f32 %v9736, %v9739
    %v9945 = vadd.f32 %v9944, %v9744
    %v9946 = vadd.f32 %v9945, %v9747
    %v9947 = vadd.f32 %v9946, %v9752
    %v9948 = vadd.f32 %v9947, %v9755
    %v9949 = vadd.f32 %v9948, %v9760
    %v9950 = vadd.f32 %v9949, %v9763
    %9951 = vadd.xlane.f32.xlu0 %v9950
    %v9952 = vpop.xlane.xlu0 %9951
    %v9953 = vrot.slane %v9952, 4
    %v9954 = vadd.f32 %v9952, %v9953
    %v9955 = vrot.slane %v9954, 2
    %v9956 = vadd.f32 %v9954, %v9955
    %v9957 = vrot.slane %v9956, 1
    %v9958 = vadd.f32 %v9956, %v9957
    %s9959 = vtos %v9958
    %v9960 = vrcp.pop 8192.0
    %s9961 = vtos %v9960
    %s9962 = smul.f32 %s9959, %s9961
    %v9963 = vstv %s9962
    %v9964 = vsub.f32 %v9736, %v9963
    %v9965 = vsub.f32 %v9739, %v9963
    %v9966 = vsub.f32 %v9744, %v9963
    %v9967 = vsub.f32 %v9747, %v9963
    %v9968 = vsub.f32 %v9752, %v9963
    %v9969 = vsub.f32 %v9755, %v9963
    %v9970 = vsub.f32 %v9760, %v9963
    %v9971 = vsub.f32 %v9763, %v9963
    %v9972 = vmul.f32 %v9964, %v9964
    %v9973 = vmul.f32 %v9965, %v9965
    %v9974 = vmul.f32 %v9966, %v9966
    %v9975 = vmul.f32 %v9967, %v9967
    %v9976 = vmul.f32 %v9968, %v9968
    %v9977 = vmul.f32 %v9969, %v9969
    %v9978 = vmul.f32 %v9970, %v9970
    %v9979 = vmul.f32 %v9971, %v9971
    %v9980 = vadd.f32 %v9972, %v9973
    %v9981 = vadd.f32 %v9980, %v9974
    %v9982 = vadd.f32 %v9981, %v9975
    %v9983 = vadd.f32 %v9982, %v9976
    %v9984 = vadd.f32 %v9983, %v9977
    %v9985 = vadd.f32 %v9984, %v9978
    %v9986 = vadd.f32 %v9985, %v9979
    %9987 = vadd.xlane.f32.xlu0 %v9986
    %v9988 = vpop.xlane.xlu0 %9987
    %v9989 = vrot.slane %v9988, 4
    %v9990 = vadd.f32 %v9988, %v9989
    %v9991 = vrot.slane %v9990, 2
    %v9992 = vadd.f32 %v9990, %v9991
    %v9993 = vrot.slane %v9992, 1
    %v9994 = vadd.f32 %v9992, %v9993
    %s9995 = vtos %v9994
    %v9996 = vrcp.pop 8192.0
    %s9997 = vtos %v9996
    %s9998 = smul.f32 %s9995, %s9997
    %s9999 = sld [smem:[#allocation5 + $0x81]]
    %s10000 = sadd.f32 %s9998, 1e-05
    %v10001 = vstv %s10000
    %v10002 = vrsqrt.pop %v10001
    %s10003 = vtos %v10002
    %s10004 = smul.f32 %s9999, %s10003
    %s10005 = sld [smem:[#allocation8 + $0x81]]
    %s10006 = smul.f32 %s9962, %s10004
    %s10007 = ssub.f32 %s10005, %s10006
    %v10008 = vstv %s10004
    %v10009 = vmul.f32 %v9736, %v10008
    %v10010 = vmul.f32 %v9739, %v10008
    %v10011 = vmul.f32 %v9744, %v10008
    %v10012 = vmul.f32 %v9747, %v10008
    %v10013 = vmul.f32 %v9752, %v10008
    %v10014 = vmul.f32 %v9755, %v10008
    %v10015 = vmul.f32 %v9760, %v10008
    %v10016 = vmul.f32 %v9763, %v10008
    %v10017 = vstv %s10007
    %v10018 = vadd.f32 %v10009, %v10017
    %v10019 = vadd.f32 %v10010, %v10017
    %v10020 = vadd.f32 %v10011, %v10017
    %v10021 = vadd.f32 %v10012, %v10017
    %v10022 = vadd.f32 %v10013, %v10017
    %v10023 = vadd.f32 %v10014, %v10017
    %v10024 = vadd.f32 %v10015, %v10017
    %v10025 = vadd.f32 %v10016, %v10017
    %vm10026 = vcmp.gt.f32.partialorder %v10018, 0.0
    %vm10027 = vcmp.gt.f32.partialorder %v10019, 0.0
    %vm10028 = vcmp.gt.f32.partialorder %v10020, 0.0
    %vm10029 = vcmp.gt.f32.partialorder %v10021, 0.0
    %vm10030 = vcmp.gt.f32.partialorder %v10022, 0.0
    %vm10031 = vcmp.gt.f32.partialorder %v10023, 0.0
    %vm10032 = vcmp.gt.f32.partialorder %v10024, 0.0
    %vm10033 = vcmp.gt.f32.partialorder %v10025, 0.0
    %v10034 = vmul.f32 %v10018, 0.2
    %v10035 = vmul.f32 %v10019, 0.2
    %v10036 = vmul.f32 %v10020, 0.2
    %v10037 = vmul.f32 %v10021, 0.2
    %v10038 = vmul.f32 %v10022, 0.2
    %v10039 = vmul.f32 %v10023, 0.2
    %v10040 = vmul.f32 %v10024, 0.2
    %v10041 = vmul.f32 %v10025, 0.2
    %v10042 = vsel %vm10026, %v10018, %v10034
    %v10043 = vsel %vm10027, %v10019, %v10035
    %v10044 = vsel %vm10028, %v10020, %v10036
    %v10045 = vsel %vm10029, %v10021, %v10037
    %v10046 = vsel %vm10030, %v10022, %v10038
    %v10047 = vsel %vm10031, %v10023, %v10039
    %v10048 = vsel %vm10032, %v10024, %v10040
    %v10049 = vsel %vm10033, %v10025, %v10041
    %v10050 = vpack.c.bf16 %v10043, %v10042
    %v10051 = vpack.c.bf16 %v10045, %v10044
    %v10052 = vpack.c.bf16 %v10047, %v10046
    %v10053 = vpack.c.bf16 %v10049, %v10048
    %10054 = vst [vmem:[#allocation3 + $0x20] sm:$0xff] %v10050
    %10055 = vst [vmem:[#allocation3 + $0x28] sm:$0xff] %v10051
    %10056 = vst [vmem:[#allocation3 + $0x30] sm:$0xff] %v10052
    %10057 = vst [vmem:[#allocation3 + $0x38] sm:$0xff] %v10053
    %v10058 = vadd.f32 %v9768, %v9771
    %v10059 = vadd.f32 %v10058, %v9776
    %v10060 = vadd.f32 %v10059, %v9779
    %v10061 = vadd.f32 %v10060, %v9784
    %v10062 = vadd.f32 %v10061, %v9787
    %v10063 = vadd.f32 %v10062, %v9792
    %v10064 = vadd.f32 %v10063, %v9795
    %10065 = vadd.xlane.f32.xlu0 %v10064
    %v10066 = vpop.xlane.xlu0 %10065
    %v10067 = vrot.slane %v10066, 4
    %v10068 = vadd.f32 %v10066, %v10067
    %v10069 = vrot.slane %v10068, 2
    %v10070 = vadd.f32 %v10068, %v10069
    %v10071 = vrot.slane %v10070, 1
    %v10072 = vadd.f32 %v10070, %v10071
    %s10073 = vtos %v10072
    %v10074 = vrcp.pop 8192.0
    %s10075 = vtos %v10074
    %s10076 = smul.f32 %s10073, %s10075
    %v10077 = vstv %s10076
    %v10078 = vsub.f32 %v9768, %v10077
    %v10079 = vsub.f32 %v9771, %v10077
    %v10080 = vsub.f32 %v9776, %v10077
    %v10081 = vsub.f32 %v9779, %v10077
    %v10082 = vsub.f32 %v9784, %v10077
    %v10083 = vsub.f32 %v9787, %v10077
    %v10084 = vsub.f32 %v9792, %v10077
    %v10085 = vsub.f32 %v9795, %v10077
    %v10086 = vmul.f32 %v10078, %v10078
    %v10087 = vmul.f32 %v10079, %v10079
    %v10088 = vmul.f32 %v10080, %v10080
    %v10089 = vmul.f32 %v10081, %v10081
    %v10090 = vmul.f32 %v10082, %v10082
    %v10091 = vmul.f32 %v10083, %v10083
    %v10092 = vmul.f32 %v10084, %v10084
    %v10093 = vmul.f32 %v10085, %v10085
    %v10094 = vadd.f32 %v10086, %v10087
    %v10095 = vadd.f32 %v10094, %v10088
    %v10096 = vadd.f32 %v10095, %v10089
    %v10097 = vadd.f32 %v10096, %v10090
    %v10098 = vadd.f32 %v10097, %v10091
    %v10099 = vadd.f32 %v10098, %v10092
    %v10100 = vadd.f32 %v10099, %v10093
    %10101 = vadd.xlane.f32.xlu0 %v10100
    %v10102 = vpop.xlane.xlu0 %10101
    %v10103 = vrot.slane %v10102, 4
    %v10104 = vadd.f32 %v10102, %v10103
    %v10105 = vrot.slane %v10104, 2
    %v10106 = vadd.f32 %v10104, %v10105
    %v10107 = vrot.slane %v10106, 1
    %v10108 = vadd.f32 %v10106, %v10107
    %s10109 = vtos %v10108
    %v10110 = vrcp.pop 8192.0
    %s10111 = vtos %v10110
    %s10112 = smul.f32 %s10109, %s10111
    %s10113 = sld [smem:[#allocation5 + $0x82]]
    %s10114 = sadd.f32 %s10112, 1e-05
    %v10115 = vstv %s10114
    %v10116 = vrsqrt.pop %v10115
    %s10117 = vtos %v10116
    %s10118 = smul.f32 %s10113, %s10117
    %s10119 = sld [smem:[#allocation8 + $0x82]]
    %s10120 = smul.f32 %s10076, %s10118
    %s10121 = ssub.f32 %s10119, %s10120
    %v10122 = vstv %s10118
    %v10123 = vmul.f32 %v9768, %v10122
    %v10124 = vmul.f32 %v9771, %v10122
    %v10125 = vmul.f32 %v9776, %v10122
    %v10126 = vmul.f32 %v9779, %v10122
    %v10127 = vmul.f32 %v9784, %v10122
    %v10128 = vmul.f32 %v9787, %v10122
    %v10129 = vmul.f32 %v9792, %v10122
    %v10130 = vmul.f32 %v9795, %v10122
    %v10131 = vstv %s10121
    %v10132 = vadd.f32 %v10123, %v10131
    %v10133 = vadd.f32 %v10124, %v10131
    %v10134 = vadd.f32 %v10125, %v10131
    %v10135 = vadd.f32 %v10126, %v10131
    %v10136 = vadd.f32 %v10127, %v10131
    %v10137 = vadd.f32 %v10128, %v10131
    %v10138 = vadd.f32 %v10129, %v10131
    %v10139 = vadd.f32 %v10130, %v10131
    %vm10140 = vcmp.gt.f32.partialorder %v10132, 0.0
    %vm10141 = vcmp.gt.f32.partialorder %v10133, 0.0
    %vm10142 = vcmp.gt.f32.partialorder %v10134, 0.0
    %vm10143 = vcmp.gt.f32.partialorder %v10135, 0.0
    %vm10144 = vcmp.gt.f32.partialorder %v10136, 0.0
    %vm10145 = vcmp.gt.f32.partialorder %v10137, 0.0
    %vm10146 = vcmp.gt.f32.partialorder %v10138, 0.0
    %vm10147 = vcmp.gt.f32.partialorder %v10139, 0.0
    %v10148 = vmul.f32 %v10132, 0.2
    %v10149 = vmul.f32 %v10133, 0.2
    %v10150 = vmul.f32 %v10134, 0.2
    %v10151 = vmul.f32 %v10135, 0.2
    %v10152 = vmul.f32 %v10136, 0.2
    %v10153 = vmul.f32 %v10137, 0.2
    %v10154 = vmul.f32 %v10138, 0.2
    %v10155 = vmul.f32 %v10139, 0.2
    %v10156 = vsel %vm10140, %v10132, %v10148
    %v10157 = vsel %vm10141, %v10133, %v10149
    %v10158 = vsel %vm10142, %v10134, %v10150
    %v10159 = vsel %vm10143, %v10135, %v10151
    %v10160 = vsel %vm10144, %v10136, %v10152
    %v10161 = vsel %vm10145, %v10137, %v10153
    %v10162 = vsel %vm10146, %v10138, %v10154
    %v10163 = vsel %vm10147, %v10139, %v10155
    %v10164 = vpack.c.bf16 %v10157, %v10156
    %v10165 = vpack.c.bf16 %v10159, %v10158
    %v10166 = vpack.c.bf16 %v10161, %v10160
    %v10167 = vpack.c.bf16 %v10163, %v10162
    %10168 = vst [vmem:[#allocation3 + $0x40] sm:$0xff] %v10164
    %10169 = vst [vmem:[#allocation3 + $0x48] sm:$0xff] %v10165
    %10170 = vst [vmem:[#allocation3 + $0x50] sm:$0xff] %v10166
    %10171 = vst [vmem:[#allocation3 + $0x58] sm:$0xff] %v10167
    %v10172 = vadd.f32 %v9800, %v9803
    %v10173 = vadd.f32 %v10172, %v9808
    %v10174 = vadd.f32 %v10173, %v9811
    %v10175 = vadd.f32 %v10174, %v9816
    %v10176 = vadd.f32 %v10175, %v9819
    %v10177 = vadd.f32 %v10176, %v9824
    %v10178 = vadd.f32 %v10177, %v9827
    %10179 = vadd.xlane.f32.xlu0 %v10178
    %v10180 = vpop.xlane.xlu0 %10179
    %v10181 = vrot.slane %v10180, 4
    %v10182 = vadd.f32 %v10180, %v10181
    %v10183 = vrot.slane %v10182, 2
    %v10184 = vadd.f32 %v10182, %v10183
    %v10185 = vrot.slane %v10184, 1
    %v10186 = vadd.f32 %v10184, %v10185
    %s10187 = vtos %v10186
    %v10188 = vrcp.pop 8192.0
    %s10189 = vtos %v10188
    %s10190 = smul.f32 %s10187, %s10189
    %v10191 = vstv %s10190
    %v10192 = vsub.f32 %v9800, %v10191
    %v10193 = vsub.f32 %v9803, %v10191
    %v10194 = vsub.f32 %v9808, %v10191
    %v10195 = vsub.f32 %v9811, %v10191
    %v10196 = vsub.f32 %v9816, %v10191
    %v10197 = vsub.f32 %v9819, %v10191
    %v10198 = vsub.f32 %v9824, %v10191
    %v10199 = vsub.f32 %v9827, %v10191
    %v10200 = vmul.f32 %v10192, %v10192
    %v10201 = vmul.f32 %v10193, %v10193
    %v10202 = vmul.f32 %v10194, %v10194
    %v10203 = vmul.f32 %v10195, %v10195
    %v10204 = vmul.f32 %v10196, %v10196
    %v10205 = vmul.f32 %v10197, %v10197
    %v10206 = vmul.f32 %v10198, %v10198
    %v10207 = vmul.f32 %v10199, %v10199
    %v10208 = vadd.f32 %v10200, %v10201
    %v10209 = vadd.f32 %v10208, %v10202
    %v10210 = vadd.f32 %v10209, %v10203
    %v10211 = vadd.f32 %v10210, %v10204
    %v10212 = vadd.f32 %v10211, %v10205
    %v10213 = vadd.f32 %v10212, %v10206
    %v10214 = vadd.f32 %v10213, %v10207
    %10215 = vadd.xlane.f32.xlu0 %v10214
    %v10216 = vpop.xlane.xlu0 %10215
    %v10217 = vrot.slane %v10216, 4
    %v10218 = vadd.f32 %v10216, %v10217
    %v10219 = vrot.slane %v10218, 2
    %v10220 = vadd.f32 %v10218, %v10219
    %v10221 = vrot.slane %v10220, 1
    %v10222 = vadd.f32 %v10220, %v10221
    %s10223 = vtos %v10222
    %v10224 = vrcp.pop 8192.0
    %s10225 = vtos %v10224
    %s10226 = smul.f32 %s10223, %s10225
    %s10227 = sld [smem:[#allocation5 + $0x83]]
    %s10228 = sadd.f32 %s10226, 1e-05
    %v10229 = vstv %s10228
    %v10230 = vrsqrt.pop %v10229
    %s10231 = vtos %v10230
    %s10232 = smul.f32 %s10227, %s10231
    %s10233 = sld [smem:[#allocation8 + $0x83]]
    %s10234 = smul.f32 %s10190, %s10232
    %s10235 = ssub.f32 %s10233, %s10234
    %v10236 = vstv %s10232
    %v10237 = vmul.f32 %v9800, %v10236
    %v10238 = vmul.f32 %v9803, %v10236
    %v10239 = vmul.f32 %v9808, %v10236
    %v10240 = vmul.f32 %v9811, %v10236
    %v10241 = vmul.f32 %v9816, %v10236
    %v10242 = vmul.f32 %v9819, %v10236
    %v10243 = vmul.f32 %v9824, %v10236
    %v10244 = vmul.f32 %v9827, %v10236
    %v10245 = vstv %s10235
    %v10246 = vadd.f32 %v10237, %v10245
    %v10247 = vadd.f32 %v10238, %v10245
    %v10248 = vadd.f32 %v10239, %v10245
    %v10249 = vadd.f32 %v10240, %v10245
    %v10250 = vadd.f32 %v10241, %v10245
    %v10251 = vadd.f32 %v10242, %v10245
    %v10252 = vadd.f32 %v10243, %v10245
    %v10253 = vadd.f32 %v10244, %v10245
    %vm10254 = vcmp.gt.f32.partialorder %v10246, 0.0
    %vm10255 = vcmp.gt.f32.partialorder %v10247, 0.0
    %vm10256 = vcmp.gt.f32.partialorder %v10248, 0.0
    %vm10257 = vcmp.gt.f32.partialorder %v10249, 0.0
    %vm10258 = vcmp.gt.f32.partialorder %v10250, 0.0
    %vm10259 = vcmp.gt.f32.partialorder %v10251, 0.0
    %vm10260 = vcmp.gt.f32.partialorder %v10252, 0.0
    %vm10261 = vcmp.gt.f32.partialorder %v10253, 0.0
    %v10262 = vmul.f32 %v10246, 0.2
    %v10263 = vmul.f32 %v10247, 0.2
    %v10264 = vmul.f32 %v10248, 0.2
    %v10265 = vmul.f32 %v10249, 0.2
    %v10266 = vmul.f32 %v10250, 0.2
    %v10267 = vmul.f32 %v10251, 0.2
    %v10268 = vmul.f32 %v10252, 0.2
    %v10269 = vmul.f32 %v10253, 0.2
    %v10270 = vsel %vm10254, %v10246, %v10262
    %v10271 = vsel %vm10255, %v10247, %v10263
    %v10272 = vsel %vm10256, %v10248, %v10264
    %v10273 = vsel %vm10257, %v10249, %v10265
    %v10274 = vsel %vm10258, %v10250, %v10266
    %v10275 = vsel %vm10259, %v10251, %v10267
    %v10276 = vsel %vm10260, %v10252, %v10268
    %v10277 = vsel %vm10261, %v10253, %v10269
    %v10278 = vpack.c.bf16 %v10271, %v10270
    %v10279 = vpack.c.bf16 %v10273, %v10272
    %v10280 = vpack.c.bf16 %v10275, %v10274
    %v10281 = vpack.c.bf16 %v10277, %v10276
    %10282 = vst [vmem:[#allocation3 + $0x60] sm:$0xff] %v10278
    %10283 = vst [vmem:[#allocation3 + $0x68] sm:$0xff] %v10279
    %10284 = vst [vmem:[#allocation3 + $0x70] sm:$0xff] %v10280
    %10285 = vst [vmem:[#allocation3 + $0x78] sm:$0xff] %v10281
    %v10286 = vld [vmem:[%s3] sm:$0xff]
    %v10287 = vld [vmem:[%s3 + $0x8] sm:$0xff]
    %v10288 = vld [vmem:[%s3 + $0x10] sm:$0xff]
    %v10289 = vld [vmem:[%s3 + $0x18] sm:$0xff]
    %v10290 = vld [vmem:[%s3 + $0x20] sm:$0xff]
    %v10291 = vld [vmem:[%s3 + $0x28] sm:$0xff]
    %v10292 = vld [vmem:[%s3 + $0x30] sm:$0xff]
    %v10293 = vld [vmem:[%s3 + $0x38] sm:$0xff]
    %v10294 = vld [vmem:[#allocation3] sm:$0xff]
    %v10295 = vld [vmem:[#allocation3 + $0x8] sm:$0xff]
    %v10296 = vld [vmem:[#allocation3 + $0x10] sm:$0xff]
    %v10297 = vld [vmem:[#allocation3 + $0x18] sm:$0xff]
    %v10298 = vld [vmem:[#allocation3 + $0x20] sm:$0xff]
    %v10299 = vld [vmem:[#allocation3 + $0x28] sm:$0xff]
    %v10300 = vld [vmem:[#allocation3 + $0x30] sm:$0xff]
    %v10301 = vld [vmem:[#allocation3 + $0x38] sm:$0xff]
    %v10302 = vld [vmem:[#allocation3 + $0x40] sm:$0xff]
    %v10303 = vld [vmem:[#allocation3 + $0x48] sm:$0xff]
    %v10304 = vld [vmem:[#allocation3 + $0x50] sm:$0xff]
    %v10305 = vld [vmem:[#allocation3 + $0x58] sm:$0xff]
    %v10306 = vld [vmem:[#allocation3 + $0x60] sm:$0xff]
    %v10307 = vld [vmem:[#allocation3 + $0x68] sm:$0xff]
    %v10308 = vld [vmem:[#allocation3 + $0x70] sm:$0xff]
    %v10309 = vld [vmem:[#allocation3 + $0x78] sm:$0xff]
    %v10318 = vunpack.c.l.b16 %v10286
    %v10319 = vunpack.c.h.b16 %v10286
    %v10320 = vunpack.c.l.b16 %v10287
    %v10321 = vunpack.c.h.b16 %v10287
    %v10322 = vunpack.c.l.b16 %v10288
    %v10323 = vunpack.c.h.b16 %v10288
    %v10324 = vunpack.c.l.b16 %v10289
    %v10325 = vunpack.c.h.b16 %v10289
    %v10326 = vunpack.c.l.b16 %v10290
    %v10327 = vunpack.c.h.b16 %v10290
    %v10328 = vunpack.c.l.b16 %v10291
    %v10329 = vunpack.c.h.b16 %v10291
    %v10330 = vunpack.c.l.b16 %v10292
    %v10331 = vunpack.c.h.b16 %v10292
    %v10332 = vunpack.c.l.b16 %v10293
    %v10333 = vunpack.c.h.b16 %v10293
    %v10334 = vpack.c.b16 %v10320, %v10318
    %v10335 = vpack.c.b16 %v10321, %v10319
    %v10336 = vpack.c.b16 %v10324, %v10322
    %v10337 = vpack.c.b16 %v10325, %v10323
    %v10338 = vpack.c.b16 %v10328, %v10326
    %v10339 = vpack.c.b16 %v10329, %v10327
    %v10340 = vpack.c.b16 %v10332, %v10330
    %v10341 = vpack.c.b16 %v10333, %v10331
    %10350 = vmatprep.subr.bf16.mxu0 0
    %10351 = vmatpush1.bf16.msra.mxu0 %v10294
    %10352 = vmatprep.subr.bf16.mxu0 0
    %10353 = vmatpush1.bf16.msra.mxu0 %v10295
    %10354 = vmatprep.subr.bf16.mxu0 0
    %10355 = vmatpush1.bf16.msra.mxu0 %v10296
    %10356 = vmatprep.subr.bf16.mxu0 0
    %10357 = vmatpush1.bf16.msra.mxu0 %v10297
    %10358 = vmatprep.subr.bf16.mxu0 0
    %10359 = vmatpush1.bf16.msra.mxu0 %v10298
    %10360 = vmatprep.subr.bf16.mxu0 0
    %10361 = vmatpush1.bf16.msra.mxu0 %v10299
    %10362 = vmatprep.subr.bf16.mxu0 0
    %10363 = vmatpush1.bf16.msra.mxu0 %v10300
    %10364 = vmatprep.subr.bf16.mxu0 0
    %10365 = vmatpush1.bf16.msra.mxu0 %v10301
    %10366 = vmatprep.subr.bf16.mxu0 0
    %10367 = vmatpush1.bf16.msra.mxu0 %v10302
    %10368 = vmatprep.subr.bf16.mxu0 0
    %10369 = vmatpush1.bf16.msra.mxu0 %v10303
    %10370 = vmatprep.subr.bf16.mxu0 0
    %10371 = vmatpush1.bf16.msra.mxu0 %v10304
    %10372 = vmatprep.subr.bf16.mxu0 0
    %10373 = vmatpush1.bf16.msra.mxu0 %v10305
    %10374 = vmatprep.subr.bf16.mxu0 0
    %10375 = vmatpush1.bf16.msra.mxu0 %v10306
    %10376 = vmatprep.subr.bf16.mxu0 0
    %10377 = vmatpush1.bf16.msra.mxu0 %v10307
    %10378 = vmatprep.subr.bf16.mxu0 0
    %10379 = vmatpush1.bf16.msra.mxu0 %v10308
    %10380 = vmatprep.subr.bf16.mxu0 0
    %10381 = vmatpush1.bf16.msra.mxu0 %v10309
    %10382 = vmatprep.mubr.bf16.mxu0 %v10335
    %10383 = vmatmul.mubr.bf16.gmra.mrb[0].mxu0 %v10334
    %v10384 = vpop.f32.mrb[0].mxu0
    %v10385 = vadd.f32 0.0, %v10384
    %v10386 = vpop.f32.mrb[0].mxu0
    %v10387 = vpop.f32.mrb[0].mxu0
    %v10388 = vadd.f32 0.0, %v10387
    %v10389 = vpop.f32.mrb[0].mxu0
    %10390 = vmatprep.mubr.bf16.mxu0 %v10337
    %10391 = vmatmul.mubr.bf16.gmra.mrb[0].mxu0 %v10336
    %v10392 = vpop.f32.mrb[0].mxu0
    %v10393 = vadd.f32 0.0, %v10392
    %v10394 = vpop.f32.mrb[0].mxu0
    %v10395 = vpop.f32.mrb[0].mxu0
    %v10396 = vadd.f32 0.0, %v10395
    %v10397 = vpop.f32.mrb[0].mxu0
    %10398 = vmatprep.mubr.bf16.mxu0 %v10339
    %10399 = vmatmul.mubr.bf16.gmra.mrb[0].mxu0 %v10338
    %v10400 = vpop.f32.mrb[0].mxu0
    %v10401 = vadd.f32 0.0, %v10400
    %v10402 = vpop.f32.mrb[0].mxu0
    %v10403 = vpop.f32.mrb[0].mxu0
    %v10404 = vadd.f32 0.0, %v10403
    %v10405 = vpop.f32.mrb[0].mxu0
    %10406 = vmatprep.mubr.bf16.mxu0 %v10341
    %10407 = vmatmul.mubr.bf16.gmra.mrb[0].mxu0 %v10340
    %v10408 = vpop.f32.mrb[0].mxu0
    %v10409 = vadd.f32 0.0, %v10408
    %v10410 = vpop.f32.mrb[0].mxu0
    %v10411 = vpop.f32.mrb[0].mxu0
    %v10412 = vadd.f32 0.0, %v10411
    %v10413 = vpop.f32.mrb[0].mxu0
    %10414 = vdwg.mxu0
    %v10415 = vadd.f32 %v10385, %v10388
    %10416 = vadd.xlane.f32.xlu0 %v10415
    %v10417 = vpop.xlane.xlu0 %10416
    %v10418 = vrot.slane %v10417, 4
    %v10419 = vadd.f32 %v10417, %v10418
    %v10420 = vrot.slane %v10419, 2
    %v10421 = vadd.f32 %v10419, %v10420
    %v10422 = vrot.slane %v10421, 1
    %v10423 = vadd.f32 %v10421, %v10422
    %s10424 = vtos %v10423
    %v10425 = vrcp.pop 2048.0
    %s10426 = vtos %v10425
    %s10427 = smul.f32 %s10424, %s10426
    %v10428 = vstv %s10427
    %v10429 = vsub.f32 %v10385, %v10428
    %v10430 = vsub.f32 %v10388, %v10428
    %v10431 = vmul.f32 %v10429, %v10429
    %v10432 = vmul.f32 %v10430, %v10430
    %v10433 = vadd.f32 %v10431, %v10432
    %10434 = vadd.xlane.f32.xlu0 %v10433
    %v10435 = vpop.xlane.xlu0 %10434
    %v10436 = vrot.slane %v10435, 4
    %v10437 = vadd.f32 %v10435, %v10436
    %v10438 = vrot.slane %v10437, 2
    %v10439 = vadd.f32 %v10437, %v10438
    %v10440 = vrot.slane %v10439, 1
    %v10441 = vadd.f32 %v10439, %v10440
    %s10442 = vtos %v10441
    %v10443 = vrcp.pop 2048.0
    %s10444 = vtos %v10443
    %s10445 = smul.f32 %s10442, %s10444
    %s10446 = sld [smem:[#allocation5 + $0x100]]
    %s10447 = sadd.f32 %s10445, 1e-05
    %v10448 = vstv %s10447
    %v10449 = vrsqrt.pop %v10448
    %s10450 = vtos %v10449
    %s10451 = smul.f32 %s10446, %s10450
    %s10452 = sld [smem:[#allocation8 + $0x100]]
    %s10453 = smul.f32 %s10427, %s10451
    %s10454 = ssub.f32 %s10452, %s10453
    %v10455 = vstv %s10451
    %v10456 = vmul.f32 %v10385, %v10455
    %v10457 = vmul.f32 %v10388, %v10455
    %v10458 = vstv %s10454
    %v10459 = vadd.f32 %v10456, %v10458
    %v10460 = vadd.f32 %v10457, %v10458
    %vm10461 = vcmp.gt.f32.partialorder %v10459, 0.0
    %vm10462 = vcmp.gt.f32.partialorder %v10460, 0.0
    %v10463 = vmul.f32 %v10459, 0.2
    %v10464 = vmul.f32 %v10460, 0.2
    %v10465 = vsel %vm10461, %v10459, %v10463
    %v10466 = vsel %vm10462, %v10460, %v10464
    %v10467 = vpack.c.bf16 %v10466, %v10465
    %10468 = vst [vmem:[#allocation4] sm:$0xff] %v10467
    %v10469 = vadd.f32 %v10393, %v10396
    %10470 = vadd.xlane.f32.xlu0 %v10469
    %v10471 = vpop.xlane.xlu0 %10470
    %v10472 = vrot.slane %v10471, 4
    %v10473 = vadd.f32 %v10471, %v10472
    %v10474 = vrot.slane %v10473, 2
    %v10475 = vadd.f32 %v10473, %v10474
    %v10476 = vrot.slane %v10475, 1
    %v10477 = vadd.f32 %v10475, %v10476
    %s10478 = vtos %v10477
    %v10479 = vrcp.pop 2048.0
    %s10480 = vtos %v10479
    %s10481 = smul.f32 %s10478, %s10480
    %v10482 = vstv %s10481
    %v10483 = vsub.f32 %v10393, %v10482
    %v10484 = vsub.f32 %v10396, %v10482
    %v10485 = vmul.f32 %v10483, %v10483
    %v10486 = vmul.f32 %v10484, %v10484
    %v10487 = vadd.f32 %v10485, %v10486
    %10488 = vadd.xlane.f32.xlu0 %v10487
    %v10489 = vpop.xlane.xlu0 %10488
    %v10490 = vrot.slane %v10489, 4
    %v10491 = vadd.f32 %v10489, %v10490
    %v10492 = vrot.slane %v10491, 2
    %v10493 = vadd.f32 %v10491, %v10492
    %v10494 = vrot.slane %v10493, 1
    %v10495 = vadd.f32 %v10493, %v10494
    %s10496 = vtos %v10495
    %v10497 = vrcp.pop 2048.0
    %s10498 = vtos %v10497
    %s10499 = smul.f32 %s10496, %s10498
    %s10500 = sld [smem:[#allocation5 + $0x101]]
    %s10501 = sadd.f32 %s10499, 1e-05
    %v10502 = vstv %s10501
    %v10503 = vrsqrt.pop %v10502
    %s10504 = vtos %v10503
    %s10505 = smul.f32 %s10500, %s10504
    %s10506 = sld [smem:[#allocation8 + $0x101]]
    %s10507 = smul.f32 %s10481, %s10505
    %s10508 = ssub.f32 %s10506, %s10507
    %v10509 = vstv %s10505
    %v10510 = vmul.f32 %v10393, %v10509
    %v10511 = vmul.f32 %v10396, %v10509
    %v10512 = vstv %s10508
    %v10513 = vadd.f32 %v10510, %v10512
    %v10514 = vadd.f32 %v10511, %v10512
    %vm10515 = vcmp.gt.f32.partialorder %v10513, 0.0
    %vm10516 = vcmp.gt.f32.partialorder %v10514, 0.0
    %v10517 = vmul.f32 %v10513, 0.2
    %v10518 = vmul.f32 %v10514, 0.2
    %v10519 = vsel %vm10515, %v10513, %v10517
    %v10520 = vsel %vm10516, %v10514, %v10518
    %v10521 = vpack.c.bf16 %v10520, %v10519
    %10522 = vst [vmem:[#allocation4 + $0x8] sm:$0xff] %v10521
    %v10523 = vadd.f32 %v10401, %v10404
    %10524 = vadd.xlane.f32.xlu0 %v10523
    %v10525 = vpop.xlane.xlu0 %10524
    %v10526 = vrot.slane %v10525, 4
    %v10527 = vadd.f32 %v10525, %v10526
    %v10528 = vrot.slane %v10527, 2
    %v10529 = vadd.f32 %v10527, %v10528
    %v10530 = vrot.slane %v10529, 1
    %v10531 = vadd.f32 %v10529, %v10530
    %s10532 = vtos %v10531
    %v10533 = vrcp.pop 2048.0
    %s10534 = vtos %v10533
    %s10535 = smul.f32 %s10532, %s10534
    %v10536 = vstv %s10535
    %v10537 = vsub.f32 %v10401, %v10536
    %v10538 = vsub.f32 %v10404, %v10536
    %v10539 = vmul.f32 %v10537, %v10537
    %v10540 = vmul.f32 %v10538, %v10538
    %v10541 = vadd.f32 %v10539, %v10540
    %10542 = vadd.xlane.f32.xlu0 %v10541
    %v10543 = vpop.xlane.xlu0 %10542
    %v10544 = vrot.slane %v10543, 4
    %v10545 = vadd.f32 %v10543, %v10544
    %v10546 = vrot.slane %v10545, 2
    %v10547 = vadd.f32 %v10545, %v10546
    %v10548 = vrot.slane %v10547, 1
    %v10549 = vadd.f32 %v10547, %v10548
    %s10550 = vtos %v10549
    %v10551 = vrcp.pop 2048.0
    %s10552 = vtos %v10551
    %s10553 = smul.f32 %s10550, %s10552
    %s10554 = sld [smem:[#allocation5 + $0x102]]
    %s10555 = sadd.f32 %s10553, 1e-05
    %v10556 = vstv %s10555
    %v10557 = vrsqrt.pop %v10556
    %s10558 = vtos %v10557
    %s10559 = smul.f32 %s10554, %s10558
    %s10560 = sld [smem:[#allocation8 + $0x102]]
    %s10561 = smul.f32 %s10535, %s10559
    %s10562 = ssub.f32 %s10560, %s10561
    %v10563 = vstv %s10559
    %v10564 = vmul.f32 %v10401, %v10563
    %v10565 = vmul.f32 %v10404, %v10563
    %v10566 = vstv %s10562
    %v10567 = vadd.f32 %v10564, %v10566
    %v10568 = vadd.f32 %v10565, %v10566
    %vm10569 = vcmp.gt.f32.partialorder %v10567, 0.0
    %vm10570 = vcmp.gt.f32.partialorder %v10568, 0.0
    %v10571 = vmul.f32 %v10567, 0.2
    %v10572 = vmul.f32 %v10568, 0.2
    %v10573 = vsel %vm10569, %v10567, %v10571
    %v10574 = vsel %vm10570, %v10568, %v10572
    %v10575 = vpack.c.bf16 %v10574, %v10573
    %10576 = vst [vmem:[#allocation4 + $0x10] sm:$0xff] %v10575
    %v10577 = vadd.f32 %v10409, %v10412
    %10578 = vadd.xlane.f32.xlu0 %v10577
    %v10579 = vpop.xlane.xlu0 %10578
    %v10580 = vrot.slane %v10579, 4
    %v10581 = vadd.f32 %v10579, %v10580
    %v10582 = vrot.slane %v10581, 2
    %v10583 = vadd.f32 %v10581, %v10582
    %v10584 = vrot.slane %v10583, 1
    %v10585 = vadd.f32 %v10583, %v10584
    %s10586 = vtos %v10585
    %v10587 = vrcp.pop 2048.0
    %s10588 = vtos %v10587
    %s10589 = smul.f32 %s10586, %s10588
    %v10590 = vstv %s10589
    %v10591 = vsub.f32 %v10409, %v10590
    %v10592 = vsub.f32 %v10412, %v10590
    %v10593 = vmul.f32 %v10591, %v10591
    %v10594 = vmul.f32 %v10592, %v10592
    %v10595 = vadd.f32 %v10593, %v10594
    %10596 = vadd.xlane.f32.xlu0 %v10595
    %v10597 = vpop.xlane.xlu0 %10596
    %v10598 = vrot.slane %v10597, 4
    %v10599 = vadd.f32 %v10597, %v10598
    %v10600 = vrot.slane %v10599, 2
    %v10601 = vadd.f32 %v10599, %v10600
    %v10602 = vrot.slane %v10601, 1
    %v10603 = vadd.f32 %v10601, %v10602
    %s10604 = vtos %v10603
    %v10605 = vrcp.pop 2048.0
    %s10606 = vtos %v10605
    %s10607 = smul.f32 %s10604, %s10606
    %s10608 = sld [smem:[#allocation5 + $0x103]]
    %s10609 = sadd.f32 %s10607, 1e-05
    %v10610 = vstv %s10609
    %v10611 = vrsqrt.pop %v10610
    %s10612 = vtos %v10611
    %s10613 = smul.f32 %s10608, %s10612
    %s10614 = sld [smem:[#allocation8 + $0x103]]
    %s10615 = smul.f32 %s10589, %s10613
    %s10616 = ssub.f32 %s10614, %s10615
    %v10617 = vstv %s10613
    %v10618 = vmul.f32 %v10409, %v10617
    %v10619 = vmul.f32 %v10412, %v10617
    %v10620 = vstv %s10616
    %v10621 = vadd.f32 %v10618, %v10620
    %v10622 = vadd.f32 %v10619, %v10620
    %vm10623 = vcmp.gt.f32.partialorder %v10621, 0.0
    %vm10624 = vcmp.gt.f32.partialorder %v10622, 0.0
    %v10625 = vmul.f32 %v10621, 0.2
    %v10626 = vmul.f32 %v10622, 0.2
    %v10627 = vsel %vm10623, %v10621, %v10625
    %v10628 = vsel %vm10624, %v10622, %v10626
    %v10629 = vpack.c.bf16 %v10628, %v10627
    %10630 = vst [vmem:[#allocation4 + $0x18] sm:$0xff] %v10629
    %v10631 = vld [vmem:[%s4] sm:$0xf]
    %v10632 = vld [vmem:[#allocation4] sm:$0xff]
    %v10633 = vld [vmem:[#allocation4 + $0x8] sm:$0xff]
    %v10634 = vld [vmem:[#allocation4 + $0x10] sm:$0xff]
    %v10635 = vld [vmem:[#allocation4 + $0x18] sm:$0xff]
    %vm10636 = vcmask 523264
    %v10638 = vsel %vm10636, %v10631, 0
    %10640 = vmatprep.subr.bf16.mxu0 0
    %10641 = vmatpush1.bf16.msra.mxu0 %v10632
    %10642 = vmatprep.subr.bf16.mxu0 0
    %10643 = vmatpush1.bf16.msra.mxu0 %v10633
    %10644 = vmatprep.subr.bf16.mxu0 0
    %10645 = vmatpush1.bf16.msra.mxu0 %v10634
    %10646 = vmatprep.subr.bf16.mxu0 0
    %10647 = vmatpush1.bf16.msra.mxu0 %v10635
    %10648 = vmatprep.subr.bf16.mxu0 0
    %10649 = vmatpush1.bf16.msra.mxu0 0
    %10650 = vmatprep.subr.bf16.mxu0 0
    %10651 = vmatpush1.bf16.msra.mxu0 0
    %10652 = vmatprep.subr.bf16.mxu0 0
    %10653 = vmatpush1.bf16.msra.mxu0 0
    %10654 = vmatprep.subr.bf16.mxu0 0
    %10655 = vmatpush1.bf16.msra.mxu0 0
    %10656 = vmatprep.subr.bf16.mxu0 0
    %10657 = vmatpush1.bf16.msra.mxu0 0
    %10658 = vmatprep.subr.bf16.mxu0 0
    %10659 = vmatpush1.bf16.msra.mxu0 0
    %10660 = vmatprep.subr.bf16.mxu0 0
    %10661 = vmatpush1.bf16.msra.mxu0 0
    %10662 = vmatprep.subr.bf16.mxu0 0
    %10663 = vmatpush1.bf16.msra.mxu0 0
    %10664 = vmatprep.subr.bf16.mxu0 0
    %10665 = vmatpush1.bf16.msra.mxu0 0
    %10666 = vmatprep.subr.bf16.mxu0 0
    %10667 = vmatpush1.bf16.msra.mxu0 0
    %10668 = vmatprep.subr.bf16.mxu0 0
    %10669 = vmatpush1.bf16.msra.mxu0 0
    %10670 = vmatprep.subr.bf16.mxu0 0
    %10671 = vmatpush1.bf16.msra.mxu0 0
    %10672 = vmatprep.mubr.bf16.mxu0 0
    %10673 = vmatmul.mubr.bf16.gmra.mrb[0].mxu0 %v10638
    %v10674 = vpop.f32.mrb[0].mxu0
    %v10675 = vadd.f32 0.0, %v10674
    %v10676 = vpop.f32.mrb[0].mxu0
    %v10677 = vpop.f32.mrb[0].mxu0
    %v10678 = vpop.f32.mrb[0].mxu0
    %10679 = vdwg.mxu0
    %v10680 = vxor.u32 %v10675, 2147483648
    %v10681 = vmul.f32 %v10680, 1.442695
    %v10682 = vpow.pop %v10681
    %v10683 = vadd.f32 %v10682, 1.0
    %v10684 = vrcp.pop %v10683
    %v10685 = vmul.f32 1.0, %v10684
    %10686 = vst [vmem:[#allocation10] sm:$0x1] %v10685
    // Predicated region
    $region38: #{discr_forward.1} parent=1 // pred_check
      _
    $region39: #{discr_forward.1} parent=1 // pred_check_branch
      %10688 = sbr.rel (0) target = $region41
    $region40: #{discr_forward.1} parent=1 // pred_region
      %s10690 = ssub.s32 16, 16
      %10691 = vsyncadd [#allocation6], %s10690
      %s10693 = sshll.u32 [#allocation10], 4
      %s10694 = int_to_ptr.vmem [resolvable:$true] %s10693
      %10696 = dma.vmem_to_hbm [thread:$0]  %s10694, 16, %s7, [#allocation6]
    $region41: #{discr_forward.1} parent=1 // pred_fallthru
      _
    // Predicated region
    $region42: #{discr_forward.1} parent=1 // pred_check
      _
    $region43: #{discr_forward.1} parent=1 // pred_check_branch
      %10698 = sbr.rel (0) target = $region45
    $region44: #{discr_forward.1} parent=1 // pred_region
      %10699 = dma.done [#allocation6], 16
    $region45: #{discr_forward.1} parent=1 // pred_fallthru
      _
    %10700 = vsyncpa [#allocation6], 1
    %10701 = vsyncpa [#allocation7], 1
    %10702 = vsyncpa [#allocation9], 1

</llo_original>
